<compile_context>
chip_gen: v6e
topology: v6e:2x2x1
jax: 0.10.0
libtpu: 0.0.40
codegen_flags: <defaults>
</compile_context>

<pallas_src>
import jax
import jax.numpy as jnp
from jax.experimental import pallas as pl
from jax.experimental.pallas import tpu as pltpu


def _silu(z):
    return z * jax.nn.sigmoid(z)


# ---------------------------------------------------------------- kernel ----

def egnn_fused_kernel(rc_ref, rt_ref, h0_ref, x_ref, ea1_ref,
                      emb_w_ref, emb_b_ref,
                      w1sd_ref, w1aux_ref, w2_ref, b2_ref,
                      wn1_ref, wn2_ref, bn2_ref,
                      nd_w1_ref, nd_b1_ref, nd_w2_ref, nd_b2_ref,
                      gd_w1_ref, gd_b1_ref, gd_w2_ref, gd_b2_ref,
                      out_ref, hsd_scr):
    f32 = jnp.float32
    n = h0_ref.shape[0]          # nodes
    hdim = w2_ref.shape[-1]      # hidden
    n_layers = w2_ref.shape[0]

    # one-hot gather matrices are stored bf16 (exact 0/1); upcast once.
    rc = rc_ref[...].astype(f32)           # [E, 2N] = [one_hot(row) | one_hot(col)]
    rt = rt_ref[...].astype(f32)           # [N, E]  = one_hot(row)^T
    h0 = h0_ref[...]                        # [N, Fin]
    x = x_ref[...]                          # [N, 3]

    # loop-invariant edge geometry: x[row] - x[col] == RC @ [x ; -x]
    xd = jnp.concatenate([x, -x], axis=0)                       # [2N, 3]
    diff = jnp.dot(rc, xd, preferred_element_type=f32)          # [E, 3]
    radial = jnp.sum(diff * diff, axis=1, keepdims=True)        # [E, 1]

    # augmented edge operand: [edge_attr | 1 | radial]  (folds w1e, b1, w1r)
    ea_aug = jnp.concatenate([ea1_ref[...], radial], axis=1)    # [E, Fe+2]

    ones_n = jnp.ones((n, 1), f32)   # hoisted, loop-invariant bias column

    # embedding
    h = jnp.dot(h0, emb_w_ref[...], preferred_element_type=f32) + emb_b_ref[...]

    for l in range(n_layers):                                    # static unroll
        # hs | hd from one lane-dense matmul, tile-aligned stores into scratch
        hsd2 = jnp.dot(h, w1sd_ref[l], preferred_element_type=f32)   # [N, 2H]
        hsd_scr[0:n, :] = hsd2[:, 0:hdim]
        hsd_scr[n:2 * n, :] = hsd2[:, hdim:2 * hdim]

        # edge_mlp layer 1:  R@(h@Ws) + C@(h@Wd) + radial@Wr + ea@We + b1
        z = _silu(jnp.dot(rc, hsd_scr[...], preferred_element_type=f32)
                  + jnp.dot(ea_aug, w1aux_ref[l], preferred_element_type=f32))
        # edge_mlp layer 2
        m = _silu(jnp.dot(z, w2_ref[l], preferred_element_type=f32) + b2_ref[l])

        # unsorted_segment_sum(edge_feat, row, N) == R^T @ edge_feat
        agg = jnp.dot(rt, m, preferred_element_type=f32)              # [N, H]

        # node_mlp layer 1 fused: [h | agg | h0 | 1] @ [wn1h; wn1a; wn1x; bn1]
        lhs = jnp.concatenate([h, agg, h0, ones_n], axis=1)           # [N, 2H+Fin+1]
        u = _silu(jnp.dot(lhs, wn1_ref[l], preferred_element_type=f32))
        # node_mlp layer 2 + residual
        h = h + jnp.dot(u, wn2_ref[l], preferred_element_type=f32) + bn2_ref[l]

    # node_dec then graph_dec (per node, exactly as in the provided forward)
    v = _silu(jnp.dot(h, nd_w1_ref[...], preferred_element_type=f32) + nd_b1_ref[...])
    h2 = jnp.dot(v, nd_w2_ref[...], preferred_element_type=f32) + nd_b2_ref[...]
    g = _silu(jnp.dot(h2, gd_w1_ref[...], preferred_element_type=f32) + gd_b1_ref[...])
    out_ref[...] = jnp.dot(g, gd_w2_ref[...], preferred_element_type=f32) + gd_b2_ref[...]


# --------------------------------------------------------------- wrapper ----

WEIGHT_ORDER = ("emb_w", "emb_b", "w1sd", "w1aux", "w2", "b2",
                "wn1", "wn2", "bn2",
                "nd_w1", "nd_b1", "nd_w2", "nd_b2",
                "gd_w1", "gd_b1", "gd_w2", "gd_b2")


def egnn_forward(packed, rc, rt, h0_b, x_b, ea1_b):
    """Batched fused forward: grid over graphs, weights VMEM-resident."""
    B, N, _ = h0_b.shape
    H = packed["w2"].shape[-1]
    out_dim = packed["gd_w2"].shape[-1]
    weights = [packed[k] for k in WEIGHT_ORDER]

    def shared_spec(arr):                 # constant block across the graph grid
        nd = arr.ndim
        return pl.BlockSpec(arr.shape, lambda b, _nd=nd: (0,) * _nd)

    def per_graph_spec(arr):              # leading (graph) dim squeezed out
        tail = arr.shape[1:]
        return pl.BlockSpec((None,) + tail,
                            lambda b, _k=len(tail): (b,) + (0,) * _k)

    in_specs = ([shared_spec(rc), shared_spec(rt),
                 per_graph_spec(h0_b), per_graph_spec(x_b), per_graph_spec(ea1_b)]
                + [shared_spec(w) for w in weights])

    return pl.pallas_call(
        egnn_fused_kernel,
        grid=(B,),
        out_shape=jax.ShapeDtypeStruct((B, N, out_dim), jnp.float32),
        in_specs=in_specs,
        out_specs=pl.BlockSpec((None, N, out_dim), lambda b: (b, 0, 0)),
        scratch_shapes=[pltpu.VMEM((2 * N, H), jnp.float32)],
        compiler_params=pltpu.CompilerParams(
            dimension_semantics=("parallel",)),
    )(rc, rt, h0_b, x_b, ea1_b, *weights)


def build_graph_mats(rows, cols, n_nodes):
    """Static graph structure (hoisted out of the forward). bf16 is exact 0/1."""
    r = jax.nn.one_hot(rows, n_nodes, dtype=jnp.float32)           # [E, N]
    c = jax.nn.one_hot(cols, n_nodes, dtype=jnp.float32)           # [E, N]
    rc = jnp.concatenate([r, c], axis=1).astype(jnp.bfloat16)      # [E, 2N]
    rt = jnp.transpose(r).astype(jnp.bfloat16)                     # [N, E]
    return rc, rt


def pack_params(params):
    """Host-side packing of per-layer weights into fused [L, ...] operands."""
    p = {k: v for k, v in params.items() if k != "layers"}
    layers = params["layers"]
    # edge_mlp layer 1, node-side:   [H, 2H] = [Ws | Wd]
    p["w1sd"] = jnp.stack(
        [jnp.concatenate([lp["w1s"], lp["w1d"]], axis=1) for lp in layers])
    # edge_mlp layer 1, edge-side:   [Fe+2, H] = [We ; b1 ; Wr]
    p["w1aux"] = jnp.stack(
        [jnp.concatenate([lp["w1e"], lp["b1"], lp["w1r"]], axis=0) for lp in layers])
    p["w2"] = jnp.stack([lp["w2"] for lp in layers])
    p["b2"] = jnp.stack([lp["b2"] for lp in layers])
    # node_mlp layer 1:              [2H+Fin+1, H] = [Wh ; Wa ; Wx ; bn1]
    p["wn1"] = jnp.stack(
        [jnp.concatenate([lp["wn1h"], lp["wn1a"], lp["wn1x"], lp["bn1"]], axis=0)
         for lp in layers])
    p["wn2"] = jnp.stack([lp["wn2"] for lp in layers])
    p["bn2"] = jnp.stack([lp["bn2"] for lp in layers])
    return p


# ------------------------------------------------------------ parameters ----

def init_params(key, in_node_nf, in_edge_nf, hidden_nf, n_layers):
    """Deterministic synthetic params ([in, out] layout, biases [1, out])."""
    def lin(k, fan_in, fan_out, scale=0.1):
        kw, kb = jax.random.split(k)
        w = scale * jax.random.normal(kw, (fan_in, fan_out), jnp.float32)
        b = scale * jax.random.normal(kb, (1, fan_out), jnp.float32)
        return w, b

    keys = jax.random.split(key, 3 + n_layers)
    p = {}
    p["emb_w"], p["emb_b"] = lin(keys[0], in_node_nf, hidden_nf)

    layers = []
    for i in range(n_layers):
        ks = jax.random.split(keys[3 + i], 8)
        lp = {}
        # edge_mlp layer 1: Linear(2H + 1 + in_edge_nf, H), split by input block
        lp["w1s"], lp["b1"] = lin(ks[0], hidden_nf, hidden_nf)
        lp["w1d"], _ = lin(ks[1], hidden_nf, hidden_nf)
        lp["w1r"], _ = lin(ks[2], 1, hidden_nf)
        lp["w1e"], _ = lin(ks[3], in_edge_nf, hidden_nf)
        # edge_mlp layer 2
        lp["w2"], lp["b2"] = lin(ks[4], hidden_nf, hidden_nf)
        # node_mlp layer 1: Linear(H + H + in_node_nf, H), split by input block
        lp["wn1h"], lp["bn1"] = lin(ks[5], hidden_nf, hidden_nf)
        lp["wn1a"], _ = lin(ks[6], hidden_nf, hidden_nf)
        lp["wn1x"], _ = lin(ks[7], in_node_nf, hidden_nf)
        # node_mlp layer 2
        kn2 = jax.random.fold_in(keys[3 + i], 99)
        lp["wn2"], lp["bn2"] = lin(kn2, hidden_nf, hidden_nf)
        layers.append(lp)
        # NOTE: coord_mlp / att_mlp exist in E_GCL.__init__ but are unused in
        # E_GCL_mask.forward (coords returned unchanged, attention=False).
    p["layers"] = layers

    p["nd_w1"], p["nd_b1"] = lin(keys[1], hidden_nf, hidden_nf)
    knd = jax.random.fold_in(keys[1], 1)
    p["nd_w2"], p["nd_b2"] = lin(knd, hidden_nf, hidden_nf)
    p["gd_w1"], p["gd_b1"] = lin(keys[2], hidden_nf, hidden_nf)
    kgd = jax.random.fold_in(keys[2], 1)
    p["gd_w2"], p["gd_b2"] = lin(kgd, hidden_nf, 21)
    return p


# ------------------------------------------------------- pure-JAX reference --

def egnn_reference(params, h0, x, rows, cols, edge_attr):
    silu = lambda z: z * jax.nn.sigmoid(z)
    n_nodes = h0.shape[0]
    h = h0 @ params["emb_w"] + params["emb_b"]
    diff = x[rows] - x[cols]
    radial = jnp.sum(diff * diff, axis=1, keepdims=True)
    for lp in params["layers"]:
        z = silu(h[rows] @ lp["w1s"] + h[cols] @ lp["w1d"] + radial @ lp["w1r"]
                 + edge_attr @ lp["w1e"] + lp["b1"])
        m = silu(z @ lp["w2"] + lp["b2"])
        agg = jax.ops.segment_sum(m, rows, num_segments=n_nodes)
        u = silu(h @ lp["wn1h"] + agg @ lp["wn1a"] + h0 @ lp["wn1x"] + lp["bn1"])
        h = h + u @ lp["wn2"] + lp["bn2"]
    v = silu(h @ params["nd_w1"] + params["nd_b1"])
    h2 = v @ params["nd_w2"] + params["nd_b2"]
    g = silu(h2 @ params["gd_w1"] + params["gd_b1"])
    return g @ params["gd_w2"] + params["gd_b2"]


# ----------------------------------------------------------------- main -----

if __name__ == "__main__":
    # small shapes consistent with the module
    B = 4               # graphs (batched over the grid)
    N = 16              # nodes per graph
    in_node_nf = 8
    in_edge_nf = 4
    hidden_nf = 32
    n_layers = 4

    key = jax.random.PRNGKey(0)
    k_h0, k_x, k_ea, k_p = jax.random.split(key, 4)

    h0 = jax.random.normal(k_h0, (B, N, in_node_nf), jnp.float32)
    x = jax.random.normal(k_x, (B, N, 3), jnp.float32)

    # fully-connected directed edge list (i != j), shared by all graphs
    rows, cols = [], []
    for i in range(N):
        for j in range(N):
            if i != j:
                rows.append(i)
                cols.append(j)
    rows = jnp.asarray(rows, jnp.int32)
    cols = jnp.asarray(cols, jnp.int32)
    E = rows.shape[0]   # 240

    edge_attr = jax.random.normal(k_ea, (B, E, in_edge_nf), jnp.float32)

    params = init_params(k_p, in_node_nf, in_edge_nf, hidden_nf, n_layers)
    packed = pack_params(params)
    rc, rt = build_graph_mats(rows, cols, N)   # hoisted static graph structure
    # augmented edge features with a constant-1 column (folds b1 into the matmul)
    ea1 = jnp.concatenate([edge_attr, jnp.ones((B, E, 1), jnp.float32)], axis=-1)

    pred = egnn_forward(packed, rc, rt, h0, x, ea1)
    pred = jax.block_until_ready(pred)
    assert pred.shape == (B, N, 21) and pred.dtype == jnp.float32

    # semantics check vs. straightforward gather/segment-sum reference
    ref = jnp.stack([egnn_reference(params, h0[b], x[b], rows, cols, edge_attr[b])
                     for b in range(B)])
    ref = jax.block_until_ready(ref)
    assert jnp.allclose(pred, ref, atol=2e-3, rtol=2e-3), "mismatch vs reference"

    print("KERNEL_OK")
</pallas_src>

<mosaic_0001>
module attributes {stable_mosaic.version = 11 : i64} {
  func.func @egnn_fused_kernel(%arg0: i32, %arg1: memref<240x32xbf16, #tpu.memory_space<vmem>>, %arg2: memref<16x240xbf16, #tpu.memory_space<vmem>>, %arg3: memref<1x16x8xf32, #tpu.memory_space<vmem>>, %arg4: memref<1x16x3xf32, #tpu.memory_space<vmem>>, %arg5: memref<1x240x5xf32, #tpu.memory_space<vmem>>, %arg6: memref<8x32xf32, #tpu.memory_space<vmem>>, %arg7: memref<1x32xf32, #tpu.memory_space<vmem>>, %arg8: memref<4x32x64xf32, #tpu.memory_space<vmem>>, %arg9: memref<4x6x32xf32, #tpu.memory_space<vmem>>, %arg10: memref<4x32x32xf32, #tpu.memory_space<vmem>>, %arg11: memref<4x1x32xf32, #tpu.memory_space<vmem>>, %arg12: memref<4x73x32xf32, #tpu.memory_space<vmem>>, %arg13: memref<4x32x32xf32, #tpu.memory_space<vmem>>, %arg14: memref<4x1x32xf32, #tpu.memory_space<vmem>>, %arg15: memref<32x32xf32, #tpu.memory_space<vmem>>, %arg16: memref<1x32xf32, #tpu.memory_space<vmem>>, %arg17: memref<32x32xf32, #tpu.memory_space<vmem>>, %arg18: memref<1x32xf32, #tpu.memory_space<vmem>>, %arg19: memref<32x32xf32, #tpu.memory_space<vmem>>, %arg20: memref<1x32xf32, #tpu.memory_space<vmem>>, %arg21: memref<32x21xf32, #tpu.memory_space<vmem>>, %arg22: memref<1x21xf32, #tpu.memory_space<vmem>>, %arg23: memref<1x16x21xf32, #tpu.memory_space<vmem>>, %arg24: memref<32x32xf32, #tpu.memory_space<vmem>>) attributes {dimension_semantics = [#tpu.dimension_semantics<parallel>], iteration_bounds = array<i64: 4>, scalar_prefetch = 0 : i64, scratch_operands = 1 : i64, tpu.core_type = #tpu.core_type<tc>, window_params = [{pipeline_mode = #tpu.pipeline_mode<synchronous>, transform_indices = @transform_0, window_bounds = array<i64: 240, 32>}, {pipeline_mode = #tpu.pipeline_mode<synchronous>, transform_indices = @transform_1, window_bounds = array<i64: 16, 240>}, {transform_indices = @transform_2, window_bounds = array<i64: 1, 16, 8>}, {transform_indices = @transform_3, window_bounds = array<i64: 1, 16, 3>}, {transform_indices = @transform_4, window_bounds = array<i64: 1, 240, 5>}, {pipeline_mode = #tpu.pipeline_mode<synchronous>, transform_indices = @transform_5, window_bounds = array<i64: 8, 32>}, {pipeline_mode = #tpu.pipeline_mode<synchronous>, transform_indices = @transform_6, window_bounds = array<i64: 1, 32>}, {pipeline_mode = #tpu.pipeline_mode<synchronous>, transform_indices = @transform_7, window_bounds = array<i64: 4, 32, 64>}, {pipeline_mode = #tpu.pipeline_mode<synchronous>, transform_indices = @transform_8, window_bounds = array<i64: 4, 6, 32>}, {pipeline_mode = #tpu.pipeline_mode<synchronous>, transform_indices = @transform_9, window_bounds = array<i64: 4, 32, 32>}, {pipeline_mode = #tpu.pipeline_mode<synchronous>, transform_indices = @transform_10, window_bounds = array<i64: 4, 1, 32>}, {pipeline_mode = #tpu.pipeline_mode<synchronous>, transform_indices = @transform_11, window_bounds = array<i64: 4, 73, 32>}, {pipeline_mode = #tpu.pipeline_mode<synchronous>, transform_indices = @transform_12, window_bounds = array<i64: 4, 32, 32>}, {pipeline_mode = #tpu.pipeline_mode<synchronous>, transform_indices = @transform_13, window_bounds = array<i64: 4, 1, 32>}, {pipeline_mode = #tpu.pipeline_mode<synchronous>, transform_indices = @transform_14, window_bounds = array<i64: 32, 32>}, {pipeline_mode = #tpu.pipeline_mode<synchronous>, transform_indices = @transform_15, window_bounds = array<i64: 1, 32>}, {pipeline_mode = #tpu.pipeline_mode<synchronous>, transform_indices = @transform_16, window_bounds = array<i64: 32, 32>}, {pipeline_mode = #tpu.pipeline_mode<synchronous>, transform_indices = @transform_17, window_bounds = array<i64: 1, 32>}, {pipeline_mode = #tpu.pipeline_mode<synchronous>, transform_indices = @transform_18, window_bounds = array<i64: 32, 32>}, {pipeline_mode = #tpu.pipeline_mode<synchronous>, transform_indices = @transform_19, window_bounds = array<i64: 1, 32>}, {pipeline_mode = #tpu.pipeline_mode<synchronous>, transform_indices = @transform_20, window_bounds = array<i64: 32, 21>}, {pipeline_mode = #tpu.pipeline_mode<synchronous>, transform_indices = @transform_21, window_bounds = array<i64: 1, 21>}, {transform_indices = @transform_22, window_bounds = array<i64: 1, 16, 21>}]} {
    %c0 = arith.constant 0 : index
    %c0_0 = arith.constant 0 : index
    %0 = vector.load %arg1[%c0, %c0_0] : memref<240x32xbf16, #tpu.memory_space<vmem>>, vector<240x32xbf16>
    %1 = arith.extf %0 : vector<240x32xbf16> to vector<240x32xf32>
    %c0_1 = arith.constant 0 : index
    %c0_2 = arith.constant 0 : index
    %2 = vector.load %arg2[%c0_1, %c0_2] : memref<16x240xbf16, #tpu.memory_space<vmem>>, vector<16x240xbf16>
    %3 = arith.extf %2 : vector<16x240xbf16> to vector<16x240xf32>
    %c0_3 = arith.constant 0 : index
    %c0_4 = arith.constant 0 : index
    %c0_5 = arith.constant 0 : index
    %4 = vector.load %arg3[%c0_3, %c0_4, %c0_5] : memref<1x16x8xf32, #tpu.memory_space<vmem>>, vector<1x16x8xf32>
    %5 = vector.shape_cast %4 : vector<1x16x8xf32> to vector<16x8xf32>
    %c0_6 = arith.constant 0 : index
    %c0_7 = arith.constant 0 : index
    %c0_8 = arith.constant 0 : index
    %6 = vector.load %arg4[%c0_6, %c0_7, %c0_8] : memref<1x16x3xf32, #tpu.memory_space<vmem>>, vector<1x16x3xf32>
    %7 = vector.shape_cast %6 : vector<1x16x3xf32> to vector<16x3xf32>
    %cst = arith.constant 0.000000e+00 : f32
    %8 = vector.broadcast %cst : f32 to vector<16x3xf32>
    %9 = arith.subf %8, %7 : vector<16x3xf32>
    %10 = tpu.concatenate %7, %9 in 0 : vector<16x3xf32>, vector<16x3xf32> -> vector<32x3xf32>
    %cst_9 = arith.constant dense<0.000000e+00> : vector<240x3xf32>
    %11 = tpu.matmul %1, %10, %cst_9 {dimension_numbers = #tpu.dot_dimension_numbers<[1], [0], [0], [1], [0, 0, 1, 1], [], []>} : vector<240x32xf32>, vector<32x3xf32>, vector<240x3xf32> -> vector<240x3xf32>
    %12 = arith.mulf %11, %11 : vector<240x3xf32>
    %cst_10 = arith.constant dense<0.000000e+00> : vector<240xf32>
    %13 = vector.multi_reduction <add>, %12, %cst_10 [1] : vector<240x3xf32> to vector<240xf32>
    %14 = vector.shape_cast %13 : vector<240xf32> to vector<240x1xf32>
    %c0_11 = arith.constant 0 : index
    %c0_12 = arith.constant 0 : index
    %c0_13 = arith.constant 0 : index
    %15 = vector.load %arg5[%c0_11, %c0_12, %c0_13] : memref<1x240x5xf32, #tpu.memory_space<vmem>>, vector<1x240x5xf32>
    %16 = vector.shape_cast %15 : vector<1x240x5xf32> to vector<240x5xf32>
    %17 = tpu.concatenate %16, %14 in 1 : vector<240x5xf32>, vector<240x1xf32> -> vector<240x6xf32>
    %cst_14 = arith.constant 1.000000e+00 : f32
    %18 = vector.broadcast %cst_14 : f32 to vector<16x1xf32>
    %c0_15 = arith.constant 0 : index
    %c0_16 = arith.constant 0 : index
    %19 = vector.load %arg6[%c0_15, %c0_16] : memref<8x32xf32, #tpu.memory_space<vmem>>, vector<8x32xf32>
    %cst_17 = arith.constant dense<0.000000e+00> : vector<16x32xf32>
    %20 = tpu.matmul %5, %19, %cst_17 {dimension_numbers = #tpu.dot_dimension_numbers<[1], [0], [0], [1], [0, 0, 1, 1], [], []>} : vector<16x8xf32>, vector<8x32xf32>, vector<16x32xf32> -> vector<16x32xf32>
    %c0_18 = arith.constant 0 : index
    %c0_19 = arith.constant 0 : index
    %21 = vector.load %arg7[%c0_18, %c0_19] : memref<1x32xf32, #tpu.memory_space<vmem>>, vector<1x32xf32>
    %22 = vector.broadcast %21 : vector<1x32xf32> to vector<16x32xf32>
    %23 = arith.addf %20, %22 : vector<16x32xf32>
    %c0_20 = arith.constant 0 : index
    %c0_21 = arith.constant 0 : index
    %c0_22 = arith.constant 0 : index
    %24 = vector.load %arg8[%c0_20, %c0_21, %c0_22] : memref<4x32x64xf32, #tpu.memory_space<vmem>>, vector<1x32x64xf32>
    %25 = vector.shape_cast %24 : vector<1x32x64xf32> to vector<32x64xf32>
    %cst_23 = arith.constant dense<0.000000e+00> : vector<16x64xf32>
    %26 = tpu.matmul %23, %25, %cst_23 {dimension_numbers = #tpu.dot_dimension_numbers<[1], [0], [0], [1], [0, 0, 1, 1], [], []>} : vector<16x32xf32>, vector<32x64xf32>, vector<16x64xf32> -> vector<16x64xf32>
    %27 = vector.extract_strided_slice %26 {offsets = [0, 0], sizes = [16, 32], strides = [1, 1]} : vector<16x64xf32> to vector<16x32xf32>
    %c0_24 = arith.constant 0 : index
    %c0_25 = arith.constant 0 : index
    %28 = vector.load %arg24[%c0_24, %c0_25] : memref<32x32xf32, #tpu.memory_space<vmem>>, vector<16x32xf32>
    tpu.vector_store %arg24[%c0_24, %c0_25], %27 {strides = array<i32>} : memref<32x32xf32, #tpu.memory_space<vmem>>, vector<16x32xf32>,
    %29 = vector.extract_strided_slice %26 {offsets = [0, 32], sizes = [16, 32], strides = [1, 1]} : vector<16x64xf32> to vector<16x32xf32>
    %c16 = arith.constant 16 : index
    %c0_26 = arith.constant 0 : index
    %30 = vector.load %arg24[%c16, %c0_26] : memref<32x32xf32, #tpu.memory_space<vmem>>, vector<16x32xf32>
    tpu.vector_store %arg24[%c16, %c0_26], %29 {strides = array<i32>} : memref<32x32xf32, #tpu.memory_space<vmem>>, vector<16x32xf32>,
    %c0_27 = arith.constant 0 : index
    %c0_28 = arith.constant 0 : index
    %31 = vector.load %arg24[%c0_27, %c0_28] : memref<32x32xf32, #tpu.memory_space<vmem>>, vector<32x32xf32>
    %cst_29 = arith.constant dense<0.000000e+00> : vector<240x32xf32>
    %32 = tpu.matmul %1, %31, %cst_29 {dimension_numbers = #tpu.dot_dimension_numbers<[1], [0], [0], [1], [0, 0, 1, 1], [], []>} : vector<240x32xf32>, vector<32x32xf32>, vector<240x32xf32> -> vector<240x32xf32>
    %c0_30 = arith.constant 0 : index
    %c0_31 = arith.constant 0 : index
    %c0_32 = arith.constant 0 : index
    %33 = vector.load %arg9[%c0_30, %c0_31, %c0_32] : memref<4x6x32xf32, #tpu.memory_space<vmem>>, vector<1x6x32xf32>
    %34 = vector.shape_cast %33 : vector<1x6x32xf32> to vector<6x32xf32>
    %cst_33 = arith.constant dense<0.000000e+00> : vector<240x32xf32>
    %35 = tpu.matmul %17, %34, %cst_33 {dimension_numbers = #tpu.dot_dimension_numbers<[1], [0], [0], [1], [0, 0, 1, 1], [], []>} : vector<240x6xf32>, vector<6x32xf32>, vector<240x32xf32> -> vector<240x32xf32>
    %36 = arith.addf %32, %35 : vector<240x32xf32>
    %37 = arith.negf %36 : vector<240x32xf32>
    %38 = math.exp %37 : vector<240x32xf32>
    %cst_34 = arith.constant 1.000000e+00 : f32
    %39 = vector.broadcast %cst_34 : f32 to vector<240x32xf32>
    %40 = arith.addf %39, %38 : vector<240x32xf32>
    %41 = arith.divf %39, %40 : vector<240x32xf32>
    %42 = arith.mulf %36, %41 : vector<240x32xf32>
    %c0_35 = arith.constant 0 : index
    %c0_36 = arith.constant 0 : index
    %c0_37 = arith.constant 0 : index
    %43 = vector.load %arg10[%c0_35, %c0_36, %c0_37] : memref<4x32x32xf32, #tpu.memory_space<vmem>>, vector<1x32x32xf32>
    %44 = vector.shape_cast %43 : vector<1x32x32xf32> to vector<32x32xf32>
    %cst_38 = arith.constant dense<0.000000e+00> : vector<240x32xf32>
    %45 = tpu.matmul %42, %44, %cst_38 {dimension_numbers = #tpu.dot_dimension_numbers<[1], [0], [0], [1], [0, 0, 1, 1], [], []>} : vector<240x32xf32>, vector<32x32xf32>, vector<240x32xf32> -> vector<240x32xf32>
    %c0_39 = arith.constant 0 : index
    %c0_40 = arith.constant 0 : index
    %c0_41 = arith.constant 0 : index
    %46 = vector.load %arg11[%c0_39, %c0_40, %c0_41] : memref<4x1x32xf32, #tpu.memory_space<vmem>>, vector<1x1x32xf32>
    %47 = vector.shape_cast %46 : vector<1x1x32xf32> to vector<1x32xf32>
    %48 = vector.broadcast %47 : vector<1x32xf32> to vector<240x32xf32>
    %49 = arith.addf %45, %48 : vector<240x32xf32>
    %50 = arith.negf %49 : vector<240x32xf32>
    %51 = math.exp %50 : vector<240x32xf32>
    %cst_42 = arith.constant 1.000000e+00 : f32
    %52 = vector.broadcast %cst_42 : f32 to vector<240x32xf32>
    %53 = arith.addf %52, %51 : vector<240x32xf32>
    %54 = arith.divf %52, %53 : vector<240x32xf32>
    %55 = arith.mulf %49, %54 : vector<240x32xf32>
    %cst_43 = arith.constant dense<0.000000e+00> : vector<16x32xf32>
    %56 = tpu.matmul %3, %55, %cst_43 {dimension_numbers = #tpu.dot_dimension_numbers<[1], [0], [0], [1], [0, 0, 1, 1], [], []>} : vector<16x240xf32>, vector<240x32xf32>, vector<16x32xf32> -> vector<16x32xf32>
    %57 = tpu.concatenate %23, %56, %5, %18 in 1 : vector<16x32xf32>, vector<16x32xf32>, vector<16x8xf32>, vector<16x1xf32> -> vector<16x73xf32>
    %c0_44 = arith.constant 0 : index
    %c0_45 = arith.constant 0 : index
    %c0_46 = arith.constant 0 : index
    %58 = vector.load %arg12[%c0_44, %c0_45, %c0_46] : memref<4x73x32xf32, #tpu.memory_space<vmem>>, vector<1x73x32xf32>
    %59 = vector.shape_cast %58 : vector<1x73x32xf32> to vector<73x32xf32>
    %cst_47 = arith.constant dense<0.000000e+00> : vector<16x32xf32>
    %60 = tpu.matmul %57, %59, %cst_47 {dimension_numbers = #tpu.dot_dimension_numbers<[1], [0], [0], [1], [0, 0, 1, 1], [], []>} : vector<16x73xf32>, vector<73x32xf32>, vector<16x32xf32> -> vector<16x32xf32>
    %61 = arith.negf %60 : vector<16x32xf32>
    %62 = math.exp %61 : vector<16x32xf32>
    %cst_48 = arith.constant 1.000000e+00 : f32
    %63 = vector.broadcast %cst_48 : f32 to vector<16x32xf32>
    %64 = arith.addf %63, %62 : vector<16x32xf32>
    %65 = arith.divf %63, %64 : vector<16x32xf32>
    %66 = arith.mulf %60, %65 : vector<16x32xf32>
    %c0_49 = arith.constant 0 : index
    %c0_50 = arith.constant 0 : index
    %c0_51 = arith.constant 0 : index
    %67 = vector.load %arg13[%c0_49, %c0_50, %c0_51] : memref<4x32x32xf32, #tpu.memory_space<vmem>>, vector<1x32x32xf32>
    %68 = vector.shape_cast %67 : vector<1x32x32xf32> to vector<32x32xf32>
    %cst_52 = arith.constant dense<0.000000e+00> : vector<16x32xf32>
    %69 = tpu.matmul %66, %68, %cst_52 {dimension_numbers = #tpu.dot_dimension_numbers<[1], [0], [0], [1], [0, 0, 1, 1], [], []>} : vector<16x32xf32>, vector<32x32xf32>, vector<16x32xf32> -> vector<16x32xf32>
    %70 = arith.addf %23, %69 : vector<16x32xf32>
    %c0_53 = arith.constant 0 : index
    %c0_54 = arith.constant 0 : index
    %c0_55 = arith.constant 0 : index
    %71 = vector.load %arg14[%c0_53, %c0_54, %c0_55] : memref<4x1x32xf32, #tpu.memory_space<vmem>>, vector<1x1x32xf32>
    %72 = vector.shape_cast %71 : vector<1x1x32xf32> to vector<1x32xf32>
    %73 = vector.broadcast %72 : vector<1x32xf32> to vector<16x32xf32>
    %74 = arith.addf %70, %73 : vector<16x32xf32>
    %c1 = arith.constant 1 : index
    %c0_56 = arith.constant 0 : index
    %c0_57 = arith.constant 0 : index
    %75 = vector.load %arg8[%c1, %c0_56, %c0_57] : memref<4x32x64xf32, #tpu.memory_space<vmem>>, vector<1x32x64xf32>
    %76 = vector.shape_cast %75 : vector<1x32x64xf32> to vector<32x64xf32>
    %cst_58 = arith.constant dense<0.000000e+00> : vector<16x64xf32>
    %77 = tpu.matmul %74, %76, %cst_58 {dimension_numbers = #tpu.dot_dimension_numbers<[1], [0], [0], [1], [0, 0, 1, 1], [], []>} : vector<16x32xf32>, vector<32x64xf32>, vector<16x64xf32> -> vector<16x64xf32>
    %78 = vector.extract_strided_slice %77 {offsets = [0, 0], sizes = [16, 32], strides = [1, 1]} : vector<16x64xf32> to vector<16x32xf32>
    %c0_59 = arith.constant 0 : index
    %c0_60 = arith.constant 0 : index
    %79 = vector.load %arg24[%c0_59, %c0_60] : memref<32x32xf32, #tpu.memory_space<vmem>>, vector<16x32xf32>
    tpu.vector_store %arg24[%c0_59, %c0_60], %78 {strides = array<i32>} : memref<32x32xf32, #tpu.memory_space<vmem>>, vector<16x32xf32>,
    %80 = vector.extract_strided_slice %77 {offsets = [0, 32], sizes = [16, 32], strides = [1, 1]} : vector<16x64xf32> to vector<16x32xf32>
    %c16_61 = arith.constant 16 : index
    %c0_62 = arith.constant 0 : index
    %81 = vector.load %arg24[%c16_61, %c0_62] : memref<32x32xf32, #tpu.memory_space<vmem>>, vector<16x32xf32>
    tpu.vector_store %arg24[%c16_61, %c0_62], %80 {strides = array<i32>} : memref<32x32xf32, #tpu.memory_space<vmem>>, vector<16x32xf32>,
    %c0_63 = arith.constant 0 : index
    %c0_64 = arith.constant 0 : index
    %82 = vector.load %arg24[%c0_63, %c0_64] : memref<32x32xf32, #tpu.memory_space<vmem>>, vector<32x32xf32>
    %cst_65 = arith.constant dense<0.000000e+00> : vector<240x32xf32>
    %83 = tpu.matmul %1, %82, %cst_65 {dimension_numbers = #tpu.dot_dimension_numbers<[1], [0], [0], [1], [0, 0, 1, 1], [], []>} : vector<240x32xf32>, vector<32x32xf32>, vector<240x32xf32> -> vector<240x32xf32>
    %c1_66 = arith.constant 1 : index
    %c0_67 = arith.constant 0 : index
    %c0_68 = arith.constant 0 : index
    %84 = vector.load %arg9[%c1_66, %c0_67, %c0_68] : memref<4x6x32xf32, #tpu.memory_space<vmem>>, vector<1x6x32xf32>
    %85 = vector.shape_cast %84 : vector<1x6x32xf32> to vector<6x32xf32>
    %cst_69 = arith.constant dense<0.000000e+00> : vector<240x32xf32>
    %86 = tpu.matmul %17, %85, %cst_69 {dimension_numbers = #tpu.dot_dimension_numbers<[1], [0], [0], [1], [0, 0, 1, 1], [], []>} : vector<240x6xf32>, vector<6x32xf32>, vector<240x32xf32> -> vector<240x32xf32>
    %87 = arith.addf %83, %86 : vector<240x32xf32>
    %88 = arith.negf %87 : vector<240x32xf32>
    %89 = math.exp %88 : vector<240x32xf32>
    %cst_70 = arith.constant 1.000000e+00 : f32
    %90 = vector.broadcast %cst_70 : f32 to vector<240x32xf32>
    %91 = arith.addf %90, %89 : vector<240x32xf32>
    %92 = arith.divf %90, %91 : vector<240x32xf32>
    %93 = arith.mulf %87, %92 : vector<240x32xf32>
    %c1_71 = arith.constant 1 : index
    %c0_72 = arith.constant 0 : index
    %c0_73 = arith.constant 0 : index
    %94 = vector.load %arg10[%c1_71, %c0_72, %c0_73] : memref<4x32x32xf32, #tpu.memory_space<vmem>>, vector<1x32x32xf32>
    %95 = vector.shape_cast %94 : vector<1x32x32xf32> to vector<32x32xf32>
    %cst_74 = arith.constant dense<0.000000e+00> : vector<240x32xf32>
    %96 = tpu.matmul %93, %95, %cst_74 {dimension_numbers = #tpu.dot_dimension_numbers<[1], [0], [0], [1], [0, 0, 1, 1], [], []>} : vector<240x32xf32>, vector<32x32xf32>, vector<240x32xf32> -> vector<240x32xf32>
    %c1_75 = arith.constant 1 : index
    %c0_76 = arith.constant 0 : index
    %c0_77 = arith.constant 0 : index
    %97 = vector.load %arg11[%c1_75, %c0_76, %c0_77] : memref<4x1x32xf32, #tpu.memory_space<vmem>>, vector<1x1x32xf32>
    %98 = vector.shape_cast %97 : vector<1x1x32xf32> to vector<1x32xf32>
    %99 = vector.broadcast %98 : vector<1x32xf32> to vector<240x32xf32>
    %100 = arith.addf %96, %99 : vector<240x32xf32>
    %101 = arith.negf %100 : vector<240x32xf32>
    %102 = math.exp %101 : vector<240x32xf32>
    %cst_78 = arith.constant 1.000000e+00 : f32
    %103 = vector.broadcast %cst_78 : f32 to vector<240x32xf32>
    %104 = arith.addf %103, %102 : vector<240x32xf32>
    %105 = arith.divf %103, %104 : vector<240x32xf32>
    %106 = arith.mulf %100, %105 : vector<240x32xf32>
    %cst_79 = arith.constant dense<0.000000e+00> : vector<16x32xf32>
    %107 = tpu.matmul %3, %106, %cst_79 {dimension_numbers = #tpu.dot_dimension_numbers<[1], [0], [0], [1], [0, 0, 1, 1], [], []>} : vector<16x240xf32>, vector<240x32xf32>, vector<16x32xf32> -> vector<16x32xf32>
    %108 = tpu.concatenate %74, %107, %5, %18 in 1 : vector<16x32xf32>, vector<16x32xf32>, vector<16x8xf32>, vector<16x1xf32> -> vector<16x73xf32>
    %c1_80 = arith.constant 1 : index
    %c0_81 = arith.constant 0 : index
    %c0_82 = arith.constant 0 : index
    %109 = vector.load %arg12[%c1_80, %c0_81, %c0_82] : memref<4x73x32xf32, #tpu.memory_space<vmem>>, vector<1x73x32xf32>
    %110 = vector.shape_cast %109 : vector<1x73x32xf32> to vector<73x32xf32>
    %cst_83 = arith.constant dense<0.000000e+00> : vector<16x32xf32>
    %111 = tpu.matmul %108, %110, %cst_83 {dimension_numbers = #tpu.dot_dimension_numbers<[1], [0], [0], [1], [0, 0, 1, 1], [], []>} : vector<16x73xf32>, vector<73x32xf32>, vector<16x32xf32> -> vector<16x32xf32>
    %112 = arith.negf %111 : vector<16x32xf32>
    %113 = math.exp %112 : vector<16x32xf32>
    %cst_84 = arith.constant 1.000000e+00 : f32
    %114 = vector.broadcast %cst_84 : f32 to vector<16x32xf32>
    %115 = arith.addf %114, %113 : vector<16x32xf32>
    %116 = arith.divf %114, %115 : vector<16x32xf32>
    %117 = arith.mulf %111, %116 : vector<16x32xf32>
    %c1_85 = arith.constant 1 : index
    %c0_86 = arith.constant 0 : index
    %c0_87 = arith.constant 0 : index
    %118 = vector.load %arg13[%c1_85, %c0_86, %c0_87] : memref<4x32x32xf32, #tpu.memory_space<vmem>>, vector<1x32x32xf32>
    %119 = vector.shape_cast %118 : vector<1x32x32xf32> to vector<32x32xf32>
    %cst_88 = arith.constant dense<0.000000e+00> : vector<16x32xf32>
    %120 = tpu.matmul %117, %119, %cst_88 {dimension_numbers = #tpu.dot_dimension_numbers<[1], [0], [0], [1], [0, 0, 1, 1], [], []>} : vector<16x32xf32>, vector<32x32xf32>, vector<16x32xf32> -> vector<16x32xf32>
    %121 = arith.addf %74, %120 : vector<16x32xf32>
    %c1_89 = arith.constant 1 : index
    %c0_90 = arith.constant 0 : index
    %c0_91 = arith.constant 0 : index
    %122 = vector.load %arg14[%c1_89, %c0_90, %c0_91] : memref<4x1x32xf32, #tpu.memory_space<vmem>>, vector<1x1x32xf32>
    %123 = vector.shape_cast %122 : vector<1x1x32xf32> to vector<1x32xf32>
    %124 = vector.broadcast %123 : vector<1x32xf32> to vector<16x32xf32>
    %125 = arith.addf %121, %124 : vector<16x32xf32>
    %c2 = arith.constant 2 : index
    %c0_92 = arith.constant 0 : index
    %c0_93 = arith.constant 0 : index
    %126 = vector.load %arg8[%c2, %c0_92, %c0_93] : memref<4x32x64xf32, #tpu.memory_space<vmem>>, vector<1x32x64xf32>
    %127 = vector.shape_cast %126 : vector<1x32x64xf32> to vector<32x64xf32>
    %cst_94 = arith.constant dense<0.000000e+00> : vector<16x64xf32>
    %128 = tpu.matmul %125, %127, %cst_94 {dimension_numbers = #tpu.dot_dimension_numbers<[1], [0], [0], [1], [0, 0, 1, 1], [], []>} : vector<16x32xf32>, vector<32x64xf32>, vector<16x64xf32> -> vector<16x64xf32>
    %129 = vector.extract_strided_slice %128 {offsets = [0, 0], sizes = [16, 32], strides = [1, 1]} : vector<16x64xf32> to vector<16x32xf32>
    %c0_95 = arith.constant 0 : index
    %c0_96 = arith.constant 0 : index
    %130 = vector.load %arg24[%c0_95, %c0_96] : memref<32x32xf32, #tpu.memory_space<vmem>>, vector<16x32xf32>
    tpu.vector_store %arg24[%c0_95, %c0_96], %129 {strides = array<i32>} : memref<32x32xf32, #tpu.memory_space<vmem>>, vector<16x32xf32>,
    %131 = vector.extract_strided_slice %128 {offsets = [0, 32], sizes = [16, 32], strides = [1, 1]} : vector<16x64xf32> to vector<16x32xf32>
    %c16_97 = arith.constant 16 : index
    %c0_98 = arith.constant 0 : index
    %132 = vector.load %arg24[%c16_97, %c0_98] : memref<32x32xf32, #tpu.memory_space<vmem>>, vector<16x32xf32>
    tpu.vector_store %arg24[%c16_97, %c0_98], %131 {strides = array<i32>} : memref<32x32xf32, #tpu.memory_space<vmem>>, vector<16x32xf32>,
    %c0_99 = arith.constant 0 : index
    %c0_100 = arith.constant 0 : index
    %133 = vector.load %arg24[%c0_99, %c0_100] : memref<32x32xf32, #tpu.memory_space<vmem>>, vector<32x32xf32>
    %cst_101 = arith.constant dense<0.000000e+00> : vector<240x32xf32>
    %134 = tpu.matmul %1, %133, %cst_101 {dimension_numbers = #tpu.dot_dimension_numbers<[1], [0], [0], [1], [0, 0, 1, 1], [], []>} : vector<240x32xf32>, vector<32x32xf32>, vector<240x32xf32> -> vector<240x32xf32>
    %c2_102 = arith.constant 2 : index
    %c0_103 = arith.constant 0 : index
    %c0_104 = arith.constant 0 : index
    %135 = vector.load %arg9[%c2_102, %c0_103, %c0_104] : memref<4x6x32xf32, #tpu.memory_space<vmem>>, vector<1x6x32xf32>
    %136 = vector.shape_cast %135 : vector<1x6x32xf32> to vector<6x32xf32>
    %cst_105 = arith.constant dense<0.000000e+00> : vector<240x32xf32>
    %137 = tpu.matmul %17, %136, %cst_105 {dimension_numbers = #tpu.dot_dimension_numbers<[1], [0], [0], [1], [0, 0, 1, 1], [], []>} : vector<240x6xf32>, vector<6x32xf32>, vector<240x32xf32> -> vector<240x32xf32>
    %138 = arith.addf %134, %137 : vector<240x32xf32>
    %139 = arith.negf %138 : vector<240x32xf32>
    %140 = math.exp %139 : vector<240x32xf32>
    %cst_106 = arith.constant 1.000000e+00 : f32
    %141 = vector.broadcast %cst_106 : f32 to vector<240x32xf32>
    %142 = arith.addf %141, %140 : vector<240x32xf32>
    %143 = arith.divf %141, %142 : vector<240x32xf32>
    %144 = arith.mulf %138, %143 : vector<240x32xf32>
    %c2_107 = arith.constant 2 : index
    %c0_108 = arith.constant 0 : index
    %c0_109 = arith.constant 0 : index
    %145 = vector.load %arg10[%c2_107, %c0_108, %c0_109] : memref<4x32x32xf32, #tpu.memory_space<vmem>>, vector<1x32x32xf32>
    %146 = vector.shape_cast %145 : vector<1x32x32xf32> to vector<32x32xf32>
    %cst_110 = arith.constant dense<0.000000e+00> : vector<240x32xf32>
    %147 = tpu.matmul %144, %146, %cst_110 {dimension_numbers = #tpu.dot_dimension_numbers<[1], [0], [0], [1], [0, 0, 1, 1], [], []>} : vector<240x32xf32>, vector<32x32xf32>, vector<240x32xf32> -> vector<240x32xf32>
    %c2_111 = arith.constant 2 : index
    %c0_112 = arith.constant 0 : index
    %c0_113 = arith.constant 0 : index
    %148 = vector.load %arg11[%c2_111, %c0_112, %c0_113] : memref<4x1x32xf32, #tpu.memory_space<vmem>>, vector<1x1x32xf32>
    %149 = vector.shape_cast %148 : vector<1x1x32xf32> to vector<1x32xf32>
    %150 = vector.broadcast %149 : vector<1x32xf32> to vector<240x32xf32>
    %151 = arith.addf %147, %150 : vector<240x32xf32>
    %152 = arith.negf %151 : vector<240x32xf32>
    %153 = math.exp %152 : vector<240x32xf32>
    %cst_114 = arith.constant 1.000000e+00 : f32
    %154 = vector.broadcast %cst_114 : f32 to vector<240x32xf32>
    %155 = arith.addf %154, %153 : vector<240x32xf32>
    %156 = arith.divf %154, %155 : vector<240x32xf32>
    %157 = arith.mulf %151, %156 : vector<240x32xf32>
    %cst_115 = arith.constant dense<0.000000e+00> : vector<16x32xf32>
    %158 = tpu.matmul %3, %157, %cst_115 {dimension_numbers = #tpu.dot_dimension_numbers<[1], [0], [0], [1], [0, 0, 1, 1], [], []>} : vector<16x240xf32>, vector<240x32xf32>, vector<16x32xf32> -> vector<16x32xf32>
    %159 = tpu.concatenate %125, %158, %5, %18 in 1 : vector<16x32xf32>, vector<16x32xf32>, vector<16x8xf32>, vector<16x1xf32> -> vector<16x73xf32>
    %c2_116 = arith.constant 2 : index
    %c0_117 = arith.constant 0 : index
    %c0_118 = arith.constant 0 : index
    %160 = vector.load %arg12[%c2_116, %c0_117, %c0_118] : memref<4x73x32xf32, #tpu.memory_space<vmem>>, vector<1x73x32xf32>
    %161 = vector.shape_cast %160 : vector<1x73x32xf32> to vector<73x32xf32>
    %cst_119 = arith.constant dense<0.000000e+00> : vector<16x32xf32>
    %162 = tpu.matmul %159, %161, %cst_119 {dimension_numbers = #tpu.dot_dimension_numbers<[1], [0], [0], [1], [0, 0, 1, 1], [], []>} : vector<16x73xf32>, vector<73x32xf32>, vector<16x32xf32> -> vector<16x32xf32>
    %163 = arith.negf %162 : vector<16x32xf32>
    %164 = math.exp %163 : vector<16x32xf32>
    %cst_120 = arith.constant 1.000000e+00 : f32
    %165 = vector.broadcast %cst_120 : f32 to vector<16x32xf32>
    %166 = arith.addf %165, %164 : vector<16x32xf32>
    %167 = arith.divf %165, %166 : vector<16x32xf32>
    %168 = arith.mulf %162, %167 : vector<16x32xf32>
    %c2_121 = arith.constant 2 : index
    %c0_122 = arith.constant 0 : index
    %c0_123 = arith.constant 0 : index
    %169 = vector.load %arg13[%c2_121, %c0_122, %c0_123] : memref<4x32x32xf32, #tpu.memory_space<vmem>>, vector<1x32x32xf32>
    %170 = vector.shape_cast %169 : vector<1x32x32xf32> to vector<32x32xf32>
    %cst_124 = arith.constant dense<0.000000e+00> : vector<16x32xf32>
    %171 = tpu.matmul %168, %170, %cst_124 {dimension_numbers = #tpu.dot_dimension_numbers<[1], [0], [0], [1], [0, 0, 1, 1], [], []>} : vector<16x32xf32>, vector<32x32xf32>, vector<16x32xf32> -> vector<16x32xf32>
    %172 = arith.addf %125, %171 : vector<16x32xf32>
    %c2_125 = arith.constant 2 : index
    %c0_126 = arith.constant 0 : index
    %c0_127 = arith.constant 0 : index
    %173 = vector.load %arg14[%c2_125, %c0_126, %c0_127] : memref<4x1x32xf32, #tpu.memory_space<vmem>>, vector<1x1x32xf32>
    %174 = vector.shape_cast %173 : vector<1x1x32xf32> to vector<1x32xf32>
    %175 = vector.broadcast %174 : vector<1x32xf32> to vector<16x32xf32>
    %176 = arith.addf %172, %175 : vector<16x32xf32>
    %c3 = arith.constant 3 : index
    %c0_128 = arith.constant 0 : index
    %c0_129 = arith.constant 0 : index
    %177 = vector.load %arg8[%c3, %c0_128, %c0_129] : memref<4x32x64xf32, #tpu.memory_space<vmem>>, vector<1x32x64xf32>
    %178 = vector.shape_cast %177 : vector<1x32x64xf32> to vector<32x64xf32>
    %cst_130 = arith.constant dense<0.000000e+00> : vector<16x64xf32>
    %179 = tpu.matmul %176, %178, %cst_130 {dimension_numbers = #tpu.dot_dimension_numbers<[1], [0], [0], [1], [0, 0, 1, 1], [], []>} : vector<16x32xf32>, vector<32x64xf32>, vector<16x64xf32> -> vector<16x64xf32>
    %180 = vector.extract_strided_slice %179 {offsets = [0, 0], sizes = [16, 32], strides = [1, 1]} : vector<16x64xf32> to vector<16x32xf32>
    %c0_131 = arith.constant 0 : index
    %c0_132 = arith.constant 0 : index
    %181 = vector.load %arg24[%c0_131, %c0_132] : memref<32x32xf32, #tpu.memory_space<vmem>>, vector<16x32xf32>
    tpu.vector_store %arg24[%c0_131, %c0_132], %180 {strides = array<i32>} : memref<32x32xf32, #tpu.memory_space<vmem>>, vector<16x32xf32>,
    %182 = vector.extract_strided_slice %179 {offsets = [0, 32], sizes = [16, 32], strides = [1, 1]} : vector<16x64xf32> to vector<16x32xf32>
    %c16_133 = arith.constant 16 : index
    %c0_134 = arith.constant 0 : index
    %183 = vector.load %arg24[%c16_133, %c0_134] : memref<32x32xf32, #tpu.memory_space<vmem>>, vector<16x32xf32>
    tpu.vector_store %arg24[%c16_133, %c0_134], %182 {strides = array<i32>} : memref<32x32xf32, #tpu.memory_space<vmem>>, vector<16x32xf32>,
    %c0_135 = arith.constant 0 : index
    %c0_136 = arith.constant 0 : index
    %184 = vector.load %arg24[%c0_135, %c0_136] : memref<32x32xf32, #tpu.memory_space<vmem>>, vector<32x32xf32>
    %cst_137 = arith.constant dense<0.000000e+00> : vector<240x32xf32>
    %185 = tpu.matmul %1, %184, %cst_137 {dimension_numbers = #tpu.dot_dimension_numbers<[1], [0], [0], [1], [0, 0, 1, 1], [], []>} : vector<240x32xf32>, vector<32x32xf32>, vector<240x32xf32> -> vector<240x32xf32>
    %c3_138 = arith.constant 3 : index
    %c0_139 = arith.constant 0 : index
    %c0_140 = arith.constant 0 : index
    %186 = vector.load %arg9[%c3_138, %c0_139, %c0_140] : memref<4x6x32xf32, #tpu.memory_space<vmem>>, vector<1x6x32xf32>
    %187 = vector.shape_cast %186 : vector<1x6x32xf32> to vector<6x32xf32>
    %cst_141 = arith.constant dense<0.000000e+00> : vector<240x32xf32>
    %188 = tpu.matmul %17, %187, %cst_141 {dimension_numbers = #tpu.dot_dimension_numbers<[1], [0], [0], [1], [0, 0, 1, 1], [], []>} : vector<240x6xf32>, vector<6x32xf32>, vector<240x32xf32> -> vector<240x32xf32>
    %189 = arith.addf %185, %188 : vector<240x32xf32>
    %190 = arith.negf %189 : vector<240x32xf32>
    %191 = math.exp %190 : vector<240x32xf32>
    %cst_142 = arith.constant 1.000000e+00 : f32
    %192 = vector.broadcast %cst_142 : f32 to vector<240x32xf32>
    %193 = arith.addf %192, %191 : vector<240x32xf32>
    %194 = arith.divf %192, %193 : vector<240x32xf32>
    %195 = arith.mulf %189, %194 : vector<240x32xf32>
    %c3_143 = arith.constant 3 : index
    %c0_144 = arith.constant 0 : index
    %c0_145 = arith.constant 0 : index
    %196 = vector.load %arg10[%c3_143, %c0_144, %c0_145] : memref<4x32x32xf32, #tpu.memory_space<vmem>>, vector<1x32x32xf32>
    %197 = vector.shape_cast %196 : vector<1x32x32xf32> to vector<32x32xf32>
    %cst_146 = arith.constant dense<0.000000e+00> : vector<240x32xf32>
    %198 = tpu.matmul %195, %197, %cst_146 {dimension_numbers = #tpu.dot_dimension_numbers<[1], [0], [0], [1], [0, 0, 1, 1], [], []>} : vector<240x32xf32>, vector<32x32xf32>, vector<240x32xf32> -> vector<240x32xf32>
    %c3_147 = arith.constant 3 : index
    %c0_148 = arith.constant 0 : index
    %c0_149 = arith.constant 0 : index
    %199 = vector.load %arg11[%c3_147, %c0_148, %c0_149] : memref<4x1x32xf32, #tpu.memory_space<vmem>>, vector<1x1x32xf32>
    %200 = vector.shape_cast %199 : vector<1x1x32xf32> to vector<1x32xf32>
    %201 = vector.broadcast %200 : vector<1x32xf32> to vector<240x32xf32>
    %202 = arith.addf %198, %201 : vector<240x32xf32>
    %203 = arith.negf %202 : vector<240x32xf32>
    %204 = math.exp %203 : vector<240x32xf32>
    %cst_150 = arith.constant 1.000000e+00 : f32
    %205 = vector.broadcast %cst_150 : f32 to vector<240x32xf32>
    %206 = arith.addf %205, %204 : vector<240x32xf32>
    %207 = arith.divf %205, %206 : vector<240x32xf32>
    %208 = arith.mulf %202, %207 : vector<240x32xf32>
    %cst_151 = arith.constant dense<0.000000e+00> : vector<16x32xf32>
    %209 = tpu.matmul %3, %208, %cst_151 {dimension_numbers = #tpu.dot_dimension_numbers<[1], [0], [0], [1], [0, 0, 1, 1], [], []>} : vector<16x240xf32>, vector<240x32xf32>, vector<16x32xf32> -> vector<16x32xf32>
    %210 = tpu.concatenate %176, %209, %5, %18 in 1 : vector<16x32xf32>, vector<16x32xf32>, vector<16x8xf32>, vector<16x1xf32> -> vector<16x73xf32>
    %c3_152 = arith.constant 3 : index
    %c0_153 = arith.constant 0 : index
    %c0_154 = arith.constant 0 : index
    %211 = vector.load %arg12[%c3_152, %c0_153, %c0_154] : memref<4x73x32xf32, #tpu.memory_space<vmem>>, vector<1x73x32xf32>
    %212 = vector.shape_cast %211 : vector<1x73x32xf32> to vector<73x32xf32>
    %cst_155 = arith.constant dense<0.000000e+00> : vector<16x32xf32>
    %213 = tpu.matmul %210, %212, %cst_155 {dimension_numbers = #tpu.dot_dimension_numbers<[1], [0], [0], [1], [0, 0, 1, 1], [], []>} : vector<16x73xf32>, vector<73x32xf32>, vector<16x32xf32> -> vector<16x32xf32>
    %214 = arith.negf %213 : vector<16x32xf32>
    %215 = math.exp %214 : vector<16x32xf32>
    %cst_156 = arith.constant 1.000000e+00 : f32
    %216 = vector.broadcast %cst_156 : f32 to vector<16x32xf32>
    %217 = arith.addf %216, %215 : vector<16x32xf32>
    %218 = arith.divf %216, %217 : vector<16x32xf32>
    %219 = arith.mulf %213, %218 : vector<16x32xf32>
    %c3_157 = arith.constant 3 : index
    %c0_158 = arith.constant 0 : index
    %c0_159 = arith.constant 0 : index
    %220 = vector.load %arg13[%c3_157, %c0_158, %c0_159] : memref<4x32x32xf32, #tpu.memory_space<vmem>>, vector<1x32x32xf32>
    %221 = vector.shape_cast %220 : vector<1x32x32xf32> to vector<32x32xf32>
    %cst_160 = arith.constant dense<0.000000e+00> : vector<16x32xf32>
    %222 = tpu.matmul %219, %221, %cst_160 {dimension_numbers = #tpu.dot_dimension_numbers<[1], [0], [0], [1], [0, 0, 1, 1], [], []>} : vector<16x32xf32>, vector<32x32xf32>, vector<16x32xf32> -> vector<16x32xf32>
    %223 = arith.addf %176, %222 : vector<16x32xf32>
    %c3_161 = arith.constant 3 : index
    %c0_162 = arith.constant 0 : index
    %c0_163 = arith.constant 0 : index
    %224 = vector.load %arg14[%c3_161, %c0_162, %c0_163] : memref<4x1x32xf32, #tpu.memory_space<vmem>>, vector<1x1x32xf32>
    %225 = vector.shape_cast %224 : vector<1x1x32xf32> to vector<1x32xf32>
    %226 = vector.broadcast %225 : vector<1x32xf32> to vector<16x32xf32>
    %227 = arith.addf %223, %226 : vector<16x32xf32>
    %c0_164 = arith.constant 0 : index
    %c0_165 = arith.constant 0 : index
    %228 = vector.load %arg15[%c0_164, %c0_165] : memref<32x32xf32, #tpu.memory_space<vmem>>, vector<32x32xf32>
    %cst_166 = arith.constant dense<0.000000e+00> : vector<16x32xf32>
    %229 = tpu.matmul %227, %228, %cst_166 {dimension_numbers = #tpu.dot_dimension_numbers<[1], [0], [0], [1], [0, 0, 1, 1], [], []>} : vector<16x32xf32>, vector<32x32xf32>, vector<16x32xf32> -> vector<16x32xf32>
    %c0_167 = arith.constant 0 : index
    %c0_168 = arith.constant 0 : index
    %230 = vector.load %arg16[%c0_167, %c0_168] : memref<1x32xf32, #tpu.memory_space<vmem>>, vector<1x32xf32>
    %231 = vector.broadcast %230 : vector<1x32xf32> to vector<16x32xf32>
    %232 = arith.addf %229, %231 : vector<16x32xf32>
    %233 = arith.negf %232 : vector<16x32xf32>
    %234 = math.exp %233 : vector<16x32xf32>
    %cst_169 = arith.constant 1.000000e+00 : f32
    %235 = vector.broadcast %cst_169 : f32 to vector<16x32xf32>
    %236 = arith.addf %235, %234 : vector<16x32xf32>
    %237 = arith.divf %235, %236 : vector<16x32xf32>
    %238 = arith.mulf %232, %237 : vector<16x32xf32>
    %c0_170 = arith.constant 0 : index
    %c0_171 = arith.constant 0 : index
    %239 = vector.load %arg17[%c0_170, %c0_171] : memref<32x32xf32, #tpu.memory_space<vmem>>, vector<32x32xf32>
    %cst_172 = arith.constant dense<0.000000e+00> : vector<16x32xf32>
    %240 = tpu.matmul %238, %239, %cst_172 {dimension_numbers = #tpu.dot_dimension_numbers<[1], [0], [0], [1], [0, 0, 1, 1], [], []>} : vector<16x32xf32>, vector<32x32xf32>, vector<16x32xf32> -> vector<16x32xf32>
    %c0_173 = arith.constant 0 : index
    %c0_174 = arith.constant 0 : index
    %241 = vector.load %arg18[%c0_173, %c0_174] : memref<1x32xf32, #tpu.memory_space<vmem>>, vector<1x32xf32>
    %242 = vector.broadcast %241 : vector<1x32xf32> to vector<16x32xf32>
    %243 = arith.addf %240, %242 : vector<16x32xf32>
    %c0_175 = arith.constant 0 : index
    %c0_176 = arith.constant 0 : index
    %244 = vector.load %arg19[%c0_175, %c0_176] : memref<32x32xf32, #tpu.memory_space<vmem>>, vector<32x32xf32>
    %cst_177 = arith.constant dense<0.000000e+00> : vector<16x32xf32>
    %245 = tpu.matmul %243, %244, %cst_177 {dimension_numbers = #tpu.dot_dimension_numbers<[1], [0], [0], [1], [0, 0, 1, 1], [], []>} : vector<16x32xf32>, vector<32x32xf32>, vector<16x32xf32> -> vector<16x32xf32>
    %c0_178 = arith.constant 0 : index
    %c0_179 = arith.constant 0 : index
    %246 = vector.load %arg20[%c0_178, %c0_179] : memref<1x32xf32, #tpu.memory_space<vmem>>, vector<1x32xf32>
    %247 = vector.broadcast %246 : vector<1x32xf32> to vector<16x32xf32>
    %248 = arith.addf %245, %247 : vector<16x32xf32>
    %249 = arith.negf %248 : vector<16x32xf32>
    %250 = math.exp %249 : vector<16x32xf32>
    %cst_180 = arith.constant 1.000000e+00 : f32
    %251 = vector.broadcast %cst_180 : f32 to vector<16x32xf32>
    %252 = arith.addf %251, %250 : vector<16x32xf32>
    %253 = arith.divf %251, %252 : vector<16x32xf32>
    %254 = arith.mulf %248, %253 : vector<16x32xf32>
    %c0_181 = arith.constant 0 : index
    %c0_182 = arith.constant 0 : index
    %255 = vector.load %arg21[%c0_181, %c0_182] : memref<32x21xf32, #tpu.memory_space<vmem>>, vector<32x21xf32>
    %cst_183 = arith.constant dense<0.000000e+00> : vector<16x21xf32>
    %256 = tpu.matmul %254, %255, %cst_183 {dimension_numbers = #tpu.dot_dimension_numbers<[1], [0], [0], [1], [0, 0, 1, 1], [], []>} : vector<16x32xf32>, vector<32x21xf32>, vector<16x21xf32> -> vector<16x21xf32>
    %c0_184 = arith.constant 0 : index
    %c0_185 = arith.constant 0 : index
    %257 = vector.load %arg22[%c0_184, %c0_185] : memref<1x21xf32, #tpu.memory_space<vmem>>, vector<1x21xf32>
    %258 = vector.broadcast %257 : vector<1x21xf32> to vector<16x21xf32>
    %259 = arith.addf %256, %258 : vector<16x21xf32>
    %c0_186 = arith.constant 0 : index
    %c0_187 = arith.constant 0 : index
    %c0_188 = arith.constant 0 : index
    %260 = vector.load %arg23[%c0_186, %c0_187, %c0_188] : memref<1x16x21xf32, #tpu.memory_space<vmem>>, vector<1x16x21xf32>
    %261 = vector.shape_cast %260 : vector<1x16x21xf32> to vector<16x21xf32>
    %262 = vector.shape_cast %259 : vector<16x21xf32> to vector<1x16x21xf32>
    tpu.vector_store %arg23[%c0_186, %c0_187, %c0_188], %262 {strides = array<i32>} : memref<1x16x21xf32, #tpu.memory_space<vmem>>, vector<1x16x21xf32>,
    return
  }
  func.func @transform_0(%arg0: i32) -> (i32, i32) {
    %c0_i32 = arith.constant 0 : i32
    %c0_i32_0 = arith.constant 0 : i32
    %c0_i32_1 = arith.constant 0 : i32
    return %c0_i32, %c0_i32_0 : i32, i32
  }
  func.func @transform_1(%arg0: i32) -> (i32, i32) {
    %c0_i32 = arith.constant 0 : i32
    %c0_i32_0 = arith.constant 0 : i32
    %c0_i32_1 = arith.constant 0 : i32
    return %c0_i32, %c0_i32_0 : i32, i32
  }
  func.func @transform_2(%arg0: i32) -> (i32, i32, i32) {
    %c0_i32 = arith.constant 0 : i32
    %c0_i32_0 = arith.constant 0 : i32
    %c0_i32_1 = arith.constant 0 : i32
    return %arg0, %c0_i32, %c0_i32_0 : i32, i32, i32
  }
  func.func @transform_3(%arg0: i32) -> (i32, i32, i32) {
    %c0_i32 = arith.constant 0 : i32
    %c0_i32_0 = arith.constant 0 : i32
    %c0_i32_1 = arith.constant 0 : i32
    return %arg0, %c0_i32, %c0_i32_0 : i32, i32, i32
  }
  func.func @transform_4(%arg0: i32) -> (i32, i32, i32) {
    %c0_i32 = arith.constant 0 : i32
    %c0_i32_0 = arith.constant 0 : i32
    %c0_i32_1 = arith.constant 0 : i32
    return %arg0, %c0_i32, %c0_i32_0 : i32, i32, i32
  }
  func.func @transform_5(%arg0: i32) -> (i32, i32) {
    %c0_i32 = arith.constant 0 : i32
    %c0_i32_0 = arith.constant 0 : i32
    %c0_i32_1 = arith.constant 0 : i32
    return %c0_i32, %c0_i32_0 : i32, i32
  }
  func.func @transform_6(%arg0: i32) -> (i32, i32) {
    %c0_i32 = arith.constant 0 : i32
    %c0_i32_0 = arith.constant 0 : i32
    %c0_i32_1 = arith.constant 0 : i32
    return %c0_i32, %c0_i32_0 : i32, i32
  }
  func.func @transform_7(%arg0: i32) -> (i32, i32, i32) {
    %c0_i32 = arith.constant 0 : i32
    %c0_i32_0 = arith.constant 0 : i32
    %c0_i32_1 = arith.constant 0 : i32
    %c0_i32_2 = arith.constant 0 : i32
    return %c0_i32, %c0_i32_0, %c0_i32_1 : i32, i32, i32
  }
  func.func @transform_8(%arg0: i32) -> (i32, i32, i32) {
    %c0_i32 = arith.constant 0 : i32
    %c0_i32_0 = arith.constant 0 : i32
    %c0_i32_1 = arith.constant 0 : i32
    %c0_i32_2 = arith.constant 0 : i32
    return %c0_i32, %c0_i32_0, %c0_i32_1 : i32, i32, i32
  }
  func.func @transform_9(%arg0: i32) -> (i32, i32, i32) {
    %c0_i32 = arith.constant 0 : i32
    %c0_i32_0 = arith.constant 0 : i32
    %c0_i32_1 = arith.constant 0 : i32
    %c0_i32_2 = arith.constant 0 : i32
    return %c0_i32, %c0_i32_0, %c0_i32_1 : i32, i32, i32
  }
  func.func @transform_10(%arg0: i32) -> (i32, i32, i32) {
    %c0_i32 = arith.constant 0 : i32
    %c0_i32_0 = arith.constant 0 : i32
    %c0_i32_1 = arith.constant 0 : i32
    %c0_i32_2 = arith.constant 0 : i32
    return %c0_i32, %c0_i32_0, %c0_i32_1 : i32, i32, i32
  }
  func.func @transform_11(%arg0: i32) -> (i32, i32, i32) {
    %c0_i32 = arith.constant 0 : i32
    %c0_i32_0 = arith.constant 0 : i32
    %c0_i32_1 = arith.constant 0 : i32
    %c0_i32_2 = arith.constant 0 : i32
    return %c0_i32, %c0_i32_0, %c0_i32_1 : i32, i32, i32
  }
  func.func @transform_12(%arg0: i32) -> (i32, i32, i32) {
    %c0_i32 = arith.constant 0 : i32
    %c0_i32_0 = arith.constant 0 : i32
    %c0_i32_1 = arith.constant 0 : i32
    %c0_i32_2 = arith.constant 0 : i32
    return %c0_i32, %c0_i32_0, %c0_i32_1 : i32, i32, i32
  }
  func.func @transform_13(%arg0: i32) -> (i32, i32, i32) {
    %c0_i32 = arith.constant 0 : i32
    %c0_i32_0 = arith.constant 0 : i32
    %c0_i32_1 = arith.constant 0 : i32
    %c0_i32_2 = arith.constant 0 : i32
    return %c0_i32, %c0_i32_0, %c0_i32_1 : i32, i32, i32
  }
  func.func @transform_14(%arg0: i32) -> (i32, i32) {
    %c0_i32 = arith.constant 0 : i32
    %c0_i32_0 = arith.constant 0 : i32
    %c0_i32_1 = arith.constant 0 : i32
    return %c0_i32, %c0_i32_0 : i32, i32
  }
  func.func @transform_15(%arg0: i32) -> (i32, i32) {
    %c0_i32 = arith.constant 0 : i32
    %c0_i32_0 = arith.constant 0 : i32
    %c0_i32_1 = arith.constant 0 : i32
    return %c0_i32, %c0_i32_0 : i32, i32
  }
  func.func @transform_16(%arg0: i32) -> (i32, i32) {
    %c0_i32 = arith.constant 0 : i32
    %c0_i32_0 = arith.constant 0 : i32
    %c0_i32_1 = arith.constant 0 : i32
    return %c0_i32, %c0_i32_0 : i32, i32
  }
  func.func @transform_17(%arg0: i32) -> (i32, i32) {
    %c0_i32 = arith.constant 0 : i32
    %c0_i32_0 = arith.constant 0 : i32
    %c0_i32_1 = arith.constant 0 : i32
    return %c0_i32, %c0_i32_0 : i32, i32
  }
  func.func @transform_18(%arg0: i32) -> (i32, i32) {
    %c0_i32 = arith.constant 0 : i32
    %c0_i32_0 = arith.constant 0 : i32
    %c0_i32_1 = arith.constant 0 : i32
    return %c0_i32, %c0_i32_0 : i32, i32
  }
  func.func @transform_19(%arg0: i32) -> (i32, i32) {
    %c0_i32 = arith.constant 0 : i32
    %c0_i32_0 = arith.constant 0 : i32
    %c0_i32_1 = arith.constant 0 : i32
    return %c0_i32, %c0_i32_0 : i32, i32
  }
  func.func @transform_20(%arg0: i32) -> (i32, i32) {
    %c0_i32 = arith.constant 0 : i32
    %c0_i32_0 = arith.constant 0 : i32
    %c0_i32_1 = arith.constant 0 : i32
    return %c0_i32, %c0_i32_0 : i32, i32
  }
  func.func @transform_21(%arg0: i32) -> (i32, i32) {
    %c0_i32 = arith.constant 0 : i32
    %c0_i32_0 = arith.constant 0 : i32
    %c0_i32_1 = arith.constant 0 : i32
    return %c0_i32, %c0_i32_0 : i32, i32
  }
  func.func @transform_22(%arg0: i32) -> (i32, i32, i32) {
    %c0_i32 = arith.constant 0 : i32
    %c0_i32_0 = arith.constant 0 : i32
    %c0_i32_1 = arith.constant 0 : i32
    return %arg0, %c0_i32, %c0_i32_0 : i32, i32, i32
  }
}

</mosaic_0001>

<llo_original>
// kernel: tpu_custom_call.1
$region0: #{tpu_custom_call.1}
  #allocation0 [shape = 'u32[]', space=smem, size = 0x4, offset = 0x4, fixed_abs, tag = 'smem constant byte address 0x4 - core index']
  #allocation1 [shape = 'u32[144,128]{1,0:T(1,128)}', space=vmem, size = 0x12000, scoped, tag = 'internal scratch']
  #allocation2 [shape = 'f32[32,32]{1,0:T(8,128)}', space=vmem, size = 0x4000, scoped, tag = 'scratch operand']
  %s0 = inlined_call_operand.vmem [shape: bf16[240,32], index: 0, kind: input, shape index: {}]
  %s1 = inlined_call_operand.vmem [shape: bf16[16,240], index: 1, kind: input, shape index: {}]
  %s2 = inlined_call_operand.vmem [shape: f32[4,16,8], index: 2, kind: input, shape index: {}]
  %s3 = inlined_call_operand.vmem [shape: f32[4,16,3], index: 3, kind: input, shape index: {}]
  %s4 = inlined_call_operand.vmem [shape: f32[4,240,5], index: 4, kind: input, shape index: {}]
  %s5 = inlined_call_operand.vmem [shape: f32[8,32], index: 5, kind: input, shape index: {}]
  %s6 = inlined_call_operand.vmem [shape: f32[1,32], index: 6, kind: input, shape index: {}]
  %s7 = inlined_call_operand.vmem [shape: f32[4,32,64], index: 7, kind: input, shape index: {}]
  %s8 = inlined_call_operand.vmem [shape: f32[4,6,32], index: 8, kind: input, shape index: {}]
  %s9 = inlined_call_operand.vmem [shape: f32[4,32,32], index: 9, kind: input, shape index: {}]
  %s10 = inlined_call_operand.vmem [shape: f32[4,1,32], index: 10, kind: input, shape index: {}]
  %s11 = inlined_call_operand.vmem [shape: f32[4,73,32], index: 11, kind: input, shape index: {}]
  %s12 = inlined_call_operand.vmem [shape: f32[4,32,32], index: 12, kind: input, shape index: {}]
  %s13 = inlined_call_operand.vmem [shape: f32[4,1,32], index: 13, kind: input, shape index: {}]
  %s14 = inlined_call_operand.vmem [shape: f32[32,32], index: 14, kind: input, shape index: {}]
  %s15 = inlined_call_operand.vmem [shape: f32[1,32], index: 15, kind: input, shape index: {}]
  %s16 = inlined_call_operand.vmem [shape: f32[32,32], index: 16, kind: input, shape index: {}]
  %s17 = inlined_call_operand.vmem [shape: f32[1,32], index: 17, kind: input, shape index: {}]
  %s18 = inlined_call_operand.vmem [shape: f32[32,32], index: 18, kind: input, shape index: {}]
  %s19 = inlined_call_operand.vmem [shape: f32[1,32], index: 19, kind: input, shape index: {}]
  %s20 = inlined_call_operand.vmem [shape: f32[32,21], index: 20, kind: input, shape index: {}]
  %s21 = inlined_call_operand.vmem [shape: f32[1,21], index: 21, kind: input, shape index: {}]
  %s22 = inlined_call_operand.hbm [shape: f32[4,16,21], index: 22, kind: output, shape index: {}]
  %s23 = sld [smem:[#allocation0]]
  $region121: #{tpu_custom_call.1} parent=0
    _
  %s25 = ssub.s32 1, %s23
  %s26 = scalar_select 0, %s25, %s23
  $region1: #{tpu_custom_call.1} parent=0
    #allocation3 [shape = 'u8[16384]{0}', space=vmem, size = 0x4000, scoped, tag = 'output window, operand 0']
    #allocation4 [shape = 's32[2]{0}', space=sflag, size = 0x8, scoped, tag = 'scoped memory for tpu_custom_call.1']
    %27 = vsyncpa [#allocation4], 0
    %s28 = scalar_lea.sflag [#allocation4], 1
    %29 = vsyncpa %s28, 0
    loop: start=0, step=1, limit=6
    $region2: #{tpu_custom_call.1} parent=1 // loop_pre_header
      _
    $region3: #{tpu_custom_call.1} parent=1 // loop_header
      %s31 = sphi 0, %s35
      %p32 = scmp.ge.s32.totalorder %s31, 6
      %s39 = sphi 0, %s39
      %s41 = sphi 0, %s39
      %s42 = sphi 0, %s41
      %s56 = sphi 0, %s42
      %s60 = sphi 0, %s60
      %s62 = sphi 0, %s60
      %s63 = sphi 0, %s62
      %s77 = sphi 0, %s63
      %s83 = sphi 0, %s85
      %s86 = sphi 0, %s83
      %s87 = sphi 0, %s86
      %s103 = sphi 0, %s87
      %s109 = sphi 0, %s111
      %s112 = sphi 0, %s109
      %s113 = sphi 0, %s112
      %s129 = sphi 0, %s113
      %s135 = sphi 0, %s137
      %s138 = sphi 0, %s135
      %s139 = sphi 0, %s138
      %s155 = sphi 0, %s139
      %s159 = sphi 0, %s159
      %s161 = sphi 0, %s159
      %s162 = sphi 0, %s161
      %s176 = sphi 0, %s162
      %s180 = sphi 0, %s180
      %s182 = sphi 0, %s180
      %s183 = sphi 0, %s182
      %s197 = sphi 0, %s183
      %s201 = sphi 0, %s201
      %s203 = sphi 0, %s201
      %s204 = sphi 0, %s203
      %s218 = sphi 0, %s204
      %s222 = sphi 0, %s222
      %s224 = sphi 0, %s222
      %s225 = sphi 0, %s224
      %s239 = sphi 0, %s225
      %s243 = sphi 0, %s243
      %s245 = sphi 0, %s243
      %s246 = sphi 0, %s245
      %s260 = sphi 0, %s246
      %s264 = sphi 0, %s264
      %s266 = sphi 0, %s264
      %s267 = sphi 0, %s266
      %s281 = sphi 0, %s267
      %s285 = sphi 0, %s285
      %s287 = sphi 0, %s285
      %s288 = sphi 0, %s287
      %s302 = sphi 0, %s288
      %s306 = sphi 0, %s306
      %s308 = sphi 0, %s306
      %s309 = sphi 0, %s308
      %s323 = sphi 0, %s309
      %s327 = sphi 0, %s327
      %s329 = sphi 0, %s327
      %s330 = sphi 0, %s329
      %s344 = sphi 0, %s330
      %s348 = sphi 0, %s348
      %s350 = sphi 0, %s348
      %s351 = sphi 0, %s350
      %s365 = sphi 0, %s351
      %s369 = sphi 0, %s369
      %s371 = sphi 0, %s369
      %s372 = sphi 0, %s371
      %s386 = sphi 0, %s372
      %s390 = sphi 0, %s390
      %s392 = sphi 0, %s390
      %s393 = sphi 0, %s392
      %s407 = sphi 0, %s393
      %s411 = sphi 0, %s411
      %s413 = sphi 0, %s411
      %s414 = sphi 0, %s413
      %s428 = sphi 0, %s414
      %s432 = sphi 0, %s432
      %s434 = sphi 0, %s432
      %s435 = sphi 0, %s434
      %s449 = sphi 0, %s435
      %s453 = sphi 0, %s453
      %s455 = sphi 0, %s453
      %s456 = sphi 0, %s455
      %s470 = sphi 0, %s456
      %s474 = sphi 0, %s474
      %s476 = sphi 0, %s474
      %s477 = sphi 0, %s476
      %s491 = sphi 0, %s477
      %s495 = sphi 0, %s495
      %s497 = sphi 0, %s495
      %s498 = sphi 0, %s497
      %s512 = sphi 0, %s498
      %s518 = sphi 0, %s520
      %s521 = sphi 0, %s518
      %s522 = sphi 0, %s521
      %s538 = sphi 0, %s522
    $region4: #{tpu_custom_call.1} parent=1 // loop_header_branch
      %34 = sbr.rel (%p32) target = $region8
    $region5: #{tpu_custom_call.1} parent=1 // loop_body
      %s36 = ssub.s32 %s31, 1
      %s37 = ssub.s32 %s31, 2
      %s38 = sadd.s32 %s31, 1
      %s40 = sadd.s32 %s39, 1
      %p43 = scmp.eq.s32.totalorder %s31, 3
      %p44 = scmp.ne.s32.totalorder %s39, %s41
      %p45 = scmp.eq.s32.totalorder %s31, 0
      %p46 = por %p44, %p45
      %p47 = scmp.ne.s32.totalorder %s39, %s41
      %p48 = scmp.eq.s32.totalorder %s36, 3
      %p49 = por %p47, %p48
      %p50 = scmp.ne.s32.totalorder %s41, %s42
      %p51 = scmp.eq.s32.totalorder %s36, 0
      %p52 = por %p50, %p51
      %p53 = scmp.ne.s32.totalorder %s41, %s42
      %p54 = scmp.eq.s32.totalorder %s37, 3
      %p55 = por %p53, %p54
      %p57 = scmp.ne.s32.totalorder %s42, %s56
      %p58 = scmp.eq.s32.totalorder %s37, 0
      %p59 = por %p57, %p58
      %s61 = sadd.s32 %s60, 1
      %p64 = scmp.eq.s32.totalorder %s31, 3
      %p65 = scmp.ne.s32.totalorder %s60, %s62
      %p66 = scmp.eq.s32.totalorder %s31, 0
      %p67 = por %p65, %p66
      %p68 = scmp.ne.s32.totalorder %s60, %s62
      %p69 = scmp.eq.s32.totalorder %s36, 3
      %p70 = por %p68, %p69
      %p71 = scmp.ne.s32.totalorder %s62, %s63
      %p72 = scmp.eq.s32.totalorder %s36, 0
      %p73 = por %p71, %p72
      %p74 = scmp.ne.s32.totalorder %s62, %s63
      %p75 = scmp.eq.s32.totalorder %s37, 3
      %p76 = por %p74, %p75
      %p78 = scmp.ne.s32.totalorder %s63, %s77
      %p79 = scmp.eq.s32.totalorder %s37, 0
      %p80 = por %p78, %p79
      %s81 = ssub.s32 %s31, %s38
      %p82 = scmp.eq.s32.totalorder %s81, 0
      %s84 = sadd.s32 %s83, 1
      %s85 = scalar_select %p82, %s83, %s84
      %p88 = pneg %p82
      %p89 = scmp.eq.s32.totalorder %s31, 3
      %p90 = por %p88, %p89
      %p91 = scmp.ne.s32.totalorder %s83, %s86
      %p92 = scmp.eq.s32.totalorder %s31, 0
      %p93 = por %p91, %p92
      %p94 = scmp.ne.s32.totalorder %s83, %s86
      %p95 = scmp.eq.s32.totalorder %s36, 3
      %p96 = por %p94, %p95
      %p97 = scmp.ne.s32.totalorder %s86, %s87
      %p98 = scmp.eq.s32.totalorder %s36, 0
      %p99 = por %p97, %p98
      %p100 = scmp.ne.s32.totalorder %s86, %s87
      %p101 = scmp.eq.s32.totalorder %s37, 3
      %p102 = por %p100, %p101
      %p104 = scmp.ne.s32.totalorder %s87, %s103
      %p105 = scmp.eq.s32.totalorder %s37, 0
      %p106 = por %p104, %p105
      %s107 = ssub.s32 %s31, %s38
      %p108 = scmp.eq.s32.totalorder %s107, 0
      %s110 = sadd.s32 %s109, 1
      %s111 = scalar_select %p108, %s109, %s110
      %p114 = pneg %p108
      %p115 = scmp.eq.s32.totalorder %s31, 3
      %p116 = por %p114, %p115
      %p117 = scmp.ne.s32.totalorder %s109, %s112
      %p118 = scmp.eq.s32.totalorder %s31, 0
      %p119 = por %p117, %p118
      %p120 = scmp.ne.s32.totalorder %s109, %s112
      %p121 = scmp.eq.s32.totalorder %s36, 3
      %p122 = por %p120, %p121
      %p123 = scmp.ne.s32.totalorder %s112, %s113
      %p124 = scmp.eq.s32.totalorder %s36, 0
      %p125 = por %p123, %p124
      %p126 = scmp.ne.s32.totalorder %s112, %s113
      %p127 = scmp.eq.s32.totalorder %s37, 3
      %p128 = por %p126, %p127
      %p130 = scmp.ne.s32.totalorder %s113, %s129
      %p131 = scmp.eq.s32.totalorder %s37, 0
      %p132 = por %p130, %p131
      %s133 = ssub.s32 %s31, %s38
      %p134 = scmp.eq.s32.totalorder %s133, 0
      %s136 = sadd.s32 %s135, 1
      %s137 = scalar_select %p134, %s135, %s136
      %p140 = pneg %p134
      %p141 = scmp.eq.s32.totalorder %s31, 3
      %p142 = por %p140, %p141
      %p143 = scmp.ne.s32.totalorder %s135, %s138
      %p144 = scmp.eq.s32.totalorder %s31, 0
      %p145 = por %p143, %p144
      %p146 = scmp.ne.s32.totalorder %s135, %s138
      %p147 = scmp.eq.s32.totalorder %s36, 3
      %p148 = por %p146, %p147
      %p149 = scmp.ne.s32.totalorder %s138, %s139
      %p150 = scmp.eq.s32.totalorder %s36, 0
      %p151 = por %p149, %p150
      %p152 = scmp.ne.s32.totalorder %s138, %s139
      %p153 = scmp.eq.s32.totalorder %s37, 3
      %p154 = por %p152, %p153
      %p156 = scmp.ne.s32.totalorder %s139, %s155
      %p157 = scmp.eq.s32.totalorder %s37, 0
      %p158 = por %p156, %p157
      %s160 = sadd.s32 %s159, 1
      %p163 = scmp.eq.s32.totalorder %s31, 3
      %p164 = scmp.ne.s32.totalorder %s159, %s161
      %p165 = scmp.eq.s32.totalorder %s31, 0
      %p166 = por %p164, %p165
      %p167 = scmp.ne.s32.totalorder %s159, %s161
      %p168 = scmp.eq.s32.totalorder %s36, 3
      %p169 = por %p167, %p168
      %p170 = scmp.ne.s32.totalorder %s161, %s162
      %p171 = scmp.eq.s32.totalorder %s36, 0
      %p172 = por %p170, %p171
      %p173 = scmp.ne.s32.totalorder %s161, %s162
      %p174 = scmp.eq.s32.totalorder %s37, 3
      %p175 = por %p173, %p174
      %p177 = scmp.ne.s32.totalorder %s162, %s176
      %p178 = scmp.eq.s32.totalorder %s37, 0
      %p179 = por %p177, %p178
      %s181 = sadd.s32 %s180, 1
      %p184 = scmp.eq.s32.totalorder %s31, 3
      %p185 = scmp.ne.s32.totalorder %s180, %s182
      %p186 = scmp.eq.s32.totalorder %s31, 0
      %p187 = por %p185, %p186
      %p188 = scmp.ne.s32.totalorder %s180, %s182
      %p189 = scmp.eq.s32.totalorder %s36, 3
      %p190 = por %p188, %p189
      %p191 = scmp.ne.s32.totalorder %s182, %s183
      %p192 = scmp.eq.s32.totalorder %s36, 0
      %p193 = por %p191, %p192
      %p194 = scmp.ne.s32.totalorder %s182, %s183
      %p195 = scmp.eq.s32.totalorder %s37, 3
      %p196 = por %p194, %p195
      %p198 = scmp.ne.s32.totalorder %s183, %s197
      %p199 = scmp.eq.s32.totalorder %s37, 0
      %p200 = por %p198, %p199
      %s202 = sadd.s32 %s201, 1
      %p205 = scmp.eq.s32.totalorder %s31, 3
      %p206 = scmp.ne.s32.totalorder %s201, %s203
      %p207 = scmp.eq.s32.totalorder %s31, 0
      %p208 = por %p206, %p207
      %p209 = scmp.ne.s32.totalorder %s201, %s203
      %p210 = scmp.eq.s32.totalorder %s36, 3
      %p211 = por %p209, %p210
      %p212 = scmp.ne.s32.totalorder %s203, %s204
      %p213 = scmp.eq.s32.totalorder %s36, 0
      %p214 = por %p212, %p213
      %p215 = scmp.ne.s32.totalorder %s203, %s204
      %p216 = scmp.eq.s32.totalorder %s37, 3
      %p217 = por %p215, %p216
      %p219 = scmp.ne.s32.totalorder %s204, %s218
      %p220 = scmp.eq.s32.totalorder %s37, 0
      %p221 = por %p219, %p220
      %s223 = sadd.s32 %s222, 1
      %p226 = scmp.eq.s32.totalorder %s31, 3
      %p227 = scmp.ne.s32.totalorder %s222, %s224
      %p228 = scmp.eq.s32.totalorder %s31, 0
      %p229 = por %p227, %p228
      %p230 = scmp.ne.s32.totalorder %s222, %s224
      %p231 = scmp.eq.s32.totalorder %s36, 3
      %p232 = por %p230, %p231
      %p233 = scmp.ne.s32.totalorder %s224, %s225
      %p234 = scmp.eq.s32.totalorder %s36, 0
      %p235 = por %p233, %p234
      %p236 = scmp.ne.s32.totalorder %s224, %s225
      %p237 = scmp.eq.s32.totalorder %s37, 3
      %p238 = por %p236, %p237
      %p240 = scmp.ne.s32.totalorder %s225, %s239
      %p241 = scmp.eq.s32.totalorder %s37, 0
      %p242 = por %p240, %p241
      %s244 = sadd.s32 %s243, 1
      %p247 = scmp.eq.s32.totalorder %s31, 3
      %p248 = scmp.ne.s32.totalorder %s243, %s245
      %p249 = scmp.eq.s32.totalorder %s31, 0
      %p250 = por %p248, %p249
      %p251 = scmp.ne.s32.totalorder %s243, %s245
      %p252 = scmp.eq.s32.totalorder %s36, 3
      %p253 = por %p251, %p252
      %p254 = scmp.ne.s32.totalorder %s245, %s246
      %p255 = scmp.eq.s32.totalorder %s36, 0
      %p256 = por %p254, %p255
      %p257 = scmp.ne.s32.totalorder %s245, %s246
      %p258 = scmp.eq.s32.totalorder %s37, 3
      %p259 = por %p257, %p258
      %p261 = scmp.ne.s32.totalorder %s246, %s260
      %p262 = scmp.eq.s32.totalorder %s37, 0
      %p263 = por %p261, %p262
      %s265 = sadd.s32 %s264, 1
      %p268 = scmp.eq.s32.totalorder %s31, 3
      %p269 = scmp.ne.s32.totalorder %s264, %s266
      %p270 = scmp.eq.s32.totalorder %s31, 0
      %p271 = por %p269, %p270
      %p272 = scmp.ne.s32.totalorder %s264, %s266
      %p273 = scmp.eq.s32.totalorder %s36, 3
      %p274 = por %p272, %p273
      %p275 = scmp.ne.s32.totalorder %s266, %s267
      %p276 = scmp.eq.s32.totalorder %s36, 0
      %p277 = por %p275, %p276
      %p278 = scmp.ne.s32.totalorder %s266, %s267
      %p279 = scmp.eq.s32.totalorder %s37, 3
      %p280 = por %p278, %p279
      %p282 = scmp.ne.s32.totalorder %s267, %s281
      %p283 = scmp.eq.s32.totalorder %s37, 0
      %p284 = por %p282, %p283
      %s286 = sadd.s32 %s285, 1
      %p289 = scmp.eq.s32.totalorder %s31, 3
      %p290 = scmp.ne.s32.totalorder %s285, %s287
      %p291 = scmp.eq.s32.totalorder %s31, 0
      %p292 = por %p290, %p291
      %p293 = scmp.ne.s32.totalorder %s285, %s287
      %p294 = scmp.eq.s32.totalorder %s36, 3
      %p295 = por %p293, %p294
      %p296 = scmp.ne.s32.totalorder %s287, %s288
      %p297 = scmp.eq.s32.totalorder %s36, 0
      %p298 = por %p296, %p297
      %p299 = scmp.ne.s32.totalorder %s287, %s288
      %p300 = scmp.eq.s32.totalorder %s37, 3
      %p301 = por %p299, %p300
      %p303 = scmp.ne.s32.totalorder %s288, %s302
      %p304 = scmp.eq.s32.totalorder %s37, 0
      %p305 = por %p303, %p304
      %s307 = sadd.s32 %s306, 1
      %p310 = scmp.eq.s32.totalorder %s31, 3
      %p311 = scmp.ne.s32.totalorder %s306, %s308
      %p312 = scmp.eq.s32.totalorder %s31, 0
      %p313 = por %p311, %p312
      %p314 = scmp.ne.s32.totalorder %s306, %s308
      %p315 = scmp.eq.s32.totalorder %s36, 3
      %p316 = por %p314, %p315
      %p317 = scmp.ne.s32.totalorder %s308, %s309
      %p318 = scmp.eq.s32.totalorder %s36, 0
      %p319 = por %p317, %p318
      %p320 = scmp.ne.s32.totalorder %s308, %s309
      %p321 = scmp.eq.s32.totalorder %s37, 3
      %p322 = por %p320, %p321
      %p324 = scmp.ne.s32.totalorder %s309, %s323
      %p325 = scmp.eq.s32.totalorder %s37, 0
      %p326 = por %p324, %p325
      %s328 = sadd.s32 %s327, 1
      %p331 = scmp.eq.s32.totalorder %s31, 3
      %p332 = scmp.ne.s32.totalorder %s327, %s329
      %p333 = scmp.eq.s32.totalorder %s31, 0
      %p334 = por %p332, %p333
      %p335 = scmp.ne.s32.totalorder %s327, %s329
      %p336 = scmp.eq.s32.totalorder %s36, 3
      %p337 = por %p335, %p336
      %p338 = scmp.ne.s32.totalorder %s329, %s330
      %p339 = scmp.eq.s32.totalorder %s36, 0
      %p340 = por %p338, %p339
      %p341 = scmp.ne.s32.totalorder %s329, %s330
      %p342 = scmp.eq.s32.totalorder %s37, 3
      %p343 = por %p341, %p342
      %p345 = scmp.ne.s32.totalorder %s330, %s344
      %p346 = scmp.eq.s32.totalorder %s37, 0
      %p347 = por %p345, %p346
      %s349 = sadd.s32 %s348, 1
      %p352 = scmp.eq.s32.totalorder %s31, 3
      %p353 = scmp.ne.s32.totalorder %s348, %s350
      %p354 = scmp.eq.s32.totalorder %s31, 0
      %p355 = por %p353, %p354
      %p356 = scmp.ne.s32.totalorder %s348, %s350
      %p357 = scmp.eq.s32.totalorder %s36, 3
      %p358 = por %p356, %p357
      %p359 = scmp.ne.s32.totalorder %s350, %s351
      %p360 = scmp.eq.s32.totalorder %s36, 0
      %p361 = por %p359, %p360
      %p362 = scmp.ne.s32.totalorder %s350, %s351
      %p363 = scmp.eq.s32.totalorder %s37, 3
      %p364 = por %p362, %p363
      %p366 = scmp.ne.s32.totalorder %s351, %s365
      %p367 = scmp.eq.s32.totalorder %s37, 0
      %p368 = por %p366, %p367
      %s370 = sadd.s32 %s369, 1
      %p373 = scmp.eq.s32.totalorder %s31, 3
      %p374 = scmp.ne.s32.totalorder %s369, %s371
      %p375 = scmp.eq.s32.totalorder %s31, 0
      %p376 = por %p374, %p375
      %p377 = scmp.ne.s32.totalorder %s369, %s371
      %p378 = scmp.eq.s32.totalorder %s36, 3
      %p379 = por %p377, %p378
      %p380 = scmp.ne.s32.totalorder %s371, %s372
      %p381 = scmp.eq.s32.totalorder %s36, 0
      %p382 = por %p380, %p381
      %p383 = scmp.ne.s32.totalorder %s371, %s372
      %p384 = scmp.eq.s32.totalorder %s37, 3
      %p385 = por %p383, %p384
      %p387 = scmp.ne.s32.totalorder %s372, %s386
      %p388 = scmp.eq.s32.totalorder %s37, 0
      %p389 = por %p387, %p388
      %s391 = sadd.s32 %s390, 1
      %p394 = scmp.eq.s32.totalorder %s31, 3
      %p395 = scmp.ne.s32.totalorder %s390, %s392
      %p396 = scmp.eq.s32.totalorder %s31, 0
      %p397 = por %p395, %p396
      %p398 = scmp.ne.s32.totalorder %s390, %s392
      %p399 = scmp.eq.s32.totalorder %s36, 3
      %p400 = por %p398, %p399
      %p401 = scmp.ne.s32.totalorder %s392, %s393
      %p402 = scmp.eq.s32.totalorder %s36, 0
      %p403 = por %p401, %p402
      %p404 = scmp.ne.s32.totalorder %s392, %s393
      %p405 = scmp.eq.s32.totalorder %s37, 3
      %p406 = por %p404, %p405
      %p408 = scmp.ne.s32.totalorder %s393, %s407
      %p409 = scmp.eq.s32.totalorder %s37, 0
      %p410 = por %p408, %p409
      %s412 = sadd.s32 %s411, 1
      %p415 = scmp.eq.s32.totalorder %s31, 3
      %p416 = scmp.ne.s32.totalorder %s411, %s413
      %p417 = scmp.eq.s32.totalorder %s31, 0
      %p418 = por %p416, %p417
      %p419 = scmp.ne.s32.totalorder %s411, %s413
      %p420 = scmp.eq.s32.totalorder %s36, 3
      %p421 = por %p419, %p420
      %p422 = scmp.ne.s32.totalorder %s413, %s414
      %p423 = scmp.eq.s32.totalorder %s36, 0
      %p424 = por %p422, %p423
      %p425 = scmp.ne.s32.totalorder %s413, %s414
      %p426 = scmp.eq.s32.totalorder %s37, 3
      %p427 = por %p425, %p426
      %p429 = scmp.ne.s32.totalorder %s414, %s428
      %p430 = scmp.eq.s32.totalorder %s37, 0
      %p431 = por %p429, %p430
      %s433 = sadd.s32 %s432, 1
      %p436 = scmp.eq.s32.totalorder %s31, 3
      %p437 = scmp.ne.s32.totalorder %s432, %s434
      %p438 = scmp.eq.s32.totalorder %s31, 0
      %p439 = por %p437, %p438
      %p440 = scmp.ne.s32.totalorder %s432, %s434
      %p441 = scmp.eq.s32.totalorder %s36, 3
      %p442 = por %p440, %p441
      %p443 = scmp.ne.s32.totalorder %s434, %s435
      %p444 = scmp.eq.s32.totalorder %s36, 0
      %p445 = por %p443, %p444
      %p446 = scmp.ne.s32.totalorder %s434, %s435
      %p447 = scmp.eq.s32.totalorder %s37, 3
      %p448 = por %p446, %p447
      %p450 = scmp.ne.s32.totalorder %s435, %s449
      %p451 = scmp.eq.s32.totalorder %s37, 0
      %p452 = por %p450, %p451
      %s454 = sadd.s32 %s453, 1
      %p457 = scmp.eq.s32.totalorder %s31, 3
      %p458 = scmp.ne.s32.totalorder %s453, %s455
      %p459 = scmp.eq.s32.totalorder %s31, 0
      %p460 = por %p458, %p459
      %p461 = scmp.ne.s32.totalorder %s453, %s455
      %p462 = scmp.eq.s32.totalorder %s36, 3
      %p463 = por %p461, %p462
      %p464 = scmp.ne.s32.totalorder %s455, %s456
      %p465 = scmp.eq.s32.totalorder %s36, 0
      %p466 = por %p464, %p465
      %p467 = scmp.ne.s32.totalorder %s455, %s456
      %p468 = scmp.eq.s32.totalorder %s37, 3
      %p469 = por %p467, %p468
      %p471 = scmp.ne.s32.totalorder %s456, %s470
      %p472 = scmp.eq.s32.totalorder %s37, 0
      %p473 = por %p471, %p472
      %s475 = sadd.s32 %s474, 1
      %p478 = scmp.eq.s32.totalorder %s31, 3
      %p479 = scmp.ne.s32.totalorder %s474, %s476
      %p480 = scmp.eq.s32.totalorder %s31, 0
      %p481 = por %p479, %p480
      %p482 = scmp.ne.s32.totalorder %s474, %s476
      %p483 = scmp.eq.s32.totalorder %s36, 3
      %p484 = por %p482, %p483
      %p485 = scmp.ne.s32.totalorder %s476, %s477
      %p486 = scmp.eq.s32.totalorder %s36, 0
      %p487 = por %p485, %p486
      %p488 = scmp.ne.s32.totalorder %s476, %s477
      %p489 = scmp.eq.s32.totalorder %s37, 3
      %p490 = por %p488, %p489
      %p492 = scmp.ne.s32.totalorder %s477, %s491
      %p493 = scmp.eq.s32.totalorder %s37, 0
      %p494 = por %p492, %p493
      %s496 = sadd.s32 %s495, 1
      %p499 = scmp.eq.s32.totalorder %s31, 3
      %p500 = scmp.ne.s32.totalorder %s495, %s497
      %p501 = scmp.eq.s32.totalorder %s31, 0
      %p502 = por %p500, %p501
      %p503 = scmp.ne.s32.totalorder %s495, %s497
      %p504 = scmp.eq.s32.totalorder %s36, 3
      %p505 = por %p503, %p504
      %p506 = scmp.ne.s32.totalorder %s497, %s498
      %p507 = scmp.eq.s32.totalorder %s36, 0
      %p508 = por %p506, %p507
      %p509 = scmp.ne.s32.totalorder %s497, %s498
      %p510 = scmp.eq.s32.totalorder %s37, 3
      %p511 = por %p509, %p510
      %p513 = scmp.ne.s32.totalorder %s498, %s512
      %p514 = scmp.eq.s32.totalorder %s37, 0
      %p515 = por %p513, %p514
      %s516 = ssub.s32 %s31, %s38
      %p517 = scmp.eq.s32.totalorder %s516, 0
      %s519 = sadd.s32 %s518, 1
      %s520 = scalar_select %p517, %s518, %s519
      %p523 = pneg %p517
      %p524 = scmp.eq.s32.totalorder %s31, 3
      %p525 = por %p523, %p524
      %p526 = scmp.ne.s32.totalorder %s518, %s521
      %p527 = scmp.eq.s32.totalorder %s31, 0
      %p528 = por %p526, %p527
      %p529 = scmp.ne.s32.totalorder %s518, %s521
      %p530 = scmp.eq.s32.totalorder %s36, 3
      %p531 = por %p529, %p530
      %p532 = scmp.ne.s32.totalorder %s521, %s522
      %p533 = scmp.eq.s32.totalorder %s36, 0
      %p534 = por %p532, %p533
      %p535 = scmp.ne.s32.totalorder %s521, %s522
      %p536 = scmp.eq.s32.totalorder %s37, 3
      %p537 = por %p535, %p536
      %p539 = scmp.ne.s32.totalorder %s522, %s538
      %p540 = scmp.eq.s32.totalorder %s37, 0
      %p541 = por %p539, %p540
      %p542 = scmp.le.s32.totalorder 1, %s31
      %p543 = scmp.lt.s32.totalorder %s31, 5
      %p544 = pnand %p542, %p543
      %p545 = pneg %p544
      // Predicated region
      $region9: #{tpu_custom_call.1} parent=5 // pred_check
        _
      $region10: #{tpu_custom_call.1} parent=5 // pred_check_branch
        %547 = sbr.rel (%p544) target = $region12
      $region11: #{tpu_custom_call.1} parent=5 // pred_region
        %s548 = ssub.s32 %s31, 1
        // Predicated region
        $region13: #{tpu_custom_call.1} parent=11 // pred_check
          %p549 = pneg %p52
        $region14: #{tpu_custom_call.1} parent=11 // pred_check_branch
          %551 = sbr.rel (%p549) target = $region16
        $region15: #{tpu_custom_call.1} parent=11 // pred_region
          _
        $region16: #{tpu_custom_call.1} parent=11 // pred_fallthru
          _
        // Predicated region
        $region17: #{tpu_custom_call.1} parent=11 // pred_check
          %p552 = pneg %p73
        $region18: #{tpu_custom_call.1} parent=11 // pred_check_branch
          %554 = sbr.rel (%p552) target = $region20
        $region19: #{tpu_custom_call.1} parent=11 // pred_region
          _
        $region20: #{tpu_custom_call.1} parent=11 // pred_fallthru
          _
        // Predicated region
        $region21: #{tpu_custom_call.1} parent=11 // pred_check
          %p555 = pneg %p172
        $region22: #{tpu_custom_call.1} parent=11 // pred_check_branch
          %557 = sbr.rel (%p555) target = $region24
        $region23: #{tpu_custom_call.1} parent=11 // pred_region
          _
        $region24: #{tpu_custom_call.1} parent=11 // pred_fallthru
          _
        // Predicated region
        $region25: #{tpu_custom_call.1} parent=11 // pred_check
          %p558 = pneg %p193
        $region26: #{tpu_custom_call.1} parent=11 // pred_check_branch
          %560 = sbr.rel (%p558) target = $region28
        $region27: #{tpu_custom_call.1} parent=11 // pred_region
          _
        $region28: #{tpu_custom_call.1} parent=11 // pred_fallthru
          _
        // Predicated region
        $region29: #{tpu_custom_call.1} parent=11 // pred_check
          %p561 = pneg %p214
        $region30: #{tpu_custom_call.1} parent=11 // pred_check_branch
          %563 = sbr.rel (%p561) target = $region32
        $region31: #{tpu_custom_call.1} parent=11 // pred_region
          _
        $region32: #{tpu_custom_call.1} parent=11 // pred_fallthru
          _
        // Predicated region
        $region33: #{tpu_custom_call.1} parent=11 // pred_check
          %p564 = pneg %p235
        $region34: #{tpu_custom_call.1} parent=11 // pred_check_branch
          %566 = sbr.rel (%p564) target = $region36
        $region35: #{tpu_custom_call.1} parent=11 // pred_region
          _
        $region36: #{tpu_custom_call.1} parent=11 // pred_fallthru
          _
        // Predicated region
        $region37: #{tpu_custom_call.1} parent=11 // pred_check
          %p567 = pneg %p256
        $region38: #{tpu_custom_call.1} parent=11 // pred_check_branch
          %569 = sbr.rel (%p567) target = $region40
        $region39: #{tpu_custom_call.1} parent=11 // pred_region
          _
        $region40: #{tpu_custom_call.1} parent=11 // pred_fallthru
          _
        // Predicated region
        $region41: #{tpu_custom_call.1} parent=11 // pred_check
          %p570 = pneg %p277
        $region42: #{tpu_custom_call.1} parent=11 // pred_check_branch
          %572 = sbr.rel (%p570) target = $region44
        $region43: #{tpu_custom_call.1} parent=11 // pred_region
          _
        $region44: #{tpu_custom_call.1} parent=11 // pred_fallthru
          _
        // Predicated region
        $region45: #{tpu_custom_call.1} parent=11 // pred_check
          %p573 = pneg %p298
        $region46: #{tpu_custom_call.1} parent=11 // pred_check_branch
          %575 = sbr.rel (%p573) target = $region48
        $region47: #{tpu_custom_call.1} parent=11 // pred_region
          _
        $region48: #{tpu_custom_call.1} parent=11 // pred_fallthru
          _
        // Predicated region
        $region49: #{tpu_custom_call.1} parent=11 // pred_check
          %p576 = pneg %p319
        $region50: #{tpu_custom_call.1} parent=11 // pred_check_branch
          %578 = sbr.rel (%p576) target = $region52
        $region51: #{tpu_custom_call.1} parent=11 // pred_region
          _
        $region52: #{tpu_custom_call.1} parent=11 // pred_fallthru
          _
        // Predicated region
        $region53: #{tpu_custom_call.1} parent=11 // pred_check
          %p579 = pneg %p340
        $region54: #{tpu_custom_call.1} parent=11 // pred_check_branch
          %581 = sbr.rel (%p579) target = $region56
        $region55: #{tpu_custom_call.1} parent=11 // pred_region
          _
        $region56: #{tpu_custom_call.1} parent=11 // pred_fallthru
          _
        // Predicated region
        $region57: #{tpu_custom_call.1} parent=11 // pred_check
          %p582 = pneg %p361
        $region58: #{tpu_custom_call.1} parent=11 // pred_check_branch
          %584 = sbr.rel (%p582) target = $region60
        $region59: #{tpu_custom_call.1} parent=11 // pred_region
          _
        $region60: #{tpu_custom_call.1} parent=11 // pred_fallthru
          _
        // Predicated region
        $region61: #{tpu_custom_call.1} parent=11 // pred_check
          %p585 = pneg %p382
        $region62: #{tpu_custom_call.1} parent=11 // pred_check_branch
          %587 = sbr.rel (%p585) target = $region64
        $region63: #{tpu_custom_call.1} parent=11 // pred_region
          _
        $region64: #{tpu_custom_call.1} parent=11 // pred_fallthru
          _
        // Predicated region
        $region65: #{tpu_custom_call.1} parent=11 // pred_check
          %p588 = pneg %p403
        $region66: #{tpu_custom_call.1} parent=11 // pred_check_branch
          %590 = sbr.rel (%p588) target = $region68
        $region67: #{tpu_custom_call.1} parent=11 // pred_region
          _
        $region68: #{tpu_custom_call.1} parent=11 // pred_fallthru
          _
        // Predicated region
        $region69: #{tpu_custom_call.1} parent=11 // pred_check
          %p591 = pneg %p424
        $region70: #{tpu_custom_call.1} parent=11 // pred_check_branch
          %593 = sbr.rel (%p591) target = $region72
        $region71: #{tpu_custom_call.1} parent=11 // pred_region
          _
        $region72: #{tpu_custom_call.1} parent=11 // pred_fallthru
          _
        // Predicated region
        $region73: #{tpu_custom_call.1} parent=11 // pred_check
          %p594 = pneg %p445
        $region74: #{tpu_custom_call.1} parent=11 // pred_check_branch
          %596 = sbr.rel (%p594) target = $region76
        $region75: #{tpu_custom_call.1} parent=11 // pred_region
          _
        $region76: #{tpu_custom_call.1} parent=11 // pred_fallthru
          _
        // Predicated region
        $region77: #{tpu_custom_call.1} parent=11 // pred_check
          %p597 = pneg %p466
        $region78: #{tpu_custom_call.1} parent=11 // pred_check_branch
          %599 = sbr.rel (%p597) target = $region80
        $region79: #{tpu_custom_call.1} parent=11 // pred_region
          _
        $region80: #{tpu_custom_call.1} parent=11 // pred_fallthru
          _
        // Predicated region
        $region81: #{tpu_custom_call.1} parent=11 // pred_check
          %p600 = pneg %p487
        $region82: #{tpu_custom_call.1} parent=11 // pred_check_branch
          %602 = sbr.rel (%p600) target = $region84
        $region83: #{tpu_custom_call.1} parent=11 // pred_region
          _
        $region84: #{tpu_custom_call.1} parent=11 // pred_fallthru
          _
        // Predicated region
        $region85: #{tpu_custom_call.1} parent=11 // pred_check
          %p603 = pneg %p508
        $region86: #{tpu_custom_call.1} parent=11 // pred_check_branch
          %605 = sbr.rel (%p603) target = $region88
        $region87: #{tpu_custom_call.1} parent=11 // pred_region
          _
        $region88: #{tpu_custom_call.1} parent=11 // pred_fallthru
          _
      $region12: #{tpu_custom_call.1} parent=5 // pred_fallthru
        _
      %p606 = scmp.lt.s32.totalorder %s31, 4
      // Predicated region
      $region89: #{tpu_custom_call.1} parent=5 // pred_check
        %p607 = pneg %p606
      $region90: #{tpu_custom_call.1} parent=5 // pred_check_branch
        %609 = sbr.rel (%p607) target = $region92
      $region91: #{tpu_custom_call.1} parent=5 // pred_region
        // Predicated region
        $region93: #{tpu_custom_call.1} parent=91 // pred_check
          %p610 = pneg %p93
        $region94: #{tpu_custom_call.1} parent=91 // pred_check_branch
          %612 = sbr.rel (%p610) target = $region96
        $region95: #{tpu_custom_call.1} parent=91 // pred_region
          %p613 = scmp.lt.s32.totalorder %s31, 3
          %s614 = scalar_select %p613, %s31, 3
          %s615 = smul.addr %s614, 2
          %s616 = smul.addr %s615, 8
          %s617 = scalar_lea.vmem %s2, %s616
        $region96: #{tpu_custom_call.1} parent=91 // pred_fallthru
          _
        // Predicated region
        $region97: #{tpu_custom_call.1} parent=91 // pred_check
          %p618 = pneg %p119
        $region98: #{tpu_custom_call.1} parent=91 // pred_check_branch
          %620 = sbr.rel (%p618) target = $region100
        $region99: #{tpu_custom_call.1} parent=91 // pred_region
          %p621 = scmp.lt.s32.totalorder %s31, 3
          %s622 = scalar_select %p621, %s31, 3
          %s623 = smul.addr %s622, 2
          %s624 = smul.addr %s623, 8
          %s625 = scalar_lea.vmem %s3, %s624
        $region100: #{tpu_custom_call.1} parent=91 // pred_fallthru
          _
        // Predicated region
        $region101: #{tpu_custom_call.1} parent=91 // pred_check
          %p626 = pneg %p145
        $region102: #{tpu_custom_call.1} parent=91 // pred_check_branch
          %628 = sbr.rel (%p626) target = $region104
        $region103: #{tpu_custom_call.1} parent=91 // pred_region
          %p629 = scmp.lt.s32.totalorder %s31, 3
          %s630 = scalar_select %p629, %s31, 3
          %s631 = smul.addr %s630, 30
          %s632 = smul.addr %s631, 8
          %s633 = scalar_lea.vmem %s4, %s632
        $region104: #{tpu_custom_call.1} parent=91 // pred_fallthru
          _
      $region92: #{tpu_custom_call.1} parent=5 // pred_fallthru
        _
      %p634 = scmp.le.s32.totalorder 1, %s31
      %p635 = scmp.lt.s32.totalorder %s31, 5
      %p636 = pnand %p634, %p635
      %p637 = pneg %p636
      // Predicated region
      $region105: #{tpu_custom_call.1} parent=5 // pred_check
        _
      $region106: #{tpu_custom_call.1} parent=5 // pred_check_branch
        %639 = sbr.rel (%p636) target = $region108
      $region107: #{tpu_custom_call.1} parent=5 // pred_region
        %s640 = ssub.s32 %s31, 1
        %p641 = pneg %p52
        %p642 = pneg %p49
        %p643 = pneg %p73
        %p644 = pneg %p70
        %p645 = scmp.lt.s32.totalorder %s36, 3
        %s646 = scalar_select %p645, %s36, 3
        %s647 = smul.addr %s646, 2
        %s648 = smul.addr %s647, 8
        %s649 = scalar_lea.vmem %s2, %s648
        %p650 = pneg %p99
        %p651 = pneg %p96
        %p652 = scmp.lt.s32.totalorder %s36, 3
        %s653 = scalar_select %p652, %s36, 3
        %s654 = smul.addr %s653, 2
        %s655 = smul.addr %s654, 8
        %s656 = scalar_lea.vmem %s3, %s655
        %p657 = pneg %p125
        %p658 = pneg %p122
        %p659 = scmp.lt.s32.totalorder %s36, 3
        %s660 = scalar_select %p659, %s36, 3
        %s661 = smul.addr %s660, 30
        %s662 = smul.addr %s661, 8
        %s663 = scalar_lea.vmem %s4, %s662
        %p664 = pneg %p151
        %p665 = pneg %p148
        %p666 = pneg %p172
        %p667 = pneg %p169
        %p668 = pneg %p193
        %p669 = pneg %p190
        %p670 = pneg %p214
        %p671 = pneg %p211
        %p672 = pneg %p235
        %p673 = pneg %p232
        %p674 = pneg %p256
        %p675 = pneg %p253
        %p676 = pneg %p277
        %p677 = pneg %p274
        %p678 = pneg %p298
        %p679 = pneg %p295
        %p680 = pneg %p319
        %p681 = pneg %p316
        %p682 = pneg %p340
        %p683 = pneg %p337
        %p684 = pneg %p361
        %p685 = pneg %p358
        %p686 = pneg %p382
        %p687 = pneg %p379
        %p688 = pneg %p403
        %p689 = pneg %p400
        %p690 = pneg %p424
        %p691 = pneg %p421
        %p692 = pneg %p445
        %p693 = pneg %p442
        %p694 = pneg %p466
        %p695 = pneg %p463
        %p696 = pneg %p487
        %p697 = pneg %p484
        %p698 = pneg %p508
        %p699 = pneg %p505
        %p700 = pneg %p534
        %p701 = pneg %p531
        %s702 = sand.u32 %s521, 1
        %s703 = scalar_lea.sflag [#allocation4], %s702
        %s704 = sand.u32 %s521, 1
        %s705 = smul.addr %s704, 16
        %s706 = scalar_lea.vmem [#allocation3], %s705
        %p707 = scmp.lt.s32.totalorder %s36, 3
        %s708 = scalar_select %p707, %s36, 3
        %s709 = smul.addr %s708, 2
        %s710 = smul.addr %s709, 8
        %s711 = scalar_lea.vmem %s2, %s710
        %p712 = scmp.lt.s32.totalorder %s36, 3
        %s713 = scalar_select %p712, %s36, 3
        %s714 = smul.addr %s713, 2
        %s715 = smul.addr %s714, 8
        %s716 = scalar_lea.vmem %s3, %s715
        %p717 = scmp.lt.s32.totalorder %s36, 3
        %s718 = scalar_select %p717, %s36, 3
        %s719 = smul.addr %s718, 30
        %s720 = smul.addr %s719, 8
        %s721 = scalar_lea.vmem %s4, %s720
        %v722 = vld [vmem:[%s0] sm:$0xf]
        %v723 = vld [vmem:[%s0 + $0x4] sm:$0xf]
        %v724 = vld [vmem:[%s0 + $0x8] sm:$0xf]
        %v725 = vld [vmem:[%s0 + $0xc] sm:$0xf]
        %v726 = vld [vmem:[%s0 + $0x10] sm:$0xf]
        %v727 = vld [vmem:[%s0 + $0x14] sm:$0xf]
        %v728 = vld [vmem:[%s0 + $0x18] sm:$0xf]
        %v729 = vld [vmem:[%s0 + $0x1c] sm:$0xf]
        %v730 = vld [vmem:[%s0 + $0x20] sm:$0xf]
        %v731 = vld [vmem:[%s0 + $0x24] sm:$0xf]
        %v732 = vld [vmem:[%s0 + $0x28] sm:$0xf]
        %v733 = vld [vmem:[%s0 + $0x2c] sm:$0xf]
        %v734 = vld [vmem:[%s0 + $0x30] sm:$0xf]
        %v735 = vld [vmem:[%s0 + $0x34] sm:$0xf]
        %v736 = vld [vmem:[%s0 + $0x38] sm:$0xf]
        %v737 = vld [vmem:[%s0 + $0x3c] sm:$0xf]
        %v738 = vld [vmem:[%s0 + $0x40] sm:$0xf]
        %v739 = vld [vmem:[%s0 + $0x44] sm:$0xf]
        %v740 = vld [vmem:[%s0 + $0x48] sm:$0xf]
        %v741 = vld [vmem:[%s0 + $0x4c] sm:$0xf]
        %v742 = vld [vmem:[%s0 + $0x50] sm:$0xf]
        %v743 = vld [vmem:[%s0 + $0x54] sm:$0xf]
        %v744 = vld [vmem:[%s0 + $0x58] sm:$0xf]
        %v745 = vld [vmem:[%s0 + $0x5c] sm:$0xf]
        %v746 = vld [vmem:[%s0 + $0x60] sm:$0xf]
        %v747 = vld [vmem:[%s0 + $0x64] sm:$0xf]
        %v748 = vld [vmem:[%s0 + $0x68] sm:$0xf]
        %v749 = vld [vmem:[%s0 + $0x6c] sm:$0xf]
        %v750 = vld [vmem:[%s0 + $0x70] sm:$0xf]
        %v751 = vld [vmem:[%s0 + $0x74] sm:$0xf]
        %v752 = vunpack.c.l.bf16 %v722
        %v753 = vunpack.c.l.bf16 %v723
        %v754 = vunpack.c.l.bf16 %v724
        %v755 = vunpack.c.l.bf16 %v725
        %v756 = vunpack.c.l.bf16 %v726
        %v757 = vunpack.c.l.bf16 %v727
        %v758 = vunpack.c.l.bf16 %v728
        %v759 = vunpack.c.l.bf16 %v729
        %v760 = vunpack.c.l.bf16 %v730
        %v761 = vunpack.c.l.bf16 %v731
        %v762 = vunpack.c.l.bf16 %v732
        %v763 = vunpack.c.l.bf16 %v733
        %v764 = vunpack.c.l.bf16 %v734
        %v765 = vunpack.c.l.bf16 %v735
        %v766 = vunpack.c.l.bf16 %v736
        %v767 = vunpack.c.l.bf16 %v737
        %v768 = vunpack.c.l.bf16 %v738
        %v769 = vunpack.c.l.bf16 %v739
        %v770 = vunpack.c.l.bf16 %v740
        %v771 = vunpack.c.l.bf16 %v741
        %v772 = vunpack.c.l.bf16 %v742
        %v773 = vunpack.c.l.bf16 %v743
        %v774 = vunpack.c.l.bf16 %v744
        %v775 = vunpack.c.l.bf16 %v745
        %v776 = vunpack.c.l.bf16 %v746
        %v777 = vunpack.c.l.bf16 %v747
        %v778 = vunpack.c.l.bf16 %v748
        %v779 = vunpack.c.l.bf16 %v749
        %v780 = vunpack.c.l.bf16 %v750
        %v781 = vunpack.c.l.bf16 %v751
        %v782 = vld [vmem:[%s1] sm:$0xff]
        %v783 = vld [vmem:[%s1 + $0x8] sm:$0xff]
        %v784 = vunpack.c.l.bf16 %v782
        %v785 = vunpack.c.h.bf16 %v782
        %v786 = vunpack.c.l.bf16 %v783
        %v787 = vunpack.c.h.bf16 %v783
        %v788 = vld [vmem:[%s711] sm:$0xff]
        %v789 = vld [vmem:[%s711 + $0x8] sm:$0xff]
        %v790 = vld [vmem:[%s716] sm:$0xff]
        %v791 = vld [vmem:[%s716 + $0x8] sm:$0xff]
        %v792 = vsub.f32 0.0, %v790
        %v793 = vsub.f32 0.0, %v791
        %vm794 = vcmask 261120
        %v796 = vsel %vm794, %v752, 0
        %v799 = vsel %vm794, %v753, 0
        %v802 = vsel %vm794, %v754, 0
        %v805 = vsel %vm794, %v755, 0
        %v808 = vsel %vm794, %v756, 0
        %v811 = vsel %vm794, %v757, 0
        %v814 = vsel %vm794, %v758, 0
        %v817 = vsel %vm794, %v759, 0
        %v820 = vsel %vm794, %v760, 0
        %v823 = vsel %vm794, %v761, 0
        %v826 = vsel %vm794, %v762, 0
        %v829 = vsel %vm794, %v763, 0
        %v832 = vsel %vm794, %v764, 0
        %v835 = vsel %vm794, %v765, 0
        %v838 = vsel %vm794, %v766, 0
        %v841 = vsel %vm794, %v767, 0
        %v844 = vsel %vm794, %v768, 0
        %v847 = vsel %vm794, %v769, 0
        %v850 = vsel %vm794, %v770, 0
        %v853 = vsel %vm794, %v771, 0
        %v856 = vsel %vm794, %v772, 0
        %v859 = vsel %vm794, %v773, 0
        %v862 = vsel %vm794, %v774, 0
        %v865 = vsel %vm794, %v775, 0
        %v868 = vsel %vm794, %v776, 0
        %v871 = vsel %vm794, %v777, 0
        %v874 = vsel %vm794, %v778, 0
        %v877 = vsel %vm794, %v779, 0
        %v880 = vsel %vm794, %v780, 0
        %v883 = vsel %vm794, %v781, 0
        %885 = vmatprep.subr.mxu0 0.0
        %886 = vmatpush1.msra.mxu0 0.0
        %887 = vmatprep.subr.mxu0 0.0
        %888 = vmatpush1.msra.mxu0 0.0
        %889 = vmatprep.subr.mxu0 0.0
        %890 = vmatpush1.msra.mxu0 0.0
        %891 = vmatprep.subr.mxu0 0.0
        %892 = vmatpush1.msra.mxu0 0.0
        %893 = vmatprep.subr.mxu0 0.0
        %894 = vmatpush1.msra.mxu0 0.0
        %895 = vmatprep.subr.mxu0 0.0
        %896 = vmatpush1.msra.mxu0 0.0
        %897 = vmatprep.subr.mxu0 0.0
        %898 = vmatpush1.msra.mxu0 0.0
        %899 = vmatprep.subr.mxu0 0.0
        %900 = vmatpush1.msra.mxu0 0.0
        %901 = vmatprep.subr.mxu0 0.0
        %902 = vmatpush1.msra.mxu0 0.0
        %903 = vmatprep.subr.mxu0 0.0
        %904 = vmatpush1.msra.mxu0 0.0
        %905 = vmatprep.subr.mxu0 0.0
        %906 = vmatpush1.msra.mxu0 0.0
        %907 = vmatprep.subr.mxu0 0.0
        %908 = vmatpush1.msra.mxu0 0.0
        %909 = vmatprep.subr.mxu0 0.0
        %910 = vmatpush1.msra.mxu0 %v793
        %911 = vmatprep.subr.mxu0 0.0
        %912 = vmatpush1.msra.mxu0 %v792
        %913 = vmatprep.subr.mxu0 0.0
        %914 = vmatpush1.msra.mxu0 %v791
        %915 = vmatprep.subr.mxu0 0.0
        %916 = vmatpush1.msra.mxu0 %v790
        %917 = vmatprep.subr.mxu0 0.0
        %918 = vmatpush2.msra.mxu0 0.0
        %919 = vmatprep.subr.mxu0 0.0
        %920 = vmatpush2.msra.mxu0 0.0
        %921 = vmatprep.subr.mxu0 0.0
        %922 = vmatpush2.msra.mxu0 0.0
        %923 = vmatprep.subr.mxu0 0.0
        %924 = vmatpush2.msra.mxu0 0.0
        %925 = vmatprep.subr.mxu0 0.0
        %926 = vmatpush2.msra.mxu0 0.0
        %927 = vmatprep.subr.mxu0 0.0
        %928 = vmatpush2.msra.mxu0 0.0
        %929 = vmatprep.subr.mxu0 0.0
        %930 = vmatpush2.msra.mxu0 0.0
        %931 = vmatprep.subr.mxu0 0.0
        %932 = vmatpush2.msra.mxu0 0.0
        %933 = vmatprep.subr.mxu0 0.0
        %934 = vmatpush2.msra.mxu0 0.0
        %935 = vmatprep.subr.mxu0 0.0
        %936 = vmatpush2.msra.mxu0 0.0
        %937 = vmatprep.subr.mxu0 0.0
        %938 = vmatpush2.msra.mxu0 0.0
        %939 = vmatprep.subr.mxu0 0.0
        %940 = vmatpush2.msra.mxu0 0.0
        %941 = vmatprep.subr.mxu0 0.0
        %942 = vmatpush2.msra.mxu0 0.0
        %943 = vmatprep.subr.mxu0 0.0
        %944 = vmatpush2.msra.mxu0 0.0
        %945 = vmatprep.subr.mxu0 0.0
        %946 = vmatpush2.msra.mxu0 0.0
        %947 = vmatprep.subr.mxu0 0.0
        %948 = vmatpush2.msra.mxu0 0.0
        %949 = vmatprep.mubr.f32.mxu0 0.0
        %950 = vmatmul.mubr.f32.gmra.mxu0 %v796
        %v951 = vpop.f32.mrf.mxu0
        %v952 = vadd.f32 0.0, %v951
        %v953 = vpop.f32.mrf.mxu0
        %954 = vmatprep.mubr.f32.mxu0 0.0
        %955 = vmatmul.mubr.f32.gmra.mxu0 %v799
        %v956 = vpop.f32.mrf.mxu0
        %v957 = vadd.f32 0.0, %v956
        %v958 = vpop.f32.mrf.mxu0
        %959 = vmatprep.mubr.f32.mxu0 0.0
        %960 = vmatmul.mubr.f32.gmra.mxu0 %v802
        %v961 = vpop.f32.mrf.mxu0
        %v962 = vadd.f32 0.0, %v961
        %v963 = vpop.f32.mrf.mxu0
        %964 = vmatprep.mubr.f32.mxu0 0.0
        %965 = vmatmul.mubr.f32.gmra.mxu0 %v805
        %v966 = vpop.f32.mrf.mxu0
        %v967 = vadd.f32 0.0, %v966
        %v968 = vpop.f32.mrf.mxu0
        %969 = vmatprep.mubr.f32.mxu0 0.0
        %970 = vmatmul.mubr.f32.gmra.mxu0 %v808
        %v971 = vpop.f32.mrf.mxu0
        %v972 = vadd.f32 0.0, %v971
        %v973 = vpop.f32.mrf.mxu0
        %974 = vmatprep.mubr.f32.mxu0 0.0
        %975 = vmatmul.mubr.f32.gmra.mxu0 %v811
        %v976 = vpop.f32.mrf.mxu0
        %v977 = vadd.f32 0.0, %v976
        %v978 = vpop.f32.mrf.mxu0
        %979 = vmatprep.mubr.f32.mxu0 0.0
        %980 = vmatmul.mubr.f32.gmra.mxu0 %v814
        %v981 = vpop.f32.mrf.mxu0
        %v982 = vadd.f32 0.0, %v981
        %v983 = vpop.f32.mrf.mxu0
        %984 = vmatprep.mubr.f32.mxu0 0.0
        %985 = vmatmul.mubr.f32.gmra.mxu0 %v817
        %v986 = vpop.f32.mrf.mxu0
        %v987 = vadd.f32 0.0, %v986
        %v988 = vpop.f32.mrf.mxu0
        %989 = vmatprep.mubr.f32.mxu0 0.0
        %990 = vmatmul.mubr.f32.gmra.mxu0 %v820
        %v991 = vpop.f32.mrf.mxu0
        %v992 = vadd.f32 0.0, %v991
        %v993 = vpop.f32.mrf.mxu0
        %994 = vmatprep.mubr.f32.mxu0 0.0
        %995 = vmatmul.mubr.f32.gmra.mxu0 %v823
        %v996 = vpop.f32.mrf.mxu0
        %v997 = vadd.f32 0.0, %v996
        %v998 = vpop.f32.mrf.mxu0
        %999 = vmatprep.mubr.f32.mxu0 0.0
        %1000 = vmatmul.mubr.f32.gmra.mxu0 %v826
        %v1001 = vpop.f32.mrf.mxu0
        %v1002 = vadd.f32 0.0, %v1001
        %v1003 = vpop.f32.mrf.mxu0
        %1004 = vmatprep.mubr.f32.mxu0 0.0
        %1005 = vmatmul.mubr.f32.gmra.mxu0 %v829
        %v1006 = vpop.f32.mrf.mxu0
        %v1007 = vadd.f32 0.0, %v1006
        %v1008 = vpop.f32.mrf.mxu0
        %1009 = vmatprep.mubr.f32.mxu0 0.0
        %1010 = vmatmul.mubr.f32.gmra.mxu0 %v832
        %v1011 = vpop.f32.mrf.mxu0
        %v1012 = vadd.f32 0.0, %v1011
        %v1013 = vpop.f32.mrf.mxu0
        %1014 = vmatprep.mubr.f32.mxu0 0.0
        %1015 = vmatmul.mubr.f32.gmra.mxu0 %v835
        %v1016 = vpop.f32.mrf.mxu0
        %v1017 = vadd.f32 0.0, %v1016
        %v1018 = vpop.f32.mrf.mxu0
        %1019 = vmatprep.mubr.f32.mxu0 0.0
        %1020 = vmatmul.mubr.f32.gmra.mxu0 %v838
        %v1021 = vpop.f32.mrf.mxu0
        %v1022 = vadd.f32 0.0, %v1021
        %v1023 = vpop.f32.mrf.mxu0
        %1024 = vmatprep.mubr.f32.mxu0 0.0
        %1025 = vmatmul.mubr.f32.gmra.mxu0 %v841
        %v1026 = vpop.f32.mrf.mxu0
        %v1027 = vadd.f32 0.0, %v1026
        %v1028 = vpop.f32.mrf.mxu0
        %1029 = vmatprep.mubr.f32.mxu0 0.0
        %1030 = vmatmul.mubr.f32.gmra.mxu0 %v844
        %v1031 = vpop.f32.mrf.mxu0
        %v1032 = vadd.f32 0.0, %v1031
        %v1033 = vpop.f32.mrf.mxu0
        %1034 = vmatprep.mubr.f32.mxu0 0.0
        %1035 = vmatmul.mubr.f32.gmra.mxu0 %v847
        %v1036 = vpop.f32.mrf.mxu0
        %v1037 = vadd.f32 0.0, %v1036
        %v1038 = vpop.f32.mrf.mxu0
        %1039 = vmatprep.mubr.f32.mxu0 0.0
        %1040 = vmatmul.mubr.f32.gmra.mxu0 %v850
        %v1041 = vpop.f32.mrf.mxu0
        %v1042 = vadd.f32 0.0, %v1041
        %v1043 = vpop.f32.mrf.mxu0
        %1044 = vmatprep.mubr.f32.mxu0 0.0
        %1045 = vmatmul.mubr.f32.gmra.mxu0 %v853
        %v1046 = vpop.f32.mrf.mxu0
        %v1047 = vadd.f32 0.0, %v1046
        %v1048 = vpop.f32.mrf.mxu0
        %1049 = vmatprep.mubr.f32.mxu0 0.0
        %1050 = vmatmul.mubr.f32.gmra.mxu0 %v856
        %v1051 = vpop.f32.mrf.mxu0
        %v1052 = vadd.f32 0.0, %v1051
        %v1053 = vpop.f32.mrf.mxu0
        %1054 = vmatprep.mubr.f32.mxu0 0.0
        %1055 = vmatmul.mubr.f32.gmra.mxu0 %v859
        %v1056 = vpop.f32.mrf.mxu0
        %v1057 = vadd.f32 0.0, %v1056
        %v1058 = vpop.f32.mrf.mxu0
        %1059 = vmatprep.mubr.f32.mxu0 0.0
        %1060 = vmatmul.mubr.f32.gmra.mxu0 %v862
        %v1061 = vpop.f32.mrf.mxu0
        %v1062 = vadd.f32 0.0, %v1061
        %v1063 = vpop.f32.mrf.mxu0
        %1064 = vmatprep.mubr.f32.mxu0 0.0
        %1065 = vmatmul.mubr.f32.gmra.mxu0 %v865
        %v1066 = vpop.f32.mrf.mxu0
        %v1067 = vadd.f32 0.0, %v1066
        %v1068 = vpop.f32.mrf.mxu0
        %1069 = vmatprep.mubr.f32.mxu0 0.0
        %1070 = vmatmul.mubr.f32.gmra.mxu0 %v868
        %v1071 = vpop.f32.mrf.mxu0
        %v1072 = vadd.f32 0.0, %v1071
        %v1073 = vpop.f32.mrf.mxu0
        %1074 = vmatprep.mubr.f32.mxu0 0.0
        %1075 = vmatmul.mubr.f32.gmra.mxu0 %v871
        %v1076 = vpop.f32.mrf.mxu0
        %v1077 = vadd.f32 0.0, %v1076
        %v1078 = vpop.f32.mrf.mxu0
        %1079 = vmatprep.mubr.f32.mxu0 0.0
        %1080 = vmatmul.mubr.f32.gmra.mxu0 %v874
        %v1081 = vpop.f32.mrf.mxu0
        %v1082 = vadd.f32 0.0, %v1081
        %v1083 = vpop.f32.mrf.mxu0
        %1084 = vmatprep.mubr.f32.mxu0 0.0
        %1085 = vmatmul.mubr.f32.gmra.mxu0 %v877
        %v1086 = vpop.f32.mrf.mxu0
        %v1087 = vadd.f32 0.0, %v1086
        %v1088 = vpop.f32.mrf.mxu0
        %1089 = vmatprep.mubr.f32.mxu0 0.0
        %1090 = vmatmul.mubr.f32.gmra.mxu0 %v880
        %v1091 = vpop.f32.mrf.mxu0
        %v1092 = vadd.f32 0.0, %v1091
        %v1093 = vpop.f32.mrf.mxu0
        %1094 = vmatprep.mubr.f32.mxu0 0.0
        %1095 = vmatmul.mubr.f32.gmra.mxu0 %v883
        %v1096 = vpop.f32.mrf.mxu0
        %v1097 = vadd.f32 0.0, %v1096
        %v1098 = vpop.f32.mrf.mxu0
        %1099 = vdwg.mxu0
        %v1100 = vmul.f32 %v952, %v952
        %v1101 = vmul.f32 %v957, %v957
        %v1102 = vmul.f32 %v962, %v962
        %v1103 = vmul.f32 %v967, %v967
        %v1104 = vmul.f32 %v972, %v972
        %v1105 = vmul.f32 %v977, %v977
        %v1106 = vmul.f32 %v982, %v982
        %v1107 = vmul.f32 %v987, %v987
        %v1108 = vmul.f32 %v992, %v992
        %v1109 = vmul.f32 %v997, %v997
        %v1110 = vmul.f32 %v1002, %v1002
        %v1111 = vmul.f32 %v1007, %v1007
        %v1112 = vmul.f32 %v1012, %v1012
        %v1113 = vmul.f32 %v1017, %v1017
        %v1114 = vmul.f32 %v1022, %v1022
        %v1115 = vmul.f32 %v1027, %v1027
        %v1116 = vmul.f32 %v1032, %v1032
        %v1117 = vmul.f32 %v1037, %v1037
        %v1118 = vmul.f32 %v1042, %v1042
        %v1119 = vmul.f32 %v1047, %v1047
        %v1120 = vmul.f32 %v1052, %v1052
        %v1121 = vmul.f32 %v1057, %v1057
        %v1122 = vmul.f32 %v1062, %v1062
        %v1123 = vmul.f32 %v1067, %v1067
        %v1124 = vmul.f32 %v1072, %v1072
        %v1125 = vmul.f32 %v1077, %v1077
        %v1126 = vmul.f32 %v1082, %v1082
        %v1127 = vmul.f32 %v1087, %v1087
        %v1128 = vmul.f32 %v1092, %v1092
        %v1129 = vmul.f32 %v1097, %v1097
        %vm1130 = vcmask 23552
        %v1131 = vsel %vm1130, %v1100, 0.0
        %1132 = vadd.xlane.f32.xlu0 %v1131
        %v1133 = vpop.xlane.xlu0 %1132
        %v1134 = vsel %vm1130, %v1101, 0.0
        %1135 = vadd.xlane.f32.xlu0 %v1134
        %v1136 = vpop.xlane.xlu0 %1135
        %v1137 = vsel %vm1130, %v1102, 0.0
        %1138 = vadd.xlane.f32.xlu0 %v1137
        %v1139 = vpop.xlane.xlu0 %1138
        %v1140 = vsel %vm1130, %v1103, 0.0
        %1141 = vadd.xlane.f32.xlu0 %v1140
        %v1142 = vpop.xlane.xlu0 %1141
        %v1143 = vsel %vm1130, %v1104, 0.0
        %1144 = vadd.xlane.f32.xlu0 %v1143
        %v1145 = vpop.xlane.xlu0 %1144
        %v1146 = vsel %vm1130, %v1105, 0.0
        %1147 = vadd.xlane.f32.xlu0 %v1146
        %v1148 = vpop.xlane.xlu0 %1147
        %v1149 = vsel %vm1130, %v1106, 0.0
        %1150 = vadd.xlane.f32.xlu0 %v1149
        %v1151 = vpop.xlane.xlu0 %1150
        %v1152 = vsel %vm1130, %v1107, 0.0
        %1153 = vadd.xlane.f32.xlu0 %v1152
        %v1154 = vpop.xlane.xlu0 %1153
        %v1155 = vsel %vm1130, %v1108, 0.0
        %1156 = vadd.xlane.f32.xlu0 %v1155
        %v1157 = vpop.xlane.xlu0 %1156
        %v1158 = vsel %vm1130, %v1109, 0.0
        %1159 = vadd.xlane.f32.xlu0 %v1158
        %v1160 = vpop.xlane.xlu0 %1159
        %v1161 = vsel %vm1130, %v1110, 0.0
        %1162 = vadd.xlane.f32.xlu0 %v1161
        %v1163 = vpop.xlane.xlu0 %1162
        %v1164 = vsel %vm1130, %v1111, 0.0
        %1165 = vadd.xlane.f32.xlu0 %v1164
        %v1166 = vpop.xlane.xlu0 %1165
        %v1167 = vsel %vm1130, %v1112, 0.0
        %1168 = vadd.xlane.f32.xlu0 %v1167
        %v1169 = vpop.xlane.xlu0 %1168
        %v1170 = vsel %vm1130, %v1113, 0.0
        %1171 = vadd.xlane.f32.xlu0 %v1170
        %v1172 = vpop.xlane.xlu0 %1171
        %v1173 = vsel %vm1130, %v1114, 0.0
        %1174 = vadd.xlane.f32.xlu0 %v1173
        %v1175 = vpop.xlane.xlu0 %1174
        %v1176 = vsel %vm1130, %v1115, 0.0
        %1177 = vadd.xlane.f32.xlu0 %v1176
        %v1178 = vpop.xlane.xlu0 %1177
        %v1179 = vsel %vm1130, %v1116, 0.0
        %1180 = vadd.xlane.f32.xlu0 %v1179
        %v1181 = vpop.xlane.xlu0 %1180
        %v1182 = vsel %vm1130, %v1117, 0.0
        %1183 = vadd.xlane.f32.xlu0 %v1182
        %v1184 = vpop.xlane.xlu0 %1183
        %v1185 = vsel %vm1130, %v1118, 0.0
        %1186 = vadd.xlane.f32.xlu0 %v1185
        %v1187 = vpop.xlane.xlu0 %1186
        %v1188 = vsel %vm1130, %v1119, 0.0
        %1189 = vadd.xlane.f32.xlu0 %v1188
        %v1190 = vpop.xlane.xlu0 %1189
        %v1191 = vsel %vm1130, %v1120, 0.0
        %1192 = vadd.xlane.f32.xlu0 %v1191
        %v1193 = vpop.xlane.xlu0 %1192
        %v1194 = vsel %vm1130, %v1121, 0.0
        %1195 = vadd.xlane.f32.xlu0 %v1194
        %v1196 = vpop.xlane.xlu0 %1195
        %v1197 = vsel %vm1130, %v1122, 0.0
        %1198 = vadd.xlane.f32.xlu0 %v1197
        %v1199 = vpop.xlane.xlu0 %1198
        %v1200 = vsel %vm1130, %v1123, 0.0
        %1201 = vadd.xlane.f32.xlu0 %v1200
        %v1202 = vpop.xlane.xlu0 %1201
        %v1203 = vsel %vm1130, %v1124, 0.0
        %1204 = vadd.xlane.f32.xlu0 %v1203
        %v1205 = vpop.xlane.xlu0 %1204
        %v1206 = vsel %vm1130, %v1125, 0.0
        %1207 = vadd.xlane.f32.xlu0 %v1206
        %v1208 = vpop.xlane.xlu0 %1207
        %v1209 = vsel %vm1130, %v1126, 0.0
        %1210 = vadd.xlane.f32.xlu0 %v1209
        %v1211 = vpop.xlane.xlu0 %1210
        %v1212 = vsel %vm1130, %v1127, 0.0
        %1213 = vadd.xlane.f32.xlu0 %v1212
        %v1214 = vpop.xlane.xlu0 %1213
        %v1215 = vsel %vm1130, %v1128, 0.0
        %1216 = vadd.xlane.f32.xlu0 %v1215
        %v1217 = vpop.xlane.xlu0 %1216
        %v1218 = vsel %vm1130, %v1129, 0.0
        %1219 = vadd.xlane.f32.xlu0 %v1218
        %v1220 = vpop.xlane.xlu0 %1219
        %v1221 = vld [vmem:[%s721] sm:$0xff]
        %v1222 = vld [vmem:[%s721 + $0x8] sm:$0xff]
        %v1223 = vld [vmem:[%s721 + $0x10] sm:$0xff]
        %v1224 = vld [vmem:[%s721 + $0x18] sm:$0xff]
        %v1225 = vld [vmem:[%s721 + $0x20] sm:$0xff]
        %v1226 = vld [vmem:[%s721 + $0x28] sm:$0xff]
        %v1227 = vld [vmem:[%s721 + $0x30] sm:$0xff]
        %v1228 = vld [vmem:[%s721 + $0x38] sm:$0xff]
        %v1229 = vld [vmem:[%s721 + $0x40] sm:$0xff]
        %v1230 = vld [vmem:[%s721 + $0x48] sm:$0xff]
        %v1231 = vld [vmem:[%s721 + $0x50] sm:$0xff]
        %v1232 = vld [vmem:[%s721 + $0x58] sm:$0xff]
        %v1233 = vld [vmem:[%s721 + $0x60] sm:$0xff]
        %v1234 = vld [vmem:[%s721 + $0x68] sm:$0xff]
        %v1235 = vld [vmem:[%s721 + $0x70] sm:$0xff]
        %v1236 = vld [vmem:[%s721 + $0x78] sm:$0xff]
        %v1237 = vld [vmem:[%s721 + $0x80] sm:$0xff]
        %v1238 = vld [vmem:[%s721 + $0x88] sm:$0xff]
        %v1239 = vld [vmem:[%s721 + $0x90] sm:$0xff]
        %v1240 = vld [vmem:[%s721 + $0x98] sm:$0xff]
        %v1241 = vld [vmem:[%s721 + $0xa0] sm:$0xff]
        %v1242 = vld [vmem:[%s721 + $0xa8] sm:$0xff]
        %v1243 = vld [vmem:[%s721 + $0xb0] sm:$0xff]
        %v1244 = vld [vmem:[%s721 + $0xb8] sm:$0xff]
        %v1245 = vld [vmem:[%s721 + $0xc0] sm:$0xff]
        %v1246 = vld [vmem:[%s721 + $0xc8] sm:$0xff]
        %v1247 = vld [vmem:[%s721 + $0xd0] sm:$0xff]
        %v1248 = vld [vmem:[%s721 + $0xd8] sm:$0xff]
        %v1249 = vld [vmem:[%s721 + $0xe0] sm:$0xff]
        %v1250 = vld [vmem:[%s721 + $0xe8] sm:$0xff]
        %vm1251 = vcmask 39936
        %v1252 = vsel %vm1251, %v1221, %v1133
        %v1253 = vsel %vm1251, %v1222, %v1136
        %v1254 = vsel %vm1251, %v1223, %v1139
        %v1255 = vsel %vm1251, %v1224, %v1142
        %v1256 = vsel %vm1251, %v1225, %v1145
        %v1257 = vsel %vm1251, %v1226, %v1148
        %v1258 = vsel %vm1251, %v1227, %v1151
        %v1259 = vsel %vm1251, %v1228, %v1154
        %v1260 = vsel %vm1251, %v1229, %v1157
        %v1261 = vsel %vm1251, %v1230, %v1160
        %v1262 = vsel %vm1251, %v1231, %v1163
        %v1263 = vsel %vm1251, %v1232, %v1166
        %v1264 = vsel %vm1251, %v1233, %v1169
        %v1265 = vsel %vm1251, %v1234, %v1172
        %v1266 = vsel %vm1251, %v1235, %v1175
        %v1267 = vsel %vm1251, %v1236, %v1178
        %v1268 = vsel %vm1251, %v1237, %v1181
        %v1269 = vsel %vm1251, %v1238, %v1184
        %v1270 = vsel %vm1251, %v1239, %v1187
        %v1271 = vsel %vm1251, %v1240, %v1190
        %v1272 = vsel %vm1251, %v1241, %v1193
        %v1273 = vsel %vm1251, %v1242, %v1196
        %v1274 = vsel %vm1251, %v1243, %v1199
        %v1275 = vsel %vm1251, %v1244, %v1202
        %v1276 = vsel %vm1251, %v1245, %v1205
        %v1277 = vsel %vm1251, %v1246, %v1208
        %v1278 = vsel %vm1251, %v1247, %v1211
        %v1279 = vsel %vm1251, %v1248, %v1214
        %v1280 = vsel %vm1251, %v1249, %v1217
        %v1281 = vsel %vm1251, %v1250, %v1220
        %v1282 = vld [vmem:[%s5] sm:$0xff]
        %v1283 = vld [vmem:[%s6] sm:$0x1]
        %v1285 = vlaneseq
        %v1286 = vshrl.u32 %v1285, 7
        %v1287 = vsub.s32 0, %v1286
        %v1288 = vrot.slane %v1283, %v1287
        %vm1290 = vcmask 64512
        %v1292 = vsel %vm1290, %v788, 0
        %v1295 = vsel %vm1290, %v789, 0
        %1297 = vmatprep.subr.mxu0 0.0
        %1298 = vmatpush1.msra.mxu0 0.0
        %1299 = vmatprep.subr.mxu0 0.0
        %1300 = vmatpush1.msra.mxu0 0.0
        %1301 = vmatprep.subr.mxu0 0.0
        %1302 = vmatpush1.msra.mxu0 0.0
        %1303 = vmatprep.subr.mxu0 0.0
        %1304 = vmatpush1.msra.mxu0 0.0
        %1305 = vmatprep.subr.mxu0 0.0
        %1306 = vmatpush1.msra.mxu0 0.0
        %1307 = vmatprep.subr.mxu0 0.0
        %1308 = vmatpush1.msra.mxu0 0.0
        %1309 = vmatprep.subr.mxu0 0.0
        %1310 = vmatpush1.msra.mxu0 0.0
        %1311 = vmatprep.subr.mxu0 0.0
        %1312 = vmatpush1.msra.mxu0 0.0
        %1313 = vmatprep.subr.mxu0 0.0
        %1314 = vmatpush1.msra.mxu0 0.0
        %1315 = vmatprep.subr.mxu0 0.0
        %1316 = vmatpush1.msra.mxu0 0.0
        %1317 = vmatprep.subr.mxu0 0.0
        %1318 = vmatpush1.msra.mxu0 0.0
        %1319 = vmatprep.subr.mxu0 0.0
        %1320 = vmatpush1.msra.mxu0 0.0
        %1321 = vmatprep.subr.mxu0 0.0
        %1322 = vmatpush1.msra.mxu0 0.0
        %1323 = vmatprep.subr.mxu0 0.0
        %1324 = vmatpush1.msra.mxu0 0.0
        %1325 = vmatprep.subr.mxu0 0.0
        %1326 = vmatpush1.msra.mxu0 0.0
        %1327 = vmatprep.subr.mxu0 0.0
        %1328 = vmatpush1.msra.mxu0 %v1282
        %1329 = vmatprep.subr.mxu0 0.0
        %1330 = vmatpush2.msra.mxu0 0.0
        %1331 = vmatprep.subr.mxu0 0.0
        %1332 = vmatpush2.msra.mxu0 0.0
        %1333 = vmatprep.subr.mxu0 0.0
        %1334 = vmatpush2.msra.mxu0 0.0
        %1335 = vmatprep.subr.mxu0 0.0
        %1336 = vmatpush2.msra.mxu0 0.0
        %1337 = vmatprep.subr.mxu0 0.0
        %1338 = vmatpush2.msra.mxu0 0.0
        %1339 = vmatprep.subr.mxu0 0.0
        %1340 = vmatpush2.msra.mxu0 0.0
        %1341 = vmatprep.subr.mxu0 0.0
        %1342 = vmatpush2.msra.mxu0 0.0
        %1343 = vmatprep.subr.mxu0 0.0
        %1344 = vmatpush2.msra.mxu0 0.0
        %1345 = vmatprep.subr.mxu0 0.0
        %1346 = vmatpush2.msra.mxu0 0.0
        %1347 = vmatprep.subr.mxu0 0.0
        %1348 = vmatpush2.msra.mxu0 0.0
        %1349 = vmatprep.subr.mxu0 0.0
        %1350 = vmatpush2.msra.mxu0 0.0
        %1351 = vmatprep.subr.mxu0 0.0
        %1352 = vmatpush2.msra.mxu0 0.0
        %1353 = vmatprep.subr.mxu0 0.0
        %1354 = vmatpush2.msra.mxu0 0.0
        %1355 = vmatprep.subr.mxu0 0.0
        %1356 = vmatpush2.msra.mxu0 0.0
        %1357 = vmatprep.subr.mxu0 0.0
        %1358 = vmatpush2.msra.mxu0 0.0
        %1359 = vmatprep.subr.mxu0 0.0
        %1360 = vmatpush2.msra.mxu0 0.0
        %1361 = vmatprep.mubr.f32.mxu0 0.0
        %1362 = vmatmul.mubr.f32.gmra.mxu0 %v1292
        %v1363 = vpop.f32.mrf.mxu0
        %v1364 = vadd.f32 %v1288, %v1363
        %v1365 = vpop.f32.mrf.mxu0
        %1366 = vmatprep.mubr.f32.mxu0 0.0
        %1367 = vmatmul.mubr.f32.gmra.mxu0 %v1295
        %v1368 = vpop.f32.mrf.mxu0
        %v1369 = vadd.f32 %v1288, %v1368
        %v1370 = vpop.f32.mrf.mxu0
        %1371 = vdwg.mxu0
        %v1372 = vld [vmem:[%s7] sm:$0xff]
        %v1373 = vld [vmem:[%s7 + $0x8] sm:$0xff]
        %v1374 = vld [vmem:[%s7 + $0x10] sm:$0xff]
        %v1375 = vld [vmem:[%s7 + $0x18] sm:$0xff]
        %v1377 = vsel %vm794, %v1364, 0
        %v1380 = vsel %vm794, %v1369, 0
        %1382 = vmatprep.subr.mxu0 0.0
        %1383 = vmatpush1.msra.mxu0 0.0
        %1384 = vmatprep.subr.mxu0 0.0
        %1385 = vmatpush1.msra.mxu0 0.0
        %1386 = vmatprep.subr.mxu0 0.0
        %1387 = vmatpush1.msra.mxu0 0.0
        %1388 = vmatprep.subr.mxu0 0.0
        %1389 = vmatpush1.msra.mxu0 0.0
        %1390 = vmatprep.subr.mxu0 0.0
        %1391 = vmatpush1.msra.mxu0 0.0
        %1392 = vmatprep.subr.mxu0 0.0
        %1393 = vmatpush1.msra.mxu0 0.0
        %1394 = vmatprep.subr.mxu0 0.0
        %1395 = vmatpush1.msra.mxu0 0.0
        %1396 = vmatprep.subr.mxu0 0.0
        %1397 = vmatpush1.msra.mxu0 0.0
        %1398 = vmatprep.subr.mxu0 0.0
        %1399 = vmatpush1.msra.mxu0 0.0
        %1400 = vmatprep.subr.mxu0 0.0
        %1401 = vmatpush1.msra.mxu0 0.0
        %1402 = vmatprep.subr.mxu0 0.0
        %1403 = vmatpush1.msra.mxu0 0.0
        %1404 = vmatprep.subr.mxu0 0.0
        %1405 = vmatpush1.msra.mxu0 0.0
        %1406 = vmatprep.subr.mxu0 0.0
        %1407 = vmatpush1.msra.mxu0 %v1375
        %1408 = vmatprep.subr.mxu0 0.0
        %1409 = vmatpush1.msra.mxu0 %v1374
        %1410 = vmatprep.subr.mxu0 0.0
        %1411 = vmatpush1.msra.mxu0 %v1373
        %1412 = vmatprep.subr.mxu0 0.0
        %1413 = vmatpush1.msra.mxu0 %v1372
        %1414 = vmatprep.subr.mxu0 0.0
        %1415 = vmatpush2.msra.mxu0 0.0
        %1416 = vmatprep.subr.mxu0 0.0
        %1417 = vmatpush2.msra.mxu0 0.0
        %1418 = vmatprep.subr.mxu0 0.0
        %1419 = vmatpush2.msra.mxu0 0.0
        %1420 = vmatprep.subr.mxu0 0.0
        %1421 = vmatpush2.msra.mxu0 0.0
        %1422 = vmatprep.subr.mxu0 0.0
        %1423 = vmatpush2.msra.mxu0 0.0
        %1424 = vmatprep.subr.mxu0 0.0
        %1425 = vmatpush2.msra.mxu0 0.0
        %1426 = vmatprep.subr.mxu0 0.0
        %1427 = vmatpush2.msra.mxu0 0.0
        %1428 = vmatprep.subr.mxu0 0.0
        %1429 = vmatpush2.msra.mxu0 0.0
        %1430 = vmatprep.subr.mxu0 0.0
        %1431 = vmatpush2.msra.mxu0 0.0
        %1432 = vmatprep.subr.mxu0 0.0
        %1433 = vmatpush2.msra.mxu0 0.0
        %1434 = vmatprep.subr.mxu0 0.0
        %1435 = vmatpush2.msra.mxu0 0.0
        %1436 = vmatprep.subr.mxu0 0.0
        %1437 = vmatpush2.msra.mxu0 0.0
        %1438 = vmatprep.subr.mxu0 0.0
        %1439 = vmatpush2.msra.mxu0 0.0
        %1440 = vmatprep.subr.mxu0 0.0
        %1441 = vmatpush2.msra.mxu0 0.0
        %1442 = vmatprep.subr.mxu0 0.0
        %1443 = vmatpush2.msra.mxu0 0.0
        %1444 = vmatprep.subr.mxu0 0.0
        %1445 = vmatpush2.msra.mxu0 0.0
        %1446 = vmatprep.mubr.f32.mxu0 0.0
        %1447 = vmatmul.mubr.f32.gmra.mxu0 %v1377
        %v1448 = vpop.f32.mrf.mxu0
        %v1449 = vadd.f32 0.0, %v1448
        %v1450 = vpop.f32.mrf.mxu0
        %1451 = vmatprep.mubr.f32.mxu0 0.0
        %1452 = vmatmul.mubr.f32.gmra.mxu0 %v1380
        %v1453 = vpop.f32.mrf.mxu0
        %v1454 = vadd.f32 0.0, %v1453
        %v1455 = vpop.f32.mrf.mxu0
        %1456 = vdwg.mxu0
        %1457 = vst.msk [vmem:[#allocation2] sm:$0xff] %vm794, %v1449
        %1458 = vst.msk [vmem:[#allocation2 + $0x8] sm:$0xff] %vm794, %v1454
        %1461 = vrot.lane.b32.xlu0 %v1449, 96
        %v1462 = vpop.permute.xlu0 %1461
        %1463 = vrot.lane.b32.xlu0 %v1454, 96
        %v1464 = vpop.permute.xlu0 %1463
        %1467 = vst.msk [vmem:[#allocation2 + $0x10] sm:$0xff] %vm794, %v1462
        %1468 = vst.msk [vmem:[#allocation2 + $0x18] sm:$0xff] %vm794, %v1464
        %v1469 = vld [vmem:[#allocation2] sm:$0xff]
        %v1470 = vld [vmem:[#allocation2 + $0x8] sm:$0xff]
        %v1471 = vld [vmem:[#allocation2 + $0x10] sm:$0xff]
        %v1472 = vld [vmem:[#allocation2 + $0x18] sm:$0xff]
        %v1473 = vld [vmem:[%s8] sm:$0x3f]
        %vm1474 = vcmask 48128
        %v1476 = vsel %vm1474, %v1252, 0
        %v1479 = vsel %vm1474, %v1253, 0
        %v1482 = vsel %vm1474, %v1254, 0
        %v1485 = vsel %vm1474, %v1255, 0
        %v1488 = vsel %vm1474, %v1256, 0
        %v1491 = vsel %vm1474, %v1257, 0
        %v1494 = vsel %vm1474, %v1258, 0
        %v1497 = vsel %vm1474, %v1259, 0
        %v1500 = vsel %vm1474, %v1260, 0
        %v1503 = vsel %vm1474, %v1261, 0
        %v1506 = vsel %vm1474, %v1262, 0
        %v1509 = vsel %vm1474, %v1263, 0
        %v1512 = vsel %vm1474, %v1264, 0
        %v1515 = vsel %vm1474, %v1265, 0
        %v1518 = vsel %vm1474, %v1266, 0
        %v1521 = vsel %vm1474, %v1267, 0
        %v1524 = vsel %vm1474, %v1268, 0
        %v1527 = vsel %vm1474, %v1269, 0
        %v1530 = vsel %vm1474, %v1270, 0
        %v1533 = vsel %vm1474, %v1271, 0
        %v1536 = vsel %vm1474, %v1272, 0
        %v1539 = vsel %vm1474, %v1273, 0
        %v1542 = vsel %vm1474, %v1274, 0
        %v1545 = vsel %vm1474, %v1275, 0
        %v1548 = vsel %vm1474, %v1276, 0
        %v1551 = vsel %vm1474, %v1277, 0
        %v1554 = vsel %vm1474, %v1278, 0
        %v1557 = vsel %vm1474, %v1279, 0
        %v1560 = vsel %vm1474, %v1280, 0
        %v1563 = vsel %vm1474, %v1281, 0
        %vm1565 = vcmask 1045504
        %v1567 = vsel %vm1565, %v1473, 0
        %1569 = vmatprep.subr.mxu0 0.0
        %1570 = vmatpush1.msra.mxu0 0.0
        %1571 = vmatprep.subr.mxu0 0.0
        %1572 = vmatpush1.msra.mxu0 0.0
        %1573 = vmatprep.subr.mxu0 0.0
        %1574 = vmatpush1.msra.mxu0 0.0
        %1575 = vmatprep.subr.mxu0 0.0
        %1576 = vmatpush1.msra.mxu0 0.0
        %1577 = vmatprep.subr.mxu0 0.0
        %1578 = vmatpush1.msra.mxu0 0.0
        %1579 = vmatprep.subr.mxu0 0.0
        %1580 = vmatpush1.msra.mxu0 0.0
        %1581 = vmatprep.subr.mxu0 0.0
        %1582 = vmatpush1.msra.mxu0 0.0
        %1583 = vmatprep.subr.mxu0 0.0
        %1584 = vmatpush1.msra.mxu0 0.0
        %1585 = vmatprep.subr.mxu0 0.0
        %1586 = vmatpush1.msra.mxu0 0.0
        %1587 = vmatprep.subr.mxu0 0.0
        %1588 = vmatpush1.msra.mxu0 0.0
        %1589 = vmatprep.subr.mxu0 0.0
        %1590 = vmatpush1.msra.mxu0 0.0
        %1591 = vmatprep.subr.mxu0 0.0
        %1592 = vmatpush1.msra.mxu0 0.0
        %1593 = vmatprep.subr.mxu0 0.0
        %1594 = vmatpush1.msra.mxu0 0.0
        %1595 = vmatprep.subr.mxu0 0.0
        %1596 = vmatpush1.msra.mxu0 0.0
        %1597 = vmatprep.subr.mxu0 0.0
        %1598 = vmatpush1.msra.mxu0 0.0
        %1599 = vmatprep.subr.mxu0 0.0
        %1600 = vmatpush1.msra.mxu0 %v1567
        %1601 = vmatprep.subr.mxu0 0.0
        %1602 = vmatpush2.msra.mxu0 0.0
        %1603 = vmatprep.subr.mxu0 0.0
        %1604 = vmatpush2.msra.mxu0 0.0
        %1605 = vmatprep.subr.mxu0 0.0
        %1606 = vmatpush2.msra.mxu0 0.0
        %1607 = vmatprep.subr.mxu0 0.0
        %1608 = vmatpush2.msra.mxu0 0.0
        %1609 = vmatprep.subr.mxu0 0.0
        %1610 = vmatpush2.msra.mxu0 0.0
        %1611 = vmatprep.subr.mxu0 0.0
        %1612 = vmatpush2.msra.mxu0 0.0
        %1613 = vmatprep.subr.mxu0 0.0
        %1614 = vmatpush2.msra.mxu0 0.0
        %1615 = vmatprep.subr.mxu0 0.0
        %1616 = vmatpush2.msra.mxu0 0.0
        %1617 = vmatprep.subr.mxu0 0.0
        %1618 = vmatpush2.msra.mxu0 0.0
        %1619 = vmatprep.subr.mxu0 0.0
        %1620 = vmatpush2.msra.mxu0 0.0
        %1621 = vmatprep.subr.mxu0 0.0
        %1622 = vmatpush2.msra.mxu0 0.0
        %1623 = vmatprep.subr.mxu0 0.0
        %1624 = vmatpush2.msra.mxu0 0.0
        %1625 = vmatprep.subr.mxu0 0.0
        %1626 = vmatpush2.msra.mxu0 0.0
        %1627 = vmatprep.subr.mxu0 0.0
        %1628 = vmatpush2.msra.mxu0 0.0
        %1629 = vmatprep.subr.mxu0 0.0
        %1630 = vmatpush2.msra.mxu0 0.0
        %1631 = vmatprep.subr.mxu0 0.0
        %1632 = vmatpush2.msra.mxu0 0.0
        %1633 = vmatprep.mubr.f32.mxu0 0.0
        %1634 = vmatmul.mubr.f32.gmra.mxu0 %v1476
        %v1635 = vpop.f32.mrf.mxu0
        %v1636 = vadd.f32 0.0, %v1635
        %v1637 = vpop.f32.mrf.mxu0
        %1638 = vmatprep.mubr.f32.mxu0 0.0
        %1639 = vmatmul.mubr.f32.gmra.mxu0 %v1479
        %v1640 = vpop.f32.mrf.mxu0
        %v1641 = vadd.f32 0.0, %v1640
        %v1642 = vpop.f32.mrf.mxu0
        %1643 = vmatprep.mubr.f32.mxu0 0.0
        %1644 = vmatmul.mubr.f32.gmra.mxu0 %v1482
        %v1645 = vpop.f32.mrf.mxu0
        %v1646 = vadd.f32 0.0, %v1645
        %v1647 = vpop.f32.mrf.mxu0
        %1648 = vmatprep.mubr.f32.mxu0 0.0
        %1649 = vmatmul.mubr.f32.gmra.mxu0 %v1485
        %v1650 = vpop.f32.mrf.mxu0
        %v1651 = vadd.f32 0.0, %v1650
        %v1652 = vpop.f32.mrf.mxu0
        %1653 = vmatprep.mubr.f32.mxu0 0.0
        %1654 = vmatmul.mubr.f32.gmra.mxu0 %v1488
        %v1655 = vpop.f32.mrf.mxu0
        %v1656 = vadd.f32 0.0, %v1655
        %v1657 = vpop.f32.mrf.mxu0
        %1658 = vmatprep.mubr.f32.mxu0 0.0
        %1659 = vmatmul.mubr.f32.gmra.mxu0 %v1491
        %v1660 = vpop.f32.mrf.mxu0
        %v1661 = vadd.f32 0.0, %v1660
        %v1662 = vpop.f32.mrf.mxu0
        %1663 = vmatprep.mubr.f32.mxu0 0.0
        %1664 = vmatmul.mubr.f32.gmra.mxu0 %v1494
        %v1665 = vpop.f32.mrf.mxu0
        %v1666 = vadd.f32 0.0, %v1665
        %v1667 = vpop.f32.mrf.mxu0
        %1668 = vmatprep.mubr.f32.mxu0 0.0
        %1669 = vmatmul.mubr.f32.gmra.mxu0 %v1497
        %v1670 = vpop.f32.mrf.mxu0
        %v1671 = vadd.f32 0.0, %v1670
        %v1672 = vpop.f32.mrf.mxu0
        %1673 = vmatprep.mubr.f32.mxu0 0.0
        %1674 = vmatmul.mubr.f32.gmra.mxu0 %v1500
        %v1675 = vpop.f32.mrf.mxu0
        %v1676 = vadd.f32 0.0, %v1675
        %v1677 = vpop.f32.mrf.mxu0
        %1678 = vmatprep.mubr.f32.mxu0 0.0
        %1679 = vmatmul.mubr.f32.gmra.mxu0 %v1503
        %v1680 = vpop.f32.mrf.mxu0
        %v1681 = vadd.f32 0.0, %v1680
        %v1682 = vpop.f32.mrf.mxu0
        %1683 = vmatprep.mubr.f32.mxu0 0.0
        %1684 = vmatmul.mubr.f32.gmra.mxu0 %v1506
        %v1685 = vpop.f32.mrf.mxu0
        %v1686 = vadd.f32 0.0, %v1685
        %v1687 = vpop.f32.mrf.mxu0
        %1688 = vmatprep.mubr.f32.mxu0 0.0
        %1689 = vmatmul.mubr.f32.gmra.mxu0 %v1509
        %v1690 = vpop.f32.mrf.mxu0
        %v1691 = vadd.f32 0.0, %v1690
        %v1692 = vpop.f32.mrf.mxu0
        %1693 = vmatprep.mubr.f32.mxu0 0.0
        %1694 = vmatmul.mubr.f32.gmra.mxu0 %v1512
        %v1695 = vpop.f32.mrf.mxu0
        %v1696 = vadd.f32 0.0, %v1695
        %v1697 = vpop.f32.mrf.mxu0
        %1698 = vmatprep.mubr.f32.mxu0 0.0
        %1699 = vmatmul.mubr.f32.gmra.mxu0 %v1515
        %v1700 = vpop.f32.mrf.mxu0
        %v1701 = vadd.f32 0.0, %v1700
        %v1702 = vpop.f32.mrf.mxu0
        %1703 = vmatprep.mubr.f32.mxu0 0.0
        %1704 = vmatmul.mubr.f32.gmra.mxu0 %v1518
        %v1705 = vpop.f32.mrf.mxu0
        %v1706 = vadd.f32 0.0, %v1705
        %v1707 = vpop.f32.mrf.mxu0
        %1708 = vmatprep.mubr.f32.mxu0 0.0
        %1709 = vmatmul.mubr.f32.gmra.mxu0 %v1521
        %v1710 = vpop.f32.mrf.mxu0
        %v1711 = vadd.f32 0.0, %v1710
        %v1712 = vpop.f32.mrf.mxu0
        %1713 = vmatprep.mubr.f32.mxu0 0.0
        %1714 = vmatmul.mubr.f32.gmra.mxu0 %v1524
        %v1715 = vpop.f32.mrf.mxu0
        %v1716 = vadd.f32 0.0, %v1715
        %v1717 = vpop.f32.mrf.mxu0
        %1718 = vmatprep.mubr.f32.mxu0 0.0
        %1719 = vmatmul.mubr.f32.gmra.mxu0 %v1527
        %v1720 = vpop.f32.mrf.mxu0
        %v1721 = vadd.f32 0.0, %v1720
        %v1722 = vpop.f32.mrf.mxu0
        %1723 = vmatprep.mubr.f32.mxu0 0.0
        %1724 = vmatmul.mubr.f32.gmra.mxu0 %v1530
        %v1725 = vpop.f32.mrf.mxu0
        %v1726 = vadd.f32 0.0, %v1725
        %v1727 = vpop.f32.mrf.mxu0
        %1728 = vmatprep.mubr.f32.mxu0 0.0
        %1729 = vmatmul.mubr.f32.gmra.mxu0 %v1533
        %v1730 = vpop.f32.mrf.mxu0
        %v1731 = vadd.f32 0.0, %v1730
        %v1732 = vpop.f32.mrf.mxu0
        %1733 = vmatprep.mubr.f32.mxu0 0.0
        %1734 = vmatmul.mubr.f32.gmra.mxu0 %v1536
        %v1735 = vpop.f32.mrf.mxu0
        %v1736 = vadd.f32 0.0, %v1735
        %v1737 = vpop.f32.mrf.mxu0
        %1738 = vmatprep.mubr.f32.mxu0 0.0
        %1739 = vmatmul.mubr.f32.gmra.mxu0 %v1539
        %v1740 = vpop.f32.mrf.mxu0
        %v1741 = vadd.f32 0.0, %v1740
        %v1742 = vpop.f32.mrf.mxu0
        %1743 = vmatprep.mubr.f32.mxu0 0.0
        %1744 = vmatmul.mubr.f32.gmra.mxu0 %v1542
        %v1745 = vpop.f32.mrf.mxu0
        %v1746 = vadd.f32 0.0, %v1745
        %v1747 = vpop.f32.mrf.mxu0
        %1748 = vmatprep.mubr.f32.mxu0 0.0
        %1749 = vmatmul.mubr.f32.gmra.mxu0 %v1545
        %v1750 = vpop.f32.mrf.mxu0
        %v1751 = vadd.f32 0.0, %v1750
        %v1752 = vpop.f32.mrf.mxu0
        %1753 = vmatprep.mubr.f32.mxu0 0.0
        %1754 = vmatmul.mubr.f32.gmra.mxu0 %v1548
        %v1755 = vpop.f32.mrf.mxu0
        %v1756 = vadd.f32 0.0, %v1755
        %v1757 = vpop.f32.mrf.mxu0
        %1758 = vmatprep.mubr.f32.mxu0 0.0
        %1759 = vmatmul.mubr.f32.gmra.mxu0 %v1551
        %v1760 = vpop.f32.mrf.mxu0
        %v1761 = vadd.f32 0.0, %v1760
        %v1762 = vpop.f32.mrf.mxu0
        %1763 = vmatprep.mubr.f32.mxu0 0.0
        %1764 = vmatmul.mubr.f32.gmra.mxu0 %v1554
        %v1765 = vpop.f32.mrf.mxu0
        %v1766 = vadd.f32 0.0, %v1765
        %v1767 = vpop.f32.mrf.mxu0
        %1768 = vmatprep.mubr.f32.mxu0 0.0
        %1769 = vmatmul.mubr.f32.gmra.mxu0 %v1557
        %v1770 = vpop.f32.mrf.mxu0
        %v1771 = vadd.f32 0.0, %v1770
        %v1772 = vpop.f32.mrf.mxu0
        %1773 = vmatprep.mubr.f32.mxu0 0.0
        %1774 = vmatmul.mubr.f32.gmra.mxu0 %v1560
        %v1775 = vpop.f32.mrf.mxu0
        %v1776 = vadd.f32 0.0, %v1775
        %v1777 = vpop.f32.mrf.mxu0
        %1778 = vmatprep.mubr.f32.mxu0 0.0
        %1779 = vmatmul.mubr.f32.gmra.mxu0 %v1563
        %v1780 = vpop.f32.mrf.mxu0
        %v1781 = vadd.f32 0.0, %v1780
        %v1782 = vpop.f32.mrf.mxu0
        %1783 = vdwg.mxu0
        %1784 = vmatprep.subr.mxu0 0.0
        %1785 = vmatpush1.msra.mxu0 0.0
        %1786 = vmatprep.subr.mxu0 0.0
        %1787 = vmatpush1.msra.mxu0 0.0
        %1788 = vmatprep.subr.mxu0 0.0
        %1789 = vmatpush1.msra.mxu0 0.0
        %1790 = vmatprep.subr.mxu0 0.0
        %1791 = vmatpush1.msra.mxu0 0.0
        %1792 = vmatprep.subr.mxu0 0.0
        %1793 = vmatpush1.msra.mxu0 0.0
        %1794 = vmatprep.subr.mxu0 0.0
        %1795 = vmatpush1.msra.mxu0 0.0
        %1796 = vmatprep.subr.mxu0 0.0
        %1797 = vmatpush1.msra.mxu0 0.0
        %1798 = vmatprep.subr.mxu0 0.0
        %1799 = vmatpush1.msra.mxu0 0.0
        %1800 = vmatprep.subr.mxu0 0.0
        %1801 = vmatpush1.msra.mxu0 0.0
        %1802 = vmatprep.subr.mxu0 0.0
        %1803 = vmatpush1.msra.mxu0 0.0
        %1804 = vmatprep.subr.mxu0 0.0
        %1805 = vmatpush1.msra.mxu0 0.0
        %1806 = vmatprep.subr.mxu0 0.0
        %1807 = vmatpush1.msra.mxu0 0.0
        %1808 = vmatprep.subr.mxu0 0.0
        %1809 = vmatpush1.msra.mxu0 %v1472
        %1810 = vmatprep.subr.mxu0 0.0
        %1811 = vmatpush1.msra.mxu0 %v1471
        %1812 = vmatprep.subr.mxu0 0.0
        %1813 = vmatpush1.msra.mxu0 %v1470
        %1814 = vmatprep.subr.mxu0 0.0
        %1815 = vmatpush1.msra.mxu0 %v1469
        %1816 = vmatprep.subr.mxu0 0.0
        %1817 = vmatpush2.msra.mxu0 0.0
        %1818 = vmatprep.subr.mxu0 0.0
        %1819 = vmatpush2.msra.mxu0 0.0
        %1820 = vmatprep.subr.mxu0 0.0
        %1821 = vmatpush2.msra.mxu0 0.0
        %1822 = vmatprep.subr.mxu0 0.0
        %1823 = vmatpush2.msra.mxu0 0.0
        %1824 = vmatprep.subr.mxu0 0.0
        %1825 = vmatpush2.msra.mxu0 0.0
        %1826 = vmatprep.subr.mxu0 0.0
        %1827 = vmatpush2.msra.mxu0 0.0
        %1828 = vmatprep.subr.mxu0 0.0
        %1829 = vmatpush2.msra.mxu0 0.0
        %1830 = vmatprep.subr.mxu0 0.0
        %1831 = vmatpush2.msra.mxu0 0.0
        %1832 = vmatprep.subr.mxu0 0.0
        %1833 = vmatpush2.msra.mxu0 0.0
        %1834 = vmatprep.subr.mxu0 0.0
        %1835 = vmatpush2.msra.mxu0 0.0
        %1836 = vmatprep.subr.mxu0 0.0
        %1837 = vmatpush2.msra.mxu0 0.0
        %1838 = vmatprep.subr.mxu0 0.0
        %1839 = vmatpush2.msra.mxu0 0.0
        %1840 = vmatprep.subr.mxu0 0.0
        %1841 = vmatpush2.msra.mxu0 0.0
        %1842 = vmatprep.subr.mxu0 0.0
        %1843 = vmatpush2.msra.mxu0 0.0
        %1844 = vmatprep.subr.mxu0 0.0
        %1845 = vmatpush2.msra.mxu0 0.0
        %1846 = vmatprep.subr.mxu0 0.0
        %1847 = vmatpush2.msra.mxu0 0.0
        %1848 = vmatprep.mubr.f32.mxu0 0.0
        %1849 = vmatmul.mubr.f32.gmra.mxu0 %v796
        %v1850 = vpop.f32.mrf.mxu0
        %v1851 = vadd.f32 %v1636, %v1850
        %v1852 = vpop.f32.mrf.mxu0
        %1853 = vmatprep.mubr.f32.mxu0 0.0
        %1854 = vmatmul.mubr.f32.gmra.mxu0 %v799
        %v1855 = vpop.f32.mrf.mxu0
        %v1856 = vadd.f32 %v1641, %v1855
        %v1857 = vpop.f32.mrf.mxu0
        %1858 = vmatprep.mubr.f32.mxu0 0.0
        %1859 = vmatmul.mubr.f32.gmra.mxu0 %v802
        %v1860 = vpop.f32.mrf.mxu0
        %v1861 = vadd.f32 %v1646, %v1860
        %v1862 = vpop.f32.mrf.mxu0
        %1863 = vmatprep.mubr.f32.mxu0 0.0
        %1864 = vmatmul.mubr.f32.gmra.mxu0 %v805
        %v1865 = vpop.f32.mrf.mxu0
        %v1866 = vadd.f32 %v1651, %v1865
        %v1867 = vpop.f32.mrf.mxu0
        %1868 = vmatprep.mubr.f32.mxu0 0.0
        %1869 = vmatmul.mubr.f32.gmra.mxu0 %v808
        %v1870 = vpop.f32.mrf.mxu0
        %v1871 = vadd.f32 %v1656, %v1870
        %v1872 = vpop.f32.mrf.mxu0
        %1873 = vmatprep.mubr.f32.mxu0 0.0
        %1874 = vmatmul.mubr.f32.gmra.mxu0 %v811
        %v1875 = vpop.f32.mrf.mxu0
        %v1876 = vadd.f32 %v1661, %v1875
        %v1877 = vpop.f32.mrf.mxu0
        %1878 = vmatprep.mubr.f32.mxu0 0.0
        %1879 = vmatmul.mubr.f32.gmra.mxu0 %v814
        %v1880 = vpop.f32.mrf.mxu0
        %v1881 = vadd.f32 %v1666, %v1880
        %v1882 = vpop.f32.mrf.mxu0
        %1883 = vmatprep.mubr.f32.mxu0 0.0
        %1884 = vmatmul.mubr.f32.gmra.mxu0 %v817
        %v1885 = vpop.f32.mrf.mxu0
        %v1886 = vadd.f32 %v1671, %v1885
        %v1887 = vpop.f32.mrf.mxu0
        %1888 = vmatprep.mubr.f32.mxu0 0.0
        %1889 = vmatmul.mubr.f32.gmra.mxu0 %v820
        %v1890 = vpop.f32.mrf.mxu0
        %v1891 = vadd.f32 %v1676, %v1890
        %v1892 = vpop.f32.mrf.mxu0
        %1893 = vmatprep.mubr.f32.mxu0 0.0
        %1894 = vmatmul.mubr.f32.gmra.mxu0 %v823
        %v1895 = vpop.f32.mrf.mxu0
        %v1896 = vadd.f32 %v1681, %v1895
        %v1897 = vpop.f32.mrf.mxu0
        %1898 = vmatprep.mubr.f32.mxu0 0.0
        %1899 = vmatmul.mubr.f32.gmra.mxu0 %v826
        %v1900 = vpop.f32.mrf.mxu0
        %v1901 = vadd.f32 %v1686, %v1900
        %v1902 = vpop.f32.mrf.mxu0
        %1903 = vmatprep.mubr.f32.mxu0 0.0
        %1904 = vmatmul.mubr.f32.gmra.mxu0 %v829
        %v1905 = vpop.f32.mrf.mxu0
        %v1906 = vadd.f32 %v1691, %v1905
        %v1907 = vpop.f32.mrf.mxu0
        %1908 = vmatprep.mubr.f32.mxu0 0.0
        %1909 = vmatmul.mubr.f32.gmra.mxu0 %v832
        %v1910 = vpop.f32.mrf.mxu0
        %v1911 = vadd.f32 %v1696, %v1910
        %v1912 = vpop.f32.mrf.mxu0
        %1913 = vmatprep.mubr.f32.mxu0 0.0
        %1914 = vmatmul.mubr.f32.gmra.mxu0 %v835
        %v1915 = vpop.f32.mrf.mxu0
        %v1916 = vadd.f32 %v1701, %v1915
        %v1917 = vpop.f32.mrf.mxu0
        %1918 = vmatprep.mubr.f32.mxu0 0.0
        %1919 = vmatmul.mubr.f32.gmra.mxu0 %v838
        %v1920 = vpop.f32.mrf.mxu0
        %v1921 = vadd.f32 %v1706, %v1920
        %v1922 = vpop.f32.mrf.mxu0
        %1923 = vmatprep.mubr.f32.mxu0 0.0
        %1924 = vmatmul.mubr.f32.gmra.mxu0 %v841
        %v1925 = vpop.f32.mrf.mxu0
        %v1926 = vadd.f32 %v1711, %v1925
        %v1927 = vpop.f32.mrf.mxu0
        %1928 = vmatprep.mubr.f32.mxu0 0.0
        %1929 = vmatmul.mubr.f32.gmra.mxu0 %v844
        %v1930 = vpop.f32.mrf.mxu0
        %v1931 = vadd.f32 %v1716, %v1930
        %v1932 = vpop.f32.mrf.mxu0
        %1933 = vmatprep.mubr.f32.mxu0 0.0
        %1934 = vmatmul.mubr.f32.gmra.mxu0 %v847
        %v1935 = vpop.f32.mrf.mxu0
        %v1936 = vadd.f32 %v1721, %v1935
        %v1937 = vpop.f32.mrf.mxu0
        %1938 = vmatprep.mubr.f32.mxu0 0.0
        %1939 = vmatmul.mubr.f32.gmra.mxu0 %v850
        %v1940 = vpop.f32.mrf.mxu0
        %v1941 = vadd.f32 %v1726, %v1940
        %v1942 = vpop.f32.mrf.mxu0
        %1943 = vmatprep.mubr.f32.mxu0 0.0
        %1944 = vmatmul.mubr.f32.gmra.mxu0 %v853
        %v1945 = vpop.f32.mrf.mxu0
        %v1946 = vadd.f32 %v1731, %v1945
        %v1947 = vpop.f32.mrf.mxu0
        %1948 = vmatprep.mubr.f32.mxu0 0.0
        %1949 = vmatmul.mubr.f32.gmra.mxu0 %v856
        %v1950 = vpop.f32.mrf.mxu0
        %v1951 = vadd.f32 %v1736, %v1950
        %v1952 = vpop.f32.mrf.mxu0
        %1953 = vmatprep.mubr.f32.mxu0 0.0
        %1954 = vmatmul.mubr.f32.gmra.mxu0 %v859
        %v1955 = vpop.f32.mrf.mxu0
        %v1956 = vadd.f32 %v1741, %v1955
        %v1957 = vpop.f32.mrf.mxu0
        %1958 = vmatprep.mubr.f32.mxu0 0.0
        %1959 = vmatmul.mubr.f32.gmra.mxu0 %v862
        %v1960 = vpop.f32.mrf.mxu0
        %v1961 = vadd.f32 %v1746, %v1960
        %v1962 = vpop.f32.mrf.mxu0
        %1963 = vmatprep.mubr.f32.mxu0 0.0
        %1964 = vmatmul.mubr.f32.gmra.mxu0 %v865
        %v1965 = vpop.f32.mrf.mxu0
        %v1966 = vadd.f32 %v1751, %v1965
        %v1967 = vpop.f32.mrf.mxu0
        %1968 = vmatprep.mubr.f32.mxu0 0.0
        %1969 = vmatmul.mubr.f32.gmra.mxu0 %v868
        %v1970 = vpop.f32.mrf.mxu0
        %v1971 = vadd.f32 %v1756, %v1970
        %v1972 = vpop.f32.mrf.mxu0
        %1973 = vmatprep.mubr.f32.mxu0 0.0
        %1974 = vmatmul.mubr.f32.gmra.mxu0 %v871
        %v1975 = vpop.f32.mrf.mxu0
        %v1976 = vadd.f32 %v1761, %v1975
        %v1977 = vpop.f32.mrf.mxu0
        %1978 = vmatprep.mubr.f32.mxu0 0.0
        %1979 = vmatmul.mubr.f32.gmra.mxu0 %v874
        %v1980 = vpop.f32.mrf.mxu0
        %v1981 = vadd.f32 %v1766, %v1980
        %v1982 = vpop.f32.mrf.mxu0
        %1983 = vmatprep.mubr.f32.mxu0 0.0
        %1984 = vmatmul.mubr.f32.gmra.mxu0 %v877
        %v1985 = vpop.f32.mrf.mxu0
        %v1986 = vadd.f32 %v1771, %v1985
        %v1987 = vpop.f32.mrf.mxu0
        %1988 = vmatprep.mubr.f32.mxu0 0.0
        %1989 = vmatmul.mubr.f32.gmra.mxu0 %v880
        %v1990 = vpop.f32.mrf.mxu0
        %v1991 = vadd.f32 %v1776, %v1990
        %v1992 = vpop.f32.mrf.mxu0
        %1993 = vmatprep.mubr.f32.mxu0 0.0
        %1994 = vmatmul.mubr.f32.gmra.mxu0 %v883
        %v1995 = vpop.f32.mrf.mxu0
        %v1996 = vadd.f32 %v1781, %v1995
        %v1997 = vpop.f32.mrf.mxu0
        %1998 = vdwg.mxu0
        %v1999 = vxor.u32 %v1851, 2147483648
        %v2000 = vxor.u32 %v1856, 2147483648
        %v2001 = vxor.u32 %v1861, 2147483648
        %v2002 = vxor.u32 %v1866, 2147483648
        %v2003 = vxor.u32 %v1871, 2147483648
        %v2004 = vxor.u32 %v1876, 2147483648
        %v2005 = vxor.u32 %v1881, 2147483648
        %v2006 = vxor.u32 %v1886, 2147483648
        %v2007 = vxor.u32 %v1891, 2147483648
        %v2008 = vxor.u32 %v1896, 2147483648
        %v2009 = vxor.u32 %v1901, 2147483648
        %v2010 = vxor.u32 %v1906, 2147483648
        %v2011 = vxor.u32 %v1911, 2147483648
        %v2012 = vxor.u32 %v1916, 2147483648
        %v2013 = vxor.u32 %v1921, 2147483648
        %v2014 = vxor.u32 %v1926, 2147483648
        %v2015 = vxor.u32 %v1931, 2147483648
        %v2016 = vxor.u32 %v1936, 2147483648
        %v2017 = vxor.u32 %v1941, 2147483648
        %v2018 = vxor.u32 %v1946, 2147483648
        %v2019 = vxor.u32 %v1951, 2147483648
        %v2020 = vxor.u32 %v1956, 2147483648
        %v2021 = vxor.u32 %v1961, 2147483648
        %v2022 = vxor.u32 %v1966, 2147483648
        %v2023 = vxor.u32 %v1971, 2147483648
        %v2024 = vxor.u32 %v1976, 2147483648
        %v2025 = vxor.u32 %v1981, 2147483648
        %v2026 = vxor.u32 %v1986, 2147483648
        %v2027 = vxor.u32 %v1991, 2147483648
        %v2028 = vxor.u32 %v1996, 2147483648
        %v2029 = vmul.f32 %v1999, 1.442695
        %v2030 = vpow.pop %v2029
        %v2031 = vmul.f32 %v2000, 1.442695
        %v2032 = vpow.pop %v2031
        %v2033 = vmul.f32 %v2001, 1.442695
        %v2034 = vpow.pop %v2033
        %v2035 = vmul.f32 %v2002, 1.442695
        %v2036 = vpow.pop %v2035
        %v2037 = vmul.f32 %v2003, 1.442695
        %v2038 = vpow.pop %v2037
        %v2039 = vmul.f32 %v2004, 1.442695
        %v2040 = vpow.pop %v2039
        %v2041 = vmul.f32 %v2005, 1.442695
        %v2042 = vpow.pop %v2041
        %v2043 = vmul.f32 %v2006, 1.442695
        %v2044 = vpow.pop %v2043
        %v2045 = vmul.f32 %v2007, 1.442695
        %v2046 = vpow.pop %v2045
        %v2047 = vmul.f32 %v2008, 1.442695
        %v2048 = vpow.pop %v2047
        %v2049 = vmul.f32 %v2009, 1.442695
        %v2050 = vpow.pop %v2049
        %v2051 = vmul.f32 %v2010, 1.442695
        %v2052 = vpow.pop %v2051
        %v2053 = vmul.f32 %v2011, 1.442695
        %v2054 = vpow.pop %v2053
        %v2055 = vmul.f32 %v2012, 1.442695
        %v2056 = vpow.pop %v2055
        %v2057 = vmul.f32 %v2013, 1.442695
        %v2058 = vpow.pop %v2057
        %v2059 = vmul.f32 %v2014, 1.442695
        %v2060 = vpow.pop %v2059
        %v2061 = vmul.f32 %v2015, 1.442695
        %v2062 = vpow.pop %v2061
        %v2063 = vmul.f32 %v2016, 1.442695
        %v2064 = vpow.pop %v2063
        %v2065 = vmul.f32 %v2017, 1.442695
        %v2066 = vpow.pop %v2065
        %v2067 = vmul.f32 %v2018, 1.442695
        %v2068 = vpow.pop %v2067
        %v2069 = vmul.f32 %v2019, 1.442695
        %v2070 = vpow.pop %v2069
        %v2071 = vmul.f32 %v2020, 1.442695
        %v2072 = vpow.pop %v2071
        %v2073 = vmul.f32 %v2021, 1.442695
        %v2074 = vpow.pop %v2073
        %v2075 = vmul.f32 %v2022, 1.442695
        %v2076 = vpow.pop %v2075
        %v2077 = vmul.f32 %v2023, 1.442695
        %v2078 = vpow.pop %v2077
        %v2079 = vmul.f32 %v2024, 1.442695
        %v2080 = vpow.pop %v2079
        %v2081 = vmul.f32 %v2025, 1.442695
        %v2082 = vpow.pop %v2081
        %v2083 = vmul.f32 %v2026, 1.442695
        %v2084 = vpow.pop %v2083
        %v2085 = vmul.f32 %v2027, 1.442695
        %v2086 = vpow.pop %v2085
        %v2087 = vmul.f32 %v2028, 1.442695
        %v2088 = vpow.pop %v2087
        %v2089 = vadd.f32 %v2030, 1.0
        %v2090 = vadd.f32 %v2032, 1.0
        %v2091 = vadd.f32 %v2034, 1.0
        %v2092 = vadd.f32 %v2036, 1.0
        %v2093 = vadd.f32 %v2038, 1.0
        %v2094 = vadd.f32 %v2040, 1.0
        %v2095 = vadd.f32 %v2042, 1.0
        %v2096 = vadd.f32 %v2044, 1.0
        %v2097 = vadd.f32 %v2046, 1.0
        %v2098 = vadd.f32 %v2048, 1.0
        %v2099 = vadd.f32 %v2050, 1.0
        %v2100 = vadd.f32 %v2052, 1.0
        %v2101 = vadd.f32 %v2054, 1.0
        %v2102 = vadd.f32 %v2056, 1.0
        %v2103 = vadd.f32 %v2058, 1.0
        %v2104 = vadd.f32 %v2060, 1.0
        %v2105 = vadd.f32 %v2062, 1.0
        %v2106 = vadd.f32 %v2064, 1.0
        %v2107 = vadd.f32 %v2066, 1.0
        %v2108 = vadd.f32 %v2068, 1.0
        %v2109 = vadd.f32 %v2070, 1.0
        %v2110 = vadd.f32 %v2072, 1.0
        %v2111 = vadd.f32 %v2074, 1.0
        %v2112 = vadd.f32 %v2076, 1.0
        %v2113 = vadd.f32 %v2078, 1.0
        %v2114 = vadd.f32 %v2080, 1.0
        %v2115 = vadd.f32 %v2082, 1.0
        %v2116 = vadd.f32 %v2084, 1.0
        %v2117 = vadd.f32 %v2086, 1.0
        %v2118 = vadd.f32 %v2088, 1.0
        %v2119 = vrcp.pop %v2089
        %v2120 = vmul.f32 1.0, %v2119
        %v2121 = vrcp.pop %v2090
        %v2122 = vmul.f32 1.0, %v2121
        %v2123 = vrcp.pop %v2091
        %v2124 = vmul.f32 1.0, %v2123
        %v2125 = vrcp.pop %v2092
        %v2126 = vmul.f32 1.0, %v2125
        %v2127 = vrcp.pop %v2093
        %v2128 = vmul.f32 1.0, %v2127
        %v2129 = vrcp.pop %v2094
        %v2130 = vmul.f32 1.0, %v2129
        %v2131 = vrcp.pop %v2095
        %v2132 = vmul.f32 1.0, %v2131
        %v2133 = vrcp.pop %v2096
        %v2134 = vmul.f32 1.0, %v2133
        %v2135 = vrcp.pop %v2097
        %v2136 = vmul.f32 1.0, %v2135
        %v2137 = vrcp.pop %v2098
        %v2138 = vmul.f32 1.0, %v2137
        %v2139 = vrcp.pop %v2099
        %v2140 = vmul.f32 1.0, %v2139
        %v2141 = vrcp.pop %v2100
        %v2142 = vmul.f32 1.0, %v2141
        %v2143 = vrcp.pop %v2101
        %v2144 = vmul.f32 1.0, %v2143
        %v2145 = vrcp.pop %v2102
        %v2146 = vmul.f32 1.0, %v2145
        %v2147 = vrcp.pop %v2103
        %v2148 = vmul.f32 1.0, %v2147
        %v2149 = vrcp.pop %v2104
        %v2150 = vmul.f32 1.0, %v2149
        %v2151 = vrcp.pop %v2105
        %v2152 = vmul.f32 1.0, %v2151
        %v2153 = vrcp.pop %v2106
        %v2154 = vmul.f32 1.0, %v2153
        %v2155 = vrcp.pop %v2107
        %v2156 = vmul.f32 1.0, %v2155
        %v2157 = vrcp.pop %v2108
        %v2158 = vmul.f32 1.0, %v2157
        %v2159 = vrcp.pop %v2109
        %v2160 = vmul.f32 1.0, %v2159
        %v2161 = vrcp.pop %v2110
        %v2162 = vmul.f32 1.0, %v2161
        %v2163 = vrcp.pop %v2111
        %v2164 = vmul.f32 1.0, %v2163
        %v2165 = vrcp.pop %v2112
        %v2166 = vmul.f32 1.0, %v2165
        %v2167 = vrcp.pop %v2113
        %v2168 = vmul.f32 1.0, %v2167
        %v2169 = vrcp.pop %v2114
        %v2170 = vmul.f32 1.0, %v2169
        %v2171 = vrcp.pop %v2115
        %v2172 = vmul.f32 1.0, %v2171
        %v2173 = vrcp.pop %v2116
        %v2174 = vmul.f32 1.0, %v2173
        %v2175 = vrcp.pop %v2117
        %v2176 = vmul.f32 1.0, %v2175
        %v2177 = vrcp.pop %v2118
        %v2178 = vmul.f32 1.0, %v2177
        %v2179 = vmul.f32 %v1851, %v2120
        %v2180 = vmul.f32 %v1856, %v2122
        %v2181 = vmul.f32 %v1861, %v2124
        %v2182 = vmul.f32 %v1866, %v2126
        %v2183 = vmul.f32 %v1871, %v2128
        %v2184 = vmul.f32 %v1876, %v2130
        %v2185 = vmul.f32 %v1881, %v2132
        %v2186 = vmul.f32 %v1886, %v2134
        %v2187 = vmul.f32 %v1891, %v2136
        %v2188 = vmul.f32 %v1896, %v2138
        %v2189 = vmul.f32 %v1901, %v2140
        %v2190 = vmul.f32 %v1906, %v2142
        %v2191 = vmul.f32 %v1911, %v2144
        %v2192 = vmul.f32 %v1916, %v2146
        %v2193 = vmul.f32 %v1921, %v2148
        %v2194 = vmul.f32 %v1926, %v2150
        %v2195 = vmul.f32 %v1931, %v2152
        %v2196 = vmul.f32 %v1936, %v2154
        %v2197 = vmul.f32 %v1941, %v2156
        %v2198 = vmul.f32 %v1946, %v2158
        %v2199 = vmul.f32 %v1951, %v2160
        %v2200 = vmul.f32 %v1956, %v2162
        %v2201 = vmul.f32 %v1961, %v2164
        %v2202 = vmul.f32 %v1966, %v2166
        %v2203 = vmul.f32 %v1971, %v2168
        %v2204 = vmul.f32 %v1976, %v2170
        %v2205 = vmul.f32 %v1981, %v2172
        %v2206 = vmul.f32 %v1986, %v2174
        %v2207 = vmul.f32 %v1991, %v2176
        %v2208 = vmul.f32 %v1996, %v2178
        %v2209 = vld [vmem:[%s9] sm:$0xff]
        %v2210 = vld [vmem:[%s9 + $0x8] sm:$0xff]
        %v2211 = vld [vmem:[%s9 + $0x10] sm:$0xff]
        %v2212 = vld [vmem:[%s9 + $0x18] sm:$0xff]
        %v2213 = vld [vmem:[%s10] sm:$0x1]
        %v2215 = vlaneseq
        %v2216 = vshrl.u32 %v2215, 7
        %v2217 = vsub.s32 0, %v2216
        %v2218 = vrot.slane %v2213, %v2217
        %v2221 = vsel %vm794, %v2179, 0
        %v2224 = vsel %vm794, %v2180, 0
        %v2227 = vsel %vm794, %v2181, 0
        %v2230 = vsel %vm794, %v2182, 0
        %v2233 = vsel %vm794, %v2183, 0
        %v2236 = vsel %vm794, %v2184, 0
        %v2239 = vsel %vm794, %v2185, 0
        %v2242 = vsel %vm794, %v2186, 0
        %v2245 = vsel %vm794, %v2187, 0
        %v2248 = vsel %vm794, %v2188, 0
        %v2251 = vsel %vm794, %v2189, 0
        %v2254 = vsel %vm794, %v2190, 0
        %v2257 = vsel %vm794, %v2191, 0
        %v2260 = vsel %vm794, %v2192, 0
        %v2263 = vsel %vm794, %v2193, 0
        %v2266 = vsel %vm794, %v2194, 0
        %v2269 = vsel %vm794, %v2195, 0
        %v2272 = vsel %vm794, %v2196, 0
        %v2275 = vsel %vm794, %v2197, 0
        %v2278 = vsel %vm794, %v2198, 0
        %v2281 = vsel %vm794, %v2199, 0
        %v2284 = vsel %vm794, %v2200, 0
        %v2287 = vsel %vm794, %v2201, 0
        %v2290 = vsel %vm794, %v2202, 0
        %v2293 = vsel %vm794, %v2203, 0
        %v2296 = vsel %vm794, %v2204, 0
        %v2299 = vsel %vm794, %v2205, 0
        %v2302 = vsel %vm794, %v2206, 0
        %v2305 = vsel %vm794, %v2207, 0
        %v2308 = vsel %vm794, %v2208, 0
        %2310 = vmatprep.subr.mxu0 0.0
        %2311 = vmatpush1.msra.mxu0 0.0
        %2312 = vmatprep.subr.mxu0 0.0
        %2313 = vmatpush1.msra.mxu0 0.0
        %2314 = vmatprep.subr.mxu0 0.0
        %2315 = vmatpush1.msra.mxu0 0.0
        %2316 = vmatprep.subr.mxu0 0.0
        %2317 = vmatpush1.msra.mxu0 0.0
        %2318 = vmatprep.subr.mxu0 0.0
        %2319 = vmatpush1.msra.mxu0 0.0
        %2320 = vmatprep.subr.mxu0 0.0
        %2321 = vmatpush1.msra.mxu0 0.0
        %2322 = vmatprep.subr.mxu0 0.0
        %2323 = vmatpush1.msra.mxu0 0.0
        %2324 = vmatprep.subr.mxu0 0.0
        %2325 = vmatpush1.msra.mxu0 0.0
        %2326 = vmatprep.subr.mxu0 0.0
        %2327 = vmatpush1.msra.mxu0 0.0
        %2328 = vmatprep.subr.mxu0 0.0
        %2329 = vmatpush1.msra.mxu0 0.0
        %2330 = vmatprep.subr.mxu0 0.0
        %2331 = vmatpush1.msra.mxu0 0.0
        %2332 = vmatprep.subr.mxu0 0.0
        %2333 = vmatpush1.msra.mxu0 0.0
        %2334 = vmatprep.subr.mxu0 0.0
        %2335 = vmatpush1.msra.mxu0 %v2212
        %2336 = vmatprep.subr.mxu0 0.0
        %2337 = vmatpush1.msra.mxu0 %v2211
        %2338 = vmatprep.subr.mxu0 0.0
        %2339 = vmatpush1.msra.mxu0 %v2210
        %2340 = vmatprep.subr.mxu0 0.0
        %2341 = vmatpush1.msra.mxu0 %v2209
        %2342 = vmatprep.subr.mxu0 0.0
        %2343 = vmatpush2.msra.mxu0 0.0
        %2344 = vmatprep.subr.mxu0 0.0
        %2345 = vmatpush2.msra.mxu0 0.0
        %2346 = vmatprep.subr.mxu0 0.0
        %2347 = vmatpush2.msra.mxu0 0.0
        %2348 = vmatprep.subr.mxu0 0.0
        %2349 = vmatpush2.msra.mxu0 0.0
        %2350 = vmatprep.subr.mxu0 0.0
        %2351 = vmatpush2.msra.mxu0 0.0
        %2352 = vmatprep.subr.mxu0 0.0
        %2353 = vmatpush2.msra.mxu0 0.0
        %2354 = vmatprep.subr.mxu0 0.0
        %2355 = vmatpush2.msra.mxu0 0.0
        %2356 = vmatprep.subr.mxu0 0.0
        %2357 = vmatpush2.msra.mxu0 0.0
        %2358 = vmatprep.subr.mxu0 0.0
        %2359 = vmatpush2.msra.mxu0 0.0
        %2360 = vmatprep.subr.mxu0 0.0
        %2361 = vmatpush2.msra.mxu0 0.0
        %2362 = vmatprep.subr.mxu0 0.0
        %2363 = vmatpush2.msra.mxu0 0.0
        %2364 = vmatprep.subr.mxu0 0.0
        %2365 = vmatpush2.msra.mxu0 0.0
        %2366 = vmatprep.subr.mxu0 0.0
        %2367 = vmatpush2.msra.mxu0 0.0
        %2368 = vmatprep.subr.mxu0 0.0
        %2369 = vmatpush2.msra.mxu0 0.0
        %2370 = vmatprep.subr.mxu0 0.0
        %2371 = vmatpush2.msra.mxu0 0.0
        %2372 = vmatprep.subr.mxu0 0.0
        %2373 = vmatpush2.msra.mxu0 0.0
        %2374 = vmatprep.mubr.f32.mxu0 0.0
        %2375 = vmatmul.mubr.f32.gmra.mxu0 %v2221
        %v2376 = vpop.f32.mrf.mxu0
        %v2377 = vadd.f32 %v2218, %v2376
        %v2378 = vpop.f32.mrf.mxu0
        %2379 = vmatprep.mubr.f32.mxu0 0.0
        %2380 = vmatmul.mubr.f32.gmra.mxu0 %v2224
        %v2381 = vpop.f32.mrf.mxu0
        %v2382 = vadd.f32 %v2218, %v2381
        %v2383 = vpop.f32.mrf.mxu0
        %2384 = vmatprep.mubr.f32.mxu0 0.0
        %2385 = vmatmul.mubr.f32.gmra.mxu0 %v2227
        %v2386 = vpop.f32.mrf.mxu0
        %v2387 = vadd.f32 %v2218, %v2386
        %v2388 = vpop.f32.mrf.mxu0
        %2389 = vmatprep.mubr.f32.mxu0 0.0
        %2390 = vmatmul.mubr.f32.gmra.mxu0 %v2230
        %v2391 = vpop.f32.mrf.mxu0
        %v2392 = vadd.f32 %v2218, %v2391
        %v2393 = vpop.f32.mrf.mxu0
        %2394 = vmatprep.mubr.f32.mxu0 0.0
        %2395 = vmatmul.mubr.f32.gmra.mxu0 %v2233
        %v2396 = vpop.f32.mrf.mxu0
        %v2397 = vadd.f32 %v2218, %v2396
        %v2398 = vpop.f32.mrf.mxu0
        %2399 = vmatprep.mubr.f32.mxu0 0.0
        %2400 = vmatmul.mubr.f32.gmra.mxu0 %v2236
        %v2401 = vpop.f32.mrf.mxu0
        %v2402 = vadd.f32 %v2218, %v2401
        %v2403 = vpop.f32.mrf.mxu0
        %2404 = vmatprep.mubr.f32.mxu0 0.0
        %2405 = vmatmul.mubr.f32.gmra.mxu0 %v2239
        %v2406 = vpop.f32.mrf.mxu0
        %v2407 = vadd.f32 %v2218, %v2406
        %v2408 = vpop.f32.mrf.mxu0
        %2409 = vmatprep.mubr.f32.mxu0 0.0
        %2410 = vmatmul.mubr.f32.gmra.mxu0 %v2242
        %v2411 = vpop.f32.mrf.mxu0
        %v2412 = vadd.f32 %v2218, %v2411
        %v2413 = vpop.f32.mrf.mxu0
        %2414 = vmatprep.mubr.f32.mxu0 0.0
        %2415 = vmatmul.mubr.f32.gmra.mxu0 %v2245
        %v2416 = vpop.f32.mrf.mxu0
        %v2417 = vadd.f32 %v2218, %v2416
        %v2418 = vpop.f32.mrf.mxu0
        %2419 = vmatprep.mubr.f32.mxu0 0.0
        %2420 = vmatmul.mubr.f32.gmra.mxu0 %v2248
        %v2421 = vpop.f32.mrf.mxu0
        %v2422 = vadd.f32 %v2218, %v2421
        %v2423 = vpop.f32.mrf.mxu0
        %2424 = vmatprep.mubr.f32.mxu0 0.0
        %2425 = vmatmul.mubr.f32.gmra.mxu0 %v2251
        %v2426 = vpop.f32.mrf.mxu0
        %v2427 = vadd.f32 %v2218, %v2426
        %v2428 = vpop.f32.mrf.mxu0
        %2429 = vmatprep.mubr.f32.mxu0 0.0
        %2430 = vmatmul.mubr.f32.gmra.mxu0 %v2254
        %v2431 = vpop.f32.mrf.mxu0
        %v2432 = vadd.f32 %v2218, %v2431
        %v2433 = vpop.f32.mrf.mxu0
        %2434 = vmatprep.mubr.f32.mxu0 0.0
        %2435 = vmatmul.mubr.f32.gmra.mxu0 %v2257
        %v2436 = vpop.f32.mrf.mxu0
        %v2437 = vadd.f32 %v2218, %v2436
        %v2438 = vpop.f32.mrf.mxu0
        %2439 = vmatprep.mubr.f32.mxu0 0.0
        %2440 = vmatmul.mubr.f32.gmra.mxu0 %v2260
        %v2441 = vpop.f32.mrf.mxu0
        %v2442 = vadd.f32 %v2218, %v2441
        %v2443 = vpop.f32.mrf.mxu0
        %2444 = vmatprep.mubr.f32.mxu0 0.0
        %2445 = vmatmul.mubr.f32.gmra.mxu0 %v2263
        %v2446 = vpop.f32.mrf.mxu0
        %v2447 = vadd.f32 %v2218, %v2446
        %v2448 = vpop.f32.mrf.mxu0
        %2449 = vmatprep.mubr.f32.mxu0 0.0
        %2450 = vmatmul.mubr.f32.gmra.mxu0 %v2266
        %v2451 = vpop.f32.mrf.mxu0
        %v2452 = vadd.f32 %v2218, %v2451
        %v2453 = vpop.f32.mrf.mxu0
        %2454 = vmatprep.mubr.f32.mxu0 0.0
        %2455 = vmatmul.mubr.f32.gmra.mxu0 %v2269
        %v2456 = vpop.f32.mrf.mxu0
        %v2457 = vadd.f32 %v2218, %v2456
        %v2458 = vpop.f32.mrf.mxu0
        %2459 = vmatprep.mubr.f32.mxu0 0.0
        %2460 = vmatmul.mubr.f32.gmra.mxu0 %v2272
        %v2461 = vpop.f32.mrf.mxu0
        %v2462 = vadd.f32 %v2218, %v2461
        %v2463 = vpop.f32.mrf.mxu0
        %2464 = vmatprep.mubr.f32.mxu0 0.0
        %2465 = vmatmul.mubr.f32.gmra.mxu0 %v2275
        %v2466 = vpop.f32.mrf.mxu0
        %v2467 = vadd.f32 %v2218, %v2466
        %v2468 = vpop.f32.mrf.mxu0
        %2469 = vmatprep.mubr.f32.mxu0 0.0
        %2470 = vmatmul.mubr.f32.gmra.mxu0 %v2278
        %v2471 = vpop.f32.mrf.mxu0
        %v2472 = vadd.f32 %v2218, %v2471
        %v2473 = vpop.f32.mrf.mxu0
        %2474 = vmatprep.mubr.f32.mxu0 0.0
        %2475 = vmatmul.mubr.f32.gmra.mxu0 %v2281
        %v2476 = vpop.f32.mrf.mxu0
        %v2477 = vadd.f32 %v2218, %v2476
        %v2478 = vpop.f32.mrf.mxu0
        %2479 = vmatprep.mubr.f32.mxu0 0.0
        %2480 = vmatmul.mubr.f32.gmra.mxu0 %v2284
        %v2481 = vpop.f32.mrf.mxu0
        %v2482 = vadd.f32 %v2218, %v2481
        %v2483 = vpop.f32.mrf.mxu0
        %2484 = vmatprep.mubr.f32.mxu0 0.0
        %2485 = vmatmul.mubr.f32.gmra.mxu0 %v2287
        %v2486 = vpop.f32.mrf.mxu0
        %v2487 = vadd.f32 %v2218, %v2486
        %v2488 = vpop.f32.mrf.mxu0
        %2489 = vmatprep.mubr.f32.mxu0 0.0
        %2490 = vmatmul.mubr.f32.gmra.mxu0 %v2290
        %v2491 = vpop.f32.mrf.mxu0
        %v2492 = vadd.f32 %v2218, %v2491
        %v2493 = vpop.f32.mrf.mxu0
        %2494 = vmatprep.mubr.f32.mxu0 0.0
        %2495 = vmatmul.mubr.f32.gmra.mxu0 %v2293
        %v2496 = vpop.f32.mrf.mxu0
        %v2497 = vadd.f32 %v2218, %v2496
        %v2498 = vpop.f32.mrf.mxu0
        %2499 = vmatprep.mubr.f32.mxu0 0.0
        %2500 = vmatmul.mubr.f32.gmra.mxu0 %v2296
        %v2501 = vpop.f32.mrf.mxu0
        %v2502 = vadd.f32 %v2218, %v2501
        %v2503 = vpop.f32.mrf.mxu0
        %2504 = vmatprep.mubr.f32.mxu0 0.0
        %2505 = vmatmul.mubr.f32.gmra.mxu0 %v2299
        %v2506 = vpop.f32.mrf.mxu0
        %v2507 = vadd.f32 %v2218, %v2506
        %v2508 = vpop.f32.mrf.mxu0
        %2509 = vmatprep.mubr.f32.mxu0 0.0
        %2510 = vmatmul.mubr.f32.gmra.mxu0 %v2302
        %v2511 = vpop.f32.mrf.mxu0
        %v2512 = vadd.f32 %v2218, %v2511
        %v2513 = vpop.f32.mrf.mxu0
        %2514 = vmatprep.mubr.f32.mxu0 0.0
        %2515 = vmatmul.mubr.f32.gmra.mxu0 %v2305
        %v2516 = vpop.f32.mrf.mxu0
        %v2517 = vadd.f32 %v2218, %v2516
        %v2518 = vpop.f32.mrf.mxu0
        %2519 = vmatprep.mubr.f32.mxu0 0.0
        %2520 = vmatmul.mubr.f32.gmra.mxu0 %v2308
        %v2521 = vpop.f32.mrf.mxu0
        %v2522 = vadd.f32 %v2218, %v2521
        %v2523 = vpop.f32.mrf.mxu0
        %2524 = vdwg.mxu0
        %v2525 = vxor.u32 %v2377, 2147483648
        %v2526 = vxor.u32 %v2382, 2147483648
        %v2527 = vxor.u32 %v2387, 2147483648
        %v2528 = vxor.u32 %v2392, 2147483648
        %v2529 = vxor.u32 %v2397, 2147483648
        %v2530 = vxor.u32 %v2402, 2147483648
        %v2531 = vxor.u32 %v2407, 2147483648
        %v2532 = vxor.u32 %v2412, 2147483648
        %v2533 = vxor.u32 %v2417, 2147483648
        %v2534 = vxor.u32 %v2422, 2147483648
        %v2535 = vxor.u32 %v2427, 2147483648
        %v2536 = vxor.u32 %v2432, 2147483648
        %v2537 = vxor.u32 %v2437, 2147483648
        %v2538 = vxor.u32 %v2442, 2147483648
        %v2539 = vxor.u32 %v2447, 2147483648
        %v2540 = vxor.u32 %v2452, 2147483648
        %v2541 = vxor.u32 %v2457, 2147483648
        %v2542 = vxor.u32 %v2462, 2147483648
        %v2543 = vxor.u32 %v2467, 2147483648
        %v2544 = vxor.u32 %v2472, 2147483648
        %v2545 = vxor.u32 %v2477, 2147483648
        %v2546 = vxor.u32 %v2482, 2147483648
        %v2547 = vxor.u32 %v2487, 2147483648
        %v2548 = vxor.u32 %v2492, 2147483648
        %v2549 = vxor.u32 %v2497, 2147483648
        %v2550 = vxor.u32 %v2502, 2147483648
        %v2551 = vxor.u32 %v2507, 2147483648
        %v2552 = vxor.u32 %v2512, 2147483648
        %v2553 = vxor.u32 %v2517, 2147483648
        %v2554 = vxor.u32 %v2522, 2147483648
        %v2555 = vmul.f32 %v2525, 1.442695
        %v2556 = vpow.pop %v2555
        %v2557 = vmul.f32 %v2526, 1.442695
        %v2558 = vpow.pop %v2557
        %v2559 = vmul.f32 %v2527, 1.442695
        %v2560 = vpow.pop %v2559
        %v2561 = vmul.f32 %v2528, 1.442695
        %v2562 = vpow.pop %v2561
        %v2563 = vmul.f32 %v2529, 1.442695
        %v2564 = vpow.pop %v2563
        %v2565 = vmul.f32 %v2530, 1.442695
        %v2566 = vpow.pop %v2565
        %v2567 = vmul.f32 %v2531, 1.442695
        %v2568 = vpow.pop %v2567
        %v2569 = vmul.f32 %v2532, 1.442695
        %v2570 = vpow.pop %v2569
        %v2571 = vmul.f32 %v2533, 1.442695
        %v2572 = vpow.pop %v2571
        %v2573 = vmul.f32 %v2534, 1.442695
        %v2574 = vpow.pop %v2573
        %v2575 = vmul.f32 %v2535, 1.442695
        %v2576 = vpow.pop %v2575
        %v2577 = vmul.f32 %v2536, 1.442695
        %v2578 = vpow.pop %v2577
        %v2579 = vmul.f32 %v2537, 1.442695
        %v2580 = vpow.pop %v2579
        %v2581 = vmul.f32 %v2538, 1.442695
        %v2582 = vpow.pop %v2581
        %v2583 = vmul.f32 %v2539, 1.442695
        %v2584 = vpow.pop %v2583
        %v2585 = vmul.f32 %v2540, 1.442695
        %v2586 = vpow.pop %v2585
        %v2587 = vmul.f32 %v2541, 1.442695
        %v2588 = vpow.pop %v2587
        %v2589 = vmul.f32 %v2542, 1.442695
        %v2590 = vpow.pop %v2589
        %v2591 = vmul.f32 %v2543, 1.442695
        %v2592 = vpow.pop %v2591
        %v2593 = vmul.f32 %v2544, 1.442695
        %v2594 = vpow.pop %v2593
        %v2595 = vmul.f32 %v2545, 1.442695
        %v2596 = vpow.pop %v2595
        %v2597 = vmul.f32 %v2546, 1.442695
        %v2598 = vpow.pop %v2597
        %v2599 = vmul.f32 %v2547, 1.442695
        %v2600 = vpow.pop %v2599
        %v2601 = vmul.f32 %v2548, 1.442695
        %v2602 = vpow.pop %v2601
        %v2603 = vmul.f32 %v2549, 1.442695
        %v2604 = vpow.pop %v2603
        %v2605 = vmul.f32 %v2550, 1.442695
        %v2606 = vpow.pop %v2605
        %v2607 = vmul.f32 %v2551, 1.442695
        %v2608 = vpow.pop %v2607
        %v2609 = vmul.f32 %v2552, 1.442695
        %v2610 = vpow.pop %v2609
        %v2611 = vmul.f32 %v2553, 1.442695
        %v2612 = vpow.pop %v2611
        %v2613 = vmul.f32 %v2554, 1.442695
        %v2614 = vpow.pop %v2613
        %v2615 = vadd.f32 %v2556, 1.0
        %v2616 = vadd.f32 %v2558, 1.0
        %v2617 = vadd.f32 %v2560, 1.0
        %v2618 = vadd.f32 %v2562, 1.0
        %v2619 = vadd.f32 %v2564, 1.0
        %v2620 = vadd.f32 %v2566, 1.0
        %v2621 = vadd.f32 %v2568, 1.0
        %v2622 = vadd.f32 %v2570, 1.0
        %v2623 = vadd.f32 %v2572, 1.0
        %v2624 = vadd.f32 %v2574, 1.0
        %v2625 = vadd.f32 %v2576, 1.0
        %v2626 = vadd.f32 %v2578, 1.0
        %v2627 = vadd.f32 %v2580, 1.0
        %v2628 = vadd.f32 %v2582, 1.0
        %v2629 = vadd.f32 %v2584, 1.0
        %v2630 = vadd.f32 %v2586, 1.0
        %v2631 = vadd.f32 %v2588, 1.0
        %v2632 = vadd.f32 %v2590, 1.0
        %v2633 = vadd.f32 %v2592, 1.0
        %v2634 = vadd.f32 %v2594, 1.0
        %v2635 = vadd.f32 %v2596, 1.0
        %v2636 = vadd.f32 %v2598, 1.0
        %v2637 = vadd.f32 %v2600, 1.0
        %v2638 = vadd.f32 %v2602, 1.0
        %v2639 = vadd.f32 %v2604, 1.0
        %v2640 = vadd.f32 %v2606, 1.0
        %v2641 = vadd.f32 %v2608, 1.0
        %v2642 = vadd.f32 %v2610, 1.0
        %v2643 = vadd.f32 %v2612, 1.0
        %v2644 = vadd.f32 %v2614, 1.0
        %v2645 = vrcp.pop %v2615
        %v2646 = vmul.f32 1.0, %v2645
        %v2647 = vrcp.pop %v2616
        %v2648 = vmul.f32 1.0, %v2647
        %v2649 = vrcp.pop %v2617
        %v2650 = vmul.f32 1.0, %v2649
        %v2651 = vrcp.pop %v2618
        %v2652 = vmul.f32 1.0, %v2651
        %v2653 = vrcp.pop %v2619
        %v2654 = vmul.f32 1.0, %v2653
        %v2655 = vrcp.pop %v2620
        %v2656 = vmul.f32 1.0, %v2655
        %v2657 = vrcp.pop %v2621
        %v2658 = vmul.f32 1.0, %v2657
        %v2659 = vrcp.pop %v2622
        %v2660 = vmul.f32 1.0, %v2659
        %v2661 = vrcp.pop %v2623
        %v2662 = vmul.f32 1.0, %v2661
        %v2663 = vrcp.pop %v2624
        %v2664 = vmul.f32 1.0, %v2663
        %v2665 = vrcp.pop %v2625
        %v2666 = vmul.f32 1.0, %v2665
        %v2667 = vrcp.pop %v2626
        %v2668 = vmul.f32 1.0, %v2667
        %v2669 = vrcp.pop %v2627
        %v2670 = vmul.f32 1.0, %v2669
        %v2671 = vrcp.pop %v2628
        %v2672 = vmul.f32 1.0, %v2671
        %v2673 = vrcp.pop %v2629
        %v2674 = vmul.f32 1.0, %v2673
        %v2675 = vrcp.pop %v2630
        %v2676 = vmul.f32 1.0, %v2675
        %v2677 = vrcp.pop %v2631
        %v2678 = vmul.f32 1.0, %v2677
        %v2679 = vrcp.pop %v2632
        %v2680 = vmul.f32 1.0, %v2679
        %v2681 = vrcp.pop %v2633
        %v2682 = vmul.f32 1.0, %v2681
        %v2683 = vrcp.pop %v2634
        %v2684 = vmul.f32 1.0, %v2683
        %v2685 = vrcp.pop %v2635
        %v2686 = vmul.f32 1.0, %v2685
        %v2687 = vrcp.pop %v2636
        %v2688 = vmul.f32 1.0, %v2687
        %v2689 = vrcp.pop %v2637
        %v2690 = vmul.f32 1.0, %v2689
        %v2691 = vrcp.pop %v2638
        %v2692 = vmul.f32 1.0, %v2691
        %v2693 = vrcp.pop %v2639
        %v2694 = vmul.f32 1.0, %v2693
        %v2695 = vrcp.pop %v2640
        %v2696 = vmul.f32 1.0, %v2695
        %v2697 = vrcp.pop %v2641
        %v2698 = vmul.f32 1.0, %v2697
        %v2699 = vrcp.pop %v2642
        %v2700 = vmul.f32 1.0, %v2699
        %v2701 = vrcp.pop %v2643
        %v2702 = vmul.f32 1.0, %v2701
        %v2703 = vrcp.pop %v2644
        %v2704 = vmul.f32 1.0, %v2703
        %v2705 = vmul.f32 %v2377, %v2646
        %v2706 = vmul.f32 %v2382, %v2648
        %v2707 = vmul.f32 %v2387, %v2650
        %v2708 = vmul.f32 %v2392, %v2652
        %v2709 = vmul.f32 %v2397, %v2654
        %v2710 = vmul.f32 %v2402, %v2656
        %v2711 = vmul.f32 %v2407, %v2658
        %v2712 = vmul.f32 %v2412, %v2660
        %v2713 = vmul.f32 %v2417, %v2662
        %v2714 = vmul.f32 %v2422, %v2664
        %v2715 = vmul.f32 %v2427, %v2666
        %v2716 = vmul.f32 %v2432, %v2668
        %v2717 = vmul.f32 %v2437, %v2670
        %v2718 = vmul.f32 %v2442, %v2672
        %v2719 = vmul.f32 %v2447, %v2674
        %v2720 = vmul.f32 %v2452, %v2676
        %v2721 = vmul.f32 %v2457, %v2678
        %v2722 = vmul.f32 %v2462, %v2680
        %v2723 = vmul.f32 %v2467, %v2682
        %v2724 = vmul.f32 %v2472, %v2684
        %v2725 = vmul.f32 %v2477, %v2686
        %v2726 = vmul.f32 %v2482, %v2688
        %v2727 = vmul.f32 %v2487, %v2690
        %v2728 = vmul.f32 %v2492, %v2692
        %v2729 = vmul.f32 %v2497, %v2694
        %v2730 = vmul.f32 %v2502, %v2696
        %v2731 = vmul.f32 %v2507, %v2698
        %v2732 = vmul.f32 %v2512, %v2700
        %v2733 = vmul.f32 %v2517, %v2702
        %v2734 = vmul.f32 %v2522, %v2704
        %vm2735 = vcmask 916480
        %v2737 = vsel %vm2735, %v785, 0
        %v2740 = vsel %vm2735, %v787, 0
        %2742 = vmatprep.subr.mxu0 0.0
        %2743 = vmatpush1.msra.mxu0 %v2720
        %2744 = vmatprep.subr.mxu0 0.0
        %2745 = vmatpush1.msra.mxu0 %v2719
        %2746 = vmatprep.subr.mxu0 0.0
        %2747 = vmatpush1.msra.mxu0 %v2718
        %2748 = vmatprep.subr.mxu0 0.0
        %2749 = vmatpush1.msra.mxu0 %v2717
        %2750 = vmatprep.subr.mxu0 0.0
        %2751 = vmatpush1.msra.mxu0 %v2716
        %2752 = vmatprep.subr.mxu0 0.0
        %2753 = vmatpush1.msra.mxu0 %v2715
        %2754 = vmatprep.subr.mxu0 0.0
        %2755 = vmatpush1.msra.mxu0 %v2714
        %2756 = vmatprep.subr.mxu0 0.0
        %2757 = vmatpush1.msra.mxu0 %v2713
        %2758 = vmatprep.subr.mxu0 0.0
        %2759 = vmatpush1.msra.mxu0 %v2712
        %2760 = vmatprep.subr.mxu0 0.0
        %2761 = vmatpush1.msra.mxu0 %v2711
        %2762 = vmatprep.subr.mxu0 0.0
        %2763 = vmatpush1.msra.mxu0 %v2710
        %2764 = vmatprep.subr.mxu0 0.0
        %2765 = vmatpush1.msra.mxu0 %v2709
        %2766 = vmatprep.subr.mxu0 0.0
        %2767 = vmatpush1.msra.mxu0 %v2708
        %2768 = vmatprep.subr.mxu0 0.0
        %2769 = vmatpush1.msra.mxu0 %v2707
        %2770 = vmatprep.subr.mxu0 0.0
        %2771 = vmatpush1.msra.mxu0 %v2706
        %2772 = vmatprep.subr.mxu0 0.0
        %2773 = vmatpush1.msra.mxu0 %v2705
        %2774 = vmatprep.subr.mxu0 0.0
        %2775 = vmatpush2.msra.mxu0 0.0
        %2776 = vmatprep.subr.mxu0 0.0
        %2777 = vmatpush2.msra.mxu0 0.0
        %2778 = vmatprep.subr.mxu0 0.0
        %2779 = vmatpush2.msra.mxu0 %v2734
        %2780 = vmatprep.subr.mxu0 0.0
        %2781 = vmatpush2.msra.mxu0 %v2733
        %2782 = vmatprep.subr.mxu0 0.0
        %2783 = vmatpush2.msra.mxu0 %v2732
        %2784 = vmatprep.subr.mxu0 0.0
        %2785 = vmatpush2.msra.mxu0 %v2731
        %2786 = vmatprep.subr.mxu0 0.0
        %2787 = vmatpush2.msra.mxu0 %v2730
        %2788 = vmatprep.subr.mxu0 0.0
        %2789 = vmatpush2.msra.mxu0 %v2729
        %2790 = vmatprep.subr.mxu0 0.0
        %2791 = vmatpush2.msra.mxu0 %v2728
        %2792 = vmatprep.subr.mxu0 0.0
        %2793 = vmatpush2.msra.mxu0 %v2727
        %2794 = vmatprep.subr.mxu0 0.0
        %2795 = vmatpush2.msra.mxu0 %v2726
        %2796 = vmatprep.subr.mxu0 0.0
        %2797 = vmatpush2.msra.mxu0 %v2725
        %2798 = vmatprep.subr.mxu0 0.0
        %2799 = vmatpush2.msra.mxu0 %v2724
        %2800 = vmatprep.subr.mxu0 0.0
        %2801 = vmatpush2.msra.mxu0 %v2723
        %2802 = vmatprep.subr.mxu0 0.0
        %2803 = vmatpush2.msra.mxu0 %v2722
        %2804 = vmatprep.subr.mxu0 0.0
        %2805 = vmatpush2.msra.mxu0 %v2721
        %2806 = vmatprep.mubr.f32.mxu0 %v2737
        %2807 = vmatmul.mubr.f32.gmra.mxu0 %v784
        %v2808 = vpop.f32.mrf.mxu0
        %v2809 = vadd.f32 0.0, %v2808
        %v2810 = vpop.f32.mrf.mxu0
        %2811 = vmatprep.mubr.f32.mxu0 %v2740
        %2812 = vmatmul.mubr.f32.gmra.mxu0 %v786
        %v2813 = vpop.f32.mrf.mxu0
        %v2814 = vadd.f32 0.0, %v2813
        %v2815 = vpop.f32.mrf.mxu0
        %2816 = vdwg.mxu0
        %2819 = vrot.lane.b32.xlu0 %v2809, 32
        %v2820 = vpop.permute.xlu0 %2819
        %2821 = vrot.lane.b32.xlu0 %v2814, 32
        %v2822 = vpop.permute.xlu0 %2821
        %2825 = vrot.lane.b32.xlu0 %v788, 64
        %v2826 = vpop.permute.xlu0 %2825
        %2827 = vrot.lane.b32.xlu0 %v789, 64
        %v2828 = vpop.permute.xlu0 %2827
        %v2831 = vsel %vm794, %v1364, %v2820
        %v2832 = vsel %vm794, %v1369, %v2822
        %vm2833 = vcmask 523264
        %v2834 = vsel %vm2833, %v2831, %v2826
        %v2835 = vsel %vm2833, %v2832, %v2828
        %vm2836 = vcmask 588800
        %v2837 = vsel %vm2836, %v2834, 1.0
        %v2838 = vsel %vm2836, %v2835, 1.0
        %v2839 = vld [vmem:[%s11] sm:$0xff]
        %v2840 = vld [vmem:[%s11 + $0x8] sm:$0xff]
        %v2841 = vld [vmem:[%s11 + $0x10] sm:$0xff]
        %v2842 = vld [vmem:[%s11 + $0x18] sm:$0xff]
        %v2843 = vld [vmem:[%s11 + $0x20] sm:$0xff]
        %v2844 = vld [vmem:[%s11 + $0x28] sm:$0xff]
        %v2845 = vld [vmem:[%s11 + $0x30] sm:$0xff]
        %v2846 = vld [vmem:[%s11 + $0x38] sm:$0xff]
        %v2847 = vld [vmem:[%s11 + $0x40] sm:$0xff]
        %v2848 = vld [vmem:[%s11 + $0x48] sm:$0x1]
        %vm2849 = vcmask 596992
        %v2851 = vsel %vm2849, %v2837, 0
        %v2854 = vsel %vm2849, %v2838, 0
        %vm2856 = vcmask 1040384
        %v2858 = vsel %vm2856, %v2848, 0
        %2860 = vmatprep.subr.mxu0 0.0
        %2861 = vmatpush1.msra.mxu0 0.0
        %2862 = vmatprep.subr.mxu0 0.0
        %2863 = vmatpush1.msra.mxu0 0.0
        %2864 = vmatprep.subr.mxu0 0.0
        %2865 = vmatpush1.msra.mxu0 0.0
        %2866 = vmatprep.subr.mxu0 0.0
        %2867 = vmatpush1.msra.mxu0 0.0
        %2868 = vmatprep.subr.mxu0 0.0
        %2869 = vmatpush1.msra.mxu0 0.0
        %2870 = vmatprep.subr.mxu0 0.0
        %2871 = vmatpush1.msra.mxu0 0.0
        %2872 = vmatprep.subr.mxu0 0.0
        %2873 = vmatpush1.msra.mxu0 %v2858
        %2874 = vmatprep.subr.mxu0 0.0
        %2875 = vmatpush1.msra.mxu0 %v2847
        %2876 = vmatprep.subr.mxu0 0.0
        %2877 = vmatpush1.msra.mxu0 %v2846
        %2878 = vmatprep.subr.mxu0 0.0
        %2879 = vmatpush1.msra.mxu0 %v2845
        %2880 = vmatprep.subr.mxu0 0.0
        %2881 = vmatpush1.msra.mxu0 %v2844
        %2882 = vmatprep.subr.mxu0 0.0
        %2883 = vmatpush1.msra.mxu0 %v2843
        %2884 = vmatprep.subr.mxu0 0.0
        %2885 = vmatpush1.msra.mxu0 %v2842
        %2886 = vmatprep.subr.mxu0 0.0
        %2887 = vmatpush1.msra.mxu0 %v2841
        %2888 = vmatprep.subr.mxu0 0.0
        %2889 = vmatpush1.msra.mxu0 %v2840
        %2890 = vmatprep.subr.mxu0 0.0
        %2891 = vmatpush1.msra.mxu0 %v2839
        %2892 = vmatprep.subr.mxu0 0.0
        %2893 = vmatpush2.msra.mxu0 0.0
        %2894 = vmatprep.subr.mxu0 0.0
        %2895 = vmatpush2.msra.mxu0 0.0
        %2896 = vmatprep.subr.mxu0 0.0
        %2897 = vmatpush2.msra.mxu0 0.0
        %2898 = vmatprep.subr.mxu0 0.0
        %2899 = vmatpush2.msra.mxu0 0.0
        %2900 = vmatprep.subr.mxu0 0.0
        %2901 = vmatpush2.msra.mxu0 0.0
        %2902 = vmatprep.subr.mxu0 0.0
        %2903 = vmatpush2.msra.mxu0 0.0
        %2904 = vmatprep.subr.mxu0 0.0
        %2905 = vmatpush2.msra.mxu0 0.0
        %2906 = vmatprep.subr.mxu0 0.0
        %2907 = vmatpush2.msra.mxu0 0.0
        %2908 = vmatprep.subr.mxu0 0.0
        %2909 = vmatpush2.msra.mxu0 0.0
        %2910 = vmatprep.subr.mxu0 0.0
        %2911 = vmatpush2.msra.mxu0 0.0
        %2912 = vmatprep.subr.mxu0 0.0
        %2913 = vmatpush2.msra.mxu0 0.0
        %2914 = vmatprep.subr.mxu0 0.0
        %2915 = vmatpush2.msra.mxu0 0.0
        %2916 = vmatprep.subr.mxu0 0.0
        %2917 = vmatpush2.msra.mxu0 0.0
        %2918 = vmatprep.subr.mxu0 0.0
        %2919 = vmatpush2.msra.mxu0 0.0
        %2920 = vmatprep.subr.mxu0 0.0
        %2921 = vmatpush2.msra.mxu0 0.0
        %2922 = vmatprep.subr.mxu0 0.0
        %2923 = vmatpush2.msra.mxu0 0.0
        %2924 = vmatprep.mubr.f32.mxu0 0.0
        %2925 = vmatmul.mubr.f32.gmra.mxu0 %v2851
        %v2926 = vpop.f32.mrf.mxu0
        %v2927 = vadd.f32 0.0, %v2926
        %v2928 = vpop.f32.mrf.mxu0
        %2929 = vmatprep.mubr.f32.mxu0 0.0
        %2930 = vmatmul.mubr.f32.gmra.mxu0 %v2854
        %v2931 = vpop.f32.mrf.mxu0
        %v2932 = vadd.f32 0.0, %v2931
        %v2933 = vpop.f32.mrf.mxu0
        %2934 = vdwg.mxu0
        %v2935 = vxor.u32 %v2927, 2147483648
        %v2936 = vxor.u32 %v2932, 2147483648
        %v2937 = vmul.f32 %v2935, 1.442695
        %v2938 = vpow.pop %v2937
        %v2939 = vmul.f32 %v2936, 1.442695
        %v2940 = vpow.pop %v2939
        %v2941 = vadd.f32 %v2938, 1.0
        %v2942 = vadd.f32 %v2940, 1.0
        %v2943 = vrcp.pop %v2941
        %v2944 = vmul.f32 1.0, %v2943
        %v2945 = vrcp.pop %v2942
        %v2946 = vmul.f32 1.0, %v2945
        %v2947 = vmul.f32 %v2927, %v2944
        %v2948 = vmul.f32 %v2932, %v2946
        %v2949 = vld [vmem:[%s12] sm:$0xff]
        %v2950 = vld [vmem:[%s12 + $0x8] sm:$0xff]
        %v2951 = vld [vmem:[%s12 + $0x10] sm:$0xff]
        %v2952 = vld [vmem:[%s12 + $0x18] sm:$0xff]
        %v2954 = vsel %vm794, %v2947, 0
        %v2957 = vsel %vm794, %v2948, 0
        %2959 = vmatprep.subr.mxu0 0.0
        %2960 = vmatpush1.msra.mxu0 0.0
        %2961 = vmatprep.subr.mxu0 0.0
        %2962 = vmatpush1.msra.mxu0 0.0
        %2963 = vmatprep.subr.mxu0 0.0
        %2964 = vmatpush1.msra.mxu0 0.0
        %2965 = vmatprep.subr.mxu0 0.0
        %2966 = vmatpush1.msra.mxu0 0.0
        %2967 = vmatprep.subr.mxu0 0.0
        %2968 = vmatpush1.msra.mxu0 0.0
        %2969 = vmatprep.subr.mxu0 0.0
        %2970 = vmatpush1.msra.mxu0 0.0
        %2971 = vmatprep.subr.mxu0 0.0
        %2972 = vmatpush1.msra.mxu0 0.0
        %2973 = vmatprep.subr.mxu0 0.0
        %2974 = vmatpush1.msra.mxu0 0.0
        %2975 = vmatprep.subr.mxu0 0.0
        %2976 = vmatpush1.msra.mxu0 0.0
        %2977 = vmatprep.subr.mxu0 0.0
        %2978 = vmatpush1.msra.mxu0 0.0
        %2979 = vmatprep.subr.mxu0 0.0
        %2980 = vmatpush1.msra.mxu0 0.0
        %2981 = vmatprep.subr.mxu0 0.0
        %2982 = vmatpush1.msra.mxu0 0.0
        %2983 = vmatprep.subr.mxu0 0.0
        %2984 = vmatpush1.msra.mxu0 %v2952
        %2985 = vmatprep.subr.mxu0 0.0
        %2986 = vmatpush1.msra.mxu0 %v2951
        %2987 = vmatprep.subr.mxu0 0.0
        %2988 = vmatpush1.msra.mxu0 %v2950
        %2989 = vmatprep.subr.mxu0 0.0
        %2990 = vmatpush1.msra.mxu0 %v2949
        %2991 = vmatprep.subr.mxu0 0.0
        %2992 = vmatpush2.msra.mxu0 0.0
        %2993 = vmatprep.subr.mxu0 0.0
        %2994 = vmatpush2.msra.mxu0 0.0
        %2995 = vmatprep.subr.mxu0 0.0
        %2996 = vmatpush2.msra.mxu0 0.0
        %2997 = vmatprep.subr.mxu0 0.0
        %2998 = vmatpush2.msra.mxu0 0.0
        %2999 = vmatprep.subr.mxu0 0.0
        %3000 = vmatpush2.msra.mxu0 0.0
        %3001 = vmatprep.subr.mxu0 0.0
        %3002 = vmatpush2.msra.mxu0 0.0
        %3003 = vmatprep.subr.mxu0 0.0
        %3004 = vmatpush2.msra.mxu0 0.0
        %3005 = vmatprep.subr.mxu0 0.0
        %3006 = vmatpush2.msra.mxu0 0.0
        %3007 = vmatprep.subr.mxu0 0.0
        %3008 = vmatpush2.msra.mxu0 0.0
        %3009 = vmatprep.subr.mxu0 0.0
        %3010 = vmatpush2.msra.mxu0 0.0
        %3011 = vmatprep.subr.mxu0 0.0
        %3012 = vmatpush2.msra.mxu0 0.0
        %3013 = vmatprep.subr.mxu0 0.0
        %3014 = vmatpush2.msra.mxu0 0.0
        %3015 = vmatprep.subr.mxu0 0.0
        %3016 = vmatpush2.msra.mxu0 0.0
        %3017 = vmatprep.subr.mxu0 0.0
        %3018 = vmatpush2.msra.mxu0 0.0
        %3019 = vmatprep.subr.mxu0 0.0
        %3020 = vmatpush2.msra.mxu0 0.0
        %3021 = vmatprep.subr.mxu0 0.0
        %3022 = vmatpush2.msra.mxu0 0.0
        %3023 = vmatprep.mubr.f32.mxu0 0.0
        %3024 = vmatmul.mubr.f32.gmra.mxu0 %v2954
        %v3025 = vpop.f32.mrf.mxu0
        %v3026 = vadd.f32 0.0, %v3025
        %v3027 = vpop.f32.mrf.mxu0
        %3028 = vmatprep.mubr.f32.mxu0 0.0
        %3029 = vmatmul.mubr.f32.gmra.mxu0 %v2957
        %v3030 = vpop.f32.mrf.mxu0
        %v3031 = vadd.f32 0.0, %v3030
        %v3032 = vpop.f32.mrf.mxu0
        %3033 = vdwg.mxu0
        %v3034 = vadd.f32 %v1364, %v3026
        %v3035 = vadd.f32 %v1369, %v3031
        %v3036 = vld [vmem:[%s13] sm:$0x1]
        %v3038 = vlaneseq
        %v3039 = vshrl.u32 %v3038, 7
        %v3040 = vsub.s32 0, %v3039
        %v3041 = vrot.slane %v3036, %v3040
        %v3043 = vadd.f32 %v3034, %v3041
        %v3044 = vadd.f32 %v3035, %v3041
        %s3045 = scalar_lea.vmem %s7, 32
        %v3046 = vld [vmem:[%s3045] sm:$0xff]
        %v3047 = vld [vmem:[%s3045 + $0x8] sm:$0xff]
        %v3048 = vld [vmem:[%s3045 + $0x10] sm:$0xff]
        %v3049 = vld [vmem:[%s3045 + $0x18] sm:$0xff]
        %v3051 = vsel %vm794, %v3043, 0
        %v3054 = vsel %vm794, %v3044, 0
        %3056 = vmatprep.subr.mxu0 0.0
        %3057 = vmatpush1.msra.mxu0 0.0
        %3058 = vmatprep.subr.mxu0 0.0
        %3059 = vmatpush1.msra.mxu0 0.0
        %3060 = vmatprep.subr.mxu0 0.0
        %3061 = vmatpush1.msra.mxu0 0.0
        %3062 = vmatprep.subr.mxu0 0.0
        %3063 = vmatpush1.msra.mxu0 0.0
        %3064 = vmatprep.subr.mxu0 0.0
        %3065 = vmatpush1.msra.mxu0 0.0
        %3066 = vmatprep.subr.mxu0 0.0
        %3067 = vmatpush1.msra.mxu0 0.0
        %3068 = vmatprep.subr.mxu0 0.0
        %3069 = vmatpush1.msra.mxu0 0.0
        %3070 = vmatprep.subr.mxu0 0.0
        %3071 = vmatpush1.msra.mxu0 0.0
        %3072 = vmatprep.subr.mxu0 0.0
        %3073 = vmatpush1.msra.mxu0 0.0
        %3074 = vmatprep.subr.mxu0 0.0
        %3075 = vmatpush1.msra.mxu0 0.0
        %3076 = vmatprep.subr.mxu0 0.0
        %3077 = vmatpush1.msra.mxu0 0.0
        %3078 = vmatprep.subr.mxu0 0.0
        %3079 = vmatpush1.msra.mxu0 0.0
        %3080 = vmatprep.subr.mxu0 0.0
        %3081 = vmatpush1.msra.mxu0 %v3049
        %3082 = vmatprep.subr.mxu0 0.0
        %3083 = vmatpush1.msra.mxu0 %v3048
        %3084 = vmatprep.subr.mxu0 0.0
        %3085 = vmatpush1.msra.mxu0 %v3047
        %3086 = vmatprep.subr.mxu0 0.0
        %3087 = vmatpush1.msra.mxu0 %v3046
        %3088 = vmatprep.subr.mxu0 0.0
        %3089 = vmatpush2.msra.mxu0 0.0
        %3090 = vmatprep.subr.mxu0 0.0
        %3091 = vmatpush2.msra.mxu0 0.0
        %3092 = vmatprep.subr.mxu0 0.0
        %3093 = vmatpush2.msra.mxu0 0.0
        %3094 = vmatprep.subr.mxu0 0.0
        %3095 = vmatpush2.msra.mxu0 0.0
        %3096 = vmatprep.subr.mxu0 0.0
        %3097 = vmatpush2.msra.mxu0 0.0
        %3098 = vmatprep.subr.mxu0 0.0
        %3099 = vmatpush2.msra.mxu0 0.0
        %3100 = vmatprep.subr.mxu0 0.0
        %3101 = vmatpush2.msra.mxu0 0.0
        %3102 = vmatprep.subr.mxu0 0.0
        %3103 = vmatpush2.msra.mxu0 0.0
        %3104 = vmatprep.subr.mxu0 0.0
        %3105 = vmatpush2.msra.mxu0 0.0
        %3106 = vmatprep.subr.mxu0 0.0
        %3107 = vmatpush2.msra.mxu0 0.0
        %3108 = vmatprep.subr.mxu0 0.0
        %3109 = vmatpush2.msra.mxu0 0.0
        %3110 = vmatprep.subr.mxu0 0.0
        %3111 = vmatpush2.msra.mxu0 0.0
        %3112 = vmatprep.subr.mxu0 0.0
        %3113 = vmatpush2.msra.mxu0 0.0
        %3114 = vmatprep.subr.mxu0 0.0
        %3115 = vmatpush2.msra.mxu0 0.0
        %3116 = vmatprep.subr.mxu0 0.0
        %3117 = vmatpush2.msra.mxu0 0.0
        %3118 = vmatprep.subr.mxu0 0.0
        %3119 = vmatpush2.msra.mxu0 0.0
        %3120 = vmatprep.mubr.f32.mxu0 0.0
        %3121 = vmatmul.mubr.f32.gmra.mxu0 %v3051
        %v3122 = vpop.f32.mrf.mxu0
        %v3123 = vadd.f32 0.0, %v3122
        %v3124 = vpop.f32.mrf.mxu0
        %3125 = vmatprep.mubr.f32.mxu0 0.0
        %3126 = vmatmul.mubr.f32.gmra.mxu0 %v3054
        %v3127 = vpop.f32.mrf.mxu0
        %v3128 = vadd.f32 0.0, %v3127
        %v3129 = vpop.f32.mrf.mxu0
        %3130 = vdwg.mxu0
        %3131 = vst.msk [vmem:[#allocation2] sm:$0xff] %vm794, %v3123
        %3132 = vst.msk [vmem:[#allocation2 + $0x8] sm:$0xff] %vm794, %v3128
        %3135 = vrot.lane.b32.xlu0 %v3123, 96
        %v3136 = vpop.permute.xlu0 %3135
        %3137 = vrot.lane.b32.xlu0 %v3128, 96
        %v3138 = vpop.permute.xlu0 %3137
        %3141 = vst.msk [vmem:[#allocation2 + $0x10] sm:$0xff] %vm794, %v3136
        %3142 = vst.msk [vmem:[#allocation2 + $0x18] sm:$0xff] %vm794, %v3138
        %v3143 = vld [vmem:[#allocation2] sm:$0xff]
        %v3144 = vld [vmem:[#allocation2 + $0x8] sm:$0xff]
        %v3145 = vld [vmem:[#allocation2 + $0x10] sm:$0xff]
        %v3146 = vld [vmem:[#allocation2 + $0x18] sm:$0xff]
        %s3147 = scalar_lea.vmem %s8, 8
        %v3148 = vld [vmem:[%s3147] sm:$0x3f]
        %v3150 = vsel %vm1565, %v3148, 0
        %3152 = vmatprep.subr.mxu0 0.0
        %3153 = vmatpush1.msra.mxu0 0.0
        %3154 = vmatprep.subr.mxu0 0.0
        %3155 = vmatpush1.msra.mxu0 0.0
        %3156 = vmatprep.subr.mxu0 0.0
        %3157 = vmatpush1.msra.mxu0 0.0
        %3158 = vmatprep.subr.mxu0 0.0
        %3159 = vmatpush1.msra.mxu0 0.0
        %3160 = vmatprep.subr.mxu0 0.0
        %3161 = vmatpush1.msra.mxu0 0.0
        %3162 = vmatprep.subr.mxu0 0.0
        %3163 = vmatpush1.msra.mxu0 0.0
        %3164 = vmatprep.subr.mxu0 0.0
        %3165 = vmatpush1.msra.mxu0 0.0
        %3166 = vmatprep.subr.mxu0 0.0
        %3167 = vmatpush1.msra.mxu0 0.0
        %3168 = vmatprep.subr.mxu0 0.0
        %3169 = vmatpush1.msra.mxu0 0.0
        %3170 = vmatprep.subr.mxu0 0.0
        %3171 = vmatpush1.msra.mxu0 0.0
        %3172 = vmatprep.subr.mxu0 0.0
        %3173 = vmatpush1.msra.mxu0 0.0
        %3174 = vmatprep.subr.mxu0 0.0
        %3175 = vmatpush1.msra.mxu0 0.0
        %3176 = vmatprep.subr.mxu0 0.0
        %3177 = vmatpush1.msra.mxu0 0.0
        %3178 = vmatprep.subr.mxu0 0.0
        %3179 = vmatpush1.msra.mxu0 0.0
        %3180 = vmatprep.subr.mxu0 0.0
        %3181 = vmatpush1.msra.mxu0 0.0
        %3182 = vmatprep.subr.mxu0 0.0
        %3183 = vmatpush1.msra.mxu0 %v3150
        %3184 = vmatprep.subr.mxu0 0.0
        %3185 = vmatpush2.msra.mxu0 0.0
        %3186 = vmatprep.subr.mxu0 0.0
        %3187 = vmatpush2.msra.mxu0 0.0
        %3188 = vmatprep.subr.mxu0 0.0
        %3189 = vmatpush2.msra.mxu0 0.0
        %3190 = vmatprep.subr.mxu0 0.0
        %3191 = vmatpush2.msra.mxu0 0.0
        %3192 = vmatprep.subr.mxu0 0.0
        %3193 = vmatpush2.msra.mxu0 0.0
        %3194 = vmatprep.subr.mxu0 0.0
        %3195 = vmatpush2.msra.mxu0 0.0
        %3196 = vmatprep.subr.mxu0 0.0
        %3197 = vmatpush2.msra.mxu0 0.0
        %3198 = vmatprep.subr.mxu0 0.0
        %3199 = vmatpush2.msra.mxu0 0.0
        %3200 = vmatprep.subr.mxu0 0.0
        %3201 = vmatpush2.msra.mxu0 0.0
        %3202 = vmatprep.subr.mxu0 0.0
        %3203 = vmatpush2.msra.mxu0 0.0
        %3204 = vmatprep.subr.mxu0 0.0
        %3205 = vmatpush2.msra.mxu0 0.0
        %3206 = vmatprep.subr.mxu0 0.0
        %3207 = vmatpush2.msra.mxu0 0.0
        %3208 = vmatprep.subr.mxu0 0.0
        %3209 = vmatpush2.msra.mxu0 0.0
        %3210 = vmatprep.subr.mxu0 0.0
        %3211 = vmatpush2.msra.mxu0 0.0
        %3212 = vmatprep.subr.mxu0 0.0
        %3213 = vmatpush2.msra.mxu0 0.0
        %3214 = vmatprep.subr.mxu0 0.0
        %3215 = vmatpush2.msra.mxu0 0.0
        %3216 = vmatprep.mubr.f32.mxu0 0.0
        %3217 = vmatmul.mubr.f32.gmra.mxu0 %v1476
        %v3218 = vpop.f32.mrf.mxu0
        %v3219 = vadd.f32 0.0, %v3218
        %v3220 = vpop.f32.mrf.mxu0
        %3221 = vmatprep.mubr.f32.mxu0 0.0
        %3222 = vmatmul.mubr.f32.gmra.mxu0 %v1479
        %v3223 = vpop.f32.mrf.mxu0
        %v3224 = vadd.f32 0.0, %v3223
        %v3225 = vpop.f32.mrf.mxu0
        %3226 = vmatprep.mubr.f32.mxu0 0.0
        %3227 = vmatmul.mubr.f32.gmra.mxu0 %v1482
        %v3228 = vpop.f32.mrf.mxu0
        %v3229 = vadd.f32 0.0, %v3228
        %v3230 = vpop.f32.mrf.mxu0
        %3231 = vmatprep.mubr.f32.mxu0 0.0
        %3232 = vmatmul.mubr.f32.gmra.mxu0 %v1485
        %v3233 = vpop.f32.mrf.mxu0
        %v3234 = vadd.f32 0.0, %v3233
        %v3235 = vpop.f32.mrf.mxu0
        %3236 = vmatprep.mubr.f32.mxu0 0.0
        %3237 = vmatmul.mubr.f32.gmra.mxu0 %v1488
        %v3238 = vpop.f32.mrf.mxu0
        %v3239 = vadd.f32 0.0, %v3238
        %v3240 = vpop.f32.mrf.mxu0
        %3241 = vmatprep.mubr.f32.mxu0 0.0
        %3242 = vmatmul.mubr.f32.gmra.mxu0 %v1491
        %v3243 = vpop.f32.mrf.mxu0
        %v3244 = vadd.f32 0.0, %v3243
        %v3245 = vpop.f32.mrf.mxu0
        %3246 = vmatprep.mubr.f32.mxu0 0.0
        %3247 = vmatmul.mubr.f32.gmra.mxu0 %v1494
        %v3248 = vpop.f32.mrf.mxu0
        %v3249 = vadd.f32 0.0, %v3248
        %v3250 = vpop.f32.mrf.mxu0
        %3251 = vmatprep.mubr.f32.mxu0 0.0
        %3252 = vmatmul.mubr.f32.gmra.mxu0 %v1497
        %v3253 = vpop.f32.mrf.mxu0
        %v3254 = vadd.f32 0.0, %v3253
        %v3255 = vpop.f32.mrf.mxu0
        %3256 = vmatprep.mubr.f32.mxu0 0.0
        %3257 = vmatmul.mubr.f32.gmra.mxu0 %v1500
        %v3258 = vpop.f32.mrf.mxu0
        %v3259 = vadd.f32 0.0, %v3258
        %v3260 = vpop.f32.mrf.mxu0
        %3261 = vmatprep.mubr.f32.mxu0 0.0
        %3262 = vmatmul.mubr.f32.gmra.mxu0 %v1503
        %v3263 = vpop.f32.mrf.mxu0
        %v3264 = vadd.f32 0.0, %v3263
        %v3265 = vpop.f32.mrf.mxu0
        %3266 = vmatprep.mubr.f32.mxu0 0.0
        %3267 = vmatmul.mubr.f32.gmra.mxu0 %v1506
        %v3268 = vpop.f32.mrf.mxu0
        %v3269 = vadd.f32 0.0, %v3268
        %v3270 = vpop.f32.mrf.mxu0
        %3271 = vmatprep.mubr.f32.mxu0 0.0
        %3272 = vmatmul.mubr.f32.gmra.mxu0 %v1509
        %v3273 = vpop.f32.mrf.mxu0
        %v3274 = vadd.f32 0.0, %v3273
        %v3275 = vpop.f32.mrf.mxu0
        %3276 = vmatprep.mubr.f32.mxu0 0.0
        %3277 = vmatmul.mubr.f32.gmra.mxu0 %v1512
        %v3278 = vpop.f32.mrf.mxu0
        %v3279 = vadd.f32 0.0, %v3278
        %v3280 = vpop.f32.mrf.mxu0
        %3281 = vmatprep.mubr.f32.mxu0 0.0
        %3282 = vmatmul.mubr.f32.gmra.mxu0 %v1515
        %v3283 = vpop.f32.mrf.mxu0
        %v3284 = vadd.f32 0.0, %v3283
        %v3285 = vpop.f32.mrf.mxu0
        %3286 = vmatprep.mubr.f32.mxu0 0.0
        %3287 = vmatmul.mubr.f32.gmra.mxu0 %v1518
        %v3288 = vpop.f32.mrf.mxu0
        %v3289 = vadd.f32 0.0, %v3288
        %v3290 = vpop.f32.mrf.mxu0
        %3291 = vmatprep.mubr.f32.mxu0 0.0
        %3292 = vmatmul.mubr.f32.gmra.mxu0 %v1521
        %v3293 = vpop.f32.mrf.mxu0
        %v3294 = vadd.f32 0.0, %v3293
        %v3295 = vpop.f32.mrf.mxu0
        %3296 = vmatprep.mubr.f32.mxu0 0.0
        %3297 = vmatmul.mubr.f32.gmra.mxu0 %v1524
        %v3298 = vpop.f32.mrf.mxu0
        %v3299 = vadd.f32 0.0, %v3298
        %v3300 = vpop.f32.mrf.mxu0
        %3301 = vmatprep.mubr.f32.mxu0 0.0
        %3302 = vmatmul.mubr.f32.gmra.mxu0 %v1527
        %v3303 = vpop.f32.mrf.mxu0
        %v3304 = vadd.f32 0.0, %v3303
        %v3305 = vpop.f32.mrf.mxu0
        %3306 = vmatprep.mubr.f32.mxu0 0.0
        %3307 = vmatmul.mubr.f32.gmra.mxu0 %v1530
        %v3308 = vpop.f32.mrf.mxu0
        %v3309 = vadd.f32 0.0, %v3308
        %v3310 = vpop.f32.mrf.mxu0
        %3311 = vmatprep.mubr.f32.mxu0 0.0
        %3312 = vmatmul.mubr.f32.gmra.mxu0 %v1533
        %v3313 = vpop.f32.mrf.mxu0
        %v3314 = vadd.f32 0.0, %v3313
        %v3315 = vpop.f32.mrf.mxu0
        %3316 = vmatprep.mubr.f32.mxu0 0.0
        %3317 = vmatmul.mubr.f32.gmra.mxu0 %v1536
        %v3318 = vpop.f32.mrf.mxu0
        %v3319 = vadd.f32 0.0, %v3318
        %v3320 = vpop.f32.mrf.mxu0
        %3321 = vmatprep.mubr.f32.mxu0 0.0
        %3322 = vmatmul.mubr.f32.gmra.mxu0 %v1539
        %v3323 = vpop.f32.mrf.mxu0
        %v3324 = vadd.f32 0.0, %v3323
        %v3325 = vpop.f32.mrf.mxu0
        %3326 = vmatprep.mubr.f32.mxu0 0.0
        %3327 = vmatmul.mubr.f32.gmra.mxu0 %v1542
        %v3328 = vpop.f32.mrf.mxu0
        %v3329 = vadd.f32 0.0, %v3328
        %v3330 = vpop.f32.mrf.mxu0
        %3331 = vmatprep.mubr.f32.mxu0 0.0
        %3332 = vmatmul.mubr.f32.gmra.mxu0 %v1545
        %v3333 = vpop.f32.mrf.mxu0
        %v3334 = vadd.f32 0.0, %v3333
        %v3335 = vpop.f32.mrf.mxu0
        %3336 = vmatprep.mubr.f32.mxu0 0.0
        %3337 = vmatmul.mubr.f32.gmra.mxu0 %v1548
        %v3338 = vpop.f32.mrf.mxu0
        %v3339 = vadd.f32 0.0, %v3338
        %v3340 = vpop.f32.mrf.mxu0
        %3341 = vmatprep.mubr.f32.mxu0 0.0
        %3342 = vmatmul.mubr.f32.gmra.mxu0 %v1551
        %v3343 = vpop.f32.mrf.mxu0
        %v3344 = vadd.f32 0.0, %v3343
        %v3345 = vpop.f32.mrf.mxu0
        %3346 = vmatprep.mubr.f32.mxu0 0.0
        %3347 = vmatmul.mubr.f32.gmra.mxu0 %v1554
        %v3348 = vpop.f32.mrf.mxu0
        %v3349 = vadd.f32 0.0, %v3348
        %v3350 = vpop.f32.mrf.mxu0
        %3351 = vmatprep.mubr.f32.mxu0 0.0
        %3352 = vmatmul.mubr.f32.gmra.mxu0 %v1557
        %v3353 = vpop.f32.mrf.mxu0
        %v3354 = vadd.f32 0.0, %v3353
        %v3355 = vpop.f32.mrf.mxu0
        %3356 = vmatprep.mubr.f32.mxu0 0.0
        %3357 = vmatmul.mubr.f32.gmra.mxu0 %v1560
        %v3358 = vpop.f32.mrf.mxu0
        %v3359 = vadd.f32 0.0, %v3358
        %v3360 = vpop.f32.mrf.mxu0
        %3361 = vmatprep.mubr.f32.mxu0 0.0
        %3362 = vmatmul.mubr.f32.gmra.mxu0 %v1563
        %v3363 = vpop.f32.mrf.mxu0
        %v3364 = vadd.f32 0.0, %v3363
        %v3365 = vpop.f32.mrf.mxu0
        %3366 = vdwg.mxu0
        %3367 = vmatprep.subr.mxu0 0.0
        %3368 = vmatpush1.msra.mxu0 0.0
        %3369 = vmatprep.subr.mxu0 0.0
        %3370 = vmatpush1.msra.mxu0 0.0
        %3371 = vmatprep.subr.mxu0 0.0
        %3372 = vmatpush1.msra.mxu0 0.0
        %3373 = vmatprep.subr.mxu0 0.0
        %3374 = vmatpush1.msra.mxu0 0.0
        %3375 = vmatprep.subr.mxu0 0.0
        %3376 = vmatpush1.msra.mxu0 0.0
        %3377 = vmatprep.subr.mxu0 0.0
        %3378 = vmatpush1.msra.mxu0 0.0
        %3379 = vmatprep.subr.mxu0 0.0
        %3380 = vmatpush1.msra.mxu0 0.0
        %3381 = vmatprep.subr.mxu0 0.0
        %3382 = vmatpush1.msra.mxu0 0.0
        %3383 = vmatprep.subr.mxu0 0.0
        %3384 = vmatpush1.msra.mxu0 0.0
        %3385 = vmatprep.subr.mxu0 0.0
        %3386 = vmatpush1.msra.mxu0 0.0
        %3387 = vmatprep.subr.mxu0 0.0
        %3388 = vmatpush1.msra.mxu0 0.0
        %3389 = vmatprep.subr.mxu0 0.0
        %3390 = vmatpush1.msra.mxu0 0.0
        %3391 = vmatprep.subr.mxu0 0.0
        %3392 = vmatpush1.msra.mxu0 %v3146
        %3393 = vmatprep.subr.mxu0 0.0
        %3394 = vmatpush1.msra.mxu0 %v3145
        %3395 = vmatprep.subr.mxu0 0.0
        %3396 = vmatpush1.msra.mxu0 %v3144
        %3397 = vmatprep.subr.mxu0 0.0
        %3398 = vmatpush1.msra.mxu0 %v3143
        %3399 = vmatprep.subr.mxu0 0.0
        %3400 = vmatpush2.msra.mxu0 0.0
        %3401 = vmatprep.subr.mxu0 0.0
        %3402 = vmatpush2.msra.mxu0 0.0
        %3403 = vmatprep.subr.mxu0 0.0
        %3404 = vmatpush2.msra.mxu0 0.0
        %3405 = vmatprep.subr.mxu0 0.0
        %3406 = vmatpush2.msra.mxu0 0.0
        %3407 = vmatprep.subr.mxu0 0.0
        %3408 = vmatpush2.msra.mxu0 0.0
        %3409 = vmatprep.subr.mxu0 0.0
        %3410 = vmatpush2.msra.mxu0 0.0
        %3411 = vmatprep.subr.mxu0 0.0
        %3412 = vmatpush2.msra.mxu0 0.0
        %3413 = vmatprep.subr.mxu0 0.0
        %3414 = vmatpush2.msra.mxu0 0.0
        %3415 = vmatprep.subr.mxu0 0.0
        %3416 = vmatpush2.msra.mxu0 0.0
        %3417 = vmatprep.subr.mxu0 0.0
        %3418 = vmatpush2.msra.mxu0 0.0
        %3419 = vmatprep.subr.mxu0 0.0
        %3420 = vmatpush2.msra.mxu0 0.0
        %3421 = vmatprep.subr.mxu0 0.0
        %3422 = vmatpush2.msra.mxu0 0.0
        %3423 = vmatprep.subr.mxu0 0.0
        %3424 = vmatpush2.msra.mxu0 0.0
        %3425 = vmatprep.subr.mxu0 0.0
        %3426 = vmatpush2.msra.mxu0 0.0
        %3427 = vmatprep.subr.mxu0 0.0
        %3428 = vmatpush2.msra.mxu0 0.0
        %3429 = vmatprep.subr.mxu0 0.0
        %3430 = vmatpush2.msra.mxu0 0.0
        %3431 = vmatprep.mubr.f32.mxu0 0.0
        %3432 = vmatmul.mubr.f32.gmra.mxu0 %v796
        %v3433 = vpop.f32.mrf.mxu0
        %v3434 = vadd.f32 %v3219, %v3433
        %v3435 = vpop.f32.mrf.mxu0
        %3436 = vmatprep.mubr.f32.mxu0 0.0
        %3437 = vmatmul.mubr.f32.gmra.mxu0 %v799
        %v3438 = vpop.f32.mrf.mxu0
        %v3439 = vadd.f32 %v3224, %v3438
        %v3440 = vpop.f32.mrf.mxu0
        %3441 = vmatprep.mubr.f32.mxu0 0.0
        %3442 = vmatmul.mubr.f32.gmra.mxu0 %v802
        %v3443 = vpop.f32.mrf.mxu0
        %v3444 = vadd.f32 %v3229, %v3443
        %v3445 = vpop.f32.mrf.mxu0
        %3446 = vmatprep.mubr.f32.mxu0 0.0
        %3447 = vmatmul.mubr.f32.gmra.mxu0 %v805
        %v3448 = vpop.f32.mrf.mxu0
        %v3449 = vadd.f32 %v3234, %v3448
        %v3450 = vpop.f32.mrf.mxu0
        %3451 = vmatprep.mubr.f32.mxu0 0.0
        %3452 = vmatmul.mubr.f32.gmra.mxu0 %v808
        %v3453 = vpop.f32.mrf.mxu0
        %v3454 = vadd.f32 %v3239, %v3453
        %v3455 = vpop.f32.mrf.mxu0
        %3456 = vmatprep.mubr.f32.mxu0 0.0
        %3457 = vmatmul.mubr.f32.gmra.mxu0 %v811
        %v3458 = vpop.f32.mrf.mxu0
        %v3459 = vadd.f32 %v3244, %v3458
        %v3460 = vpop.f32.mrf.mxu0
        %3461 = vmatprep.mubr.f32.mxu0 0.0
        %3462 = vmatmul.mubr.f32.gmra.mxu0 %v814
        %v3463 = vpop.f32.mrf.mxu0
        %v3464 = vadd.f32 %v3249, %v3463
        %v3465 = vpop.f32.mrf.mxu0
        %3466 = vmatprep.mubr.f32.mxu0 0.0
        %3467 = vmatmul.mubr.f32.gmra.mxu0 %v817
        %v3468 = vpop.f32.mrf.mxu0
        %v3469 = vadd.f32 %v3254, %v3468
        %v3470 = vpop.f32.mrf.mxu0
        %3471 = vmatprep.mubr.f32.mxu0 0.0
        %3472 = vmatmul.mubr.f32.gmra.mxu0 %v820
        %v3473 = vpop.f32.mrf.mxu0
        %v3474 = vadd.f32 %v3259, %v3473
        %v3475 = vpop.f32.mrf.mxu0
        %3476 = vmatprep.mubr.f32.mxu0 0.0
        %3477 = vmatmul.mubr.f32.gmra.mxu0 %v823
        %v3478 = vpop.f32.mrf.mxu0
        %v3479 = vadd.f32 %v3264, %v3478
        %v3480 = vpop.f32.mrf.mxu0
        %3481 = vmatprep.mubr.f32.mxu0 0.0
        %3482 = vmatmul.mubr.f32.gmra.mxu0 %v826
        %v3483 = vpop.f32.mrf.mxu0
        %v3484 = vadd.f32 %v3269, %v3483
        %v3485 = vpop.f32.mrf.mxu0
        %3486 = vmatprep.mubr.f32.mxu0 0.0
        %3487 = vmatmul.mubr.f32.gmra.mxu0 %v829
        %v3488 = vpop.f32.mrf.mxu0
        %v3489 = vadd.f32 %v3274, %v3488
        %v3490 = vpop.f32.mrf.mxu0
        %3491 = vmatprep.mubr.f32.mxu0 0.0
        %3492 = vmatmul.mubr.f32.gmra.mxu0 %v832
        %v3493 = vpop.f32.mrf.mxu0
        %v3494 = vadd.f32 %v3279, %v3493
        %v3495 = vpop.f32.mrf.mxu0
        %3496 = vmatprep.mubr.f32.mxu0 0.0
        %3497 = vmatmul.mubr.f32.gmra.mxu0 %v835
        %v3498 = vpop.f32.mrf.mxu0
        %v3499 = vadd.f32 %v3284, %v3498
        %v3500 = vpop.f32.mrf.mxu0
        %3501 = vmatprep.mubr.f32.mxu0 0.0
        %3502 = vmatmul.mubr.f32.gmra.mxu0 %v838
        %v3503 = vpop.f32.mrf.mxu0
        %v3504 = vadd.f32 %v3289, %v3503
        %v3505 = vpop.f32.mrf.mxu0
        %3506 = vmatprep.mubr.f32.mxu0 0.0
        %3507 = vmatmul.mubr.f32.gmra.mxu0 %v841
        %v3508 = vpop.f32.mrf.mxu0
        %v3509 = vadd.f32 %v3294, %v3508
        %v3510 = vpop.f32.mrf.mxu0
        %3511 = vmatprep.mubr.f32.mxu0 0.0
        %3512 = vmatmul.mubr.f32.gmra.mxu0 %v844
        %v3513 = vpop.f32.mrf.mxu0
        %v3514 = vadd.f32 %v3299, %v3513
        %v3515 = vpop.f32.mrf.mxu0
        %3516 = vmatprep.mubr.f32.mxu0 0.0
        %3517 = vmatmul.mubr.f32.gmra.mxu0 %v847
        %v3518 = vpop.f32.mrf.mxu0
        %v3519 = vadd.f32 %v3304, %v3518
        %v3520 = vpop.f32.mrf.mxu0
        %3521 = vmatprep.mubr.f32.mxu0 0.0
        %3522 = vmatmul.mubr.f32.gmra.mxu0 %v850
        %v3523 = vpop.f32.mrf.mxu0
        %v3524 = vadd.f32 %v3309, %v3523
        %v3525 = vpop.f32.mrf.mxu0
        %3526 = vmatprep.mubr.f32.mxu0 0.0
        %3527 = vmatmul.mubr.f32.gmra.mxu0 %v853
        %v3528 = vpop.f32.mrf.mxu0
        %v3529 = vadd.f32 %v3314, %v3528
        %v3530 = vpop.f32.mrf.mxu0
        %3531 = vmatprep.mubr.f32.mxu0 0.0
        %3532 = vmatmul.mubr.f32.gmra.mxu0 %v856
        %v3533 = vpop.f32.mrf.mxu0
        %v3534 = vadd.f32 %v3319, %v3533
        %v3535 = vpop.f32.mrf.mxu0
        %3536 = vmatprep.mubr.f32.mxu0 0.0
        %3537 = vmatmul.mubr.f32.gmra.mxu0 %v859
        %v3538 = vpop.f32.mrf.mxu0
        %v3539 = vadd.f32 %v3324, %v3538
        %v3540 = vpop.f32.mrf.mxu0
        %3541 = vmatprep.mubr.f32.mxu0 0.0
        %3542 = vmatmul.mubr.f32.gmra.mxu0 %v862
        %v3543 = vpop.f32.mrf.mxu0
        %v3544 = vadd.f32 %v3329, %v3543
        %v3545 = vpop.f32.mrf.mxu0
        %3546 = vmatprep.mubr.f32.mxu0 0.0
        %3547 = vmatmul.mubr.f32.gmra.mxu0 %v865
        %v3548 = vpop.f32.mrf.mxu0
        %v3549 = vadd.f32 %v3334, %v3548
        %v3550 = vpop.f32.mrf.mxu0
        %3551 = vmatprep.mubr.f32.mxu0 0.0
        %3552 = vmatmul.mubr.f32.gmra.mxu0 %v868
        %v3553 = vpop.f32.mrf.mxu0
        %v3554 = vadd.f32 %v3339, %v3553
        %v3555 = vpop.f32.mrf.mxu0
        %3556 = vmatprep.mubr.f32.mxu0 0.0
        %3557 = vmatmul.mubr.f32.gmra.mxu0 %v871
        %v3558 = vpop.f32.mrf.mxu0
        %v3559 = vadd.f32 %v3344, %v3558
        %v3560 = vpop.f32.mrf.mxu0
        %3561 = vmatprep.mubr.f32.mxu0 0.0
        %3562 = vmatmul.mubr.f32.gmra.mxu0 %v874
        %v3563 = vpop.f32.mrf.mxu0
        %v3564 = vadd.f32 %v3349, %v3563
        %v3565 = vpop.f32.mrf.mxu0
        %3566 = vmatprep.mubr.f32.mxu0 0.0
        %3567 = vmatmul.mubr.f32.gmra.mxu0 %v877
        %v3568 = vpop.f32.mrf.mxu0
        %v3569 = vadd.f32 %v3354, %v3568
        %v3570 = vpop.f32.mrf.mxu0
        %3571 = vmatprep.mubr.f32.mxu0 0.0
        %3572 = vmatmul.mubr.f32.gmra.mxu0 %v880
        %v3573 = vpop.f32.mrf.mxu0
        %v3574 = vadd.f32 %v3359, %v3573
        %v3575 = vpop.f32.mrf.mxu0
        %3576 = vmatprep.mubr.f32.mxu0 0.0
        %3577 = vmatmul.mubr.f32.gmra.mxu0 %v883
        %v3578 = vpop.f32.mrf.mxu0
        %v3579 = vadd.f32 %v3364, %v3578
        %v3580 = vpop.f32.mrf.mxu0
        %3581 = vdwg.mxu0
        %v3582 = vxor.u32 %v3434, 2147483648
        %v3583 = vxor.u32 %v3439, 2147483648
        %v3584 = vxor.u32 %v3444, 2147483648
        %v3585 = vxor.u32 %v3449, 2147483648
        %v3586 = vxor.u32 %v3454, 2147483648
        %v3587 = vxor.u32 %v3459, 2147483648
        %v3588 = vxor.u32 %v3464, 2147483648
        %v3589 = vxor.u32 %v3469, 2147483648
        %v3590 = vxor.u32 %v3474, 2147483648
        %v3591 = vxor.u32 %v3479, 2147483648
        %v3592 = vxor.u32 %v3484, 2147483648
        %v3593 = vxor.u32 %v3489, 2147483648
        %v3594 = vxor.u32 %v3494, 2147483648
        %v3595 = vxor.u32 %v3499, 2147483648
        %v3596 = vxor.u32 %v3504, 2147483648
        %v3597 = vxor.u32 %v3509, 2147483648
        %v3598 = vxor.u32 %v3514, 2147483648
        %v3599 = vxor.u32 %v3519, 2147483648
        %v3600 = vxor.u32 %v3524, 2147483648
        %v3601 = vxor.u32 %v3529, 2147483648
        %v3602 = vxor.u32 %v3534, 2147483648
        %v3603 = vxor.u32 %v3539, 2147483648
        %v3604 = vxor.u32 %v3544, 2147483648
        %v3605 = vxor.u32 %v3549, 2147483648
        %v3606 = vxor.u32 %v3554, 2147483648
        %v3607 = vxor.u32 %v3559, 2147483648
        %v3608 = vxor.u32 %v3564, 2147483648
        %v3609 = vxor.u32 %v3569, 2147483648
        %v3610 = vxor.u32 %v3574, 2147483648
        %v3611 = vxor.u32 %v3579, 2147483648
        %v3612 = vmul.f32 %v3582, 1.442695
        %v3613 = vpow.pop %v3612
        %v3614 = vmul.f32 %v3583, 1.442695
        %v3615 = vpow.pop %v3614
        %v3616 = vmul.f32 %v3584, 1.442695
        %v3617 = vpow.pop %v3616
        %v3618 = vmul.f32 %v3585, 1.442695
        %v3619 = vpow.pop %v3618
        %v3620 = vmul.f32 %v3586, 1.442695
        %v3621 = vpow.pop %v3620
        %v3622 = vmul.f32 %v3587, 1.442695
        %v3623 = vpow.pop %v3622
        %v3624 = vmul.f32 %v3588, 1.442695
        %v3625 = vpow.pop %v3624
        %v3626 = vmul.f32 %v3589, 1.442695
        %v3627 = vpow.pop %v3626
        %v3628 = vmul.f32 %v3590, 1.442695
        %v3629 = vpow.pop %v3628
        %v3630 = vmul.f32 %v3591, 1.442695
        %v3631 = vpow.pop %v3630
        %v3632 = vmul.f32 %v3592, 1.442695
        %v3633 = vpow.pop %v3632
        %v3634 = vmul.f32 %v3593, 1.442695
        %v3635 = vpow.pop %v3634
        %v3636 = vmul.f32 %v3594, 1.442695
        %v3637 = vpow.pop %v3636
        %v3638 = vmul.f32 %v3595, 1.442695
        %v3639 = vpow.pop %v3638
        %v3640 = vmul.f32 %v3596, 1.442695
        %v3641 = vpow.pop %v3640
        %v3642 = vmul.f32 %v3597, 1.442695
        %v3643 = vpow.pop %v3642
        %v3644 = vmul.f32 %v3598, 1.442695
        %v3645 = vpow.pop %v3644
        %v3646 = vmul.f32 %v3599, 1.442695
        %v3647 = vpow.pop %v3646
        %v3648 = vmul.f32 %v3600, 1.442695
        %v3649 = vpow.pop %v3648
        %v3650 = vmul.f32 %v3601, 1.442695
        %v3651 = vpow.pop %v3650
        %v3652 = vmul.f32 %v3602, 1.442695
        %v3653 = vpow.pop %v3652
        %v3654 = vmul.f32 %v3603, 1.442695
        %v3655 = vpow.pop %v3654
        %v3656 = vmul.f32 %v3604, 1.442695
        %v3657 = vpow.pop %v3656
        %v3658 = vmul.f32 %v3605, 1.442695
        %v3659 = vpow.pop %v3658
        %v3660 = vmul.f32 %v3606, 1.442695
        %v3661 = vpow.pop %v3660
        %v3662 = vmul.f32 %v3607, 1.442695
        %v3663 = vpow.pop %v3662
        %v3664 = vmul.f32 %v3608, 1.442695
        %v3665 = vpow.pop %v3664
        %v3666 = vmul.f32 %v3609, 1.442695
        %v3667 = vpow.pop %v3666
        %v3668 = vmul.f32 %v3610, 1.442695
        %v3669 = vpow.pop %v3668
        %v3670 = vmul.f32 %v3611, 1.442695
        %v3671 = vpow.pop %v3670
        %v3672 = vadd.f32 %v3613, 1.0
        %v3673 = vadd.f32 %v3615, 1.0
        %v3674 = vadd.f32 %v3617, 1.0
        %v3675 = vadd.f32 %v3619, 1.0
        %v3676 = vadd.f32 %v3621, 1.0
        %v3677 = vadd.f32 %v3623, 1.0
        %v3678 = vadd.f32 %v3625, 1.0
        %v3679 = vadd.f32 %v3627, 1.0
        %v3680 = vadd.f32 %v3629, 1.0
        %v3681 = vadd.f32 %v3631, 1.0
        %v3682 = vadd.f32 %v3633, 1.0
        %v3683 = vadd.f32 %v3635, 1.0
        %v3684 = vadd.f32 %v3637, 1.0
        %v3685 = vadd.f32 %v3639, 1.0
        %v3686 = vadd.f32 %v3641, 1.0
        %v3687 = vadd.f32 %v3643, 1.0
        %v3688 = vadd.f32 %v3645, 1.0
        %v3689 = vadd.f32 %v3647, 1.0
        %v3690 = vadd.f32 %v3649, 1.0
        %v3691 = vadd.f32 %v3651, 1.0
        %v3692 = vadd.f32 %v3653, 1.0
        %v3693 = vadd.f32 %v3655, 1.0
        %v3694 = vadd.f32 %v3657, 1.0
        %v3695 = vadd.f32 %v3659, 1.0
        %v3696 = vadd.f32 %v3661, 1.0
        %v3697 = vadd.f32 %v3663, 1.0
        %v3698 = vadd.f32 %v3665, 1.0
        %v3699 = vadd.f32 %v3667, 1.0
        %v3700 = vadd.f32 %v3669, 1.0
        %v3701 = vadd.f32 %v3671, 1.0
        %v3702 = vrcp.pop %v3672
        %v3703 = vmul.f32 1.0, %v3702
        %v3704 = vrcp.pop %v3673
        %v3705 = vmul.f32 1.0, %v3704
        %v3706 = vrcp.pop %v3674
        %v3707 = vmul.f32 1.0, %v3706
        %v3708 = vrcp.pop %v3675
        %v3709 = vmul.f32 1.0, %v3708
        %v3710 = vrcp.pop %v3676
        %v3711 = vmul.f32 1.0, %v3710
        %v3712 = vrcp.pop %v3677
        %v3713 = vmul.f32 1.0, %v3712
        %v3714 = vrcp.pop %v3678
        %v3715 = vmul.f32 1.0, %v3714
        %v3716 = vrcp.pop %v3679
        %v3717 = vmul.f32 1.0, %v3716
        %v3718 = vrcp.pop %v3680
        %v3719 = vmul.f32 1.0, %v3718
        %v3720 = vrcp.pop %v3681
        %v3721 = vmul.f32 1.0, %v3720
        %v3722 = vrcp.pop %v3682
        %v3723 = vmul.f32 1.0, %v3722
        %v3724 = vrcp.pop %v3683
        %v3725 = vmul.f32 1.0, %v3724
        %v3726 = vrcp.pop %v3684
        %v3727 = vmul.f32 1.0, %v3726
        %v3728 = vrcp.pop %v3685
        %v3729 = vmul.f32 1.0, %v3728
        %v3730 = vrcp.pop %v3686
        %v3731 = vmul.f32 1.0, %v3730
        %v3732 = vrcp.pop %v3687
        %v3733 = vmul.f32 1.0, %v3732
        %v3734 = vrcp.pop %v3688
        %v3735 = vmul.f32 1.0, %v3734
        %v3736 = vrcp.pop %v3689
        %v3737 = vmul.f32 1.0, %v3736
        %v3738 = vrcp.pop %v3690
        %v3739 = vmul.f32 1.0, %v3738
        %v3740 = vrcp.pop %v3691
        %v3741 = vmul.f32 1.0, %v3740
        %v3742 = vrcp.pop %v3692
        %v3743 = vmul.f32 1.0, %v3742
        %v3744 = vrcp.pop %v3693
        %v3745 = vmul.f32 1.0, %v3744
        %v3746 = vrcp.pop %v3694
        %v3747 = vmul.f32 1.0, %v3746
        %v3748 = vrcp.pop %v3695
        %v3749 = vmul.f32 1.0, %v3748
        %v3750 = vrcp.pop %v3696
        %v3751 = vmul.f32 1.0, %v3750
        %v3752 = vrcp.pop %v3697
        %v3753 = vmul.f32 1.0, %v3752
        %v3754 = vrcp.pop %v3698
        %v3755 = vmul.f32 1.0, %v3754
        %v3756 = vrcp.pop %v3699
        %v3757 = vmul.f32 1.0, %v3756
        %v3758 = vrcp.pop %v3700
        %v3759 = vmul.f32 1.0, %v3758
        %v3760 = vrcp.pop %v3701
        %v3761 = vmul.f32 1.0, %v3760
        %v3762 = vmul.f32 %v3434, %v3703
        %v3763 = vmul.f32 %v3439, %v3705
        %v3764 = vmul.f32 %v3444, %v3707
        %v3765 = vmul.f32 %v3449, %v3709
        %v3766 = vmul.f32 %v3454, %v3711
        %v3767 = vmul.f32 %v3459, %v3713
        %v3768 = vmul.f32 %v3464, %v3715
        %v3769 = vmul.f32 %v3469, %v3717
        %v3770 = vmul.f32 %v3474, %v3719
        %v3771 = vmul.f32 %v3479, %v3721
        %v3772 = vmul.f32 %v3484, %v3723
        %v3773 = vmul.f32 %v3489, %v3725
        %v3774 = vmul.f32 %v3494, %v3727
        %v3775 = vmul.f32 %v3499, %v3729
        %v3776 = vmul.f32 %v3504, %v3731
        %v3777 = vmul.f32 %v3509, %v3733
        %v3778 = vmul.f32 %v3514, %v3735
        %v3779 = vmul.f32 %v3519, %v3737
        %v3780 = vmul.f32 %v3524, %v3739
        %v3781 = vmul.f32 %v3529, %v3741
        %v3782 = vmul.f32 %v3534, %v3743
        %v3783 = vmul.f32 %v3539, %v3745
        %v3784 = vmul.f32 %v3544, %v3747
        %v3785 = vmul.f32 %v3549, %v3749
        %v3786 = vmul.f32 %v3554, %v3751
        %v3787 = vmul.f32 %v3559, %v3753
        %v3788 = vmul.f32 %v3564, %v3755
        %v3789 = vmul.f32 %v3569, %v3757
        %v3790 = vmul.f32 %v3574, %v3759
        %v3791 = vmul.f32 %v3579, %v3761
        %s3792 = scalar_lea.vmem %s9, 32
        %v3793 = vld [vmem:[%s3792] sm:$0xff]
        %v3794 = vld [vmem:[%s3792 + $0x8] sm:$0xff]
        %v3795 = vld [vmem:[%s3792 + $0x10] sm:$0xff]
        %v3796 = vld [vmem:[%s3792 + $0x18] sm:$0xff]
        %s3797 = scalar_lea.vmem %s10, 1
        %v3798 = vld [vmem:[%s3797] sm:$0x1]
        %v3800 = vlaneseq
        %v3801 = vshrl.u32 %v3800, 7
        %v3802 = vsub.s32 0, %v3801
        %v3803 = vrot.slane %v3798, %v3802
        %v3806 = vsel %vm794, %v3762, 0
        %v3809 = vsel %vm794, %v3763, 0
        %v3812 = vsel %vm794, %v3764, 0
        %v3815 = vsel %vm794, %v3765, 0
        %v3818 = vsel %vm794, %v3766, 0
        %v3821 = vsel %vm794, %v3767, 0
        %v3824 = vsel %vm794, %v3768, 0
        %v3827 = vsel %vm794, %v3769, 0
        %v3830 = vsel %vm794, %v3770, 0
        %v3833 = vsel %vm794, %v3771, 0
        %v3836 = vsel %vm794, %v3772, 0
        %v3839 = vsel %vm794, %v3773, 0
        %v3842 = vsel %vm794, %v3774, 0
        %v3845 = vsel %vm794, %v3775, 0
        %v3848 = vsel %vm794, %v3776, 0
        %v3851 = vsel %vm794, %v3777, 0
        %v3854 = vsel %vm794, %v3778, 0
        %v3857 = vsel %vm794, %v3779, 0
        %v3860 = vsel %vm794, %v3780, 0
        %v3863 = vsel %vm794, %v3781, 0
        %v3866 = vsel %vm794, %v3782, 0
        %v3869 = vsel %vm794, %v3783, 0
        %v3872 = vsel %vm794, %v3784, 0
        %v3875 = vsel %vm794, %v3785, 0
        %v3878 = vsel %vm794, %v3786, 0
        %v3881 = vsel %vm794, %v3787, 0
        %v3884 = vsel %vm794, %v3788, 0
        %v3887 = vsel %vm794, %v3789, 0
        %v3890 = vsel %vm794, %v3790, 0
        %v3893 = vsel %vm794, %v3791, 0
        %3895 = vmatprep.subr.mxu0 0.0
        %3896 = vmatpush1.msra.mxu0 0.0
        %3897 = vmatprep.subr.mxu0 0.0
        %3898 = vmatpush1.msra.mxu0 0.0
        %3899 = vmatprep.subr.mxu0 0.0
        %3900 = vmatpush1.msra.mxu0 0.0
        %3901 = vmatprep.subr.mxu0 0.0
        %3902 = vmatpush1.msra.mxu0 0.0
        %3903 = vmatprep.subr.mxu0 0.0
        %3904 = vmatpush1.msra.mxu0 0.0
        %3905 = vmatprep.subr.mxu0 0.0
        %3906 = vmatpush1.msra.mxu0 0.0
        %3907 = vmatprep.subr.mxu0 0.0
        %3908 = vmatpush1.msra.mxu0 0.0
        %3909 = vmatprep.subr.mxu0 0.0
        %3910 = vmatpush1.msra.mxu0 0.0
        %3911 = vmatprep.subr.mxu0 0.0
        %3912 = vmatpush1.msra.mxu0 0.0
        %3913 = vmatprep.subr.mxu0 0.0
        %3914 = vmatpush1.msra.mxu0 0.0
        %3915 = vmatprep.subr.mxu0 0.0
        %3916 = vmatpush1.msra.mxu0 0.0
        %3917 = vmatprep.subr.mxu0 0.0
        %3918 = vmatpush1.msra.mxu0 0.0
        %3919 = vmatprep.subr.mxu0 0.0
        %3920 = vmatpush1.msra.mxu0 %v3796
        %3921 = vmatprep.subr.mxu0 0.0
        %3922 = vmatpush1.msra.mxu0 %v3795
        %3923 = vmatprep.subr.mxu0 0.0
        %3924 = vmatpush1.msra.mxu0 %v3794
        %3925 = vmatprep.subr.mxu0 0.0
        %3926 = vmatpush1.msra.mxu0 %v3793
        %3927 = vmatprep.subr.mxu0 0.0
        %3928 = vmatpush2.msra.mxu0 0.0
        %3929 = vmatprep.subr.mxu0 0.0
        %3930 = vmatpush2.msra.mxu0 0.0
        %3931 = vmatprep.subr.mxu0 0.0
        %3932 = vmatpush2.msra.mxu0 0.0
        %3933 = vmatprep.subr.mxu0 0.0
        %3934 = vmatpush2.msra.mxu0 0.0
        %3935 = vmatprep.subr.mxu0 0.0
        %3936 = vmatpush2.msra.mxu0 0.0
        %3937 = vmatprep.subr.mxu0 0.0
        %3938 = vmatpush2.msra.mxu0 0.0
        %3939 = vmatprep.subr.mxu0 0.0
        %3940 = vmatpush2.msra.mxu0 0.0
        %3941 = vmatprep.subr.mxu0 0.0
        %3942 = vmatpush2.msra.mxu0 0.0
        %3943 = vmatprep.subr.mxu0 0.0
        %3944 = vmatpush2.msra.mxu0 0.0
        %3945 = vmatprep.subr.mxu0 0.0
        %3946 = vmatpush2.msra.mxu0 0.0
        %3947 = vmatprep.subr.mxu0 0.0
        %3948 = vmatpush2.msra.mxu0 0.0
        %3949 = vmatprep.subr.mxu0 0.0
        %3950 = vmatpush2.msra.mxu0 0.0
        %3951 = vmatprep.subr.mxu0 0.0
        %3952 = vmatpush2.msra.mxu0 0.0
        %3953 = vmatprep.subr.mxu0 0.0
        %3954 = vmatpush2.msra.mxu0 0.0
        %3955 = vmatprep.subr.mxu0 0.0
        %3956 = vmatpush2.msra.mxu0 0.0
        %3957 = vmatprep.subr.mxu0 0.0
        %3958 = vmatpush2.msra.mxu0 0.0
        %3959 = vmatprep.mubr.f32.mxu0 0.0
        %3960 = vmatmul.mubr.f32.gmra.mxu0 %v3806
        %v3961 = vpop.f32.mrf.mxu0
        %v3962 = vadd.f32 %v3803, %v3961
        %v3963 = vpop.f32.mrf.mxu0
        %3964 = vmatprep.mubr.f32.mxu0 0.0
        %3965 = vmatmul.mubr.f32.gmra.mxu0 %v3809
        %v3966 = vpop.f32.mrf.mxu0
        %v3967 = vadd.f32 %v3803, %v3966
        %v3968 = vpop.f32.mrf.mxu0
        %3969 = vmatprep.mubr.f32.mxu0 0.0
        %3970 = vmatmul.mubr.f32.gmra.mxu0 %v3812
        %v3971 = vpop.f32.mrf.mxu0
        %v3972 = vadd.f32 %v3803, %v3971
        %v3973 = vpop.f32.mrf.mxu0
        %3974 = vmatprep.mubr.f32.mxu0 0.0
        %3975 = vmatmul.mubr.f32.gmra.mxu0 %v3815
        %v3976 = vpop.f32.mrf.mxu0
        %v3977 = vadd.f32 %v3803, %v3976
        %v3978 = vpop.f32.mrf.mxu0
        %3979 = vmatprep.mubr.f32.mxu0 0.0
        %3980 = vmatmul.mubr.f32.gmra.mxu0 %v3818
        %v3981 = vpop.f32.mrf.mxu0
        %v3982 = vadd.f32 %v3803, %v3981
        %v3983 = vpop.f32.mrf.mxu0
        %3984 = vmatprep.mubr.f32.mxu0 0.0
        %3985 = vmatmul.mubr.f32.gmra.mxu0 %v3821
        %v3986 = vpop.f32.mrf.mxu0
        %v3987 = vadd.f32 %v3803, %v3986
        %v3988 = vpop.f32.mrf.mxu0
        %3989 = vmatprep.mubr.f32.mxu0 0.0
        %3990 = vmatmul.mubr.f32.gmra.mxu0 %v3824
        %v3991 = vpop.f32.mrf.mxu0
        %v3992 = vadd.f32 %v3803, %v3991
        %v3993 = vpop.f32.mrf.mxu0
        %3994 = vmatprep.mubr.f32.mxu0 0.0
        %3995 = vmatmul.mubr.f32.gmra.mxu0 %v3827
        %v3996 = vpop.f32.mrf.mxu0
        %v3997 = vadd.f32 %v3803, %v3996
        %v3998 = vpop.f32.mrf.mxu0
        %3999 = vmatprep.mubr.f32.mxu0 0.0
        %4000 = vmatmul.mubr.f32.gmra.mxu0 %v3830
        %v4001 = vpop.f32.mrf.mxu0
        %v4002 = vadd.f32 %v3803, %v4001
        %v4003 = vpop.f32.mrf.mxu0
        %4004 = vmatprep.mubr.f32.mxu0 0.0
        %4005 = vmatmul.mubr.f32.gmra.mxu0 %v3833
        %v4006 = vpop.f32.mrf.mxu0
        %v4007 = vadd.f32 %v3803, %v4006
        %v4008 = vpop.f32.mrf.mxu0
        %4009 = vmatprep.mubr.f32.mxu0 0.0
        %4010 = vmatmul.mubr.f32.gmra.mxu0 %v3836
        %v4011 = vpop.f32.mrf.mxu0
        %v4012 = vadd.f32 %v3803, %v4011
        %v4013 = vpop.f32.mrf.mxu0
        %4014 = vmatprep.mubr.f32.mxu0 0.0
        %4015 = vmatmul.mubr.f32.gmra.mxu0 %v3839
        %v4016 = vpop.f32.mrf.mxu0
        %v4017 = vadd.f32 %v3803, %v4016
        %v4018 = vpop.f32.mrf.mxu0
        %4019 = vmatprep.mubr.f32.mxu0 0.0
        %4020 = vmatmul.mubr.f32.gmra.mxu0 %v3842
        %v4021 = vpop.f32.mrf.mxu0
        %v4022 = vadd.f32 %v3803, %v4021
        %v4023 = vpop.f32.mrf.mxu0
        %4024 = vmatprep.mubr.f32.mxu0 0.0
        %4025 = vmatmul.mubr.f32.gmra.mxu0 %v3845
        %v4026 = vpop.f32.mrf.mxu0
        %v4027 = vadd.f32 %v3803, %v4026
        %v4028 = vpop.f32.mrf.mxu0
        %4029 = vmatprep.mubr.f32.mxu0 0.0
        %4030 = vmatmul.mubr.f32.gmra.mxu0 %v3848
        %v4031 = vpop.f32.mrf.mxu0
        %v4032 = vadd.f32 %v3803, %v4031
        %v4033 = vpop.f32.mrf.mxu0
        %4034 = vmatprep.mubr.f32.mxu0 0.0
        %4035 = vmatmul.mubr.f32.gmra.mxu0 %v3851
        %v4036 = vpop.f32.mrf.mxu0
        %v4037 = vadd.f32 %v3803, %v4036
        %v4038 = vpop.f32.mrf.mxu0
        %4039 = vmatprep.mubr.f32.mxu0 0.0
        %4040 = vmatmul.mubr.f32.gmra.mxu0 %v3854
        %v4041 = vpop.f32.mrf.mxu0
        %v4042 = vadd.f32 %v3803, %v4041
        %v4043 = vpop.f32.mrf.mxu0
        %4044 = vmatprep.mubr.f32.mxu0 0.0
        %4045 = vmatmul.mubr.f32.gmra.mxu0 %v3857
        %v4046 = vpop.f32.mrf.mxu0
        %v4047 = vadd.f32 %v3803, %v4046
        %v4048 = vpop.f32.mrf.mxu0
        %4049 = vmatprep.mubr.f32.mxu0 0.0
        %4050 = vmatmul.mubr.f32.gmra.mxu0 %v3860
        %v4051 = vpop.f32.mrf.mxu0
        %v4052 = vadd.f32 %v3803, %v4051
        %v4053 = vpop.f32.mrf.mxu0
        %4054 = vmatprep.mubr.f32.mxu0 0.0
        %4055 = vmatmul.mubr.f32.gmra.mxu0 %v3863
        %v4056 = vpop.f32.mrf.mxu0
        %v4057 = vadd.f32 %v3803, %v4056
        %v4058 = vpop.f32.mrf.mxu0
        %4059 = vmatprep.mubr.f32.mxu0 0.0
        %4060 = vmatmul.mubr.f32.gmra.mxu0 %v3866
        %v4061 = vpop.f32.mrf.mxu0
        %v4062 = vadd.f32 %v3803, %v4061
        %v4063 = vpop.f32.mrf.mxu0
        %4064 = vmatprep.mubr.f32.mxu0 0.0
        %4065 = vmatmul.mubr.f32.gmra.mxu0 %v3869
        %v4066 = vpop.f32.mrf.mxu0
        %v4067 = vadd.f32 %v3803, %v4066
        %v4068 = vpop.f32.mrf.mxu0
        %4069 = vmatprep.mubr.f32.mxu0 0.0
        %4070 = vmatmul.mubr.f32.gmra.mxu0 %v3872
        %v4071 = vpop.f32.mrf.mxu0
        %v4072 = vadd.f32 %v3803, %v4071
        %v4073 = vpop.f32.mrf.mxu0
        %4074 = vmatprep.mubr.f32.mxu0 0.0
        %4075 = vmatmul.mubr.f32.gmra.mxu0 %v3875
        %v4076 = vpop.f32.mrf.mxu0
        %v4077 = vadd.f32 %v3803, %v4076
        %v4078 = vpop.f32.mrf.mxu0
        %4079 = vmatprep.mubr.f32.mxu0 0.0
        %4080 = vmatmul.mubr.f32.gmra.mxu0 %v3878
        %v4081 = vpop.f32.mrf.mxu0
        %v4082 = vadd.f32 %v3803, %v4081
        %v4083 = vpop.f32.mrf.mxu0
        %4084 = vmatprep.mubr.f32.mxu0 0.0
        %4085 = vmatmul.mubr.f32.gmra.mxu0 %v3881
        %v4086 = vpop.f32.mrf.mxu0
        %v4087 = vadd.f32 %v3803, %v4086
        %v4088 = vpop.f32.mrf.mxu0
        %4089 = vmatprep.mubr.f32.mxu0 0.0
        %4090 = vmatmul.mubr.f32.gmra.mxu0 %v3884
        %v4091 = vpop.f32.mrf.mxu0
        %v4092 = vadd.f32 %v3803, %v4091
        %v4093 = vpop.f32.mrf.mxu0
        %4094 = vmatprep.mubr.f32.mxu0 0.0
        %4095 = vmatmul.mubr.f32.gmra.mxu0 %v3887
        %v4096 = vpop.f32.mrf.mxu0
        %v4097 = vadd.f32 %v3803, %v4096
        %v4098 = vpop.f32.mrf.mxu0
        %4099 = vmatprep.mubr.f32.mxu0 0.0
        %4100 = vmatmul.mubr.f32.gmra.mxu0 %v3890
        %v4101 = vpop.f32.mrf.mxu0
        %v4102 = vadd.f32 %v3803, %v4101
        %v4103 = vpop.f32.mrf.mxu0
        %4104 = vmatprep.mubr.f32.mxu0 0.0
        %4105 = vmatmul.mubr.f32.gmra.mxu0 %v3893
        %v4106 = vpop.f32.mrf.mxu0
        %v4107 = vadd.f32 %v3803, %v4106
        %v4108 = vpop.f32.mrf.mxu0
        %4109 = vdwg.mxu0
        %v4110 = vxor.u32 %v3962, 2147483648
        %v4111 = vxor.u32 %v3967, 2147483648
        %v4112 = vxor.u32 %v3972, 2147483648
        %v4113 = vxor.u32 %v3977, 2147483648
        %v4114 = vxor.u32 %v3982, 2147483648
        %v4115 = vxor.u32 %v3987, 2147483648
        %v4116 = vxor.u32 %v3992, 2147483648
        %v4117 = vxor.u32 %v3997, 2147483648
        %v4118 = vxor.u32 %v4002, 2147483648
        %v4119 = vxor.u32 %v4007, 2147483648
        %v4120 = vxor.u32 %v4012, 2147483648
        %v4121 = vxor.u32 %v4017, 2147483648
        %v4122 = vxor.u32 %v4022, 2147483648
        %v4123 = vxor.u32 %v4027, 2147483648
        %v4124 = vxor.u32 %v4032, 2147483648
        %v4125 = vxor.u32 %v4037, 2147483648
        %v4126 = vxor.u32 %v4042, 2147483648
        %v4127 = vxor.u32 %v4047, 2147483648
        %v4128 = vxor.u32 %v4052, 2147483648
        %v4129 = vxor.u32 %v4057, 2147483648
        %v4130 = vxor.u32 %v4062, 2147483648
        %v4131 = vxor.u32 %v4067, 2147483648
        %v4132 = vxor.u32 %v4072, 2147483648
        %v4133 = vxor.u32 %v4077, 2147483648
        %v4134 = vxor.u32 %v4082, 2147483648
        %v4135 = vxor.u32 %v4087, 2147483648
        %v4136 = vxor.u32 %v4092, 2147483648
        %v4137 = vxor.u32 %v4097, 2147483648
        %v4138 = vxor.u32 %v4102, 2147483648
        %v4139 = vxor.u32 %v4107, 2147483648
        %v4140 = vmul.f32 %v4110, 1.442695
        %v4141 = vpow.pop %v4140
        %v4142 = vmul.f32 %v4111, 1.442695
        %v4143 = vpow.pop %v4142
        %v4144 = vmul.f32 %v4112, 1.442695
        %v4145 = vpow.pop %v4144
        %v4146 = vmul.f32 %v4113, 1.442695
        %v4147 = vpow.pop %v4146
        %v4148 = vmul.f32 %v4114, 1.442695
        %v4149 = vpow.pop %v4148
        %v4150 = vmul.f32 %v4115, 1.442695
        %v4151 = vpow.pop %v4150
        %v4152 = vmul.f32 %v4116, 1.442695
        %v4153 = vpow.pop %v4152
        %v4154 = vmul.f32 %v4117, 1.442695
        %v4155 = vpow.pop %v4154
        %v4156 = vmul.f32 %v4118, 1.442695
        %v4157 = vpow.pop %v4156
        %v4158 = vmul.f32 %v4119, 1.442695
        %v4159 = vpow.pop %v4158
        %v4160 = vmul.f32 %v4120, 1.442695
        %v4161 = vpow.pop %v4160
        %v4162 = vmul.f32 %v4121, 1.442695
        %v4163 = vpow.pop %v4162
        %v4164 = vmul.f32 %v4122, 1.442695
        %v4165 = vpow.pop %v4164
        %v4166 = vmul.f32 %v4123, 1.442695
        %v4167 = vpow.pop %v4166
        %v4168 = vmul.f32 %v4124, 1.442695
        %v4169 = vpow.pop %v4168
        %v4170 = vmul.f32 %v4125, 1.442695
        %v4171 = vpow.pop %v4170
        %v4172 = vmul.f32 %v4126, 1.442695
        %v4173 = vpow.pop %v4172
        %v4174 = vmul.f32 %v4127, 1.442695
        %v4175 = vpow.pop %v4174
        %v4176 = vmul.f32 %v4128, 1.442695
        %v4177 = vpow.pop %v4176
        %v4178 = vmul.f32 %v4129, 1.442695
        %v4179 = vpow.pop %v4178
        %v4180 = vmul.f32 %v4130, 1.442695
        %v4181 = vpow.pop %v4180
        %v4182 = vmul.f32 %v4131, 1.442695
        %v4183 = vpow.pop %v4182
        %v4184 = vmul.f32 %v4132, 1.442695
        %v4185 = vpow.pop %v4184
        %v4186 = vmul.f32 %v4133, 1.442695
        %v4187 = vpow.pop %v4186
        %v4188 = vmul.f32 %v4134, 1.442695
        %v4189 = vpow.pop %v4188
        %v4190 = vmul.f32 %v4135, 1.442695
        %v4191 = vpow.pop %v4190
        %v4192 = vmul.f32 %v4136, 1.442695
        %v4193 = vpow.pop %v4192
        %v4194 = vmul.f32 %v4137, 1.442695
        %v4195 = vpow.pop %v4194
        %v4196 = vmul.f32 %v4138, 1.442695
        %v4197 = vpow.pop %v4196
        %v4198 = vmul.f32 %v4139, 1.442695
        %v4199 = vpow.pop %v4198
        %v4200 = vadd.f32 %v4141, 1.0
        %v4201 = vadd.f32 %v4143, 1.0
        %v4202 = vadd.f32 %v4145, 1.0
        %v4203 = vadd.f32 %v4147, 1.0
        %v4204 = vadd.f32 %v4149, 1.0
        %v4205 = vadd.f32 %v4151, 1.0
        %v4206 = vadd.f32 %v4153, 1.0
        %v4207 = vadd.f32 %v4155, 1.0
        %v4208 = vadd.f32 %v4157, 1.0
        %v4209 = vadd.f32 %v4159, 1.0
        %v4210 = vadd.f32 %v4161, 1.0
        %v4211 = vadd.f32 %v4163, 1.0
        %v4212 = vadd.f32 %v4165, 1.0
        %v4213 = vadd.f32 %v4167, 1.0
        %v4214 = vadd.f32 %v4169, 1.0
        %v4215 = vadd.f32 %v4171, 1.0
        %v4216 = vadd.f32 %v4173, 1.0
        %v4217 = vadd.f32 %v4175, 1.0
        %v4218 = vadd.f32 %v4177, 1.0
        %v4219 = vadd.f32 %v4179, 1.0
        %v4220 = vadd.f32 %v4181, 1.0
        %v4221 = vadd.f32 %v4183, 1.0
        %v4222 = vadd.f32 %v4185, 1.0
        %v4223 = vadd.f32 %v4187, 1.0
        %v4224 = vadd.f32 %v4189, 1.0
        %v4225 = vadd.f32 %v4191, 1.0
        %v4226 = vadd.f32 %v4193, 1.0
        %v4227 = vadd.f32 %v4195, 1.0
        %v4228 = vadd.f32 %v4197, 1.0
        %v4229 = vadd.f32 %v4199, 1.0
        %v4230 = vrcp.pop %v4200
        %v4231 = vmul.f32 1.0, %v4230
        %v4232 = vrcp.pop %v4201
        %v4233 = vmul.f32 1.0, %v4232
        %v4234 = vrcp.pop %v4202
        %v4235 = vmul.f32 1.0, %v4234
        %v4236 = vrcp.pop %v4203
        %v4237 = vmul.f32 1.0, %v4236
        %v4238 = vrcp.pop %v4204
        %v4239 = vmul.f32 1.0, %v4238
        %v4240 = vrcp.pop %v4205
        %v4241 = vmul.f32 1.0, %v4240
        %v4242 = vrcp.pop %v4206
        %v4243 = vmul.f32 1.0, %v4242
        %v4244 = vrcp.pop %v4207
        %v4245 = vmul.f32 1.0, %v4244
        %v4246 = vrcp.pop %v4208
        %v4247 = vmul.f32 1.0, %v4246
        %v4248 = vrcp.pop %v4209
        %v4249 = vmul.f32 1.0, %v4248
        %v4250 = vrcp.pop %v4210
        %v4251 = vmul.f32 1.0, %v4250
        %v4252 = vrcp.pop %v4211
        %v4253 = vmul.f32 1.0, %v4252
        %v4254 = vrcp.pop %v4212
        %v4255 = vmul.f32 1.0, %v4254
        %v4256 = vrcp.pop %v4213
        %v4257 = vmul.f32 1.0, %v4256
        %v4258 = vrcp.pop %v4214
        %v4259 = vmul.f32 1.0, %v4258
        %v4260 = vrcp.pop %v4215
        %v4261 = vmul.f32 1.0, %v4260
        %v4262 = vrcp.pop %v4216
        %v4263 = vmul.f32 1.0, %v4262
        %v4264 = vrcp.pop %v4217
        %v4265 = vmul.f32 1.0, %v4264
        %v4266 = vrcp.pop %v4218
        %v4267 = vmul.f32 1.0, %v4266
        %v4268 = vrcp.pop %v4219
        %v4269 = vmul.f32 1.0, %v4268
        %v4270 = vrcp.pop %v4220
        %v4271 = vmul.f32 1.0, %v4270
        %v4272 = vrcp.pop %v4221
        %v4273 = vmul.f32 1.0, %v4272
        %v4274 = vrcp.pop %v4222
        %v4275 = vmul.f32 1.0, %v4274
        %v4276 = vrcp.pop %v4223
        %v4277 = vmul.f32 1.0, %v4276
        %v4278 = vrcp.pop %v4224
        %v4279 = vmul.f32 1.0, %v4278
        %v4280 = vrcp.pop %v4225
        %v4281 = vmul.f32 1.0, %v4280
        %v4282 = vrcp.pop %v4226
        %v4283 = vmul.f32 1.0, %v4282
        %v4284 = vrcp.pop %v4227
        %v4285 = vmul.f32 1.0, %v4284
        %v4286 = vrcp.pop %v4228
        %v4287 = vmul.f32 1.0, %v4286
        %v4288 = vrcp.pop %v4229
        %v4289 = vmul.f32 1.0, %v4288
        %v4290 = vmul.f32 %v3962, %v4231
        %v4291 = vmul.f32 %v3967, %v4233
        %v4292 = vmul.f32 %v3972, %v4235
        %v4293 = vmul.f32 %v3977, %v4237
        %v4294 = vmul.f32 %v3982, %v4239
        %v4295 = vmul.f32 %v3987, %v4241
        %v4296 = vmul.f32 %v3992, %v4243
        %v4297 = vmul.f32 %v3997, %v4245
        %v4298 = vmul.f32 %v4002, %v4247
        %v4299 = vmul.f32 %v4007, %v4249
        %v4300 = vmul.f32 %v4012, %v4251
        %v4301 = vmul.f32 %v4017, %v4253
        %v4302 = vmul.f32 %v4022, %v4255
        %v4303 = vmul.f32 %v4027, %v4257
        %v4304 = vmul.f32 %v4032, %v4259
        %v4305 = vmul.f32 %v4037, %v4261
        %v4306 = vmul.f32 %v4042, %v4263
        %v4307 = vmul.f32 %v4047, %v4265
        %v4308 = vmul.f32 %v4052, %v4267
        %v4309 = vmul.f32 %v4057, %v4269
        %v4310 = vmul.f32 %v4062, %v4271
        %v4311 = vmul.f32 %v4067, %v4273
        %v4312 = vmul.f32 %v4072, %v4275
        %v4313 = vmul.f32 %v4077, %v4277
        %v4314 = vmul.f32 %v4082, %v4279
        %v4315 = vmul.f32 %v4087, %v4281
        %v4316 = vmul.f32 %v4092, %v4283
        %v4317 = vmul.f32 %v4097, %v4285
        %v4318 = vmul.f32 %v4102, %v4287
        %v4319 = vmul.f32 %v4107, %v4289
        %4320 = vmatprep.subr.mxu0 0.0
        %4321 = vmatpush1.msra.mxu0 %v4305
        %4322 = vmatprep.subr.mxu0 0.0
        %4323 = vmatpush1.msra.mxu0 %v4304
        %4324 = vmatprep.subr.mxu0 0.0
        %4325 = vmatpush1.msra.mxu0 %v4303
        %4326 = vmatprep.subr.mxu0 0.0
        %4327 = vmatpush1.msra.mxu0 %v4302
        %4328 = vmatprep.subr.mxu0 0.0
        %4329 = vmatpush1.msra.mxu0 %v4301
        %4330 = vmatprep.subr.mxu0 0.0
        %4331 = vmatpush1.msra.mxu0 %v4300
        %4332 = vmatprep.subr.mxu0 0.0
        %4333 = vmatpush1.msra.mxu0 %v4299
        %4334 = vmatprep.subr.mxu0 0.0
        %4335 = vmatpush1.msra.mxu0 %v4298
        %4336 = vmatprep.subr.mxu0 0.0
        %4337 = vmatpush1.msra.mxu0 %v4297
        %4338 = vmatprep.subr.mxu0 0.0
        %4339 = vmatpush1.msra.mxu0 %v4296
        %4340 = vmatprep.subr.mxu0 0.0
        %4341 = vmatpush1.msra.mxu0 %v4295
        %4342 = vmatprep.subr.mxu0 0.0
        %4343 = vmatpush1.msra.mxu0 %v4294
        %4344 = vmatprep.subr.mxu0 0.0
        %4345 = vmatpush1.msra.mxu0 %v4293
        %4346 = vmatprep.subr.mxu0 0.0
        %4347 = vmatpush1.msra.mxu0 %v4292
        %4348 = vmatprep.subr.mxu0 0.0
        %4349 = vmatpush1.msra.mxu0 %v4291
        %4350 = vmatprep.subr.mxu0 0.0
        %4351 = vmatpush1.msra.mxu0 %v4290
        %4352 = vmatprep.subr.mxu0 0.0
        %4353 = vmatpush2.msra.mxu0 0.0
        %4354 = vmatprep.subr.mxu0 0.0
        %4355 = vmatpush2.msra.mxu0 0.0
        %4356 = vmatprep.subr.mxu0 0.0
        %4357 = vmatpush2.msra.mxu0 %v4319
        %4358 = vmatprep.subr.mxu0 0.0
        %4359 = vmatpush2.msra.mxu0 %v4318
        %4360 = vmatprep.subr.mxu0 0.0
        %4361 = vmatpush2.msra.mxu0 %v4317
        %4362 = vmatprep.subr.mxu0 0.0
        %4363 = vmatpush2.msra.mxu0 %v4316
        %4364 = vmatprep.subr.mxu0 0.0
        %4365 = vmatpush2.msra.mxu0 %v4315
        %4366 = vmatprep.subr.mxu0 0.0
        %4367 = vmatpush2.msra.mxu0 %v4314
        %4368 = vmatprep.subr.mxu0 0.0
        %4369 = vmatpush2.msra.mxu0 %v4313
        %4370 = vmatprep.subr.mxu0 0.0
        %4371 = vmatpush2.msra.mxu0 %v4312
        %4372 = vmatprep.subr.mxu0 0.0
        %4373 = vmatpush2.msra.mxu0 %v4311
        %4374 = vmatprep.subr.mxu0 0.0
        %4375 = vmatpush2.msra.mxu0 %v4310
        %4376 = vmatprep.subr.mxu0 0.0
        %4377 = vmatpush2.msra.mxu0 %v4309
        %4378 = vmatprep.subr.mxu0 0.0
        %4379 = vmatpush2.msra.mxu0 %v4308
        %4380 = vmatprep.subr.mxu0 0.0
        %4381 = vmatpush2.msra.mxu0 %v4307
        %4382 = vmatprep.subr.mxu0 0.0
        %4383 = vmatpush2.msra.mxu0 %v4306
        %4384 = vmatprep.mubr.f32.mxu0 %v2737
        %4385 = vmatmul.mubr.f32.gmra.mxu0 %v784
        %v4386 = vpop.f32.mrf.mxu0
        %v4387 = vadd.f32 0.0, %v4386
        %v4388 = vpop.f32.mrf.mxu0
        %4389 = vmatprep.mubr.f32.mxu0 %v2740
        %4390 = vmatmul.mubr.f32.gmra.mxu0 %v786
        %v4391 = vpop.f32.mrf.mxu0
        %v4392 = vadd.f32 0.0, %v4391
        %v4393 = vpop.f32.mrf.mxu0
        %4394 = vdwg.mxu0
        %4397 = vrot.lane.b32.xlu0 %v4387, 32
        %v4398 = vpop.permute.xlu0 %4397
        %4399 = vrot.lane.b32.xlu0 %v4392, 32
        %v4400 = vpop.permute.xlu0 %4399
        %v4403 = vsel %vm794, %v3043, %v4398
        %v4404 = vsel %vm794, %v3044, %v4400
        %v4405 = vsel %vm2833, %v4403, %v2826
        %v4406 = vsel %vm2833, %v4404, %v2828
        %v4407 = vsel %vm2836, %v4405, 1.0
        %v4408 = vsel %vm2836, %v4406, 1.0
        %s4409 = scalar_lea.vmem %s11, 80
        %v4410 = vld [vmem:[%s4409] sm:$0xff]
        %v4411 = vld [vmem:[%s4409 + $0x8] sm:$0xff]
        %v4412 = vld [vmem:[%s4409 + $0x10] sm:$0xff]
        %v4413 = vld [vmem:[%s4409 + $0x18] sm:$0xff]
        %v4414 = vld [vmem:[%s4409 + $0x20] sm:$0xff]
        %v4415 = vld [vmem:[%s4409 + $0x28] sm:$0xff]
        %v4416 = vld [vmem:[%s4409 + $0x30] sm:$0xff]
        %v4417 = vld [vmem:[%s4409 + $0x38] sm:$0xff]
        %v4418 = vld [vmem:[%s4409 + $0x40] sm:$0xff]
        %v4419 = vld [vmem:[%s4409 + $0x48] sm:$0x1]
        %v4421 = vsel %vm2849, %v4407, 0
        %v4424 = vsel %vm2849, %v4408, 0
        %v4427 = vsel %vm2856, %v4419, 0
        %4429 = vmatprep.subr.mxu0 0.0
        %4430 = vmatpush1.msra.mxu0 0.0
        %4431 = vmatprep.subr.mxu0 0.0
        %4432 = vmatpush1.msra.mxu0 0.0
        %4433 = vmatprep.subr.mxu0 0.0
        %4434 = vmatpush1.msra.mxu0 0.0
        %4435 = vmatprep.subr.mxu0 0.0
        %4436 = vmatpush1.msra.mxu0 0.0
        %4437 = vmatprep.subr.mxu0 0.0
        %4438 = vmatpush1.msra.mxu0 0.0
        %4439 = vmatprep.subr.mxu0 0.0
        %4440 = vmatpush1.msra.mxu0 0.0
        %4441 = vmatprep.subr.mxu0 0.0
        %4442 = vmatpush1.msra.mxu0 %v4427
        %4443 = vmatprep.subr.mxu0 0.0
        %4444 = vmatpush1.msra.mxu0 %v4418
        %4445 = vmatprep.subr.mxu0 0.0
        %4446 = vmatpush1.msra.mxu0 %v4417
        %4447 = vmatprep.subr.mxu0 0.0
        %4448 = vmatpush1.msra.mxu0 %v4416
        %4449 = vmatprep.subr.mxu0 0.0
        %4450 = vmatpush1.msra.mxu0 %v4415
        %4451 = vmatprep.subr.mxu0 0.0
        %4452 = vmatpush1.msra.mxu0 %v4414
        %4453 = vmatprep.subr.mxu0 0.0
        %4454 = vmatpush1.msra.mxu0 %v4413
        %4455 = vmatprep.subr.mxu0 0.0
        %4456 = vmatpush1.msra.mxu0 %v4412
        %4457 = vmatprep.subr.mxu0 0.0
        %4458 = vmatpush1.msra.mxu0 %v4411
        %4459 = vmatprep.subr.mxu0 0.0
        %4460 = vmatpush1.msra.mxu0 %v4410
        %4461 = vmatprep.subr.mxu0 0.0
        %4462 = vmatpush2.msra.mxu0 0.0
        %4463 = vmatprep.subr.mxu0 0.0
        %4464 = vmatpush2.msra.mxu0 0.0
        %4465 = vmatprep.subr.mxu0 0.0
        %4466 = vmatpush2.msra.mxu0 0.0
        %4467 = vmatprep.subr.mxu0 0.0
        %4468 = vmatpush2.msra.mxu0 0.0
        %4469 = vmatprep.subr.mxu0 0.0
        %4470 = vmatpush2.msra.mxu0 0.0
        %4471 = vmatprep.subr.mxu0 0.0
        %4472 = vmatpush2.msra.mxu0 0.0
        %4473 = vmatprep.subr.mxu0 0.0
        %4474 = vmatpush2.msra.mxu0 0.0
        %4475 = vmatprep.subr.mxu0 0.0
        %4476 = vmatpush2.msra.mxu0 0.0
        %4477 = vmatprep.subr.mxu0 0.0
        %4478 = vmatpush2.msra.mxu0 0.0
        %4479 = vmatprep.subr.mxu0 0.0
        %4480 = vmatpush2.msra.mxu0 0.0
        %4481 = vmatprep.subr.mxu0 0.0
        %4482 = vmatpush2.msra.mxu0 0.0
        %4483 = vmatprep.subr.mxu0 0.0
        %4484 = vmatpush2.msra.mxu0 0.0
        %4485 = vmatprep.subr.mxu0 0.0
        %4486 = vmatpush2.msra.mxu0 0.0
        %4487 = vmatprep.subr.mxu0 0.0
        %4488 = vmatpush2.msra.mxu0 0.0
        %4489 = vmatprep.subr.mxu0 0.0
        %4490 = vmatpush2.msra.mxu0 0.0
        %4491 = vmatprep.subr.mxu0 0.0
        %4492 = vmatpush2.msra.mxu0 0.0
        %4493 = vmatprep.mubr.f32.mxu0 0.0
        %4494 = vmatmul.mubr.f32.gmra.mxu0 %v4421
        %v4495 = vpop.f32.mrf.mxu0
        %v4496 = vadd.f32 0.0, %v4495
        %v4497 = vpop.f32.mrf.mxu0
        %4498 = vmatprep.mubr.f32.mxu0 0.0
        %4499 = vmatmul.mubr.f32.gmra.mxu0 %v4424
        %v4500 = vpop.f32.mrf.mxu0
        %v4501 = vadd.f32 0.0, %v4500
        %v4502 = vpop.f32.mrf.mxu0
        %4503 = vdwg.mxu0
        %v4504 = vxor.u32 %v4496, 2147483648
        %v4505 = vxor.u32 %v4501, 2147483648
        %v4506 = vmul.f32 %v4504, 1.442695
        %v4507 = vpow.pop %v4506
        %v4508 = vmul.f32 %v4505, 1.442695
        %v4509 = vpow.pop %v4508
        %v4510 = vadd.f32 %v4507, 1.0
        %v4511 = vadd.f32 %v4509, 1.0
        %v4512 = vrcp.pop %v4510
        %v4513 = vmul.f32 1.0, %v4512
        %v4514 = vrcp.pop %v4511
        %v4515 = vmul.f32 1.0, %v4514
        %v4516 = vmul.f32 %v4496, %v4513
        %v4517 = vmul.f32 %v4501, %v4515
        %s4518 = scalar_lea.vmem %s12, 32
        %v4519 = vld [vmem:[%s4518] sm:$0xff]
        %v4520 = vld [vmem:[%s4518 + $0x8] sm:$0xff]
        %v4521 = vld [vmem:[%s4518 + $0x10] sm:$0xff]
        %v4522 = vld [vmem:[%s4518 + $0x18] sm:$0xff]
        %v4524 = vsel %vm794, %v4516, 0
        %v4527 = vsel %vm794, %v4517, 0
        %4529 = vmatprep.subr.mxu0 0.0
        %4530 = vmatpush1.msra.mxu0 0.0
        %4531 = vmatprep.subr.mxu0 0.0
        %4532 = vmatpush1.msra.mxu0 0.0
        %4533 = vmatprep.subr.mxu0 0.0
        %4534 = vmatpush1.msra.mxu0 0.0
        %4535 = vmatprep.subr.mxu0 0.0
        %4536 = vmatpush1.msra.mxu0 0.0
        %4537 = vmatprep.subr.mxu0 0.0
        %4538 = vmatpush1.msra.mxu0 0.0
        %4539 = vmatprep.subr.mxu0 0.0
        %4540 = vmatpush1.msra.mxu0 0.0
        %4541 = vmatprep.subr.mxu0 0.0
        %4542 = vmatpush1.msra.mxu0 0.0
        %4543 = vmatprep.subr.mxu0 0.0
        %4544 = vmatpush1.msra.mxu0 0.0
        %4545 = vmatprep.subr.mxu0 0.0
        %4546 = vmatpush1.msra.mxu0 0.0
        %4547 = vmatprep.subr.mxu0 0.0
        %4548 = vmatpush1.msra.mxu0 0.0
        %4549 = vmatprep.subr.mxu0 0.0
        %4550 = vmatpush1.msra.mxu0 0.0
        %4551 = vmatprep.subr.mxu0 0.0
        %4552 = vmatpush1.msra.mxu0 0.0
        %4553 = vmatprep.subr.mxu0 0.0
        %4554 = vmatpush1.msra.mxu0 %v4522
        %4555 = vmatprep.subr.mxu0 0.0
        %4556 = vmatpush1.msra.mxu0 %v4521
        %4557 = vmatprep.subr.mxu0 0.0
        %4558 = vmatpush1.msra.mxu0 %v4520
        %4559 = vmatprep.subr.mxu0 0.0
        %4560 = vmatpush1.msra.mxu0 %v4519
        %4561 = vmatprep.subr.mxu0 0.0
        %4562 = vmatpush2.msra.mxu0 0.0
        %4563 = vmatprep.subr.mxu0 0.0
        %4564 = vmatpush2.msra.mxu0 0.0
        %4565 = vmatprep.subr.mxu0 0.0
        %4566 = vmatpush2.msra.mxu0 0.0
        %4567 = vmatprep.subr.mxu0 0.0
        %4568 = vmatpush2.msra.mxu0 0.0
        %4569 = vmatprep.subr.mxu0 0.0
        %4570 = vmatpush2.msra.mxu0 0.0
        %4571 = vmatprep.subr.mxu0 0.0
        %4572 = vmatpush2.msra.mxu0 0.0
        %4573 = vmatprep.subr.mxu0 0.0
        %4574 = vmatpush2.msra.mxu0 0.0
        %4575 = vmatprep.subr.mxu0 0.0
        %4576 = vmatpush2.msra.mxu0 0.0
        %4577 = vmatprep.subr.mxu0 0.0
        %4578 = vmatpush2.msra.mxu0 0.0
        %4579 = vmatprep.subr.mxu0 0.0
        %4580 = vmatpush2.msra.mxu0 0.0
        %4581 = vmatprep.subr.mxu0 0.0
        %4582 = vmatpush2.msra.mxu0 0.0
        %4583 = vmatprep.subr.mxu0 0.0
        %4584 = vmatpush2.msra.mxu0 0.0
        %4585 = vmatprep.subr.mxu0 0.0
        %4586 = vmatpush2.msra.mxu0 0.0
        %4587 = vmatprep.subr.mxu0 0.0
        %4588 = vmatpush2.msra.mxu0 0.0
        %4589 = vmatprep.subr.mxu0 0.0
        %4590 = vmatpush2.msra.mxu0 0.0
        %4591 = vmatprep.subr.mxu0 0.0
        %4592 = vmatpush2.msra.mxu0 0.0
        %4593 = vmatprep.mubr.f32.mxu0 0.0
        %4594 = vmatmul.mubr.f32.gmra.mxu0 %v4524
        %v4595 = vpop.f32.mrf.mxu0
        %v4596 = vadd.f32 0.0, %v4595
        %v4597 = vpop.f32.mrf.mxu0
        %4598 = vmatprep.mubr.f32.mxu0 0.0
        %4599 = vmatmul.mubr.f32.gmra.mxu0 %v4527
        %v4600 = vpop.f32.mrf.mxu0
        %v4601 = vadd.f32 0.0, %v4600
        %v4602 = vpop.f32.mrf.mxu0
        %4603 = vdwg.mxu0
        %v4604 = vadd.f32 %v3043, %v4596
        %v4605 = vadd.f32 %v3044, %v4601
        %s4606 = scalar_lea.vmem %s13, 1
        %v4607 = vld [vmem:[%s4606] sm:$0x1]
        %v4609 = vlaneseq
        %v4610 = vshrl.u32 %v4609, 7
        %v4611 = vsub.s32 0, %v4610
        %v4612 = vrot.slane %v4607, %v4611
        %v4614 = vadd.f32 %v4604, %v4612
        %v4615 = vadd.f32 %v4605, %v4612
        %s4616 = scalar_lea.vmem %s7, 64
        %v4617 = vld [vmem:[%s4616] sm:$0xff]
        %v4618 = vld [vmem:[%s4616 + $0x8] sm:$0xff]
        %v4619 = vld [vmem:[%s4616 + $0x10] sm:$0xff]
        %v4620 = vld [vmem:[%s4616 + $0x18] sm:$0xff]
        %v4622 = vsel %vm794, %v4614, 0
        %v4625 = vsel %vm794, %v4615, 0
        %4627 = vmatprep.subr.mxu0 0.0
        %4628 = vmatpush1.msra.mxu0 0.0
        %4629 = vmatprep.subr.mxu0 0.0
        %4630 = vmatpush1.msra.mxu0 0.0
        %4631 = vmatprep.subr.mxu0 0.0
        %4632 = vmatpush1.msra.mxu0 0.0
        %4633 = vmatprep.subr.mxu0 0.0
        %4634 = vmatpush1.msra.mxu0 0.0
        %4635 = vmatprep.subr.mxu0 0.0
        %4636 = vmatpush1.msra.mxu0 0.0
        %4637 = vmatprep.subr.mxu0 0.0
        %4638 = vmatpush1.msra.mxu0 0.0
        %4639 = vmatprep.subr.mxu0 0.0
        %4640 = vmatpush1.msra.mxu0 0.0
        %4641 = vmatprep.subr.mxu0 0.0
        %4642 = vmatpush1.msra.mxu0 0.0
        %4643 = vmatprep.subr.mxu0 0.0
        %4644 = vmatpush1.msra.mxu0 0.0
        %4645 = vmatprep.subr.mxu0 0.0
        %4646 = vmatpush1.msra.mxu0 0.0
        %4647 = vmatprep.subr.mxu0 0.0
        %4648 = vmatpush1.msra.mxu0 0.0
        %4649 = vmatprep.subr.mxu0 0.0
        %4650 = vmatpush1.msra.mxu0 0.0
        %4651 = vmatprep.subr.mxu0 0.0
        %4652 = vmatpush1.msra.mxu0 %v4620
        %4653 = vmatprep.subr.mxu0 0.0
        %4654 = vmatpush1.msra.mxu0 %v4619
        %4655 = vmatprep.subr.mxu0 0.0
        %4656 = vmatpush1.msra.mxu0 %v4618
        %4657 = vmatprep.subr.mxu0 0.0
        %4658 = vmatpush1.msra.mxu0 %v4617
        %4659 = vmatprep.subr.mxu0 0.0
        %4660 = vmatpush2.msra.mxu0 0.0
        %4661 = vmatprep.subr.mxu0 0.0
        %4662 = vmatpush2.msra.mxu0 0.0
        %4663 = vmatprep.subr.mxu0 0.0
        %4664 = vmatpush2.msra.mxu0 0.0
        %4665 = vmatprep.subr.mxu0 0.0
        %4666 = vmatpush2.msra.mxu0 0.0
        %4667 = vmatprep.subr.mxu0 0.0
        %4668 = vmatpush2.msra.mxu0 0.0
        %4669 = vmatprep.subr.mxu0 0.0
        %4670 = vmatpush2.msra.mxu0 0.0
        %4671 = vmatprep.subr.mxu0 0.0
        %4672 = vmatpush2.msra.mxu0 0.0
        %4673 = vmatprep.subr.mxu0 0.0
        %4674 = vmatpush2.msra.mxu0 0.0
        %4675 = vmatprep.subr.mxu0 0.0
        %4676 = vmatpush2.msra.mxu0 0.0
        %4677 = vmatprep.subr.mxu0 0.0
        %4678 = vmatpush2.msra.mxu0 0.0
        %4679 = vmatprep.subr.mxu0 0.0
        %4680 = vmatpush2.msra.mxu0 0.0
        %4681 = vmatprep.subr.mxu0 0.0
        %4682 = vmatpush2.msra.mxu0 0.0
        %4683 = vmatprep.subr.mxu0 0.0
        %4684 = vmatpush2.msra.mxu0 0.0
        %4685 = vmatprep.subr.mxu0 0.0
        %4686 = vmatpush2.msra.mxu0 0.0
        %4687 = vmatprep.subr.mxu0 0.0
        %4688 = vmatpush2.msra.mxu0 0.0
        %4689 = vmatprep.subr.mxu0 0.0
        %4690 = vmatpush2.msra.mxu0 0.0
        %4691 = vmatprep.mubr.f32.mxu0 0.0
        %4692 = vmatmul.mubr.f32.gmra.mxu0 %v4622
        %v4693 = vpop.f32.mrf.mxu0
        %v4694 = vadd.f32 0.0, %v4693
        %v4695 = vpop.f32.mrf.mxu0
        %4696 = vmatprep.mubr.f32.mxu0 0.0
        %4697 = vmatmul.mubr.f32.gmra.mxu0 %v4625
        %v4698 = vpop.f32.mrf.mxu0
        %v4699 = vadd.f32 0.0, %v4698
        %v4700 = vpop.f32.mrf.mxu0
        %4701 = vdwg.mxu0
        %4702 = vst.msk [vmem:[#allocation2] sm:$0xff] %vm794, %v4694
        %4703 = vst.msk [vmem:[#allocation2 + $0x8] sm:$0xff] %vm794, %v4699
        %4706 = vrot.lane.b32.xlu0 %v4694, 96
        %v4707 = vpop.permute.xlu0 %4706
        %4708 = vrot.lane.b32.xlu0 %v4699, 96
        %v4709 = vpop.permute.xlu0 %4708
        %4712 = vst.msk [vmem:[#allocation2 + $0x10] sm:$0xff] %vm794, %v4707
        %4713 = vst.msk [vmem:[#allocation2 + $0x18] sm:$0xff] %vm794, %v4709
        %v4714 = vld [vmem:[#allocation2] sm:$0xff]
        %v4715 = vld [vmem:[#allocation2 + $0x8] sm:$0xff]
        %v4716 = vld [vmem:[#allocation2 + $0x10] sm:$0xff]
        %v4717 = vld [vmem:[#allocation2 + $0x18] sm:$0xff]
        %s4718 = scalar_lea.vmem %s8, 16
        %v4719 = vld [vmem:[%s4718] sm:$0x3f]
        %v4721 = vsel %vm1565, %v4719, 0
        %4723 = vmatprep.subr.mxu0 0.0
        %4724 = vmatpush1.msra.mxu0 0.0
        %4725 = vmatprep.subr.mxu0 0.0
        %4726 = vmatpush1.msra.mxu0 0.0
        %4727 = vmatprep.subr.mxu0 0.0
        %4728 = vmatpush1.msra.mxu0 0.0
        %4729 = vmatprep.subr.mxu0 0.0
        %4730 = vmatpush1.msra.mxu0 0.0
        %4731 = vmatprep.subr.mxu0 0.0
        %4732 = vmatpush1.msra.mxu0 0.0
        %4733 = vmatprep.subr.mxu0 0.0
        %4734 = vmatpush1.msra.mxu0 0.0
        %4735 = vmatprep.subr.mxu0 0.0
        %4736 = vmatpush1.msra.mxu0 0.0
        %4737 = vmatprep.subr.mxu0 0.0
        %4738 = vmatpush1.msra.mxu0 0.0
        %4739 = vmatprep.subr.mxu0 0.0
        %4740 = vmatpush1.msra.mxu0 0.0
        %4741 = vmatprep.subr.mxu0 0.0
        %4742 = vmatpush1.msra.mxu0 0.0
        %4743 = vmatprep.subr.mxu0 0.0
        %4744 = vmatpush1.msra.mxu0 0.0
        %4745 = vmatprep.subr.mxu0 0.0
        %4746 = vmatpush1.msra.mxu0 0.0
        %4747 = vmatprep.subr.mxu0 0.0
        %4748 = vmatpush1.msra.mxu0 0.0
        %4749 = vmatprep.subr.mxu0 0.0
        %4750 = vmatpush1.msra.mxu0 0.0
        %4751 = vmatprep.subr.mxu0 0.0
        %4752 = vmatpush1.msra.mxu0 0.0
        %4753 = vmatprep.subr.mxu0 0.0
        %4754 = vmatpush1.msra.mxu0 %v4721
        %4755 = vmatprep.subr.mxu0 0.0
        %4756 = vmatpush2.msra.mxu0 0.0
        %4757 = vmatprep.subr.mxu0 0.0
        %4758 = vmatpush2.msra.mxu0 0.0
        %4759 = vmatprep.subr.mxu0 0.0
        %4760 = vmatpush2.msra.mxu0 0.0
        %4761 = vmatprep.subr.mxu0 0.0
        %4762 = vmatpush2.msra.mxu0 0.0
        %4763 = vmatprep.subr.mxu0 0.0
        %4764 = vmatpush2.msra.mxu0 0.0
        %4765 = vmatprep.subr.mxu0 0.0
        %4766 = vmatpush2.msra.mxu0 0.0
        %4767 = vmatprep.subr.mxu0 0.0
        %4768 = vmatpush2.msra.mxu0 0.0
        %4769 = vmatprep.subr.mxu0 0.0
        %4770 = vmatpush2.msra.mxu0 0.0
        %4771 = vmatprep.subr.mxu0 0.0
        %4772 = vmatpush2.msra.mxu0 0.0
        %4773 = vmatprep.subr.mxu0 0.0
        %4774 = vmatpush2.msra.mxu0 0.0
        %4775 = vmatprep.subr.mxu0 0.0
        %4776 = vmatpush2.msra.mxu0 0.0
        %4777 = vmatprep.subr.mxu0 0.0
        %4778 = vmatpush2.msra.mxu0 0.0
        %4779 = vmatprep.subr.mxu0 0.0
        %4780 = vmatpush2.msra.mxu0 0.0
        %4781 = vmatprep.subr.mxu0 0.0
        %4782 = vmatpush2.msra.mxu0 0.0
        %4783 = vmatprep.subr.mxu0 0.0
        %4784 = vmatpush2.msra.mxu0 0.0
        %4785 = vmatprep.subr.mxu0 0.0
        %4786 = vmatpush2.msra.mxu0 0.0
        %4787 = vmatprep.mubr.f32.mxu0 0.0
        %4788 = vmatmul.mubr.f32.gmra.mxu0 %v1476
        %v4789 = vpop.f32.mrf.mxu0
        %v4790 = vadd.f32 0.0, %v4789
        %v4791 = vpop.f32.mrf.mxu0
        %4792 = vmatprep.mubr.f32.mxu0 0.0
        %4793 = vmatmul.mubr.f32.gmra.mxu0 %v1479
        %v4794 = vpop.f32.mrf.mxu0
        %v4795 = vadd.f32 0.0, %v4794
        %v4796 = vpop.f32.mrf.mxu0
        %4797 = vmatprep.mubr.f32.mxu0 0.0
        %4798 = vmatmul.mubr.f32.gmra.mxu0 %v1482
        %v4799 = vpop.f32.mrf.mxu0
        %v4800 = vadd.f32 0.0, %v4799
        %v4801 = vpop.f32.mrf.mxu0
        %4802 = vmatprep.mubr.f32.mxu0 0.0
        %4803 = vmatmul.mubr.f32.gmra.mxu0 %v1485
        %v4804 = vpop.f32.mrf.mxu0
        %v4805 = vadd.f32 0.0, %v4804
        %v4806 = vpop.f32.mrf.mxu0
        %4807 = vmatprep.mubr.f32.mxu0 0.0
        %4808 = vmatmul.mubr.f32.gmra.mxu0 %v1488
        %v4809 = vpop.f32.mrf.mxu0
        %v4810 = vadd.f32 0.0, %v4809
        %v4811 = vpop.f32.mrf.mxu0
        %4812 = vmatprep.mubr.f32.mxu0 0.0
        %4813 = vmatmul.mubr.f32.gmra.mxu0 %v1491
        %v4814 = vpop.f32.mrf.mxu0
        %v4815 = vadd.f32 0.0, %v4814
        %v4816 = vpop.f32.mrf.mxu0
        %4817 = vmatprep.mubr.f32.mxu0 0.0
        %4818 = vmatmul.mubr.f32.gmra.mxu0 %v1494
        %v4819 = vpop.f32.mrf.mxu0
        %v4820 = vadd.f32 0.0, %v4819
        %v4821 = vpop.f32.mrf.mxu0
        %4822 = vmatprep.mubr.f32.mxu0 0.0
        %4823 = vmatmul.mubr.f32.gmra.mxu0 %v1497
        %v4824 = vpop.f32.mrf.mxu0
        %v4825 = vadd.f32 0.0, %v4824
        %v4826 = vpop.f32.mrf.mxu0
        %4827 = vmatprep.mubr.f32.mxu0 0.0
        %4828 = vmatmul.mubr.f32.gmra.mxu0 %v1500
        %v4829 = vpop.f32.mrf.mxu0
        %v4830 = vadd.f32 0.0, %v4829
        %v4831 = vpop.f32.mrf.mxu0
        %4832 = vmatprep.mubr.f32.mxu0 0.0
        %4833 = vmatmul.mubr.f32.gmra.mxu0 %v1503
        %v4834 = vpop.f32.mrf.mxu0
        %v4835 = vadd.f32 0.0, %v4834
        %v4836 = vpop.f32.mrf.mxu0
        %4837 = vmatprep.mubr.f32.mxu0 0.0
        %4838 = vmatmul.mubr.f32.gmra.mxu0 %v1506
        %v4839 = vpop.f32.mrf.mxu0
        %v4840 = vadd.f32 0.0, %v4839
        %v4841 = vpop.f32.mrf.mxu0
        %4842 = vmatprep.mubr.f32.mxu0 0.0
        %4843 = vmatmul.mubr.f32.gmra.mxu0 %v1509
        %v4844 = vpop.f32.mrf.mxu0
        %v4845 = vadd.f32 0.0, %v4844
        %v4846 = vpop.f32.mrf.mxu0
        %4847 = vmatprep.mubr.f32.mxu0 0.0
        %4848 = vmatmul.mubr.f32.gmra.mxu0 %v1512
        %v4849 = vpop.f32.mrf.mxu0
        %v4850 = vadd.f32 0.0, %v4849
        %v4851 = vpop.f32.mrf.mxu0
        %4852 = vmatprep.mubr.f32.mxu0 0.0
        %4853 = vmatmul.mubr.f32.gmra.mxu0 %v1515
        %v4854 = vpop.f32.mrf.mxu0
        %v4855 = vadd.f32 0.0, %v4854
        %v4856 = vpop.f32.mrf.mxu0
        %4857 = vmatprep.mubr.f32.mxu0 0.0
        %4858 = vmatmul.mubr.f32.gmra.mxu0 %v1518
        %v4859 = vpop.f32.mrf.mxu0
        %v4860 = vadd.f32 0.0, %v4859
        %v4861 = vpop.f32.mrf.mxu0
        %4862 = vmatprep.mubr.f32.mxu0 0.0
        %4863 = vmatmul.mubr.f32.gmra.mxu0 %v1521
        %v4864 = vpop.f32.mrf.mxu0
        %v4865 = vadd.f32 0.0, %v4864
        %v4866 = vpop.f32.mrf.mxu0
        %4867 = vmatprep.mubr.f32.mxu0 0.0
        %4868 = vmatmul.mubr.f32.gmra.mxu0 %v1524
        %v4869 = vpop.f32.mrf.mxu0
        %v4870 = vadd.f32 0.0, %v4869
        %v4871 = vpop.f32.mrf.mxu0
        %4872 = vmatprep.mubr.f32.mxu0 0.0
        %4873 = vmatmul.mubr.f32.gmra.mxu0 %v1527
        %v4874 = vpop.f32.mrf.mxu0
        %v4875 = vadd.f32 0.0, %v4874
        %v4876 = vpop.f32.mrf.mxu0
        %4877 = vmatprep.mubr.f32.mxu0 0.0
        %4878 = vmatmul.mubr.f32.gmra.mxu0 %v1530
        %v4879 = vpop.f32.mrf.mxu0
        %v4880 = vadd.f32 0.0, %v4879
        %v4881 = vpop.f32.mrf.mxu0
        %4882 = vmatprep.mubr.f32.mxu0 0.0
        %4883 = vmatmul.mubr.f32.gmra.mxu0 %v1533
        %v4884 = vpop.f32.mrf.mxu0
        %v4885 = vadd.f32 0.0, %v4884
        %v4886 = vpop.f32.mrf.mxu0
        %4887 = vmatprep.mubr.f32.mxu0 0.0
        %4888 = vmatmul.mubr.f32.gmra.mxu0 %v1536
        %v4889 = vpop.f32.mrf.mxu0
        %v4890 = vadd.f32 0.0, %v4889
        %v4891 = vpop.f32.mrf.mxu0
        %4892 = vmatprep.mubr.f32.mxu0 0.0
        %4893 = vmatmul.mubr.f32.gmra.mxu0 %v1539
        %v4894 = vpop.f32.mrf.mxu0
        %v4895 = vadd.f32 0.0, %v4894
        %v4896 = vpop.f32.mrf.mxu0
        %4897 = vmatprep.mubr.f32.mxu0 0.0
        %4898 = vmatmul.mubr.f32.gmra.mxu0 %v1542
        %v4899 = vpop.f32.mrf.mxu0
        %v4900 = vadd.f32 0.0, %v4899
        %v4901 = vpop.f32.mrf.mxu0
        %4902 = vmatprep.mubr.f32.mxu0 0.0
        %4903 = vmatmul.mubr.f32.gmra.mxu0 %v1545
        %v4904 = vpop.f32.mrf.mxu0
        %v4905 = vadd.f32 0.0, %v4904
        %v4906 = vpop.f32.mrf.mxu0
        %4907 = vmatprep.mubr.f32.mxu0 0.0
        %4908 = vmatmul.mubr.f32.gmra.mxu0 %v1548
        %v4909 = vpop.f32.mrf.mxu0
        %v4910 = vadd.f32 0.0, %v4909
        %v4911 = vpop.f32.mrf.mxu0
        %4912 = vmatprep.mubr.f32.mxu0 0.0
        %4913 = vmatmul.mubr.f32.gmra.mxu0 %v1551
        %v4914 = vpop.f32.mrf.mxu0
        %v4915 = vadd.f32 0.0, %v4914
        %v4916 = vpop.f32.mrf.mxu0
        %4917 = vmatprep.mubr.f32.mxu0 0.0
        %4918 = vmatmul.mubr.f32.gmra.mxu0 %v1554
        %v4919 = vpop.f32.mrf.mxu0
        %v4920 = vadd.f32 0.0, %v4919
        %v4921 = vpop.f32.mrf.mxu0
        %4922 = vmatprep.mubr.f32.mxu0 0.0
        %4923 = vmatmul.mubr.f32.gmra.mxu0 %v1557
        %v4924 = vpop.f32.mrf.mxu0
        %v4925 = vadd.f32 0.0, %v4924
        %v4926 = vpop.f32.mrf.mxu0
        %4927 = vmatprep.mubr.f32.mxu0 0.0
        %4928 = vmatmul.mubr.f32.gmra.mxu0 %v1560
        %v4929 = vpop.f32.mrf.mxu0
        %v4930 = vadd.f32 0.0, %v4929
        %v4931 = vpop.f32.mrf.mxu0
        %4932 = vmatprep.mubr.f32.mxu0 0.0
        %4933 = vmatmul.mubr.f32.gmra.mxu0 %v1563
        %v4934 = vpop.f32.mrf.mxu0
        %v4935 = vadd.f32 0.0, %v4934
        %v4936 = vpop.f32.mrf.mxu0
        %4937 = vdwg.mxu0
        %4938 = vmatprep.subr.mxu0 0.0
        %4939 = vmatpush1.msra.mxu0 0.0
        %4940 = vmatprep.subr.mxu0 0.0
        %4941 = vmatpush1.msra.mxu0 0.0
        %4942 = vmatprep.subr.mxu0 0.0
        %4943 = vmatpush1.msra.mxu0 0.0
        %4944 = vmatprep.subr.mxu0 0.0
        %4945 = vmatpush1.msra.mxu0 0.0
        %4946 = vmatprep.subr.mxu0 0.0
        %4947 = vmatpush1.msra.mxu0 0.0
        %4948 = vmatprep.subr.mxu0 0.0
        %4949 = vmatpush1.msra.mxu0 0.0
        %4950 = vmatprep.subr.mxu0 0.0
        %4951 = vmatpush1.msra.mxu0 0.0
        %4952 = vmatprep.subr.mxu0 0.0
        %4953 = vmatpush1.msra.mxu0 0.0
        %4954 = vmatprep.subr.mxu0 0.0
        %4955 = vmatpush1.msra.mxu0 0.0
        %4956 = vmatprep.subr.mxu0 0.0
        %4957 = vmatpush1.msra.mxu0 0.0
        %4958 = vmatprep.subr.mxu0 0.0
        %4959 = vmatpush1.msra.mxu0 0.0
        %4960 = vmatprep.subr.mxu0 0.0
        %4961 = vmatpush1.msra.mxu0 0.0
        %4962 = vmatprep.subr.mxu0 0.0
        %4963 = vmatpush1.msra.mxu0 %v4717
        %4964 = vmatprep.subr.mxu0 0.0
        %4965 = vmatpush1.msra.mxu0 %v4716
        %4966 = vmatprep.subr.mxu0 0.0
        %4967 = vmatpush1.msra.mxu0 %v4715
        %4968 = vmatprep.subr.mxu0 0.0
        %4969 = vmatpush1.msra.mxu0 %v4714
        %4970 = vmatprep.subr.mxu0 0.0
        %4971 = vmatpush2.msra.mxu0 0.0
        %4972 = vmatprep.subr.mxu0 0.0
        %4973 = vmatpush2.msra.mxu0 0.0
        %4974 = vmatprep.subr.mxu0 0.0
        %4975 = vmatpush2.msra.mxu0 0.0
        %4976 = vmatprep.subr.mxu0 0.0
        %4977 = vmatpush2.msra.mxu0 0.0
        %4978 = vmatprep.subr.mxu0 0.0
        %4979 = vmatpush2.msra.mxu0 0.0
        %4980 = vmatprep.subr.mxu0 0.0
        %4981 = vmatpush2.msra.mxu0 0.0
        %4982 = vmatprep.subr.mxu0 0.0
        %4983 = vmatpush2.msra.mxu0 0.0
        %4984 = vmatprep.subr.mxu0 0.0
        %4985 = vmatpush2.msra.mxu0 0.0
        %4986 = vmatprep.subr.mxu0 0.0
        %4987 = vmatpush2.msra.mxu0 0.0
        %4988 = vmatprep.subr.mxu0 0.0
        %4989 = vmatpush2.msra.mxu0 0.0
        %4990 = vmatprep.subr.mxu0 0.0
        %4991 = vmatpush2.msra.mxu0 0.0
        %4992 = vmatprep.subr.mxu0 0.0
        %4993 = vmatpush2.msra.mxu0 0.0
        %4994 = vmatprep.subr.mxu0 0.0
        %4995 = vmatpush2.msra.mxu0 0.0
        %4996 = vmatprep.subr.mxu0 0.0
        %4997 = vmatpush2.msra.mxu0 0.0
        %4998 = vmatprep.subr.mxu0 0.0
        %4999 = vmatpush2.msra.mxu0 0.0
        %5000 = vmatprep.subr.mxu0 0.0
        %5001 = vmatpush2.msra.mxu0 0.0
        %5002 = vmatprep.mubr.f32.mxu0 0.0
        %5003 = vmatmul.mubr.f32.gmra.mxu0 %v796
        %v5004 = vpop.f32.mrf.mxu0
        %v5005 = vadd.f32 %v4790, %v5004
        %v5006 = vpop.f32.mrf.mxu0
        %5007 = vmatprep.mubr.f32.mxu0 0.0
        %5008 = vmatmul.mubr.f32.gmra.mxu0 %v799
        %v5009 = vpop.f32.mrf.mxu0
        %v5010 = vadd.f32 %v4795, %v5009
        %v5011 = vpop.f32.mrf.mxu0
        %5012 = vmatprep.mubr.f32.mxu0 0.0
        %5013 = vmatmul.mubr.f32.gmra.mxu0 %v802
        %v5014 = vpop.f32.mrf.mxu0
        %v5015 = vadd.f32 %v4800, %v5014
        %v5016 = vpop.f32.mrf.mxu0
        %5017 = vmatprep.mubr.f32.mxu0 0.0
        %5018 = vmatmul.mubr.f32.gmra.mxu0 %v805
        %v5019 = vpop.f32.mrf.mxu0
        %v5020 = vadd.f32 %v4805, %v5019
        %v5021 = vpop.f32.mrf.mxu0
        %5022 = vmatprep.mubr.f32.mxu0 0.0
        %5023 = vmatmul.mubr.f32.gmra.mxu0 %v808
        %v5024 = vpop.f32.mrf.mxu0
        %v5025 = vadd.f32 %v4810, %v5024
        %v5026 = vpop.f32.mrf.mxu0
        %5027 = vmatprep.mubr.f32.mxu0 0.0
        %5028 = vmatmul.mubr.f32.gmra.mxu0 %v811
        %v5029 = vpop.f32.mrf.mxu0
        %v5030 = vadd.f32 %v4815, %v5029
        %v5031 = vpop.f32.mrf.mxu0
        %5032 = vmatprep.mubr.f32.mxu0 0.0
        %5033 = vmatmul.mubr.f32.gmra.mxu0 %v814
        %v5034 = vpop.f32.mrf.mxu0
        %v5035 = vadd.f32 %v4820, %v5034
        %v5036 = vpop.f32.mrf.mxu0
        %5037 = vmatprep.mubr.f32.mxu0 0.0
        %5038 = vmatmul.mubr.f32.gmra.mxu0 %v817
        %v5039 = vpop.f32.mrf.mxu0
        %v5040 = vadd.f32 %v4825, %v5039
        %v5041 = vpop.f32.mrf.mxu0
        %5042 = vmatprep.mubr.f32.mxu0 0.0
        %5043 = vmatmul.mubr.f32.gmra.mxu0 %v820
        %v5044 = vpop.f32.mrf.mxu0
        %v5045 = vadd.f32 %v4830, %v5044
        %v5046 = vpop.f32.mrf.mxu0
        %5047 = vmatprep.mubr.f32.mxu0 0.0
        %5048 = vmatmul.mubr.f32.gmra.mxu0 %v823
        %v5049 = vpop.f32.mrf.mxu0
        %v5050 = vadd.f32 %v4835, %v5049
        %v5051 = vpop.f32.mrf.mxu0
        %5052 = vmatprep.mubr.f32.mxu0 0.0
        %5053 = vmatmul.mubr.f32.gmra.mxu0 %v826
        %v5054 = vpop.f32.mrf.mxu0
        %v5055 = vadd.f32 %v4840, %v5054
        %v5056 = vpop.f32.mrf.mxu0
        %5057 = vmatprep.mubr.f32.mxu0 0.0
        %5058 = vmatmul.mubr.f32.gmra.mxu0 %v829
        %v5059 = vpop.f32.mrf.mxu0
        %v5060 = vadd.f32 %v4845, %v5059
        %v5061 = vpop.f32.mrf.mxu0
        %5062 = vmatprep.mubr.f32.mxu0 0.0
        %5063 = vmatmul.mubr.f32.gmra.mxu0 %v832
        %v5064 = vpop.f32.mrf.mxu0
        %v5065 = vadd.f32 %v4850, %v5064
        %v5066 = vpop.f32.mrf.mxu0
        %5067 = vmatprep.mubr.f32.mxu0 0.0
        %5068 = vmatmul.mubr.f32.gmra.mxu0 %v835
        %v5069 = vpop.f32.mrf.mxu0
        %v5070 = vadd.f32 %v4855, %v5069
        %v5071 = vpop.f32.mrf.mxu0
        %5072 = vmatprep.mubr.f32.mxu0 0.0
        %5073 = vmatmul.mubr.f32.gmra.mxu0 %v838
        %v5074 = vpop.f32.mrf.mxu0
        %v5075 = vadd.f32 %v4860, %v5074
        %v5076 = vpop.f32.mrf.mxu0
        %5077 = vmatprep.mubr.f32.mxu0 0.0
        %5078 = vmatmul.mubr.f32.gmra.mxu0 %v841
        %v5079 = vpop.f32.mrf.mxu0
        %v5080 = vadd.f32 %v4865, %v5079
        %v5081 = vpop.f32.mrf.mxu0
        %5082 = vmatprep.mubr.f32.mxu0 0.0
        %5083 = vmatmul.mubr.f32.gmra.mxu0 %v844
        %v5084 = vpop.f32.mrf.mxu0
        %v5085 = vadd.f32 %v4870, %v5084
        %v5086 = vpop.f32.mrf.mxu0
        %5087 = vmatprep.mubr.f32.mxu0 0.0
        %5088 = vmatmul.mubr.f32.gmra.mxu0 %v847
        %v5089 = vpop.f32.mrf.mxu0
        %v5090 = vadd.f32 %v4875, %v5089
        %v5091 = vpop.f32.mrf.mxu0
        %5092 = vmatprep.mubr.f32.mxu0 0.0
        %5093 = vmatmul.mubr.f32.gmra.mxu0 %v850
        %v5094 = vpop.f32.mrf.mxu0
        %v5095 = vadd.f32 %v4880, %v5094
        %v5096 = vpop.f32.mrf.mxu0
        %5097 = vmatprep.mubr.f32.mxu0 0.0
        %5098 = vmatmul.mubr.f32.gmra.mxu0 %v853
        %v5099 = vpop.f32.mrf.mxu0
        %v5100 = vadd.f32 %v4885, %v5099
        %v5101 = vpop.f32.mrf.mxu0
        %5102 = vmatprep.mubr.f32.mxu0 0.0
        %5103 = vmatmul.mubr.f32.gmra.mxu0 %v856
        %v5104 = vpop.f32.mrf.mxu0
        %v5105 = vadd.f32 %v4890, %v5104
        %v5106 = vpop.f32.mrf.mxu0
        %5107 = vmatprep.mubr.f32.mxu0 0.0
        %5108 = vmatmul.mubr.f32.gmra.mxu0 %v859
        %v5109 = vpop.f32.mrf.mxu0
        %v5110 = vadd.f32 %v4895, %v5109
        %v5111 = vpop.f32.mrf.mxu0
        %5112 = vmatprep.mubr.f32.mxu0 0.0
        %5113 = vmatmul.mubr.f32.gmra.mxu0 %v862
        %v5114 = vpop.f32.mrf.mxu0
        %v5115 = vadd.f32 %v4900, %v5114
        %v5116 = vpop.f32.mrf.mxu0
        %5117 = vmatprep.mubr.f32.mxu0 0.0
        %5118 = vmatmul.mubr.f32.gmra.mxu0 %v865
        %v5119 = vpop.f32.mrf.mxu0
        %v5120 = vadd.f32 %v4905, %v5119
        %v5121 = vpop.f32.mrf.mxu0
        %5122 = vmatprep.mubr.f32.mxu0 0.0
        %5123 = vmatmul.mubr.f32.gmra.mxu0 %v868
        %v5124 = vpop.f32.mrf.mxu0
        %v5125 = vadd.f32 %v4910, %v5124
        %v5126 = vpop.f32.mrf.mxu0
        %5127 = vmatprep.mubr.f32.mxu0 0.0
        %5128 = vmatmul.mubr.f32.gmra.mxu0 %v871
        %v5129 = vpop.f32.mrf.mxu0
        %v5130 = vadd.f32 %v4915, %v5129
        %v5131 = vpop.f32.mrf.mxu0
        %5132 = vmatprep.mubr.f32.mxu0 0.0
        %5133 = vmatmul.mubr.f32.gmra.mxu0 %v874
        %v5134 = vpop.f32.mrf.mxu0
        %v5135 = vadd.f32 %v4920, %v5134
        %v5136 = vpop.f32.mrf.mxu0
        %5137 = vmatprep.mubr.f32.mxu0 0.0
        %5138 = vmatmul.mubr.f32.gmra.mxu0 %v877
        %v5139 = vpop.f32.mrf.mxu0
        %v5140 = vadd.f32 %v4925, %v5139
        %v5141 = vpop.f32.mrf.mxu0
        %5142 = vmatprep.mubr.f32.mxu0 0.0
        %5143 = vmatmul.mubr.f32.gmra.mxu0 %v880
        %v5144 = vpop.f32.mrf.mxu0
        %v5145 = vadd.f32 %v4930, %v5144
        %v5146 = vpop.f32.mrf.mxu0
        %5147 = vmatprep.mubr.f32.mxu0 0.0
        %5148 = vmatmul.mubr.f32.gmra.mxu0 %v883
        %v5149 = vpop.f32.mrf.mxu0
        %v5150 = vadd.f32 %v4935, %v5149
        %v5151 = vpop.f32.mrf.mxu0
        %5152 = vdwg.mxu0
        %v5153 = vxor.u32 %v5005, 2147483648
        %v5154 = vxor.u32 %v5010, 2147483648
        %v5155 = vxor.u32 %v5015, 2147483648
        %v5156 = vxor.u32 %v5020, 2147483648
        %v5157 = vxor.u32 %v5025, 2147483648
        %v5158 = vxor.u32 %v5030, 2147483648
        %v5159 = vxor.u32 %v5035, 2147483648
        %v5160 = vxor.u32 %v5040, 2147483648
        %v5161 = vxor.u32 %v5045, 2147483648
        %v5162 = vxor.u32 %v5050, 2147483648
        %v5163 = vxor.u32 %v5055, 2147483648
        %v5164 = vxor.u32 %v5060, 2147483648
        %v5165 = vxor.u32 %v5065, 2147483648
        %v5166 = vxor.u32 %v5070, 2147483648
        %v5167 = vxor.u32 %v5075, 2147483648
        %v5168 = vxor.u32 %v5080, 2147483648
        %v5169 = vxor.u32 %v5085, 2147483648
        %v5170 = vxor.u32 %v5090, 2147483648
        %v5171 = vxor.u32 %v5095, 2147483648
        %v5172 = vxor.u32 %v5100, 2147483648
        %v5173 = vxor.u32 %v5105, 2147483648
        %v5174 = vxor.u32 %v5110, 2147483648
        %v5175 = vxor.u32 %v5115, 2147483648
        %v5176 = vxor.u32 %v5120, 2147483648
        %v5177 = vxor.u32 %v5125, 2147483648
        %v5178 = vxor.u32 %v5130, 2147483648
        %v5179 = vxor.u32 %v5135, 2147483648
        %v5180 = vxor.u32 %v5140, 2147483648
        %v5181 = vxor.u32 %v5145, 2147483648
        %v5182 = vxor.u32 %v5150, 2147483648
        %v5183 = vmul.f32 %v5153, 1.442695
        %v5184 = vpow.pop %v5183
        %v5185 = vmul.f32 %v5154, 1.442695
        %v5186 = vpow.pop %v5185
        %v5187 = vmul.f32 %v5155, 1.442695
        %v5188 = vpow.pop %v5187
        %v5189 = vmul.f32 %v5156, 1.442695
        %v5190 = vpow.pop %v5189
        %v5191 = vmul.f32 %v5157, 1.442695
        %v5192 = vpow.pop %v5191
        %v5193 = vmul.f32 %v5158, 1.442695
        %v5194 = vpow.pop %v5193
        %v5195 = vmul.f32 %v5159, 1.442695
        %v5196 = vpow.pop %v5195
        %v5197 = vmul.f32 %v5160, 1.442695
        %v5198 = vpow.pop %v5197
        %v5199 = vmul.f32 %v5161, 1.442695
        %v5200 = vpow.pop %v5199
        %v5201 = vmul.f32 %v5162, 1.442695
        %v5202 = vpow.pop %v5201
        %v5203 = vmul.f32 %v5163, 1.442695
        %v5204 = vpow.pop %v5203
        %v5205 = vmul.f32 %v5164, 1.442695
        %v5206 = vpow.pop %v5205
        %v5207 = vmul.f32 %v5165, 1.442695
        %v5208 = vpow.pop %v5207
        %v5209 = vmul.f32 %v5166, 1.442695
        %v5210 = vpow.pop %v5209
        %v5211 = vmul.f32 %v5167, 1.442695
        %v5212 = vpow.pop %v5211
        %v5213 = vmul.f32 %v5168, 1.442695
        %v5214 = vpow.pop %v5213
        %v5215 = vmul.f32 %v5169, 1.442695
        %v5216 = vpow.pop %v5215
        %v5217 = vmul.f32 %v5170, 1.442695
        %v5218 = vpow.pop %v5217
        %v5219 = vmul.f32 %v5171, 1.442695
        %v5220 = vpow.pop %v5219
        %v5221 = vmul.f32 %v5172, 1.442695
        %v5222 = vpow.pop %v5221
        %v5223 = vmul.f32 %v5173, 1.442695
        %v5224 = vpow.pop %v5223
        %v5225 = vmul.f32 %v5174, 1.442695
        %v5226 = vpow.pop %v5225
        %v5227 = vmul.f32 %v5175, 1.442695
        %v5228 = vpow.pop %v5227
        %v5229 = vmul.f32 %v5176, 1.442695
        %v5230 = vpow.pop %v5229
        %v5231 = vmul.f32 %v5177, 1.442695
        %v5232 = vpow.pop %v5231
        %v5233 = vmul.f32 %v5178, 1.442695
        %v5234 = vpow.pop %v5233
        %v5235 = vmul.f32 %v5179, 1.442695
        %v5236 = vpow.pop %v5235
        %v5237 = vmul.f32 %v5180, 1.442695
        %v5238 = vpow.pop %v5237
        %v5239 = vmul.f32 %v5181, 1.442695
        %v5240 = vpow.pop %v5239
        %v5241 = vmul.f32 %v5182, 1.442695
        %v5242 = vpow.pop %v5241
        %v5243 = vadd.f32 %v5184, 1.0
        %v5244 = vadd.f32 %v5186, 1.0
        %v5245 = vadd.f32 %v5188, 1.0
        %v5246 = vadd.f32 %v5190, 1.0
        %v5247 = vadd.f32 %v5192, 1.0
        %v5248 = vadd.f32 %v5194, 1.0
        %v5249 = vadd.f32 %v5196, 1.0
        %v5250 = vadd.f32 %v5198, 1.0
        %v5251 = vadd.f32 %v5200, 1.0
        %v5252 = vadd.f32 %v5202, 1.0
        %v5253 = vadd.f32 %v5204, 1.0
        %v5254 = vadd.f32 %v5206, 1.0
        %v5255 = vadd.f32 %v5208, 1.0
        %v5256 = vadd.f32 %v5210, 1.0
        %v5257 = vadd.f32 %v5212, 1.0
        %v5258 = vadd.f32 %v5214, 1.0
        %v5259 = vadd.f32 %v5216, 1.0
        %v5260 = vadd.f32 %v5218, 1.0
        %v5261 = vadd.f32 %v5220, 1.0
        %v5262 = vadd.f32 %v5222, 1.0
        %v5263 = vadd.f32 %v5224, 1.0
        %v5264 = vadd.f32 %v5226, 1.0
        %v5265 = vadd.f32 %v5228, 1.0
        %v5266 = vadd.f32 %v5230, 1.0
        %v5267 = vadd.f32 %v5232, 1.0
        %v5268 = vadd.f32 %v5234, 1.0
        %v5269 = vadd.f32 %v5236, 1.0
        %v5270 = vadd.f32 %v5238, 1.0
        %v5271 = vadd.f32 %v5240, 1.0
        %v5272 = vadd.f32 %v5242, 1.0
        %v5273 = vrcp.pop %v5243
        %v5274 = vmul.f32 1.0, %v5273
        %v5275 = vrcp.pop %v5244
        %v5276 = vmul.f32 1.0, %v5275
        %v5277 = vrcp.pop %v5245
        %v5278 = vmul.f32 1.0, %v5277
        %v5279 = vrcp.pop %v5246
        %v5280 = vmul.f32 1.0, %v5279
        %v5281 = vrcp.pop %v5247
        %v5282 = vmul.f32 1.0, %v5281
        %v5283 = vrcp.pop %v5248
        %v5284 = vmul.f32 1.0, %v5283
        %v5285 = vrcp.pop %v5249
        %v5286 = vmul.f32 1.0, %v5285
        %v5287 = vrcp.pop %v5250
        %v5288 = vmul.f32 1.0, %v5287
        %v5289 = vrcp.pop %v5251
        %v5290 = vmul.f32 1.0, %v5289
        %v5291 = vrcp.pop %v5252
        %v5292 = vmul.f32 1.0, %v5291
        %v5293 = vrcp.pop %v5253
        %v5294 = vmul.f32 1.0, %v5293
        %v5295 = vrcp.pop %v5254
        %v5296 = vmul.f32 1.0, %v5295
        %v5297 = vrcp.pop %v5255
        %v5298 = vmul.f32 1.0, %v5297
        %v5299 = vrcp.pop %v5256
        %v5300 = vmul.f32 1.0, %v5299
        %v5301 = vrcp.pop %v5257
        %v5302 = vmul.f32 1.0, %v5301
        %v5303 = vrcp.pop %v5258
        %v5304 = vmul.f32 1.0, %v5303
        %v5305 = vrcp.pop %v5259
        %v5306 = vmul.f32 1.0, %v5305
        %v5307 = vrcp.pop %v5260
        %v5308 = vmul.f32 1.0, %v5307
        %v5309 = vrcp.pop %v5261
        %v5310 = vmul.f32 1.0, %v5309
        %v5311 = vrcp.pop %v5262
        %v5312 = vmul.f32 1.0, %v5311
        %v5313 = vrcp.pop %v5263
        %v5314 = vmul.f32 1.0, %v5313
        %v5315 = vrcp.pop %v5264
        %v5316 = vmul.f32 1.0, %v5315
        %v5317 = vrcp.pop %v5265
        %v5318 = vmul.f32 1.0, %v5317
        %v5319 = vrcp.pop %v5266
        %v5320 = vmul.f32 1.0, %v5319
        %v5321 = vrcp.pop %v5267
        %v5322 = vmul.f32 1.0, %v5321
        %v5323 = vrcp.pop %v5268
        %v5324 = vmul.f32 1.0, %v5323
        %v5325 = vrcp.pop %v5269
        %v5326 = vmul.f32 1.0, %v5325
        %v5327 = vrcp.pop %v5270
        %v5328 = vmul.f32 1.0, %v5327
        %v5329 = vrcp.pop %v5271
        %v5330 = vmul.f32 1.0, %v5329
        %v5331 = vrcp.pop %v5272
        %v5332 = vmul.f32 1.0, %v5331
        %v5333 = vmul.f32 %v5005, %v5274
        %v5334 = vmul.f32 %v5010, %v5276
        %v5335 = vmul.f32 %v5015, %v5278
        %v5336 = vmul.f32 %v5020, %v5280
        %v5337 = vmul.f32 %v5025, %v5282
        %v5338 = vmul.f32 %v5030, %v5284
        %v5339 = vmul.f32 %v5035, %v5286
        %v5340 = vmul.f32 %v5040, %v5288
        %v5341 = vmul.f32 %v5045, %v5290
        %v5342 = vmul.f32 %v5050, %v5292
        %v5343 = vmul.f32 %v5055, %v5294
        %v5344 = vmul.f32 %v5060, %v5296
        %v5345 = vmul.f32 %v5065, %v5298
        %v5346 = vmul.f32 %v5070, %v5300
        %v5347 = vmul.f32 %v5075, %v5302
        %v5348 = vmul.f32 %v5080, %v5304
        %v5349 = vmul.f32 %v5085, %v5306
        %v5350 = vmul.f32 %v5090, %v5308
        %v5351 = vmul.f32 %v5095, %v5310
        %v5352 = vmul.f32 %v5100, %v5312
        %v5353 = vmul.f32 %v5105, %v5314
        %v5354 = vmul.f32 %v5110, %v5316
        %v5355 = vmul.f32 %v5115, %v5318
        %v5356 = vmul.f32 %v5120, %v5320
        %v5357 = vmul.f32 %v5125, %v5322
        %v5358 = vmul.f32 %v5130, %v5324
        %v5359 = vmul.f32 %v5135, %v5326
        %v5360 = vmul.f32 %v5140, %v5328
        %v5361 = vmul.f32 %v5145, %v5330
        %v5362 = vmul.f32 %v5150, %v5332
        %s5363 = scalar_lea.vmem %s9, 64
        %v5364 = vld [vmem:[%s5363] sm:$0xff]
        %v5365 = vld [vmem:[%s5363 + $0x8] sm:$0xff]
        %v5366 = vld [vmem:[%s5363 + $0x10] sm:$0xff]
        %v5367 = vld [vmem:[%s5363 + $0x18] sm:$0xff]
        %s5368 = scalar_lea.vmem %s10, 2
        %v5369 = vld [vmem:[%s5368] sm:$0x1]
        %v5371 = vlaneseq
        %v5372 = vshrl.u32 %v5371, 7
        %v5373 = vsub.s32 0, %v5372
        %v5374 = vrot.slane %v5369, %v5373
        %v5377 = vsel %vm794, %v5333, 0
        %v5380 = vsel %vm794, %v5334, 0
        %v5383 = vsel %vm794, %v5335, 0
        %v5386 = vsel %vm794, %v5336, 0
        %v5389 = vsel %vm794, %v5337, 0
        %v5392 = vsel %vm794, %v5338, 0
        %v5395 = vsel %vm794, %v5339, 0
        %v5398 = vsel %vm794, %v5340, 0
        %v5401 = vsel %vm794, %v5341, 0
        %v5404 = vsel %vm794, %v5342, 0
        %v5407 = vsel %vm794, %v5343, 0
        %v5410 = vsel %vm794, %v5344, 0
        %v5413 = vsel %vm794, %v5345, 0
        %v5416 = vsel %vm794, %v5346, 0
        %v5419 = vsel %vm794, %v5347, 0
        %v5422 = vsel %vm794, %v5348, 0
        %v5425 = vsel %vm794, %v5349, 0
        %v5428 = vsel %vm794, %v5350, 0
        %v5431 = vsel %vm794, %v5351, 0
        %v5434 = vsel %vm794, %v5352, 0
        %v5437 = vsel %vm794, %v5353, 0
        %v5440 = vsel %vm794, %v5354, 0
        %v5443 = vsel %vm794, %v5355, 0
        %v5446 = vsel %vm794, %v5356, 0
        %v5449 = vsel %vm794, %v5357, 0
        %v5452 = vsel %vm794, %v5358, 0
        %v5455 = vsel %vm794, %v5359, 0
        %v5458 = vsel %vm794, %v5360, 0
        %v5461 = vsel %vm794, %v5361, 0
        %v5464 = vsel %vm794, %v5362, 0
        %5466 = vmatprep.subr.mxu0 0.0
        %5467 = vmatpush1.msra.mxu0 0.0
        %5468 = vmatprep.subr.mxu0 0.0
        %5469 = vmatpush1.msra.mxu0 0.0
        %5470 = vmatprep.subr.mxu0 0.0
        %5471 = vmatpush1.msra.mxu0 0.0
        %5472 = vmatprep.subr.mxu0 0.0
        %5473 = vmatpush1.msra.mxu0 0.0
        %5474 = vmatprep.subr.mxu0 0.0
        %5475 = vmatpush1.msra.mxu0 0.0
        %5476 = vmatprep.subr.mxu0 0.0
        %5477 = vmatpush1.msra.mxu0 0.0
        %5478 = vmatprep.subr.mxu0 0.0
        %5479 = vmatpush1.msra.mxu0 0.0
        %5480 = vmatprep.subr.mxu0 0.0
        %5481 = vmatpush1.msra.mxu0 0.0
        %5482 = vmatprep.subr.mxu0 0.0
        %5483 = vmatpush1.msra.mxu0 0.0
        %5484 = vmatprep.subr.mxu0 0.0
        %5485 = vmatpush1.msra.mxu0 0.0
        %5486 = vmatprep.subr.mxu0 0.0
        %5487 = vmatpush1.msra.mxu0 0.0
        %5488 = vmatprep.subr.mxu0 0.0
        %5489 = vmatpush1.msra.mxu0 0.0
        %5490 = vmatprep.subr.mxu0 0.0
        %5491 = vmatpush1.msra.mxu0 %v5367
        %5492 = vmatprep.subr.mxu0 0.0
        %5493 = vmatpush1.msra.mxu0 %v5366
        %5494 = vmatprep.subr.mxu0 0.0
        %5495 = vmatpush1.msra.mxu0 %v5365
        %5496 = vmatprep.subr.mxu0 0.0
        %5497 = vmatpush1.msra.mxu0 %v5364
        %5498 = vmatprep.subr.mxu0 0.0
        %5499 = vmatpush2.msra.mxu0 0.0
        %5500 = vmatprep.subr.mxu0 0.0
        %5501 = vmatpush2.msra.mxu0 0.0
        %5502 = vmatprep.subr.mxu0 0.0
        %5503 = vmatpush2.msra.mxu0 0.0
        %5504 = vmatprep.subr.mxu0 0.0
        %5505 = vmatpush2.msra.mxu0 0.0
        %5506 = vmatprep.subr.mxu0 0.0
        %5507 = vmatpush2.msra.mxu0 0.0
        %5508 = vmatprep.subr.mxu0 0.0
        %5509 = vmatpush2.msra.mxu0 0.0
        %5510 = vmatprep.subr.mxu0 0.0
        %5511 = vmatpush2.msra.mxu0 0.0
        %5512 = vmatprep.subr.mxu0 0.0
        %5513 = vmatpush2.msra.mxu0 0.0
        %5514 = vmatprep.subr.mxu0 0.0
        %5515 = vmatpush2.msra.mxu0 0.0
        %5516 = vmatprep.subr.mxu0 0.0
        %5517 = vmatpush2.msra.mxu0 0.0
        %5518 = vmatprep.subr.mxu0 0.0
        %5519 = vmatpush2.msra.mxu0 0.0
        %5520 = vmatprep.subr.mxu0 0.0
        %5521 = vmatpush2.msra.mxu0 0.0
        %5522 = vmatprep.subr.mxu0 0.0
        %5523 = vmatpush2.msra.mxu0 0.0
        %5524 = vmatprep.subr.mxu0 0.0
        %5525 = vmatpush2.msra.mxu0 0.0
        %5526 = vmatprep.subr.mxu0 0.0
        %5527 = vmatpush2.msra.mxu0 0.0
        %5528 = vmatprep.subr.mxu0 0.0
        %5529 = vmatpush2.msra.mxu0 0.0
        %5530 = vmatprep.mubr.f32.mxu0 0.0
        %5531 = vmatmul.mubr.f32.gmra.mxu0 %v5377
        %v5532 = vpop.f32.mrf.mxu0
        %v5533 = vadd.f32 %v5374, %v5532
        %v5534 = vpop.f32.mrf.mxu0
        %5535 = vmatprep.mubr.f32.mxu0 0.0
        %5536 = vmatmul.mubr.f32.gmra.mxu0 %v5380
        %v5537 = vpop.f32.mrf.mxu0
        %v5538 = vadd.f32 %v5374, %v5537
        %v5539 = vpop.f32.mrf.mxu0
        %5540 = vmatprep.mubr.f32.mxu0 0.0
        %5541 = vmatmul.mubr.f32.gmra.mxu0 %v5383
        %v5542 = vpop.f32.mrf.mxu0
        %v5543 = vadd.f32 %v5374, %v5542
        %v5544 = vpop.f32.mrf.mxu0
        %5545 = vmatprep.mubr.f32.mxu0 0.0
        %5546 = vmatmul.mubr.f32.gmra.mxu0 %v5386
        %v5547 = vpop.f32.mrf.mxu0
        %v5548 = vadd.f32 %v5374, %v5547
        %v5549 = vpop.f32.mrf.mxu0
        %5550 = vmatprep.mubr.f32.mxu0 0.0
        %5551 = vmatmul.mubr.f32.gmra.mxu0 %v5389
        %v5552 = vpop.f32.mrf.mxu0
        %v5553 = vadd.f32 %v5374, %v5552
        %v5554 = vpop.f32.mrf.mxu0
        %5555 = vmatprep.mubr.f32.mxu0 0.0
        %5556 = vmatmul.mubr.f32.gmra.mxu0 %v5392
        %v5557 = vpop.f32.mrf.mxu0
        %v5558 = vadd.f32 %v5374, %v5557
        %v5559 = vpop.f32.mrf.mxu0
        %5560 = vmatprep.mubr.f32.mxu0 0.0
        %5561 = vmatmul.mubr.f32.gmra.mxu0 %v5395
        %v5562 = vpop.f32.mrf.mxu0
        %v5563 = vadd.f32 %v5374, %v5562
        %v5564 = vpop.f32.mrf.mxu0
        %5565 = vmatprep.mubr.f32.mxu0 0.0
        %5566 = vmatmul.mubr.f32.gmra.mxu0 %v5398
        %v5567 = vpop.f32.mrf.mxu0
        %v5568 = vadd.f32 %v5374, %v5567
        %v5569 = vpop.f32.mrf.mxu0
        %5570 = vmatprep.mubr.f32.mxu0 0.0
        %5571 = vmatmul.mubr.f32.gmra.mxu0 %v5401
        %v5572 = vpop.f32.mrf.mxu0
        %v5573 = vadd.f32 %v5374, %v5572
        %v5574 = vpop.f32.mrf.mxu0
        %5575 = vmatprep.mubr.f32.mxu0 0.0
        %5576 = vmatmul.mubr.f32.gmra.mxu0 %v5404
        %v5577 = vpop.f32.mrf.mxu0
        %v5578 = vadd.f32 %v5374, %v5577
        %v5579 = vpop.f32.mrf.mxu0
        %5580 = vmatprep.mubr.f32.mxu0 0.0
        %5581 = vmatmul.mubr.f32.gmra.mxu0 %v5407
        %v5582 = vpop.f32.mrf.mxu0
        %v5583 = vadd.f32 %v5374, %v5582
        %v5584 = vpop.f32.mrf.mxu0
        %5585 = vmatprep.mubr.f32.mxu0 0.0
        %5586 = vmatmul.mubr.f32.gmra.mxu0 %v5410
        %v5587 = vpop.f32.mrf.mxu0
        %v5588 = vadd.f32 %v5374, %v5587
        %v5589 = vpop.f32.mrf.mxu0
        %5590 = vmatprep.mubr.f32.mxu0 0.0
        %5591 = vmatmul.mubr.f32.gmra.mxu0 %v5413
        %v5592 = vpop.f32.mrf.mxu0
        %v5593 = vadd.f32 %v5374, %v5592
        %v5594 = vpop.f32.mrf.mxu0
        %5595 = vmatprep.mubr.f32.mxu0 0.0
        %5596 = vmatmul.mubr.f32.gmra.mxu0 %v5416
        %v5597 = vpop.f32.mrf.mxu0
        %v5598 = vadd.f32 %v5374, %v5597
        %v5599 = vpop.f32.mrf.mxu0
        %5600 = vmatprep.mubr.f32.mxu0 0.0
        %5601 = vmatmul.mubr.f32.gmra.mxu0 %v5419
        %v5602 = vpop.f32.mrf.mxu0
        %v5603 = vadd.f32 %v5374, %v5602
        %v5604 = vpop.f32.mrf.mxu0
        %5605 = vmatprep.mubr.f32.mxu0 0.0
        %5606 = vmatmul.mubr.f32.gmra.mxu0 %v5422
        %v5607 = vpop.f32.mrf.mxu0
        %v5608 = vadd.f32 %v5374, %v5607
        %v5609 = vpop.f32.mrf.mxu0
        %5610 = vmatprep.mubr.f32.mxu0 0.0
        %5611 = vmatmul.mubr.f32.gmra.mxu0 %v5425
        %v5612 = vpop.f32.mrf.mxu0
        %v5613 = vadd.f32 %v5374, %v5612
        %v5614 = vpop.f32.mrf.mxu0
        %5615 = vmatprep.mubr.f32.mxu0 0.0
        %5616 = vmatmul.mubr.f32.gmra.mxu0 %v5428
        %v5617 = vpop.f32.mrf.mxu0
        %v5618 = vadd.f32 %v5374, %v5617
        %v5619 = vpop.f32.mrf.mxu0
        %5620 = vmatprep.mubr.f32.mxu0 0.0
        %5621 = vmatmul.mubr.f32.gmra.mxu0 %v5431
        %v5622 = vpop.f32.mrf.mxu0
        %v5623 = vadd.f32 %v5374, %v5622
        %v5624 = vpop.f32.mrf.mxu0
        %5625 = vmatprep.mubr.f32.mxu0 0.0
        %5626 = vmatmul.mubr.f32.gmra.mxu0 %v5434
        %v5627 = vpop.f32.mrf.mxu0
        %v5628 = vadd.f32 %v5374, %v5627
        %v5629 = vpop.f32.mrf.mxu0
        %5630 = vmatprep.mubr.f32.mxu0 0.0
        %5631 = vmatmul.mubr.f32.gmra.mxu0 %v5437
        %v5632 = vpop.f32.mrf.mxu0
        %v5633 = vadd.f32 %v5374, %v5632
        %v5634 = vpop.f32.mrf.mxu0
        %5635 = vmatprep.mubr.f32.mxu0 0.0
        %5636 = vmatmul.mubr.f32.gmra.mxu0 %v5440
        %v5637 = vpop.f32.mrf.mxu0
        %v5638 = vadd.f32 %v5374, %v5637
        %v5639 = vpop.f32.mrf.mxu0
        %5640 = vmatprep.mubr.f32.mxu0 0.0
        %5641 = vmatmul.mubr.f32.gmra.mxu0 %v5443
        %v5642 = vpop.f32.mrf.mxu0
        %v5643 = vadd.f32 %v5374, %v5642
        %v5644 = vpop.f32.mrf.mxu0
        %5645 = vmatprep.mubr.f32.mxu0 0.0
        %5646 = vmatmul.mubr.f32.gmra.mxu0 %v5446
        %v5647 = vpop.f32.mrf.mxu0
        %v5648 = vadd.f32 %v5374, %v5647
        %v5649 = vpop.f32.mrf.mxu0
        %5650 = vmatprep.mubr.f32.mxu0 0.0
        %5651 = vmatmul.mubr.f32.gmra.mxu0 %v5449
        %v5652 = vpop.f32.mrf.mxu0
        %v5653 = vadd.f32 %v5374, %v5652
        %v5654 = vpop.f32.mrf.mxu0
        %5655 = vmatprep.mubr.f32.mxu0 0.0
        %5656 = vmatmul.mubr.f32.gmra.mxu0 %v5452
        %v5657 = vpop.f32.mrf.mxu0
        %v5658 = vadd.f32 %v5374, %v5657
        %v5659 = vpop.f32.mrf.mxu0
        %5660 = vmatprep.mubr.f32.mxu0 0.0
        %5661 = vmatmul.mubr.f32.gmra.mxu0 %v5455
        %v5662 = vpop.f32.mrf.mxu0
        %v5663 = vadd.f32 %v5374, %v5662
        %v5664 = vpop.f32.mrf.mxu0
        %5665 = vmatprep.mubr.f32.mxu0 0.0
        %5666 = vmatmul.mubr.f32.gmra.mxu0 %v5458
        %v5667 = vpop.f32.mrf.mxu0
        %v5668 = vadd.f32 %v5374, %v5667
        %v5669 = vpop.f32.mrf.mxu0
        %5670 = vmatprep.mubr.f32.mxu0 0.0
        %5671 = vmatmul.mubr.f32.gmra.mxu0 %v5461
        %v5672 = vpop.f32.mrf.mxu0
        %v5673 = vadd.f32 %v5374, %v5672
        %v5674 = vpop.f32.mrf.mxu0
        %5675 = vmatprep.mubr.f32.mxu0 0.0
        %5676 = vmatmul.mubr.f32.gmra.mxu0 %v5464
        %v5677 = vpop.f32.mrf.mxu0
        %v5678 = vadd.f32 %v5374, %v5677
        %v5679 = vpop.f32.mrf.mxu0
        %5680 = vdwg.mxu0
        %v5681 = vxor.u32 %v5533, 2147483648
        %v5682 = vxor.u32 %v5538, 2147483648
        %v5683 = vxor.u32 %v5543, 2147483648
        %v5684 = vxor.u32 %v5548, 2147483648
        %v5685 = vxor.u32 %v5553, 2147483648
        %v5686 = vxor.u32 %v5558, 2147483648
        %v5687 = vxor.u32 %v5563, 2147483648
        %v5688 = vxor.u32 %v5568, 2147483648
        %v5689 = vxor.u32 %v5573, 2147483648
        %v5690 = vxor.u32 %v5578, 2147483648
        %v5691 = vxor.u32 %v5583, 2147483648
        %v5692 = vxor.u32 %v5588, 2147483648
        %v5693 = vxor.u32 %v5593, 2147483648
        %v5694 = vxor.u32 %v5598, 2147483648
        %v5695 = vxor.u32 %v5603, 2147483648
        %v5696 = vxor.u32 %v5608, 2147483648
        %v5697 = vxor.u32 %v5613, 2147483648
        %v5698 = vxor.u32 %v5618, 2147483648
        %v5699 = vxor.u32 %v5623, 2147483648
        %v5700 = vxor.u32 %v5628, 2147483648
        %v5701 = vxor.u32 %v5633, 2147483648
        %v5702 = vxor.u32 %v5638, 2147483648
        %v5703 = vxor.u32 %v5643, 2147483648
        %v5704 = vxor.u32 %v5648, 2147483648
        %v5705 = vxor.u32 %v5653, 2147483648
        %v5706 = vxor.u32 %v5658, 2147483648
        %v5707 = vxor.u32 %v5663, 2147483648
        %v5708 = vxor.u32 %v5668, 2147483648
        %v5709 = vxor.u32 %v5673, 2147483648
        %v5710 = vxor.u32 %v5678, 2147483648
        %v5711 = vmul.f32 %v5681, 1.442695
        %v5712 = vpow.pop %v5711
        %v5713 = vmul.f32 %v5682, 1.442695
        %v5714 = vpow.pop %v5713
        %v5715 = vmul.f32 %v5683, 1.442695
        %v5716 = vpow.pop %v5715
        %v5717 = vmul.f32 %v5684, 1.442695
        %v5718 = vpow.pop %v5717
        %v5719 = vmul.f32 %v5685, 1.442695
        %v5720 = vpow.pop %v5719
        %v5721 = vmul.f32 %v5686, 1.442695
        %v5722 = vpow.pop %v5721
        %v5723 = vmul.f32 %v5687, 1.442695
        %v5724 = vpow.pop %v5723
        %v5725 = vmul.f32 %v5688, 1.442695
        %v5726 = vpow.pop %v5725
        %v5727 = vmul.f32 %v5689, 1.442695
        %v5728 = vpow.pop %v5727
        %v5729 = vmul.f32 %v5690, 1.442695
        %v5730 = vpow.pop %v5729
        %v5731 = vmul.f32 %v5691, 1.442695
        %v5732 = vpow.pop %v5731
        %v5733 = vmul.f32 %v5692, 1.442695
        %v5734 = vpow.pop %v5733
        %v5735 = vmul.f32 %v5693, 1.442695
        %v5736 = vpow.pop %v5735
        %v5737 = vmul.f32 %v5694, 1.442695
        %v5738 = vpow.pop %v5737
        %v5739 = vmul.f32 %v5695, 1.442695
        %v5740 = vpow.pop %v5739
        %v5741 = vmul.f32 %v5696, 1.442695
        %v5742 = vpow.pop %v5741
        %v5743 = vmul.f32 %v5697, 1.442695
        %v5744 = vpow.pop %v5743
        %v5745 = vmul.f32 %v5698, 1.442695
        %v5746 = vpow.pop %v5745
        %v5747 = vmul.f32 %v5699, 1.442695
        %v5748 = vpow.pop %v5747
        %v5749 = vmul.f32 %v5700, 1.442695
        %v5750 = vpow.pop %v5749
        %v5751 = vmul.f32 %v5701, 1.442695
        %v5752 = vpow.pop %v5751
        %v5753 = vmul.f32 %v5702, 1.442695
        %v5754 = vpow.pop %v5753
        %v5755 = vmul.f32 %v5703, 1.442695
        %v5756 = vpow.pop %v5755
        %v5757 = vmul.f32 %v5704, 1.442695
        %v5758 = vpow.pop %v5757
        %v5759 = vmul.f32 %v5705, 1.442695
        %v5760 = vpow.pop %v5759
        %v5761 = vmul.f32 %v5706, 1.442695
        %v5762 = vpow.pop %v5761
        %v5763 = vmul.f32 %v5707, 1.442695
        %v5764 = vpow.pop %v5763
        %v5765 = vmul.f32 %v5708, 1.442695
        %v5766 = vpow.pop %v5765
        %v5767 = vmul.f32 %v5709, 1.442695
        %v5768 = vpow.pop %v5767
        %v5769 = vmul.f32 %v5710, 1.442695
        %v5770 = vpow.pop %v5769
        %v5771 = vadd.f32 %v5712, 1.0
        %v5772 = vadd.f32 %v5714, 1.0
        %v5773 = vadd.f32 %v5716, 1.0
        %v5774 = vadd.f32 %v5718, 1.0
        %v5775 = vadd.f32 %v5720, 1.0
        %v5776 = vadd.f32 %v5722, 1.0
        %v5777 = vadd.f32 %v5724, 1.0
        %v5778 = vadd.f32 %v5726, 1.0
        %v5779 = vadd.f32 %v5728, 1.0
        %v5780 = vadd.f32 %v5730, 1.0
        %v5781 = vadd.f32 %v5732, 1.0
        %v5782 = vadd.f32 %v5734, 1.0
        %v5783 = vadd.f32 %v5736, 1.0
        %v5784 = vadd.f32 %v5738, 1.0
        %v5785 = vadd.f32 %v5740, 1.0
        %v5786 = vadd.f32 %v5742, 1.0
        %v5787 = vadd.f32 %v5744, 1.0
        %v5788 = vadd.f32 %v5746, 1.0
        %v5789 = vadd.f32 %v5748, 1.0
        %v5790 = vadd.f32 %v5750, 1.0
        %v5791 = vadd.f32 %v5752, 1.0
        %v5792 = vadd.f32 %v5754, 1.0
        %v5793 = vadd.f32 %v5756, 1.0
        %v5794 = vadd.f32 %v5758, 1.0
        %v5795 = vadd.f32 %v5760, 1.0
        %v5796 = vadd.f32 %v5762, 1.0
        %v5797 = vadd.f32 %v5764, 1.0
        %v5798 = vadd.f32 %v5766, 1.0
        %v5799 = vadd.f32 %v5768, 1.0
        %v5800 = vadd.f32 %v5770, 1.0
        %v5801 = vrcp.pop %v5771
        %v5802 = vmul.f32 1.0, %v5801
        %v5803 = vrcp.pop %v5772
        %v5804 = vmul.f32 1.0, %v5803
        %v5805 = vrcp.pop %v5773
        %v5806 = vmul.f32 1.0, %v5805
        %v5807 = vrcp.pop %v5774
        %v5808 = vmul.f32 1.0, %v5807
        %v5809 = vrcp.pop %v5775
        %v5810 = vmul.f32 1.0, %v5809
        %v5811 = vrcp.pop %v5776
        %v5812 = vmul.f32 1.0, %v5811
        %v5813 = vrcp.pop %v5777
        %v5814 = vmul.f32 1.0, %v5813
        %v5815 = vrcp.pop %v5778
        %v5816 = vmul.f32 1.0, %v5815
        %v5817 = vrcp.pop %v5779
        %v5818 = vmul.f32 1.0, %v5817
        %v5819 = vrcp.pop %v5780
        %v5820 = vmul.f32 1.0, %v5819
        %v5821 = vrcp.pop %v5781
        %v5822 = vmul.f32 1.0, %v5821
        %v5823 = vrcp.pop %v5782
        %v5824 = vmul.f32 1.0, %v5823
        %v5825 = vrcp.pop %v5783
        %v5826 = vmul.f32 1.0, %v5825
        %v5827 = vrcp.pop %v5784
        %v5828 = vmul.f32 1.0, %v5827
        %v5829 = vrcp.pop %v5785
        %v5830 = vmul.f32 1.0, %v5829
        %v5831 = vrcp.pop %v5786
        %v5832 = vmul.f32 1.0, %v5831
        %v5833 = vrcp.pop %v5787
        %v5834 = vmul.f32 1.0, %v5833
        %v5835 = vrcp.pop %v5788
        %v5836 = vmul.f32 1.0, %v5835
        %v5837 = vrcp.pop %v5789
        %v5838 = vmul.f32 1.0, %v5837
        %v5839 = vrcp.pop %v5790
        %v5840 = vmul.f32 1.0, %v5839
        %v5841 = vrcp.pop %v5791
        %v5842 = vmul.f32 1.0, %v5841
        %v5843 = vrcp.pop %v5792
        %v5844 = vmul.f32 1.0, %v5843
        %v5845 = vrcp.pop %v5793
        %v5846 = vmul.f32 1.0, %v5845
        %v5847 = vrcp.pop %v5794
        %v5848 = vmul.f32 1.0, %v5847
        %v5849 = vrcp.pop %v5795
        %v5850 = vmul.f32 1.0, %v5849
        %v5851 = vrcp.pop %v5796
        %v5852 = vmul.f32 1.0, %v5851
        %v5853 = vrcp.pop %v5797
        %v5854 = vmul.f32 1.0, %v5853
        %v5855 = vrcp.pop %v5798
        %v5856 = vmul.f32 1.0, %v5855
        %v5857 = vrcp.pop %v5799
        %v5858 = vmul.f32 1.0, %v5857
        %v5859 = vrcp.pop %v5800
        %v5860 = vmul.f32 1.0, %v5859
        %v5861 = vmul.f32 %v5533, %v5802
        %v5862 = vmul.f32 %v5538, %v5804
        %v5863 = vmul.f32 %v5543, %v5806
        %v5864 = vmul.f32 %v5548, %v5808
        %v5865 = vmul.f32 %v5553, %v5810
        %v5866 = vmul.f32 %v5558, %v5812
        %v5867 = vmul.f32 %v5563, %v5814
        %v5868 = vmul.f32 %v5568, %v5816
        %v5869 = vmul.f32 %v5573, %v5818
        %v5870 = vmul.f32 %v5578, %v5820
        %v5871 = vmul.f32 %v5583, %v5822
        %v5872 = vmul.f32 %v5588, %v5824
        %v5873 = vmul.f32 %v5593, %v5826
        %v5874 = vmul.f32 %v5598, %v5828
        %v5875 = vmul.f32 %v5603, %v5830
        %v5876 = vmul.f32 %v5608, %v5832
        %v5877 = vmul.f32 %v5613, %v5834
        %v5878 = vmul.f32 %v5618, %v5836
        %v5879 = vmul.f32 %v5623, %v5838
        %v5880 = vmul.f32 %v5628, %v5840
        %v5881 = vmul.f32 %v5633, %v5842
        %v5882 = vmul.f32 %v5638, %v5844
        %v5883 = vmul.f32 %v5643, %v5846
        %v5884 = vmul.f32 %v5648, %v5848
        %v5885 = vmul.f32 %v5653, %v5850
        %v5886 = vmul.f32 %v5658, %v5852
        %v5887 = vmul.f32 %v5663, %v5854
        %v5888 = vmul.f32 %v5668, %v5856
        %v5889 = vmul.f32 %v5673, %v5858
        %v5890 = vmul.f32 %v5678, %v5860
        %5891 = vmatprep.subr.mxu0 0.0
        %5892 = vmatpush1.msra.mxu0 %v5876
        %5893 = vmatprep.subr.mxu0 0.0
        %5894 = vmatpush1.msra.mxu0 %v5875
        %5895 = vmatprep.subr.mxu0 0.0
        %5896 = vmatpush1.msra.mxu0 %v5874
        %5897 = vmatprep.subr.mxu0 0.0
        %5898 = vmatpush1.msra.mxu0 %v5873
        %5899 = vmatprep.subr.mxu0 0.0
        %5900 = vmatpush1.msra.mxu0 %v5872
        %5901 = vmatprep.subr.mxu0 0.0
        %5902 = vmatpush1.msra.mxu0 %v5871
        %5903 = vmatprep.subr.mxu0 0.0
        %5904 = vmatpush1.msra.mxu0 %v5870
        %5905 = vmatprep.subr.mxu0 0.0
        %5906 = vmatpush1.msra.mxu0 %v5869
        %5907 = vmatprep.subr.mxu0 0.0
        %5908 = vmatpush1.msra.mxu0 %v5868
        %5909 = vmatprep.subr.mxu0 0.0
        %5910 = vmatpush1.msra.mxu0 %v5867
        %5911 = vmatprep.subr.mxu0 0.0
        %5912 = vmatpush1.msra.mxu0 %v5866
        %5913 = vmatprep.subr.mxu0 0.0
        %5914 = vmatpush1.msra.mxu0 %v5865
        %5915 = vmatprep.subr.mxu0 0.0
        %5916 = vmatpush1.msra.mxu0 %v5864
        %5917 = vmatprep.subr.mxu0 0.0
        %5918 = vmatpush1.msra.mxu0 %v5863
        %5919 = vmatprep.subr.mxu0 0.0
        %5920 = vmatpush1.msra.mxu0 %v5862
        %5921 = vmatprep.subr.mxu0 0.0
        %5922 = vmatpush1.msra.mxu0 %v5861
        %5923 = vmatprep.subr.mxu0 0.0
        %5924 = vmatpush2.msra.mxu0 0.0
        %5925 = vmatprep.subr.mxu0 0.0
        %5926 = vmatpush2.msra.mxu0 0.0
        %5927 = vmatprep.subr.mxu0 0.0
        %5928 = vmatpush2.msra.mxu0 %v5890
        %5929 = vmatprep.subr.mxu0 0.0
        %5930 = vmatpush2.msra.mxu0 %v5889
        %5931 = vmatprep.subr.mxu0 0.0
        %5932 = vmatpush2.msra.mxu0 %v5888
        %5933 = vmatprep.subr.mxu0 0.0
        %5934 = vmatpush2.msra.mxu0 %v5887
        %5935 = vmatprep.subr.mxu0 0.0
        %5936 = vmatpush2.msra.mxu0 %v5886
        %5937 = vmatprep.subr.mxu0 0.0
        %5938 = vmatpush2.msra.mxu0 %v5885
        %5939 = vmatprep.subr.mxu0 0.0
        %5940 = vmatpush2.msra.mxu0 %v5884
        %5941 = vmatprep.subr.mxu0 0.0
        %5942 = vmatpush2.msra.mxu0 %v5883
        %5943 = vmatprep.subr.mxu0 0.0
        %5944 = vmatpush2.msra.mxu0 %v5882
        %5945 = vmatprep.subr.mxu0 0.0
        %5946 = vmatpush2.msra.mxu0 %v5881
        %5947 = vmatprep.subr.mxu0 0.0
        %5948 = vmatpush2.msra.mxu0 %v5880
        %5949 = vmatprep.subr.mxu0 0.0
        %5950 = vmatpush2.msra.mxu0 %v5879
        %5951 = vmatprep.subr.mxu0 0.0
        %5952 = vmatpush2.msra.mxu0 %v5878
        %5953 = vmatprep.subr.mxu0 0.0
        %5954 = vmatpush2.msra.mxu0 %v5877
        %5955 = vmatprep.mubr.f32.mxu0 %v2737
        %5956 = vmatmul.mubr.f32.gmra.mxu0 %v784
        %v5957 = vpop.f32.mrf.mxu0
        %v5958 = vadd.f32 0.0, %v5957
        %v5959 = vpop.f32.mrf.mxu0
        %5960 = vmatprep.mubr.f32.mxu0 %v2740
        %5961 = vmatmul.mubr.f32.gmra.mxu0 %v786
        %v5962 = vpop.f32.mrf.mxu0
        %v5963 = vadd.f32 0.0, %v5962
        %v5964 = vpop.f32.mrf.mxu0
        %5965 = vdwg.mxu0
        %5968 = vrot.lane.b32.xlu0 %v5958, 32
        %v5969 = vpop.permute.xlu0 %5968
        %5970 = vrot.lane.b32.xlu0 %v5963, 32
        %v5971 = vpop.permute.xlu0 %5970
        %v5974 = vsel %vm794, %v4614, %v5969
        %v5975 = vsel %vm794, %v4615, %v5971
        %v5976 = vsel %vm2833, %v5974, %v2826
        %v5977 = vsel %vm2833, %v5975, %v2828
        %v5978 = vsel %vm2836, %v5976, 1.0
        %v5979 = vsel %vm2836, %v5977, 1.0
        %s5980 = scalar_lea.vmem %s11, 160
        %v5981 = vld [vmem:[%s5980] sm:$0xff]
        %v5982 = vld [vmem:[%s5980 + $0x8] sm:$0xff]
        %v5983 = vld [vmem:[%s5980 + $0x10] sm:$0xff]
        %v5984 = vld [vmem:[%s5980 + $0x18] sm:$0xff]
        %v5985 = vld [vmem:[%s5980 + $0x20] sm:$0xff]
        %v5986 = vld [vmem:[%s5980 + $0x28] sm:$0xff]
        %v5987 = vld [vmem:[%s5980 + $0x30] sm:$0xff]
        %v5988 = vld [vmem:[%s5980 + $0x38] sm:$0xff]
        %v5989 = vld [vmem:[%s5980 + $0x40] sm:$0xff]
        %v5990 = vld [vmem:[%s5980 + $0x48] sm:$0x1]
        %v5992 = vsel %vm2849, %v5978, 0
        %v5995 = vsel %vm2849, %v5979, 0
        %v5998 = vsel %vm2856, %v5990, 0
        %6000 = vmatprep.subr.mxu0 0.0
        %6001 = vmatpush1.msra.mxu0 0.0
        %6002 = vmatprep.subr.mxu0 0.0
        %6003 = vmatpush1.msra.mxu0 0.0
        %6004 = vmatprep.subr.mxu0 0.0
        %6005 = vmatpush1.msra.mxu0 0.0
        %6006 = vmatprep.subr.mxu0 0.0
        %6007 = vmatpush1.msra.mxu0 0.0
        %6008 = vmatprep.subr.mxu0 0.0
        %6009 = vmatpush1.msra.mxu0 0.0
        %6010 = vmatprep.subr.mxu0 0.0
        %6011 = vmatpush1.msra.mxu0 0.0
        %6012 = vmatprep.subr.mxu0 0.0
        %6013 = vmatpush1.msra.mxu0 %v5998
        %6014 = vmatprep.subr.mxu0 0.0
        %6015 = vmatpush1.msra.mxu0 %v5989
        %6016 = vmatprep.subr.mxu0 0.0
        %6017 = vmatpush1.msra.mxu0 %v5988
        %6018 = vmatprep.subr.mxu0 0.0
        %6019 = vmatpush1.msra.mxu0 %v5987
        %6020 = vmatprep.subr.mxu0 0.0
        %6021 = vmatpush1.msra.mxu0 %v5986
        %6022 = vmatprep.subr.mxu0 0.0
        %6023 = vmatpush1.msra.mxu0 %v5985
        %6024 = vmatprep.subr.mxu0 0.0
        %6025 = vmatpush1.msra.mxu0 %v5984
        %6026 = vmatprep.subr.mxu0 0.0
        %6027 = vmatpush1.msra.mxu0 %v5983
        %6028 = vmatprep.subr.mxu0 0.0
        %6029 = vmatpush1.msra.mxu0 %v5982
        %6030 = vmatprep.subr.mxu0 0.0
        %6031 = vmatpush1.msra.mxu0 %v5981
        %6032 = vmatprep.subr.mxu0 0.0
        %6033 = vmatpush2.msra.mxu0 0.0
        %6034 = vmatprep.subr.mxu0 0.0
        %6035 = vmatpush2.msra.mxu0 0.0
        %6036 = vmatprep.subr.mxu0 0.0
        %6037 = vmatpush2.msra.mxu0 0.0
        %6038 = vmatprep.subr.mxu0 0.0
        %6039 = vmatpush2.msra.mxu0 0.0
        %6040 = vmatprep.subr.mxu0 0.0
        %6041 = vmatpush2.msra.mxu0 0.0
        %6042 = vmatprep.subr.mxu0 0.0
        %6043 = vmatpush2.msra.mxu0 0.0
        %6044 = vmatprep.subr.mxu0 0.0
        %6045 = vmatpush2.msra.mxu0 0.0
        %6046 = vmatprep.subr.mxu0 0.0
        %6047 = vmatpush2.msra.mxu0 0.0
        %6048 = vmatprep.subr.mxu0 0.0
        %6049 = vmatpush2.msra.mxu0 0.0
        %6050 = vmatprep.subr.mxu0 0.0
        %6051 = vmatpush2.msra.mxu0 0.0
        %6052 = vmatprep.subr.mxu0 0.0
        %6053 = vmatpush2.msra.mxu0 0.0
        %6054 = vmatprep.subr.mxu0 0.0
        %6055 = vmatpush2.msra.mxu0 0.0
        %6056 = vmatprep.subr.mxu0 0.0
        %6057 = vmatpush2.msra.mxu0 0.0
        %6058 = vmatprep.subr.mxu0 0.0
        %6059 = vmatpush2.msra.mxu0 0.0
        %6060 = vmatprep.subr.mxu0 0.0
        %6061 = vmatpush2.msra.mxu0 0.0
        %6062 = vmatprep.subr.mxu0 0.0
        %6063 = vmatpush2.msra.mxu0 0.0
        %6064 = vmatprep.mubr.f32.mxu0 0.0
        %6065 = vmatmul.mubr.f32.gmra.mxu0 %v5992
        %v6066 = vpop.f32.mrf.mxu0
        %v6067 = vadd.f32 0.0, %v6066
        %v6068 = vpop.f32.mrf.mxu0
        %6069 = vmatprep.mubr.f32.mxu0 0.0
        %6070 = vmatmul.mubr.f32.gmra.mxu0 %v5995
        %v6071 = vpop.f32.mrf.mxu0
        %v6072 = vadd.f32 0.0, %v6071
        %v6073 = vpop.f32.mrf.mxu0
        %6074 = vdwg.mxu0
        %v6075 = vxor.u32 %v6067, 2147483648
        %v6076 = vxor.u32 %v6072, 2147483648
        %v6077 = vmul.f32 %v6075, 1.442695
        %v6078 = vpow.pop %v6077
        %v6079 = vmul.f32 %v6076, 1.442695
        %v6080 = vpow.pop %v6079
        %v6081 = vadd.f32 %v6078, 1.0
        %v6082 = vadd.f32 %v6080, 1.0
        %v6083 = vrcp.pop %v6081
        %v6084 = vmul.f32 1.0, %v6083
        %v6085 = vrcp.pop %v6082
        %v6086 = vmul.f32 1.0, %v6085
        %v6087 = vmul.f32 %v6067, %v6084
        %v6088 = vmul.f32 %v6072, %v6086
        %s6089 = scalar_lea.vmem %s12, 64
        %v6090 = vld [vmem:[%s6089] sm:$0xff]
        %v6091 = vld [vmem:[%s6089 + $0x8] sm:$0xff]
        %v6092 = vld [vmem:[%s6089 + $0x10] sm:$0xff]
        %v6093 = vld [vmem:[%s6089 + $0x18] sm:$0xff]
        %v6095 = vsel %vm794, %v6087, 0
        %v6098 = vsel %vm794, %v6088, 0
        %6100 = vmatprep.subr.mxu0 0.0
        %6101 = vmatpush1.msra.mxu0 0.0
        %6102 = vmatprep.subr.mxu0 0.0
        %6103 = vmatpush1.msra.mxu0 0.0
        %6104 = vmatprep.subr.mxu0 0.0
        %6105 = vmatpush1.msra.mxu0 0.0
        %6106 = vmatprep.subr.mxu0 0.0
        %6107 = vmatpush1.msra.mxu0 0.0
        %6108 = vmatprep.subr.mxu0 0.0
        %6109 = vmatpush1.msra.mxu0 0.0
        %6110 = vmatprep.subr.mxu0 0.0
        %6111 = vmatpush1.msra.mxu0 0.0
        %6112 = vmatprep.subr.mxu0 0.0
        %6113 = vmatpush1.msra.mxu0 0.0
        %6114 = vmatprep.subr.mxu0 0.0
        %6115 = vmatpush1.msra.mxu0 0.0
        %6116 = vmatprep.subr.mxu0 0.0
        %6117 = vmatpush1.msra.mxu0 0.0
        %6118 = vmatprep.subr.mxu0 0.0
        %6119 = vmatpush1.msra.mxu0 0.0
        %6120 = vmatprep.subr.mxu0 0.0
        %6121 = vmatpush1.msra.mxu0 0.0
        %6122 = vmatprep.subr.mxu0 0.0
        %6123 = vmatpush1.msra.mxu0 0.0
        %6124 = vmatprep.subr.mxu0 0.0
        %6125 = vmatpush1.msra.mxu0 %v6093
        %6126 = vmatprep.subr.mxu0 0.0
        %6127 = vmatpush1.msra.mxu0 %v6092
        %6128 = vmatprep.subr.mxu0 0.0
        %6129 = vmatpush1.msra.mxu0 %v6091
        %6130 = vmatprep.subr.mxu0 0.0
        %6131 = vmatpush1.msra.mxu0 %v6090
        %6132 = vmatprep.subr.mxu0 0.0
        %6133 = vmatpush2.msra.mxu0 0.0
        %6134 = vmatprep.subr.mxu0 0.0
        %6135 = vmatpush2.msra.mxu0 0.0
        %6136 = vmatprep.subr.mxu0 0.0
        %6137 = vmatpush2.msra.mxu0 0.0
        %6138 = vmatprep.subr.mxu0 0.0
        %6139 = vmatpush2.msra.mxu0 0.0
        %6140 = vmatprep.subr.mxu0 0.0
        %6141 = vmatpush2.msra.mxu0 0.0
        %6142 = vmatprep.subr.mxu0 0.0
        %6143 = vmatpush2.msra.mxu0 0.0
        %6144 = vmatprep.subr.mxu0 0.0
        %6145 = vmatpush2.msra.mxu0 0.0
        %6146 = vmatprep.subr.mxu0 0.0
        %6147 = vmatpush2.msra.mxu0 0.0
        %6148 = vmatprep.subr.mxu0 0.0
        %6149 = vmatpush2.msra.mxu0 0.0
        %6150 = vmatprep.subr.mxu0 0.0
        %6151 = vmatpush2.msra.mxu0 0.0
        %6152 = vmatprep.subr.mxu0 0.0
        %6153 = vmatpush2.msra.mxu0 0.0
        %6154 = vmatprep.subr.mxu0 0.0
        %6155 = vmatpush2.msra.mxu0 0.0
        %6156 = vmatprep.subr.mxu0 0.0
        %6157 = vmatpush2.msra.mxu0 0.0
        %6158 = vmatprep.subr.mxu0 0.0
        %6159 = vmatpush2.msra.mxu0 0.0
        %6160 = vmatprep.subr.mxu0 0.0
        %6161 = vmatpush2.msra.mxu0 0.0
        %6162 = vmatprep.subr.mxu0 0.0
        %6163 = vmatpush2.msra.mxu0 0.0
        %6164 = vmatprep.mubr.f32.mxu0 0.0
        %6165 = vmatmul.mubr.f32.gmra.mxu0 %v6095
        %v6166 = vpop.f32.mrf.mxu0
        %v6167 = vadd.f32 0.0, %v6166
        %v6168 = vpop.f32.mrf.mxu0
        %6169 = vmatprep.mubr.f32.mxu0 0.0
        %6170 = vmatmul.mubr.f32.gmra.mxu0 %v6098
        %v6171 = vpop.f32.mrf.mxu0
        %v6172 = vadd.f32 0.0, %v6171
        %v6173 = vpop.f32.mrf.mxu0
        %6174 = vdwg.mxu0
        %v6175 = vadd.f32 %v4614, %v6167
        %v6176 = vadd.f32 %v4615, %v6172
        %s6177 = scalar_lea.vmem %s13, 2
        %v6178 = vld [vmem:[%s6177] sm:$0x1]
        %v6180 = vlaneseq
        %v6181 = vshrl.u32 %v6180, 7
        %v6182 = vsub.s32 0, %v6181
        %v6183 = vrot.slane %v6178, %v6182
        %v6185 = vadd.f32 %v6175, %v6183
        %v6186 = vadd.f32 %v6176, %v6183
        %s6187 = scalar_lea.vmem %s7, 96
        %v6188 = vld [vmem:[%s6187] sm:$0xff]
        %v6189 = vld [vmem:[%s6187 + $0x8] sm:$0xff]
        %v6190 = vld [vmem:[%s6187 + $0x10] sm:$0xff]
        %v6191 = vld [vmem:[%s6187 + $0x18] sm:$0xff]
        %v6193 = vsel %vm794, %v6185, 0
        %v6196 = vsel %vm794, %v6186, 0
        %6198 = vmatprep.subr.mxu0 0.0
        %6199 = vmatpush1.msra.mxu0 0.0
        %6200 = vmatprep.subr.mxu0 0.0
        %6201 = vmatpush1.msra.mxu0 0.0
        %6202 = vmatprep.subr.mxu0 0.0
        %6203 = vmatpush1.msra.mxu0 0.0
        %6204 = vmatprep.subr.mxu0 0.0
        %6205 = vmatpush1.msra.mxu0 0.0
        %6206 = vmatprep.subr.mxu0 0.0
        %6207 = vmatpush1.msra.mxu0 0.0
        %6208 = vmatprep.subr.mxu0 0.0
        %6209 = vmatpush1.msra.mxu0 0.0
        %6210 = vmatprep.subr.mxu0 0.0
        %6211 = vmatpush1.msra.mxu0 0.0
        %6212 = vmatprep.subr.mxu0 0.0
        %6213 = vmatpush1.msra.mxu0 0.0
        %6214 = vmatprep.subr.mxu0 0.0
        %6215 = vmatpush1.msra.mxu0 0.0
        %6216 = vmatprep.subr.mxu0 0.0
        %6217 = vmatpush1.msra.mxu0 0.0
        %6218 = vmatprep.subr.mxu0 0.0
        %6219 = vmatpush1.msra.mxu0 0.0
        %6220 = vmatprep.subr.mxu0 0.0
        %6221 = vmatpush1.msra.mxu0 0.0
        %6222 = vmatprep.subr.mxu0 0.0
        %6223 = vmatpush1.msra.mxu0 %v6191
        %6224 = vmatprep.subr.mxu0 0.0
        %6225 = vmatpush1.msra.mxu0 %v6190
        %6226 = vmatprep.subr.mxu0 0.0
        %6227 = vmatpush1.msra.mxu0 %v6189
        %6228 = vmatprep.subr.mxu0 0.0
        %6229 = vmatpush1.msra.mxu0 %v6188
        %6230 = vmatprep.subr.mxu0 0.0
        %6231 = vmatpush2.msra.mxu0 0.0
        %6232 = vmatprep.subr.mxu0 0.0
        %6233 = vmatpush2.msra.mxu0 0.0
        %6234 = vmatprep.subr.mxu0 0.0
        %6235 = vmatpush2.msra.mxu0 0.0
        %6236 = vmatprep.subr.mxu0 0.0
        %6237 = vmatpush2.msra.mxu0 0.0
        %6238 = vmatprep.subr.mxu0 0.0
        %6239 = vmatpush2.msra.mxu0 0.0
        %6240 = vmatprep.subr.mxu0 0.0
        %6241 = vmatpush2.msra.mxu0 0.0
        %6242 = vmatprep.subr.mxu0 0.0
        %6243 = vmatpush2.msra.mxu0 0.0
        %6244 = vmatprep.subr.mxu0 0.0
        %6245 = vmatpush2.msra.mxu0 0.0
        %6246 = vmatprep.subr.mxu0 0.0
        %6247 = vmatpush2.msra.mxu0 0.0
        %6248 = vmatprep.subr.mxu0 0.0
        %6249 = vmatpush2.msra.mxu0 0.0
        %6250 = vmatprep.subr.mxu0 0.0
        %6251 = vmatpush2.msra.mxu0 0.0
        %6252 = vmatprep.subr.mxu0 0.0
        %6253 = vmatpush2.msra.mxu0 0.0
        %6254 = vmatprep.subr.mxu0 0.0
        %6255 = vmatpush2.msra.mxu0 0.0
        %6256 = vmatprep.subr.mxu0 0.0
        %6257 = vmatpush2.msra.mxu0 0.0
        %6258 = vmatprep.subr.mxu0 0.0
        %6259 = vmatpush2.msra.mxu0 0.0
        %6260 = vmatprep.subr.mxu0 0.0
        %6261 = vmatpush2.msra.mxu0 0.0
        %6262 = vmatprep.mubr.f32.mxu0 0.0
        %6263 = vmatmul.mubr.f32.gmra.mxu0 %v6193
        %v6264 = vpop.f32.mrf.mxu0
        %v6265 = vadd.f32 0.0, %v6264
        %v6266 = vpop.f32.mrf.mxu0
        %6267 = vmatprep.mubr.f32.mxu0 0.0
        %6268 = vmatmul.mubr.f32.gmra.mxu0 %v6196
        %v6269 = vpop.f32.mrf.mxu0
        %v6270 = vadd.f32 0.0, %v6269
        %v6271 = vpop.f32.mrf.mxu0
        %6272 = vdwg.mxu0
        %6273 = vst.msk [vmem:[#allocation2] sm:$0xff] %vm794, %v6265
        %6274 = vst.msk [vmem:[#allocation2 + $0x8] sm:$0xff] %vm794, %v6270
        %6277 = vrot.lane.b32.xlu0 %v6265, 96
        %v6278 = vpop.permute.xlu0 %6277
        %6279 = vrot.lane.b32.xlu0 %v6270, 96
        %v6280 = vpop.permute.xlu0 %6279
        %6283 = vst.msk [vmem:[#allocation2 + $0x10] sm:$0xff] %vm794, %v6278
        %6284 = vst.msk [vmem:[#allocation2 + $0x18] sm:$0xff] %vm794, %v6280
        %v6285 = vld [vmem:[#allocation2] sm:$0xff]
        %v6286 = vld [vmem:[#allocation2 + $0x8] sm:$0xff]
        %v6287 = vld [vmem:[#allocation2 + $0x10] sm:$0xff]
        %v6288 = vld [vmem:[#allocation2 + $0x18] sm:$0xff]
        %s6289 = scalar_lea.vmem %s8, 24
        %v6290 = vld [vmem:[%s6289] sm:$0x3f]
        %v6292 = vsel %vm1565, %v6290, 0
        %6294 = vmatprep.subr.mxu0 0.0
        %6295 = vmatpush1.msra.mxu0 0.0
        %6296 = vmatprep.subr.mxu0 0.0
        %6297 = vmatpush1.msra.mxu0 0.0
        %6298 = vmatprep.subr.mxu0 0.0
        %6299 = vmatpush1.msra.mxu0 0.0
        %6300 = vmatprep.subr.mxu0 0.0
        %6301 = vmatpush1.msra.mxu0 0.0
        %6302 = vmatprep.subr.mxu0 0.0
        %6303 = vmatpush1.msra.mxu0 0.0
        %6304 = vmatprep.subr.mxu0 0.0
        %6305 = vmatpush1.msra.mxu0 0.0
        %6306 = vmatprep.subr.mxu0 0.0
        %6307 = vmatpush1.msra.mxu0 0.0
        %6308 = vmatprep.subr.mxu0 0.0
        %6309 = vmatpush1.msra.mxu0 0.0
        %6310 = vmatprep.subr.mxu0 0.0
        %6311 = vmatpush1.msra.mxu0 0.0
        %6312 = vmatprep.subr.mxu0 0.0
        %6313 = vmatpush1.msra.mxu0 0.0
        %6314 = vmatprep.subr.mxu0 0.0
        %6315 = vmatpush1.msra.mxu0 0.0
        %6316 = vmatprep.subr.mxu0 0.0
        %6317 = vmatpush1.msra.mxu0 0.0
        %6318 = vmatprep.subr.mxu0 0.0
        %6319 = vmatpush1.msra.mxu0 0.0
        %6320 = vmatprep.subr.mxu0 0.0
        %6321 = vmatpush1.msra.mxu0 0.0
        %6322 = vmatprep.subr.mxu0 0.0
        %6323 = vmatpush1.msra.mxu0 0.0
        %6324 = vmatprep.subr.mxu0 0.0
        %6325 = vmatpush1.msra.mxu0 %v6292
        %6326 = vmatprep.subr.mxu0 0.0
        %6327 = vmatpush2.msra.mxu0 0.0
        %6328 = vmatprep.subr.mxu0 0.0
        %6329 = vmatpush2.msra.mxu0 0.0
        %6330 = vmatprep.subr.mxu0 0.0
        %6331 = vmatpush2.msra.mxu0 0.0
        %6332 = vmatprep.subr.mxu0 0.0
        %6333 = vmatpush2.msra.mxu0 0.0
        %6334 = vmatprep.subr.mxu0 0.0
        %6335 = vmatpush2.msra.mxu0 0.0
        %6336 = vmatprep.subr.mxu0 0.0
        %6337 = vmatpush2.msra.mxu0 0.0
        %6338 = vmatprep.subr.mxu0 0.0
        %6339 = vmatpush2.msra.mxu0 0.0
        %6340 = vmatprep.subr.mxu0 0.0
        %6341 = vmatpush2.msra.mxu0 0.0
        %6342 = vmatprep.subr.mxu0 0.0
        %6343 = vmatpush2.msra.mxu0 0.0
        %6344 = vmatprep.subr.mxu0 0.0
        %6345 = vmatpush2.msra.mxu0 0.0
        %6346 = vmatprep.subr.mxu0 0.0
        %6347 = vmatpush2.msra.mxu0 0.0
        %6348 = vmatprep.subr.mxu0 0.0
        %6349 = vmatpush2.msra.mxu0 0.0
        %6350 = vmatprep.subr.mxu0 0.0
        %6351 = vmatpush2.msra.mxu0 0.0
        %6352 = vmatprep.subr.mxu0 0.0
        %6353 = vmatpush2.msra.mxu0 0.0
        %6354 = vmatprep.subr.mxu0 0.0
        %6355 = vmatpush2.msra.mxu0 0.0
        %6356 = vmatprep.subr.mxu0 0.0
        %6357 = vmatpush2.msra.mxu0 0.0
        %6358 = vmatprep.mubr.f32.mxu0 0.0
        %6359 = vmatmul.mubr.f32.gmra.mxu0 %v1476
        %v6360 = vpop.f32.mrf.mxu0
        %v6361 = vadd.f32 0.0, %v6360
        %v6362 = vpop.f32.mrf.mxu0
        %6363 = vmatprep.mubr.f32.mxu0 0.0
        %6364 = vmatmul.mubr.f32.gmra.mxu0 %v1479
        %v6365 = vpop.f32.mrf.mxu0
        %v6366 = vadd.f32 0.0, %v6365
        %v6367 = vpop.f32.mrf.mxu0
        %6368 = vmatprep.mubr.f32.mxu0 0.0
        %6369 = vmatmul.mubr.f32.gmra.mxu0 %v1482
        %v6370 = vpop.f32.mrf.mxu0
        %v6371 = vadd.f32 0.0, %v6370
        %v6372 = vpop.f32.mrf.mxu0
        %6373 = vmatprep.mubr.f32.mxu0 0.0
        %6374 = vmatmul.mubr.f32.gmra.mxu0 %v1485
        %v6375 = vpop.f32.mrf.mxu0
        %v6376 = vadd.f32 0.0, %v6375
        %v6377 = vpop.f32.mrf.mxu0
        %6378 = vmatprep.mubr.f32.mxu0 0.0
        %6379 = vmatmul.mubr.f32.gmra.mxu0 %v1488
        %v6380 = vpop.f32.mrf.mxu0
        %v6381 = vadd.f32 0.0, %v6380
        %v6382 = vpop.f32.mrf.mxu0
        %6383 = vmatprep.mubr.f32.mxu0 0.0
        %6384 = vmatmul.mubr.f32.gmra.mxu0 %v1491
        %v6385 = vpop.f32.mrf.mxu0
        %v6386 = vadd.f32 0.0, %v6385
        %v6387 = vpop.f32.mrf.mxu0
        %6388 = vmatprep.mubr.f32.mxu0 0.0
        %6389 = vmatmul.mubr.f32.gmra.mxu0 %v1494
        %v6390 = vpop.f32.mrf.mxu0
        %v6391 = vadd.f32 0.0, %v6390
        %v6392 = vpop.f32.mrf.mxu0
        %6393 = vmatprep.mubr.f32.mxu0 0.0
        %6394 = vmatmul.mubr.f32.gmra.mxu0 %v1497
        %v6395 = vpop.f32.mrf.mxu0
        %v6396 = vadd.f32 0.0, %v6395
        %v6397 = vpop.f32.mrf.mxu0
        %6398 = vmatprep.mubr.f32.mxu0 0.0
        %6399 = vmatmul.mubr.f32.gmra.mxu0 %v1500
        %v6400 = vpop.f32.mrf.mxu0
        %v6401 = vadd.f32 0.0, %v6400
        %v6402 = vpop.f32.mrf.mxu0
        %6403 = vmatprep.mubr.f32.mxu0 0.0
        %6404 = vmatmul.mubr.f32.gmra.mxu0 %v1503
        %v6405 = vpop.f32.mrf.mxu0
        %v6406 = vadd.f32 0.0, %v6405
        %v6407 = vpop.f32.mrf.mxu0
        %6408 = vmatprep.mubr.f32.mxu0 0.0
        %6409 = vmatmul.mubr.f32.gmra.mxu0 %v1506
        %v6410 = vpop.f32.mrf.mxu0
        %v6411 = vadd.f32 0.0, %v6410
        %v6412 = vpop.f32.mrf.mxu0
        %6413 = vmatprep.mubr.f32.mxu0 0.0
        %6414 = vmatmul.mubr.f32.gmra.mxu0 %v1509
        %v6415 = vpop.f32.mrf.mxu0
        %v6416 = vadd.f32 0.0, %v6415
        %v6417 = vpop.f32.mrf.mxu0
        %6418 = vmatprep.mubr.f32.mxu0 0.0
        %6419 = vmatmul.mubr.f32.gmra.mxu0 %v1512
        %v6420 = vpop.f32.mrf.mxu0
        %v6421 = vadd.f32 0.0, %v6420
        %v6422 = vpop.f32.mrf.mxu0
        %6423 = vmatprep.mubr.f32.mxu0 0.0
        %6424 = vmatmul.mubr.f32.gmra.mxu0 %v1515
        %v6425 = vpop.f32.mrf.mxu0
        %v6426 = vadd.f32 0.0, %v6425
        %v6427 = vpop.f32.mrf.mxu0
        %6428 = vmatprep.mubr.f32.mxu0 0.0
        %6429 = vmatmul.mubr.f32.gmra.mxu0 %v1518
        %v6430 = vpop.f32.mrf.mxu0
        %v6431 = vadd.f32 0.0, %v6430
        %v6432 = vpop.f32.mrf.mxu0
        %6433 = vmatprep.mubr.f32.mxu0 0.0
        %6434 = vmatmul.mubr.f32.gmra.mxu0 %v1521
        %v6435 = vpop.f32.mrf.mxu0
        %v6436 = vadd.f32 0.0, %v6435
        %v6437 = vpop.f32.mrf.mxu0
        %6438 = vmatprep.mubr.f32.mxu0 0.0
        %6439 = vmatmul.mubr.f32.gmra.mxu0 %v1524
        %v6440 = vpop.f32.mrf.mxu0
        %v6441 = vadd.f32 0.0, %v6440
        %v6442 = vpop.f32.mrf.mxu0
        %6443 = vmatprep.mubr.f32.mxu0 0.0
        %6444 = vmatmul.mubr.f32.gmra.mxu0 %v1527
        %v6445 = vpop.f32.mrf.mxu0
        %v6446 = vadd.f32 0.0, %v6445
        %v6447 = vpop.f32.mrf.mxu0
        %6448 = vmatprep.mubr.f32.mxu0 0.0
        %6449 = vmatmul.mubr.f32.gmra.mxu0 %v1530
        %v6450 = vpop.f32.mrf.mxu0
        %v6451 = vadd.f32 0.0, %v6450
        %v6452 = vpop.f32.mrf.mxu0
        %6453 = vmatprep.mubr.f32.mxu0 0.0
        %6454 = vmatmul.mubr.f32.gmra.mxu0 %v1533
        %v6455 = vpop.f32.mrf.mxu0
        %v6456 = vadd.f32 0.0, %v6455
        %v6457 = vpop.f32.mrf.mxu0
        %6458 = vmatprep.mubr.f32.mxu0 0.0
        %6459 = vmatmul.mubr.f32.gmra.mxu0 %v1536
        %v6460 = vpop.f32.mrf.mxu0
        %v6461 = vadd.f32 0.0, %v6460
        %v6462 = vpop.f32.mrf.mxu0
        %6463 = vmatprep.mubr.f32.mxu0 0.0
        %6464 = vmatmul.mubr.f32.gmra.mxu0 %v1539
        %v6465 = vpop.f32.mrf.mxu0
        %v6466 = vadd.f32 0.0, %v6465
        %v6467 = vpop.f32.mrf.mxu0
        %6468 = vmatprep.mubr.f32.mxu0 0.0
        %6469 = vmatmul.mubr.f32.gmra.mxu0 %v1542
        %v6470 = vpop.f32.mrf.mxu0
        %v6471 = vadd.f32 0.0, %v6470
        %v6472 = vpop.f32.mrf.mxu0
        %6473 = vmatprep.mubr.f32.mxu0 0.0
        %6474 = vmatmul.mubr.f32.gmra.mxu0 %v1545
        %v6475 = vpop.f32.mrf.mxu0
        %v6476 = vadd.f32 0.0, %v6475
        %v6477 = vpop.f32.mrf.mxu0
        %6478 = vmatprep.mubr.f32.mxu0 0.0
        %6479 = vmatmul.mubr.f32.gmra.mxu0 %v1548
        %v6480 = vpop.f32.mrf.mxu0
        %v6481 = vadd.f32 0.0, %v6480
        %v6482 = vpop.f32.mrf.mxu0
        %6483 = vmatprep.mubr.f32.mxu0 0.0
        %6484 = vmatmul.mubr.f32.gmra.mxu0 %v1551
        %v6485 = vpop.f32.mrf.mxu0
        %v6486 = vadd.f32 0.0, %v6485
        %v6487 = vpop.f32.mrf.mxu0
        %6488 = vmatprep.mubr.f32.mxu0 0.0
        %6489 = vmatmul.mubr.f32.gmra.mxu0 %v1554
        %v6490 = vpop.f32.mrf.mxu0
        %v6491 = vadd.f32 0.0, %v6490
        %v6492 = vpop.f32.mrf.mxu0
        %6493 = vmatprep.mubr.f32.mxu0 0.0
        %6494 = vmatmul.mubr.f32.gmra.mxu0 %v1557
        %v6495 = vpop.f32.mrf.mxu0
        %v6496 = vadd.f32 0.0, %v6495
        %v6497 = vpop.f32.mrf.mxu0
        %6498 = vmatprep.mubr.f32.mxu0 0.0
        %6499 = vmatmul.mubr.f32.gmra.mxu0 %v1560
        %v6500 = vpop.f32.mrf.mxu0
        %v6501 = vadd.f32 0.0, %v6500
        %v6502 = vpop.f32.mrf.mxu0
        %6503 = vmatprep.mubr.f32.mxu0 0.0
        %6504 = vmatmul.mubr.f32.gmra.mxu0 %v1563
        %v6505 = vpop.f32.mrf.mxu0
        %v6506 = vadd.f32 0.0, %v6505
        %v6507 = vpop.f32.mrf.mxu0
        %6508 = vdwg.mxu0
        %6509 = vmatprep.subr.mxu0 0.0
        %6510 = vmatpush1.msra.mxu0 0.0
        %6511 = vmatprep.subr.mxu0 0.0
        %6512 = vmatpush1.msra.mxu0 0.0
        %6513 = vmatprep.subr.mxu0 0.0
        %6514 = vmatpush1.msra.mxu0 0.0
        %6515 = vmatprep.subr.mxu0 0.0
        %6516 = vmatpush1.msra.mxu0 0.0
        %6517 = vmatprep.subr.mxu0 0.0
        %6518 = vmatpush1.msra.mxu0 0.0
        %6519 = vmatprep.subr.mxu0 0.0
        %6520 = vmatpush1.msra.mxu0 0.0
        %6521 = vmatprep.subr.mxu0 0.0
        %6522 = vmatpush1.msra.mxu0 0.0
        %6523 = vmatprep.subr.mxu0 0.0
        %6524 = vmatpush1.msra.mxu0 0.0
        %6525 = vmatprep.subr.mxu0 0.0
        %6526 = vmatpush1.msra.mxu0 0.0
        %6527 = vmatprep.subr.mxu0 0.0
        %6528 = vmatpush1.msra.mxu0 0.0
        %6529 = vmatprep.subr.mxu0 0.0
        %6530 = vmatpush1.msra.mxu0 0.0
        %6531 = vmatprep.subr.mxu0 0.0
        %6532 = vmatpush1.msra.mxu0 0.0
        %6533 = vmatprep.subr.mxu0 0.0
        %6534 = vmatpush1.msra.mxu0 %v6288
        %6535 = vmatprep.subr.mxu0 0.0
        %6536 = vmatpush1.msra.mxu0 %v6287
        %6537 = vmatprep.subr.mxu0 0.0
        %6538 = vmatpush1.msra.mxu0 %v6286
        %6539 = vmatprep.subr.mxu0 0.0
        %6540 = vmatpush1.msra.mxu0 %v6285
        %6541 = vmatprep.subr.mxu0 0.0
        %6542 = vmatpush2.msra.mxu0 0.0
        %6543 = vmatprep.subr.mxu0 0.0
        %6544 = vmatpush2.msra.mxu0 0.0
        %6545 = vmatprep.subr.mxu0 0.0
        %6546 = vmatpush2.msra.mxu0 0.0
        %6547 = vmatprep.subr.mxu0 0.0
        %6548 = vmatpush2.msra.mxu0 0.0
        %6549 = vmatprep.subr.mxu0 0.0
        %6550 = vmatpush2.msra.mxu0 0.0
        %6551 = vmatprep.subr.mxu0 0.0
        %6552 = vmatpush2.msra.mxu0 0.0
        %6553 = vmatprep.subr.mxu0 0.0
        %6554 = vmatpush2.msra.mxu0 0.0
        %6555 = vmatprep.subr.mxu0 0.0
        %6556 = vmatpush2.msra.mxu0 0.0
        %6557 = vmatprep.subr.mxu0 0.0
        %6558 = vmatpush2.msra.mxu0 0.0
        %6559 = vmatprep.subr.mxu0 0.0
        %6560 = vmatpush2.msra.mxu0 0.0
        %6561 = vmatprep.subr.mxu0 0.0
        %6562 = vmatpush2.msra.mxu0 0.0
        %6563 = vmatprep.subr.mxu0 0.0
        %6564 = vmatpush2.msra.mxu0 0.0
        %6565 = vmatprep.subr.mxu0 0.0
        %6566 = vmatpush2.msra.mxu0 0.0
        %6567 = vmatprep.subr.mxu0 0.0
        %6568 = vmatpush2.msra.mxu0 0.0
        %6569 = vmatprep.subr.mxu0 0.0
        %6570 = vmatpush2.msra.mxu0 0.0
        %6571 = vmatprep.subr.mxu0 0.0
        %6572 = vmatpush2.msra.mxu0 0.0
        %6573 = vmatprep.mubr.f32.mxu0 0.0
        %6574 = vmatmul.mubr.f32.gmra.mxu0 %v796
        %v6575 = vpop.f32.mrf.mxu0
        %v6576 = vadd.f32 %v6361, %v6575
        %v6577 = vpop.f32.mrf.mxu0
        %6578 = vmatprep.mubr.f32.mxu0 0.0
        %6579 = vmatmul.mubr.f32.gmra.mxu0 %v799
        %v6580 = vpop.f32.mrf.mxu0
        %v6581 = vadd.f32 %v6366, %v6580
        %v6582 = vpop.f32.mrf.mxu0
        %6583 = vmatprep.mubr.f32.mxu0 0.0
        %6584 = vmatmul.mubr.f32.gmra.mxu0 %v802
        %v6585 = vpop.f32.mrf.mxu0
        %v6586 = vadd.f32 %v6371, %v6585
        %v6587 = vpop.f32.mrf.mxu0
        %6588 = vmatprep.mubr.f32.mxu0 0.0
        %6589 = vmatmul.mubr.f32.gmra.mxu0 %v805
        %v6590 = vpop.f32.mrf.mxu0
        %v6591 = vadd.f32 %v6376, %v6590
        %v6592 = vpop.f32.mrf.mxu0
        %6593 = vmatprep.mubr.f32.mxu0 0.0
        %6594 = vmatmul.mubr.f32.gmra.mxu0 %v808
        %v6595 = vpop.f32.mrf.mxu0
        %v6596 = vadd.f32 %v6381, %v6595
        %v6597 = vpop.f32.mrf.mxu0
        %6598 = vmatprep.mubr.f32.mxu0 0.0
        %6599 = vmatmul.mubr.f32.gmra.mxu0 %v811
        %v6600 = vpop.f32.mrf.mxu0
        %v6601 = vadd.f32 %v6386, %v6600
        %v6602 = vpop.f32.mrf.mxu0
        %6603 = vmatprep.mubr.f32.mxu0 0.0
        %6604 = vmatmul.mubr.f32.gmra.mxu0 %v814
        %v6605 = vpop.f32.mrf.mxu0
        %v6606 = vadd.f32 %v6391, %v6605
        %v6607 = vpop.f32.mrf.mxu0
        %6608 = vmatprep.mubr.f32.mxu0 0.0
        %6609 = vmatmul.mubr.f32.gmra.mxu0 %v817
        %v6610 = vpop.f32.mrf.mxu0
        %v6611 = vadd.f32 %v6396, %v6610
        %v6612 = vpop.f32.mrf.mxu0
        %6613 = vmatprep.mubr.f32.mxu0 0.0
        %6614 = vmatmul.mubr.f32.gmra.mxu0 %v820
        %v6615 = vpop.f32.mrf.mxu0
        %v6616 = vadd.f32 %v6401, %v6615
        %v6617 = vpop.f32.mrf.mxu0
        %6618 = vmatprep.mubr.f32.mxu0 0.0
        %6619 = vmatmul.mubr.f32.gmra.mxu0 %v823
        %v6620 = vpop.f32.mrf.mxu0
        %v6621 = vadd.f32 %v6406, %v6620
        %v6622 = vpop.f32.mrf.mxu0
        %6623 = vmatprep.mubr.f32.mxu0 0.0
        %6624 = vmatmul.mubr.f32.gmra.mxu0 %v826
        %v6625 = vpop.f32.mrf.mxu0
        %v6626 = vadd.f32 %v6411, %v6625
        %v6627 = vpop.f32.mrf.mxu0
        %6628 = vmatprep.mubr.f32.mxu0 0.0
        %6629 = vmatmul.mubr.f32.gmra.mxu0 %v829
        %v6630 = vpop.f32.mrf.mxu0
        %v6631 = vadd.f32 %v6416, %v6630
        %v6632 = vpop.f32.mrf.mxu0
        %6633 = vmatprep.mubr.f32.mxu0 0.0
        %6634 = vmatmul.mubr.f32.gmra.mxu0 %v832
        %v6635 = vpop.f32.mrf.mxu0
        %v6636 = vadd.f32 %v6421, %v6635
        %v6637 = vpop.f32.mrf.mxu0
        %6638 = vmatprep.mubr.f32.mxu0 0.0
        %6639 = vmatmul.mubr.f32.gmra.mxu0 %v835
        %v6640 = vpop.f32.mrf.mxu0
        %v6641 = vadd.f32 %v6426, %v6640
        %v6642 = vpop.f32.mrf.mxu0
        %6643 = vmatprep.mubr.f32.mxu0 0.0
        %6644 = vmatmul.mubr.f32.gmra.mxu0 %v838
        %v6645 = vpop.f32.mrf.mxu0
        %v6646 = vadd.f32 %v6431, %v6645
        %v6647 = vpop.f32.mrf.mxu0
        %6648 = vmatprep.mubr.f32.mxu0 0.0
        %6649 = vmatmul.mubr.f32.gmra.mxu0 %v841
        %v6650 = vpop.f32.mrf.mxu0
        %v6651 = vadd.f32 %v6436, %v6650
        %v6652 = vpop.f32.mrf.mxu0
        %6653 = vmatprep.mubr.f32.mxu0 0.0
        %6654 = vmatmul.mubr.f32.gmra.mxu0 %v844
        %v6655 = vpop.f32.mrf.mxu0
        %v6656 = vadd.f32 %v6441, %v6655
        %v6657 = vpop.f32.mrf.mxu0
        %6658 = vmatprep.mubr.f32.mxu0 0.0
        %6659 = vmatmul.mubr.f32.gmra.mxu0 %v847
        %v6660 = vpop.f32.mrf.mxu0
        %v6661 = vadd.f32 %v6446, %v6660
        %v6662 = vpop.f32.mrf.mxu0
        %6663 = vmatprep.mubr.f32.mxu0 0.0
        %6664 = vmatmul.mubr.f32.gmra.mxu0 %v850
        %v6665 = vpop.f32.mrf.mxu0
        %v6666 = vadd.f32 %v6451, %v6665
        %v6667 = vpop.f32.mrf.mxu0
        %6668 = vmatprep.mubr.f32.mxu0 0.0
        %6669 = vmatmul.mubr.f32.gmra.mxu0 %v853
        %v6670 = vpop.f32.mrf.mxu0
        %v6671 = vadd.f32 %v6456, %v6670
        %v6672 = vpop.f32.mrf.mxu0
        %6673 = vmatprep.mubr.f32.mxu0 0.0
        %6674 = vmatmul.mubr.f32.gmra.mxu0 %v856
        %v6675 = vpop.f32.mrf.mxu0
        %v6676 = vadd.f32 %v6461, %v6675
        %v6677 = vpop.f32.mrf.mxu0
        %6678 = vmatprep.mubr.f32.mxu0 0.0
        %6679 = vmatmul.mubr.f32.gmra.mxu0 %v859
        %v6680 = vpop.f32.mrf.mxu0
        %v6681 = vadd.f32 %v6466, %v6680
        %v6682 = vpop.f32.mrf.mxu0
        %6683 = vmatprep.mubr.f32.mxu0 0.0
        %6684 = vmatmul.mubr.f32.gmra.mxu0 %v862
        %v6685 = vpop.f32.mrf.mxu0
        %v6686 = vadd.f32 %v6471, %v6685
        %v6687 = vpop.f32.mrf.mxu0
        %6688 = vmatprep.mubr.f32.mxu0 0.0
        %6689 = vmatmul.mubr.f32.gmra.mxu0 %v865
        %v6690 = vpop.f32.mrf.mxu0
        %v6691 = vadd.f32 %v6476, %v6690
        %v6692 = vpop.f32.mrf.mxu0
        %6693 = vmatprep.mubr.f32.mxu0 0.0
        %6694 = vmatmul.mubr.f32.gmra.mxu0 %v868
        %v6695 = vpop.f32.mrf.mxu0
        %v6696 = vadd.f32 %v6481, %v6695
        %v6697 = vpop.f32.mrf.mxu0
        %6698 = vmatprep.mubr.f32.mxu0 0.0
        %6699 = vmatmul.mubr.f32.gmra.mxu0 %v871
        %v6700 = vpop.f32.mrf.mxu0
        %v6701 = vadd.f32 %v6486, %v6700
        %v6702 = vpop.f32.mrf.mxu0
        %6703 = vmatprep.mubr.f32.mxu0 0.0
        %6704 = vmatmul.mubr.f32.gmra.mxu0 %v874
        %v6705 = vpop.f32.mrf.mxu0
        %v6706 = vadd.f32 %v6491, %v6705
        %v6707 = vpop.f32.mrf.mxu0
        %6708 = vmatprep.mubr.f32.mxu0 0.0
        %6709 = vmatmul.mubr.f32.gmra.mxu0 %v877
        %v6710 = vpop.f32.mrf.mxu0
        %v6711 = vadd.f32 %v6496, %v6710
        %v6712 = vpop.f32.mrf.mxu0
        %6713 = vmatprep.mubr.f32.mxu0 0.0
        %6714 = vmatmul.mubr.f32.gmra.mxu0 %v880
        %v6715 = vpop.f32.mrf.mxu0
        %v6716 = vadd.f32 %v6501, %v6715
        %v6717 = vpop.f32.mrf.mxu0
        %6718 = vmatprep.mubr.f32.mxu0 0.0
        %6719 = vmatmul.mubr.f32.gmra.mxu0 %v883
        %v6720 = vpop.f32.mrf.mxu0
        %v6721 = vadd.f32 %v6506, %v6720
        %v6722 = vpop.f32.mrf.mxu0
        %6723 = vdwg.mxu0
        %v6724 = vxor.u32 %v6576, 2147483648
        %v6725 = vxor.u32 %v6581, 2147483648
        %v6726 = vxor.u32 %v6586, 2147483648
        %v6727 = vxor.u32 %v6591, 2147483648
        %v6728 = vxor.u32 %v6596, 2147483648
        %v6729 = vxor.u32 %v6601, 2147483648
        %v6730 = vxor.u32 %v6606, 2147483648
        %v6731 = vxor.u32 %v6611, 2147483648
        %v6732 = vxor.u32 %v6616, 2147483648
        %v6733 = vxor.u32 %v6621, 2147483648
        %v6734 = vxor.u32 %v6626, 2147483648
        %v6735 = vxor.u32 %v6631, 2147483648
        %v6736 = vxor.u32 %v6636, 2147483648
        %v6737 = vxor.u32 %v6641, 2147483648
        %v6738 = vxor.u32 %v6646, 2147483648
        %v6739 = vxor.u32 %v6651, 2147483648
        %v6740 = vxor.u32 %v6656, 2147483648
        %v6741 = vxor.u32 %v6661, 2147483648
        %v6742 = vxor.u32 %v6666, 2147483648
        %v6743 = vxor.u32 %v6671, 2147483648
        %v6744 = vxor.u32 %v6676, 2147483648
        %v6745 = vxor.u32 %v6681, 2147483648
        %v6746 = vxor.u32 %v6686, 2147483648
        %v6747 = vxor.u32 %v6691, 2147483648
        %v6748 = vxor.u32 %v6696, 2147483648
        %v6749 = vxor.u32 %v6701, 2147483648
        %v6750 = vxor.u32 %v6706, 2147483648
        %v6751 = vxor.u32 %v6711, 2147483648
        %v6752 = vxor.u32 %v6716, 2147483648
        %v6753 = vxor.u32 %v6721, 2147483648
        %v6754 = vmul.f32 %v6724, 1.442695
        %v6755 = vpow.pop %v6754
        %v6756 = vmul.f32 %v6725, 1.442695
        %v6757 = vpow.pop %v6756
        %v6758 = vmul.f32 %v6726, 1.442695
        %v6759 = vpow.pop %v6758
        %v6760 = vmul.f32 %v6727, 1.442695
        %v6761 = vpow.pop %v6760
        %v6762 = vmul.f32 %v6728, 1.442695
        %v6763 = vpow.pop %v6762
        %v6764 = vmul.f32 %v6729, 1.442695
        %v6765 = vpow.pop %v6764
        %v6766 = vmul.f32 %v6730, 1.442695
        %v6767 = vpow.pop %v6766
        %v6768 = vmul.f32 %v6731, 1.442695
        %v6769 = vpow.pop %v6768
        %v6770 = vmul.f32 %v6732, 1.442695
        %v6771 = vpow.pop %v6770
        %v6772 = vmul.f32 %v6733, 1.442695
        %v6773 = vpow.pop %v6772
        %v6774 = vmul.f32 %v6734, 1.442695
        %v6775 = vpow.pop %v6774
        %v6776 = vmul.f32 %v6735, 1.442695
        %v6777 = vpow.pop %v6776
        %v6778 = vmul.f32 %v6736, 1.442695
        %v6779 = vpow.pop %v6778
        %v6780 = vmul.f32 %v6737, 1.442695
        %v6781 = vpow.pop %v6780
        %v6782 = vmul.f32 %v6738, 1.442695
        %v6783 = vpow.pop %v6782
        %v6784 = vmul.f32 %v6739, 1.442695
        %v6785 = vpow.pop %v6784
        %v6786 = vmul.f32 %v6740, 1.442695
        %v6787 = vpow.pop %v6786
        %v6788 = vmul.f32 %v6741, 1.442695
        %v6789 = vpow.pop %v6788
        %v6790 = vmul.f32 %v6742, 1.442695
        %v6791 = vpow.pop %v6790
        %v6792 = vmul.f32 %v6743, 1.442695
        %v6793 = vpow.pop %v6792
        %v6794 = vmul.f32 %v6744, 1.442695
        %v6795 = vpow.pop %v6794
        %v6796 = vmul.f32 %v6745, 1.442695
        %v6797 = vpow.pop %v6796
        %v6798 = vmul.f32 %v6746, 1.442695
        %v6799 = vpow.pop %v6798
        %v6800 = vmul.f32 %v6747, 1.442695
        %v6801 = vpow.pop %v6800
        %v6802 = vmul.f32 %v6748, 1.442695
        %v6803 = vpow.pop %v6802
        %v6804 = vmul.f32 %v6749, 1.442695
        %v6805 = vpow.pop %v6804
        %v6806 = vmul.f32 %v6750, 1.442695
        %v6807 = vpow.pop %v6806
        %v6808 = vmul.f32 %v6751, 1.442695
        %v6809 = vpow.pop %v6808
        %v6810 = vmul.f32 %v6752, 1.442695
        %v6811 = vpow.pop %v6810
        %v6812 = vmul.f32 %v6753, 1.442695
        %v6813 = vpow.pop %v6812
        %v6814 = vadd.f32 %v6755, 1.0
        %v6815 = vadd.f32 %v6757, 1.0
        %v6816 = vadd.f32 %v6759, 1.0
        %v6817 = vadd.f32 %v6761, 1.0
        %v6818 = vadd.f32 %v6763, 1.0
        %v6819 = vadd.f32 %v6765, 1.0
        %v6820 = vadd.f32 %v6767, 1.0
        %v6821 = vadd.f32 %v6769, 1.0
        %v6822 = vadd.f32 %v6771, 1.0
        %v6823 = vadd.f32 %v6773, 1.0
        %v6824 = vadd.f32 %v6775, 1.0
        %v6825 = vadd.f32 %v6777, 1.0
        %v6826 = vadd.f32 %v6779, 1.0
        %v6827 = vadd.f32 %v6781, 1.0
        %v6828 = vadd.f32 %v6783, 1.0
        %v6829 = vadd.f32 %v6785, 1.0
        %v6830 = vadd.f32 %v6787, 1.0
        %v6831 = vadd.f32 %v6789, 1.0
        %v6832 = vadd.f32 %v6791, 1.0
        %v6833 = vadd.f32 %v6793, 1.0
        %v6834 = vadd.f32 %v6795, 1.0
        %v6835 = vadd.f32 %v6797, 1.0
        %v6836 = vadd.f32 %v6799, 1.0
        %v6837 = vadd.f32 %v6801, 1.0
        %v6838 = vadd.f32 %v6803, 1.0
        %v6839 = vadd.f32 %v6805, 1.0
        %v6840 = vadd.f32 %v6807, 1.0
        %v6841 = vadd.f32 %v6809, 1.0
        %v6842 = vadd.f32 %v6811, 1.0
        %v6843 = vadd.f32 %v6813, 1.0
        %v6844 = vrcp.pop %v6814
        %v6845 = vmul.f32 1.0, %v6844
        %v6846 = vrcp.pop %v6815
        %v6847 = vmul.f32 1.0, %v6846
        %v6848 = vrcp.pop %v6816
        %v6849 = vmul.f32 1.0, %v6848
        %v6850 = vrcp.pop %v6817
        %v6851 = vmul.f32 1.0, %v6850
        %v6852 = vrcp.pop %v6818
        %v6853 = vmul.f32 1.0, %v6852
        %v6854 = vrcp.pop %v6819
        %v6855 = vmul.f32 1.0, %v6854
        %v6856 = vrcp.pop %v6820
        %v6857 = vmul.f32 1.0, %v6856
        %v6858 = vrcp.pop %v6821
        %v6859 = vmul.f32 1.0, %v6858
        %v6860 = vrcp.pop %v6822
        %v6861 = vmul.f32 1.0, %v6860
        %v6862 = vrcp.pop %v6823
        %v6863 = vmul.f32 1.0, %v6862
        %v6864 = vrcp.pop %v6824
        %v6865 = vmul.f32 1.0, %v6864
        %v6866 = vrcp.pop %v6825
        %v6867 = vmul.f32 1.0, %v6866
        %v6868 = vrcp.pop %v6826
        %v6869 = vmul.f32 1.0, %v6868
        %v6870 = vrcp.pop %v6827
        %v6871 = vmul.f32 1.0, %v6870
        %v6872 = vrcp.pop %v6828
        %v6873 = vmul.f32 1.0, %v6872
        %v6874 = vrcp.pop %v6829
        %v6875 = vmul.f32 1.0, %v6874
        %v6876 = vrcp.pop %v6830
        %v6877 = vmul.f32 1.0, %v6876
        %v6878 = vrcp.pop %v6831
        %v6879 = vmul.f32 1.0, %v6878
        %v6880 = vrcp.pop %v6832
        %v6881 = vmul.f32 1.0, %v6880
        %v6882 = vrcp.pop %v6833
        %v6883 = vmul.f32 1.0, %v6882
        %v6884 = vrcp.pop %v6834
        %v6885 = vmul.f32 1.0, %v6884
        %v6886 = vrcp.pop %v6835
        %v6887 = vmul.f32 1.0, %v6886
        %v6888 = vrcp.pop %v6836
        %v6889 = vmul.f32 1.0, %v6888
        %v6890 = vrcp.pop %v6837
        %v6891 = vmul.f32 1.0, %v6890
        %v6892 = vrcp.pop %v6838
        %v6893 = vmul.f32 1.0, %v6892
        %v6894 = vrcp.pop %v6839
        %v6895 = vmul.f32 1.0, %v6894
        %v6896 = vrcp.pop %v6840
        %v6897 = vmul.f32 1.0, %v6896
        %v6898 = vrcp.pop %v6841
        %v6899 = vmul.f32 1.0, %v6898
        %v6900 = vrcp.pop %v6842
        %v6901 = vmul.f32 1.0, %v6900
        %v6902 = vrcp.pop %v6843
        %v6903 = vmul.f32 1.0, %v6902
        %v6904 = vmul.f32 %v6576, %v6845
        %v6905 = vmul.f32 %v6581, %v6847
        %v6906 = vmul.f32 %v6586, %v6849
        %v6907 = vmul.f32 %v6591, %v6851
        %v6908 = vmul.f32 %v6596, %v6853
        %v6909 = vmul.f32 %v6601, %v6855
        %v6910 = vmul.f32 %v6606, %v6857
        %v6911 = vmul.f32 %v6611, %v6859
        %v6912 = vmul.f32 %v6616, %v6861
        %v6913 = vmul.f32 %v6621, %v6863
        %v6914 = vmul.f32 %v6626, %v6865
        %v6915 = vmul.f32 %v6631, %v6867
        %v6916 = vmul.f32 %v6636, %v6869
        %v6917 = vmul.f32 %v6641, %v6871
        %v6918 = vmul.f32 %v6646, %v6873
        %v6919 = vmul.f32 %v6651, %v6875
        %v6920 = vmul.f32 %v6656, %v6877
        %v6921 = vmul.f32 %v6661, %v6879
        %v6922 = vmul.f32 %v6666, %v6881
        %v6923 = vmul.f32 %v6671, %v6883
        %v6924 = vmul.f32 %v6676, %v6885
        %v6925 = vmul.f32 %v6681, %v6887
        %v6926 = vmul.f32 %v6686, %v6889
        %v6927 = vmul.f32 %v6691, %v6891
        %v6928 = vmul.f32 %v6696, %v6893
        %v6929 = vmul.f32 %v6701, %v6895
        %v6930 = vmul.f32 %v6706, %v6897
        %v6931 = vmul.f32 %v6711, %v6899
        %v6932 = vmul.f32 %v6716, %v6901
        %v6933 = vmul.f32 %v6721, %v6903
        %s6934 = scalar_lea.vmem %s9, 96
        %v6935 = vld [vmem:[%s6934] sm:$0xff]
        %v6936 = vld [vmem:[%s6934 + $0x8] sm:$0xff]
        %v6937 = vld [vmem:[%s6934 + $0x10] sm:$0xff]
        %v6938 = vld [vmem:[%s6934 + $0x18] sm:$0xff]
        %s6939 = scalar_lea.vmem %s10, 3
        %v6940 = vld [vmem:[%s6939] sm:$0x1]
        %v6942 = vlaneseq
        %v6943 = vshrl.u32 %v6942, 7
        %v6944 = vsub.s32 0, %v6943
        %v6945 = vrot.slane %v6940, %v6944
        %v6948 = vsel %vm794, %v6904, 0
        %v6951 = vsel %vm794, %v6905, 0
        %v6954 = vsel %vm794, %v6906, 0
        %v6957 = vsel %vm794, %v6907, 0
        %v6960 = vsel %vm794, %v6908, 0
        %v6963 = vsel %vm794, %v6909, 0
        %v6966 = vsel %vm794, %v6910, 0
        %v6969 = vsel %vm794, %v6911, 0
        %v6972 = vsel %vm794, %v6912, 0
        %v6975 = vsel %vm794, %v6913, 0
        %v6978 = vsel %vm794, %v6914, 0
        %v6981 = vsel %vm794, %v6915, 0
        %v6984 = vsel %vm794, %v6916, 0
        %v6987 = vsel %vm794, %v6917, 0
        %v6990 = vsel %vm794, %v6918, 0
        %v6993 = vsel %vm794, %v6919, 0
        %v6996 = vsel %vm794, %v6920, 0
        %v6999 = vsel %vm794, %v6921, 0
        %v7002 = vsel %vm794, %v6922, 0
        %v7005 = vsel %vm794, %v6923, 0
        %v7008 = vsel %vm794, %v6924, 0
        %v7011 = vsel %vm794, %v6925, 0
        %v7014 = vsel %vm794, %v6926, 0
        %v7017 = vsel %vm794, %v6927, 0
        %v7020 = vsel %vm794, %v6928, 0
        %v7023 = vsel %vm794, %v6929, 0
        %v7026 = vsel %vm794, %v6930, 0
        %v7029 = vsel %vm794, %v6931, 0
        %v7032 = vsel %vm794, %v6932, 0
        %v7035 = vsel %vm794, %v6933, 0
        %7037 = vmatprep.subr.mxu0 0.0
        %7038 = vmatpush1.msra.mxu0 0.0
        %7039 = vmatprep.subr.mxu0 0.0
        %7040 = vmatpush1.msra.mxu0 0.0
        %7041 = vmatprep.subr.mxu0 0.0
        %7042 = vmatpush1.msra.mxu0 0.0
        %7043 = vmatprep.subr.mxu0 0.0
        %7044 = vmatpush1.msra.mxu0 0.0
        %7045 = vmatprep.subr.mxu0 0.0
        %7046 = vmatpush1.msra.mxu0 0.0
        %7047 = vmatprep.subr.mxu0 0.0
        %7048 = vmatpush1.msra.mxu0 0.0
        %7049 = vmatprep.subr.mxu0 0.0
        %7050 = vmatpush1.msra.mxu0 0.0
        %7051 = vmatprep.subr.mxu0 0.0
        %7052 = vmatpush1.msra.mxu0 0.0
        %7053 = vmatprep.subr.mxu0 0.0
        %7054 = vmatpush1.msra.mxu0 0.0
        %7055 = vmatprep.subr.mxu0 0.0
        %7056 = vmatpush1.msra.mxu0 0.0
        %7057 = vmatprep.subr.mxu0 0.0
        %7058 = vmatpush1.msra.mxu0 0.0
        %7059 = vmatprep.subr.mxu0 0.0
        %7060 = vmatpush1.msra.mxu0 0.0
        %7061 = vmatprep.subr.mxu0 0.0
        %7062 = vmatpush1.msra.mxu0 %v6938
        %7063 = vmatprep.subr.mxu0 0.0
        %7064 = vmatpush1.msra.mxu0 %v6937
        %7065 = vmatprep.subr.mxu0 0.0
        %7066 = vmatpush1.msra.mxu0 %v6936
        %7067 = vmatprep.subr.mxu0 0.0
        %7068 = vmatpush1.msra.mxu0 %v6935
        %7069 = vmatprep.subr.mxu0 0.0
        %7070 = vmatpush2.msra.mxu0 0.0
        %7071 = vmatprep.subr.mxu0 0.0
        %7072 = vmatpush2.msra.mxu0 0.0
        %7073 = vmatprep.subr.mxu0 0.0
        %7074 = vmatpush2.msra.mxu0 0.0
        %7075 = vmatprep.subr.mxu0 0.0
        %7076 = vmatpush2.msra.mxu0 0.0
        %7077 = vmatprep.subr.mxu0 0.0
        %7078 = vmatpush2.msra.mxu0 0.0
        %7079 = vmatprep.subr.mxu0 0.0
        %7080 = vmatpush2.msra.mxu0 0.0
        %7081 = vmatprep.subr.mxu0 0.0
        %7082 = vmatpush2.msra.mxu0 0.0
        %7083 = vmatprep.subr.mxu0 0.0
        %7084 = vmatpush2.msra.mxu0 0.0
        %7085 = vmatprep.subr.mxu0 0.0
        %7086 = vmatpush2.msra.mxu0 0.0
        %7087 = vmatprep.subr.mxu0 0.0
        %7088 = vmatpush2.msra.mxu0 0.0
        %7089 = vmatprep.subr.mxu0 0.0
        %7090 = vmatpush2.msra.mxu0 0.0
        %7091 = vmatprep.subr.mxu0 0.0
        %7092 = vmatpush2.msra.mxu0 0.0
        %7093 = vmatprep.subr.mxu0 0.0
        %7094 = vmatpush2.msra.mxu0 0.0
        %7095 = vmatprep.subr.mxu0 0.0
        %7096 = vmatpush2.msra.mxu0 0.0
        %7097 = vmatprep.subr.mxu0 0.0
        %7098 = vmatpush2.msra.mxu0 0.0
        %7099 = vmatprep.subr.mxu0 0.0
        %7100 = vmatpush2.msra.mxu0 0.0
        %7101 = vmatprep.mubr.f32.mxu0 0.0
        %7102 = vmatmul.mubr.f32.gmra.mxu0 %v6948
        %v7103 = vpop.f32.mrf.mxu0
        %v7104 = vadd.f32 %v6945, %v7103
        %v7105 = vpop.f32.mrf.mxu0
        %7106 = vmatprep.mubr.f32.mxu0 0.0
        %7107 = vmatmul.mubr.f32.gmra.mxu0 %v6951
        %v7108 = vpop.f32.mrf.mxu0
        %v7109 = vadd.f32 %v6945, %v7108
        %v7110 = vpop.f32.mrf.mxu0
        %7111 = vmatprep.mubr.f32.mxu0 0.0
        %7112 = vmatmul.mubr.f32.gmra.mxu0 %v6954
        %v7113 = vpop.f32.mrf.mxu0
        %v7114 = vadd.f32 %v6945, %v7113
        %v7115 = vpop.f32.mrf.mxu0
        %7116 = vmatprep.mubr.f32.mxu0 0.0
        %7117 = vmatmul.mubr.f32.gmra.mxu0 %v6957
        %v7118 = vpop.f32.mrf.mxu0
        %v7119 = vadd.f32 %v6945, %v7118
        %v7120 = vpop.f32.mrf.mxu0
        %7121 = vmatprep.mubr.f32.mxu0 0.0
        %7122 = vmatmul.mubr.f32.gmra.mxu0 %v6960
        %v7123 = vpop.f32.mrf.mxu0
        %v7124 = vadd.f32 %v6945, %v7123
        %v7125 = vpop.f32.mrf.mxu0
        %7126 = vmatprep.mubr.f32.mxu0 0.0
        %7127 = vmatmul.mubr.f32.gmra.mxu0 %v6963
        %v7128 = vpop.f32.mrf.mxu0
        %v7129 = vadd.f32 %v6945, %v7128
        %v7130 = vpop.f32.mrf.mxu0
        %7131 = vmatprep.mubr.f32.mxu0 0.0
        %7132 = vmatmul.mubr.f32.gmra.mxu0 %v6966
        %v7133 = vpop.f32.mrf.mxu0
        %v7134 = vadd.f32 %v6945, %v7133
        %v7135 = vpop.f32.mrf.mxu0
        %7136 = vmatprep.mubr.f32.mxu0 0.0
        %7137 = vmatmul.mubr.f32.gmra.mxu0 %v6969
        %v7138 = vpop.f32.mrf.mxu0
        %v7139 = vadd.f32 %v6945, %v7138
        %v7140 = vpop.f32.mrf.mxu0
        %7141 = vmatprep.mubr.f32.mxu0 0.0
        %7142 = vmatmul.mubr.f32.gmra.mxu0 %v6972
        %v7143 = vpop.f32.mrf.mxu0
        %v7144 = vadd.f32 %v6945, %v7143
        %v7145 = vpop.f32.mrf.mxu0
        %7146 = vmatprep.mubr.f32.mxu0 0.0
        %7147 = vmatmul.mubr.f32.gmra.mxu0 %v6975
        %v7148 = vpop.f32.mrf.mxu0
        %v7149 = vadd.f32 %v6945, %v7148
        %v7150 = vpop.f32.mrf.mxu0
        %7151 = vmatprep.mubr.f32.mxu0 0.0
        %7152 = vmatmul.mubr.f32.gmra.mxu0 %v6978
        %v7153 = vpop.f32.mrf.mxu0
        %v7154 = vadd.f32 %v6945, %v7153
        %v7155 = vpop.f32.mrf.mxu0
        %7156 = vmatprep.mubr.f32.mxu0 0.0
        %7157 = vmatmul.mubr.f32.gmra.mxu0 %v6981
        %v7158 = vpop.f32.mrf.mxu0
        %v7159 = vadd.f32 %v6945, %v7158
        %v7160 = vpop.f32.mrf.mxu0
        %7161 = vmatprep.mubr.f32.mxu0 0.0
        %7162 = vmatmul.mubr.f32.gmra.mxu0 %v6984
        %v7163 = vpop.f32.mrf.mxu0
        %v7164 = vadd.f32 %v6945, %v7163
        %v7165 = vpop.f32.mrf.mxu0
        %7166 = vmatprep.mubr.f32.mxu0 0.0
        %7167 = vmatmul.mubr.f32.gmra.mxu0 %v6987
        %v7168 = vpop.f32.mrf.mxu0
        %v7169 = vadd.f32 %v6945, %v7168
        %v7170 = vpop.f32.mrf.mxu0
        %7171 = vmatprep.mubr.f32.mxu0 0.0
        %7172 = vmatmul.mubr.f32.gmra.mxu0 %v6990
        %v7173 = vpop.f32.mrf.mxu0
        %v7174 = vadd.f32 %v6945, %v7173
        %v7175 = vpop.f32.mrf.mxu0
        %7176 = vmatprep.mubr.f32.mxu0 0.0
        %7177 = vmatmul.mubr.f32.gmra.mxu0 %v6993
        %v7178 = vpop.f32.mrf.mxu0
        %v7179 = vadd.f32 %v6945, %v7178
        %v7180 = vpop.f32.mrf.mxu0
        %7181 = vmatprep.mubr.f32.mxu0 0.0
        %7182 = vmatmul.mubr.f32.gmra.mxu0 %v6996
        %v7183 = vpop.f32.mrf.mxu0
        %v7184 = vadd.f32 %v6945, %v7183
        %v7185 = vpop.f32.mrf.mxu0
        %7186 = vmatprep.mubr.f32.mxu0 0.0
        %7187 = vmatmul.mubr.f32.gmra.mxu0 %v6999
        %v7188 = vpop.f32.mrf.mxu0
        %v7189 = vadd.f32 %v6945, %v7188
        %v7190 = vpop.f32.mrf.mxu0
        %7191 = vmatprep.mubr.f32.mxu0 0.0
        %7192 = vmatmul.mubr.f32.gmra.mxu0 %v7002
        %v7193 = vpop.f32.mrf.mxu0
        %v7194 = vadd.f32 %v6945, %v7193
        %v7195 = vpop.f32.mrf.mxu0
        %7196 = vmatprep.mubr.f32.mxu0 0.0
        %7197 = vmatmul.mubr.f32.gmra.mxu0 %v7005
        %v7198 = vpop.f32.mrf.mxu0
        %v7199 = vadd.f32 %v6945, %v7198
        %v7200 = vpop.f32.mrf.mxu0
        %7201 = vmatprep.mubr.f32.mxu0 0.0
        %7202 = vmatmul.mubr.f32.gmra.mxu0 %v7008
        %v7203 = vpop.f32.mrf.mxu0
        %v7204 = vadd.f32 %v6945, %v7203
        %v7205 = vpop.f32.mrf.mxu0
        %7206 = vmatprep.mubr.f32.mxu0 0.0
        %7207 = vmatmul.mubr.f32.gmra.mxu0 %v7011
        %v7208 = vpop.f32.mrf.mxu0
        %v7209 = vadd.f32 %v6945, %v7208
        %v7210 = vpop.f32.mrf.mxu0
        %7211 = vmatprep.mubr.f32.mxu0 0.0
        %7212 = vmatmul.mubr.f32.gmra.mxu0 %v7014
        %v7213 = vpop.f32.mrf.mxu0
        %v7214 = vadd.f32 %v6945, %v7213
        %v7215 = vpop.f32.mrf.mxu0
        %7216 = vmatprep.mubr.f32.mxu0 0.0
        %7217 = vmatmul.mubr.f32.gmra.mxu0 %v7017
        %v7218 = vpop.f32.mrf.mxu0
        %v7219 = vadd.f32 %v6945, %v7218
        %v7220 = vpop.f32.mrf.mxu0
        %7221 = vmatprep.mubr.f32.mxu0 0.0
        %7222 = vmatmul.mubr.f32.gmra.mxu0 %v7020
        %v7223 = vpop.f32.mrf.mxu0
        %v7224 = vadd.f32 %v6945, %v7223
        %v7225 = vpop.f32.mrf.mxu0
        %7226 = vmatprep.mubr.f32.mxu0 0.0
        %7227 = vmatmul.mubr.f32.gmra.mxu0 %v7023
        %v7228 = vpop.f32.mrf.mxu0
        %v7229 = vadd.f32 %v6945, %v7228
        %v7230 = vpop.f32.mrf.mxu0
        %7231 = vmatprep.mubr.f32.mxu0 0.0
        %7232 = vmatmul.mubr.f32.gmra.mxu0 %v7026
        %v7233 = vpop.f32.mrf.mxu0
        %v7234 = vadd.f32 %v6945, %v7233
        %v7235 = vpop.f32.mrf.mxu0
        %7236 = vmatprep.mubr.f32.mxu0 0.0
        %7237 = vmatmul.mubr.f32.gmra.mxu0 %v7029
        %v7238 = vpop.f32.mrf.mxu0
        %v7239 = vadd.f32 %v6945, %v7238
        %v7240 = vpop.f32.mrf.mxu0
        %7241 = vmatprep.mubr.f32.mxu0 0.0
        %7242 = vmatmul.mubr.f32.gmra.mxu0 %v7032
        %v7243 = vpop.f32.mrf.mxu0
        %v7244 = vadd.f32 %v6945, %v7243
        %v7245 = vpop.f32.mrf.mxu0
        %7246 = vmatprep.mubr.f32.mxu0 0.0
        %7247 = vmatmul.mubr.f32.gmra.mxu0 %v7035
        %v7248 = vpop.f32.mrf.mxu0
        %v7249 = vadd.f32 %v6945, %v7248
        %v7250 = vpop.f32.mrf.mxu0
        %7251 = vdwg.mxu0
        %v7252 = vxor.u32 %v7104, 2147483648
        %v7253 = vxor.u32 %v7109, 2147483648
        %v7254 = vxor.u32 %v7114, 2147483648
        %v7255 = vxor.u32 %v7119, 2147483648
        %v7256 = vxor.u32 %v7124, 2147483648
        %v7257 = vxor.u32 %v7129, 2147483648
        %v7258 = vxor.u32 %v7134, 2147483648
        %v7259 = vxor.u32 %v7139, 2147483648
        %v7260 = vxor.u32 %v7144, 2147483648
        %v7261 = vxor.u32 %v7149, 2147483648
        %v7262 = vxor.u32 %v7154, 2147483648
        %v7263 = vxor.u32 %v7159, 2147483648
        %v7264 = vxor.u32 %v7164, 2147483648
        %v7265 = vxor.u32 %v7169, 2147483648
        %v7266 = vxor.u32 %v7174, 2147483648
        %v7267 = vxor.u32 %v7179, 2147483648
        %v7268 = vxor.u32 %v7184, 2147483648
        %v7269 = vxor.u32 %v7189, 2147483648
        %v7270 = vxor.u32 %v7194, 2147483648
        %v7271 = vxor.u32 %v7199, 2147483648
        %v7272 = vxor.u32 %v7204, 2147483648
        %v7273 = vxor.u32 %v7209, 2147483648
        %v7274 = vxor.u32 %v7214, 2147483648
        %v7275 = vxor.u32 %v7219, 2147483648
        %v7276 = vxor.u32 %v7224, 2147483648
        %v7277 = vxor.u32 %v7229, 2147483648
        %v7278 = vxor.u32 %v7234, 2147483648
        %v7279 = vxor.u32 %v7239, 2147483648
        %v7280 = vxor.u32 %v7244, 2147483648
        %v7281 = vxor.u32 %v7249, 2147483648
        %v7282 = vmul.f32 %v7252, 1.442695
        %v7283 = vpow.pop %v7282
        %v7284 = vmul.f32 %v7253, 1.442695
        %v7285 = vpow.pop %v7284
        %v7286 = vmul.f32 %v7254, 1.442695
        %v7287 = vpow.pop %v7286
        %v7288 = vmul.f32 %v7255, 1.442695
        %v7289 = vpow.pop %v7288
        %v7290 = vmul.f32 %v7256, 1.442695
        %v7291 = vpow.pop %v7290
        %v7292 = vmul.f32 %v7257, 1.442695
        %v7293 = vpow.pop %v7292
        %v7294 = vmul.f32 %v7258, 1.442695
        %v7295 = vpow.pop %v7294
        %v7296 = vmul.f32 %v7259, 1.442695
        %v7297 = vpow.pop %v7296
        %v7298 = vmul.f32 %v7260, 1.442695
        %v7299 = vpow.pop %v7298
        %v7300 = vmul.f32 %v7261, 1.442695
        %v7301 = vpow.pop %v7300
        %v7302 = vmul.f32 %v7262, 1.442695
        %v7303 = vpow.pop %v7302
        %v7304 = vmul.f32 %v7263, 1.442695
        %v7305 = vpow.pop %v7304
        %v7306 = vmul.f32 %v7264, 1.442695
        %v7307 = vpow.pop %v7306
        %v7308 = vmul.f32 %v7265, 1.442695
        %v7309 = vpow.pop %v7308
        %v7310 = vmul.f32 %v7266, 1.442695
        %v7311 = vpow.pop %v7310
        %v7312 = vmul.f32 %v7267, 1.442695
        %v7313 = vpow.pop %v7312
        %v7314 = vmul.f32 %v7268, 1.442695
        %v7315 = vpow.pop %v7314
        %v7316 = vmul.f32 %v7269, 1.442695
        %v7317 = vpow.pop %v7316
        %v7318 = vmul.f32 %v7270, 1.442695
        %v7319 = vpow.pop %v7318
        %v7320 = vmul.f32 %v7271, 1.442695
        %v7321 = vpow.pop %v7320
        %v7322 = vmul.f32 %v7272, 1.442695
        %v7323 = vpow.pop %v7322
        %v7324 = vmul.f32 %v7273, 1.442695
        %v7325 = vpow.pop %v7324
        %v7326 = vmul.f32 %v7274, 1.442695
        %v7327 = vpow.pop %v7326
        %v7328 = vmul.f32 %v7275, 1.442695
        %v7329 = vpow.pop %v7328
        %v7330 = vmul.f32 %v7276, 1.442695
        %v7331 = vpow.pop %v7330
        %v7332 = vmul.f32 %v7277, 1.442695
        %v7333 = vpow.pop %v7332
        %v7334 = vmul.f32 %v7278, 1.442695
        %v7335 = vpow.pop %v7334
        %v7336 = vmul.f32 %v7279, 1.442695
        %v7337 = vpow.pop %v7336
        %v7338 = vmul.f32 %v7280, 1.442695
        %v7339 = vpow.pop %v7338
        %v7340 = vmul.f32 %v7281, 1.442695
        %v7341 = vpow.pop %v7340
        %v7342 = vadd.f32 %v7283, 1.0
        %v7343 = vadd.f32 %v7285, 1.0
        %v7344 = vadd.f32 %v7287, 1.0
        %v7345 = vadd.f32 %v7289, 1.0
        %v7346 = vadd.f32 %v7291, 1.0
        %v7347 = vadd.f32 %v7293, 1.0
        %v7348 = vadd.f32 %v7295, 1.0
        %v7349 = vadd.f32 %v7297, 1.0
        %v7350 = vadd.f32 %v7299, 1.0
        %v7351 = vadd.f32 %v7301, 1.0
        %v7352 = vadd.f32 %v7303, 1.0
        %v7353 = vadd.f32 %v7305, 1.0
        %v7354 = vadd.f32 %v7307, 1.0
        %v7355 = vadd.f32 %v7309, 1.0
        %v7356 = vadd.f32 %v7311, 1.0
        %v7357 = vadd.f32 %v7313, 1.0
        %v7358 = vadd.f32 %v7315, 1.0
        %v7359 = vadd.f32 %v7317, 1.0
        %v7360 = vadd.f32 %v7319, 1.0
        %v7361 = vadd.f32 %v7321, 1.0
        %v7362 = vadd.f32 %v7323, 1.0
        %v7363 = vadd.f32 %v7325, 1.0
        %v7364 = vadd.f32 %v7327, 1.0
        %v7365 = vadd.f32 %v7329, 1.0
        %v7366 = vadd.f32 %v7331, 1.0
        %v7367 = vadd.f32 %v7333, 1.0
        %v7368 = vadd.f32 %v7335, 1.0
        %v7369 = vadd.f32 %v7337, 1.0
        %v7370 = vadd.f32 %v7339, 1.0
        %v7371 = vadd.f32 %v7341, 1.0
        %v7372 = vrcp.pop %v7342
        %v7373 = vmul.f32 1.0, %v7372
        %v7374 = vrcp.pop %v7343
        %v7375 = vmul.f32 1.0, %v7374
        %v7376 = vrcp.pop %v7344
        %v7377 = vmul.f32 1.0, %v7376
        %v7378 = vrcp.pop %v7345
        %v7379 = vmul.f32 1.0, %v7378
        %v7380 = vrcp.pop %v7346
        %v7381 = vmul.f32 1.0, %v7380
        %v7382 = vrcp.pop %v7347
        %v7383 = vmul.f32 1.0, %v7382
        %v7384 = vrcp.pop %v7348
        %v7385 = vmul.f32 1.0, %v7384
        %v7386 = vrcp.pop %v7349
        %v7387 = vmul.f32 1.0, %v7386
        %v7388 = vrcp.pop %v7350
        %v7389 = vmul.f32 1.0, %v7388
        %v7390 = vrcp.pop %v7351
        %v7391 = vmul.f32 1.0, %v7390
        %v7392 = vrcp.pop %v7352
        %v7393 = vmul.f32 1.0, %v7392
        %v7394 = vrcp.pop %v7353
        %v7395 = vmul.f32 1.0, %v7394
        %v7396 = vrcp.pop %v7354
        %v7397 = vmul.f32 1.0, %v7396
        %v7398 = vrcp.pop %v7355
        %v7399 = vmul.f32 1.0, %v7398
        %v7400 = vrcp.pop %v7356
        %v7401 = vmul.f32 1.0, %v7400
        %v7402 = vrcp.pop %v7357
        %v7403 = vmul.f32 1.0, %v7402
        %v7404 = vrcp.pop %v7358
        %v7405 = vmul.f32 1.0, %v7404
        %v7406 = vrcp.pop %v7359
        %v7407 = vmul.f32 1.0, %v7406
        %v7408 = vrcp.pop %v7360
        %v7409 = vmul.f32 1.0, %v7408
        %v7410 = vrcp.pop %v7361
        %v7411 = vmul.f32 1.0, %v7410
        %v7412 = vrcp.pop %v7362
        %v7413 = vmul.f32 1.0, %v7412
        %v7414 = vrcp.pop %v7363
        %v7415 = vmul.f32 1.0, %v7414
        %v7416 = vrcp.pop %v7364
        %v7417 = vmul.f32 1.0, %v7416
        %v7418 = vrcp.pop %v7365
        %v7419 = vmul.f32 1.0, %v7418
        %v7420 = vrcp.pop %v7366
        %v7421 = vmul.f32 1.0, %v7420
        %v7422 = vrcp.pop %v7367
        %v7423 = vmul.f32 1.0, %v7422
        %v7424 = vrcp.pop %v7368
        %v7425 = vmul.f32 1.0, %v7424
        %v7426 = vrcp.pop %v7369
        %v7427 = vmul.f32 1.0, %v7426
        %v7428 = vrcp.pop %v7370
        %v7429 = vmul.f32 1.0, %v7428
        %v7430 = vrcp.pop %v7371
        %v7431 = vmul.f32 1.0, %v7430
        %v7432 = vmul.f32 %v7104, %v7373
        %v7433 = vmul.f32 %v7109, %v7375
        %v7434 = vmul.f32 %v7114, %v7377
        %v7435 = vmul.f32 %v7119, %v7379
        %v7436 = vmul.f32 %v7124, %v7381
        %v7437 = vmul.f32 %v7129, %v7383
        %v7438 = vmul.f32 %v7134, %v7385
        %v7439 = vmul.f32 %v7139, %v7387
        %v7440 = vmul.f32 %v7144, %v7389
        %v7441 = vmul.f32 %v7149, %v7391
        %v7442 = vmul.f32 %v7154, %v7393
        %v7443 = vmul.f32 %v7159, %v7395
        %v7444 = vmul.f32 %v7164, %v7397
        %v7445 = vmul.f32 %v7169, %v7399
        %v7446 = vmul.f32 %v7174, %v7401
        %v7447 = vmul.f32 %v7179, %v7403
        %v7448 = vmul.f32 %v7184, %v7405
        %v7449 = vmul.f32 %v7189, %v7407
        %v7450 = vmul.f32 %v7194, %v7409
        %v7451 = vmul.f32 %v7199, %v7411
        %v7452 = vmul.f32 %v7204, %v7413
        %v7453 = vmul.f32 %v7209, %v7415
        %v7454 = vmul.f32 %v7214, %v7417
        %v7455 = vmul.f32 %v7219, %v7419
        %v7456 = vmul.f32 %v7224, %v7421
        %v7457 = vmul.f32 %v7229, %v7423
        %v7458 = vmul.f32 %v7234, %v7425
        %v7459 = vmul.f32 %v7239, %v7427
        %v7460 = vmul.f32 %v7244, %v7429
        %v7461 = vmul.f32 %v7249, %v7431
        %7462 = vmatprep.subr.mxu0 0.0
        %7463 = vmatpush1.msra.mxu0 %v7447
        %7464 = vmatprep.subr.mxu0 0.0
        %7465 = vmatpush1.msra.mxu0 %v7446
        %7466 = vmatprep.subr.mxu0 0.0
        %7467 = vmatpush1.msra.mxu0 %v7445
        %7468 = vmatprep.subr.mxu0 0.0
        %7469 = vmatpush1.msra.mxu0 %v7444
        %7470 = vmatprep.subr.mxu0 0.0
        %7471 = vmatpush1.msra.mxu0 %v7443
        %7472 = vmatprep.subr.mxu0 0.0
        %7473 = vmatpush1.msra.mxu0 %v7442
        %7474 = vmatprep.subr.mxu0 0.0
        %7475 = vmatpush1.msra.mxu0 %v7441
        %7476 = vmatprep.subr.mxu0 0.0
        %7477 = vmatpush1.msra.mxu0 %v7440
        %7478 = vmatprep.subr.mxu0 0.0
        %7479 = vmatpush1.msra.mxu0 %v7439
        %7480 = vmatprep.subr.mxu0 0.0
        %7481 = vmatpush1.msra.mxu0 %v7438
        %7482 = vmatprep.subr.mxu0 0.0
        %7483 = vmatpush1.msra.mxu0 %v7437
        %7484 = vmatprep.subr.mxu0 0.0
        %7485 = vmatpush1.msra.mxu0 %v7436
        %7486 = vmatprep.subr.mxu0 0.0
        %7487 = vmatpush1.msra.mxu0 %v7435
        %7488 = vmatprep.subr.mxu0 0.0
        %7489 = vmatpush1.msra.mxu0 %v7434
        %7490 = vmatprep.subr.mxu0 0.0
        %7491 = vmatpush1.msra.mxu0 %v7433
        %7492 = vmatprep.subr.mxu0 0.0
        %7493 = vmatpush1.msra.mxu0 %v7432
        %7494 = vmatprep.subr.mxu0 0.0
        %7495 = vmatpush2.msra.mxu0 0.0
        %7496 = vmatprep.subr.mxu0 0.0
        %7497 = vmatpush2.msra.mxu0 0.0
        %7498 = vmatprep.subr.mxu0 0.0
        %7499 = vmatpush2.msra.mxu0 %v7461
        %7500 = vmatprep.subr.mxu0 0.0
        %7501 = vmatpush2.msra.mxu0 %v7460
        %7502 = vmatprep.subr.mxu0 0.0
        %7503 = vmatpush2.msra.mxu0 %v7459
        %7504 = vmatprep.subr.mxu0 0.0
        %7505 = vmatpush2.msra.mxu0 %v7458
        %7506 = vmatprep.subr.mxu0 0.0
        %7507 = vmatpush2.msra.mxu0 %v7457
        %7508 = vmatprep.subr.mxu0 0.0
        %7509 = vmatpush2.msra.mxu0 %v7456
        %7510 = vmatprep.subr.mxu0 0.0
        %7511 = vmatpush2.msra.mxu0 %v7455
        %7512 = vmatprep.subr.mxu0 0.0
        %7513 = vmatpush2.msra.mxu0 %v7454
        %7514 = vmatprep.subr.mxu0 0.0
        %7515 = vmatpush2.msra.mxu0 %v7453
        %7516 = vmatprep.subr.mxu0 0.0
        %7517 = vmatpush2.msra.mxu0 %v7452
        %7518 = vmatprep.subr.mxu0 0.0
        %7519 = vmatpush2.msra.mxu0 %v7451
        %7520 = vmatprep.subr.mxu0 0.0
        %7521 = vmatpush2.msra.mxu0 %v7450
        %7522 = vmatprep.subr.mxu0 0.0
        %7523 = vmatpush2.msra.mxu0 %v7449
        %7524 = vmatprep.subr.mxu0 0.0
        %7525 = vmatpush2.msra.mxu0 %v7448
        %7526 = vmatprep.mubr.f32.mxu0 %v2737
        %7527 = vmatmul.mubr.f32.gmra.mxu0 %v784
        %v7528 = vpop.f32.mrf.mxu0
        %v7529 = vadd.f32 0.0, %v7528
        %v7530 = vpop.f32.mrf.mxu0
        %7531 = vmatprep.mubr.f32.mxu0 %v2740
        %7532 = vmatmul.mubr.f32.gmra.mxu0 %v786
        %v7533 = vpop.f32.mrf.mxu0
        %v7534 = vadd.f32 0.0, %v7533
        %v7535 = vpop.f32.mrf.mxu0
        %7536 = vdwg.mxu0
        %7539 = vrot.lane.b32.xlu0 %v7529, 32
        %v7540 = vpop.permute.xlu0 %7539
        %7541 = vrot.lane.b32.xlu0 %v7534, 32
        %v7542 = vpop.permute.xlu0 %7541
        %v7545 = vsel %vm794, %v6185, %v7540
        %v7546 = vsel %vm794, %v6186, %v7542
        %v7547 = vsel %vm2833, %v7545, %v2826
        %v7548 = vsel %vm2833, %v7546, %v2828
        %v7549 = vsel %vm2836, %v7547, 1.0
        %v7550 = vsel %vm2836, %v7548, 1.0
        %s7551 = scalar_lea.vmem %s11, 240
        %v7552 = vld [vmem:[%s7551] sm:$0xff]
        %v7553 = vld [vmem:[%s7551 + $0x8] sm:$0xff]
        %v7554 = vld [vmem:[%s7551 + $0x10] sm:$0xff]
        %v7555 = vld [vmem:[%s7551 + $0x18] sm:$0xff]
        %v7556 = vld [vmem:[%s7551 + $0x20] sm:$0xff]
        %v7557 = vld [vmem:[%s7551 + $0x28] sm:$0xff]
        %v7558 = vld [vmem:[%s7551 + $0x30] sm:$0xff]
        %v7559 = vld [vmem:[%s7551 + $0x38] sm:$0xff]
        %v7560 = vld [vmem:[%s7551 + $0x40] sm:$0xff]
        %v7561 = vld [vmem:[%s7551 + $0x48] sm:$0x1]
        %v7563 = vsel %vm2849, %v7549, 0
        %v7566 = vsel %vm2849, %v7550, 0
        %v7569 = vsel %vm2856, %v7561, 0
        %7571 = vmatprep.subr.mxu0 0.0
        %7572 = vmatpush1.msra.mxu0 0.0
        %7573 = vmatprep.subr.mxu0 0.0
        %7574 = vmatpush1.msra.mxu0 0.0
        %7575 = vmatprep.subr.mxu0 0.0
        %7576 = vmatpush1.msra.mxu0 0.0
        %7577 = vmatprep.subr.mxu0 0.0
        %7578 = vmatpush1.msra.mxu0 0.0
        %7579 = vmatprep.subr.mxu0 0.0
        %7580 = vmatpush1.msra.mxu0 0.0
        %7581 = vmatprep.subr.mxu0 0.0
        %7582 = vmatpush1.msra.mxu0 0.0
        %7583 = vmatprep.subr.mxu0 0.0
        %7584 = vmatpush1.msra.mxu0 %v7569
        %7585 = vmatprep.subr.mxu0 0.0
        %7586 = vmatpush1.msra.mxu0 %v7560
        %7587 = vmatprep.subr.mxu0 0.0
        %7588 = vmatpush1.msra.mxu0 %v7559
        %7589 = vmatprep.subr.mxu0 0.0
        %7590 = vmatpush1.msra.mxu0 %v7558
        %7591 = vmatprep.subr.mxu0 0.0
        %7592 = vmatpush1.msra.mxu0 %v7557
        %7593 = vmatprep.subr.mxu0 0.0
        %7594 = vmatpush1.msra.mxu0 %v7556
        %7595 = vmatprep.subr.mxu0 0.0
        %7596 = vmatpush1.msra.mxu0 %v7555
        %7597 = vmatprep.subr.mxu0 0.0
        %7598 = vmatpush1.msra.mxu0 %v7554
        %7599 = vmatprep.subr.mxu0 0.0
        %7600 = vmatpush1.msra.mxu0 %v7553
        %7601 = vmatprep.subr.mxu0 0.0
        %7602 = vmatpush1.msra.mxu0 %v7552
        %7603 = vmatprep.subr.mxu0 0.0
        %7604 = vmatpush2.msra.mxu0 0.0
        %7605 = vmatprep.subr.mxu0 0.0
        %7606 = vmatpush2.msra.mxu0 0.0
        %7607 = vmatprep.subr.mxu0 0.0
        %7608 = vmatpush2.msra.mxu0 0.0
        %7609 = vmatprep.subr.mxu0 0.0
        %7610 = vmatpush2.msra.mxu0 0.0
        %7611 = vmatprep.subr.mxu0 0.0
        %7612 = vmatpush2.msra.mxu0 0.0
        %7613 = vmatprep.subr.mxu0 0.0
        %7614 = vmatpush2.msra.mxu0 0.0
        %7615 = vmatprep.subr.mxu0 0.0
        %7616 = vmatpush2.msra.mxu0 0.0
        %7617 = vmatprep.subr.mxu0 0.0
        %7618 = vmatpush2.msra.mxu0 0.0
        %7619 = vmatprep.subr.mxu0 0.0
        %7620 = vmatpush2.msra.mxu0 0.0
        %7621 = vmatprep.subr.mxu0 0.0
        %7622 = vmatpush2.msra.mxu0 0.0
        %7623 = vmatprep.subr.mxu0 0.0
        %7624 = vmatpush2.msra.mxu0 0.0
        %7625 = vmatprep.subr.mxu0 0.0
        %7626 = vmatpush2.msra.mxu0 0.0
        %7627 = vmatprep.subr.mxu0 0.0
        %7628 = vmatpush2.msra.mxu0 0.0
        %7629 = vmatprep.subr.mxu0 0.0
        %7630 = vmatpush2.msra.mxu0 0.0
        %7631 = vmatprep.subr.mxu0 0.0
        %7632 = vmatpush2.msra.mxu0 0.0
        %7633 = vmatprep.subr.mxu0 0.0
        %7634 = vmatpush2.msra.mxu0 0.0
        %7635 = vmatprep.mubr.f32.mxu0 0.0
        %7636 = vmatmul.mubr.f32.gmra.mxu0 %v7563
        %v7637 = vpop.f32.mrf.mxu0
        %v7638 = vadd.f32 0.0, %v7637
        %v7639 = vpop.f32.mrf.mxu0
        %7640 = vmatprep.mubr.f32.mxu0 0.0
        %7641 = vmatmul.mubr.f32.gmra.mxu0 %v7566
        %v7642 = vpop.f32.mrf.mxu0
        %v7643 = vadd.f32 0.0, %v7642
        %v7644 = vpop.f32.mrf.mxu0
        %7645 = vdwg.mxu0
        %v7646 = vxor.u32 %v7638, 2147483648
        %v7647 = vxor.u32 %v7643, 2147483648
        %v7648 = vmul.f32 %v7646, 1.442695
        %v7649 = vpow.pop %v7648
        %v7650 = vmul.f32 %v7647, 1.442695
        %v7651 = vpow.pop %v7650
        %v7652 = vadd.f32 %v7649, 1.0
        %v7653 = vadd.f32 %v7651, 1.0
        %v7654 = vrcp.pop %v7652
        %v7655 = vmul.f32 1.0, %v7654
        %v7656 = vrcp.pop %v7653
        %v7657 = vmul.f32 1.0, %v7656
        %v7658 = vmul.f32 %v7638, %v7655
        %v7659 = vmul.f32 %v7643, %v7657
        %s7660 = scalar_lea.vmem %s12, 96
        %v7661 = vld [vmem:[%s7660] sm:$0xff]
        %v7662 = vld [vmem:[%s7660 + $0x8] sm:$0xff]
        %v7663 = vld [vmem:[%s7660 + $0x10] sm:$0xff]
        %v7664 = vld [vmem:[%s7660 + $0x18] sm:$0xff]
        %v7666 = vsel %vm794, %v7658, 0
        %v7669 = vsel %vm794, %v7659, 0
        %7671 = vmatprep.subr.mxu0 0.0
        %7672 = vmatpush1.msra.mxu0 0.0
        %7673 = vmatprep.subr.mxu0 0.0
        %7674 = vmatpush1.msra.mxu0 0.0
        %7675 = vmatprep.subr.mxu0 0.0
        %7676 = vmatpush1.msra.mxu0 0.0
        %7677 = vmatprep.subr.mxu0 0.0
        %7678 = vmatpush1.msra.mxu0 0.0
        %7679 = vmatprep.subr.mxu0 0.0
        %7680 = vmatpush1.msra.mxu0 0.0
        %7681 = vmatprep.subr.mxu0 0.0
        %7682 = vmatpush1.msra.mxu0 0.0
        %7683 = vmatprep.subr.mxu0 0.0
        %7684 = vmatpush1.msra.mxu0 0.0
        %7685 = vmatprep.subr.mxu0 0.0
        %7686 = vmatpush1.msra.mxu0 0.0
        %7687 = vmatprep.subr.mxu0 0.0
        %7688 = vmatpush1.msra.mxu0 0.0
        %7689 = vmatprep.subr.mxu0 0.0
        %7690 = vmatpush1.msra.mxu0 0.0
        %7691 = vmatprep.subr.mxu0 0.0
        %7692 = vmatpush1.msra.mxu0 0.0
        %7693 = vmatprep.subr.mxu0 0.0
        %7694 = vmatpush1.msra.mxu0 0.0
        %7695 = vmatprep.subr.mxu0 0.0
        %7696 = vmatpush1.msra.mxu0 %v7664
        %7697 = vmatprep.subr.mxu0 0.0
        %7698 = vmatpush1.msra.mxu0 %v7663
        %7699 = vmatprep.subr.mxu0 0.0
        %7700 = vmatpush1.msra.mxu0 %v7662
        %7701 = vmatprep.subr.mxu0 0.0
        %7702 = vmatpush1.msra.mxu0 %v7661
        %7703 = vmatprep.subr.mxu0 0.0
        %7704 = vmatpush2.msra.mxu0 0.0
        %7705 = vmatprep.subr.mxu0 0.0
        %7706 = vmatpush2.msra.mxu0 0.0
        %7707 = vmatprep.subr.mxu0 0.0
        %7708 = vmatpush2.msra.mxu0 0.0
        %7709 = vmatprep.subr.mxu0 0.0
        %7710 = vmatpush2.msra.mxu0 0.0
        %7711 = vmatprep.subr.mxu0 0.0
        %7712 = vmatpush2.msra.mxu0 0.0
        %7713 = vmatprep.subr.mxu0 0.0
        %7714 = vmatpush2.msra.mxu0 0.0
        %7715 = vmatprep.subr.mxu0 0.0
        %7716 = vmatpush2.msra.mxu0 0.0
        %7717 = vmatprep.subr.mxu0 0.0
        %7718 = vmatpush2.msra.mxu0 0.0
        %7719 = vmatprep.subr.mxu0 0.0
        %7720 = vmatpush2.msra.mxu0 0.0
        %7721 = vmatprep.subr.mxu0 0.0
        %7722 = vmatpush2.msra.mxu0 0.0
        %7723 = vmatprep.subr.mxu0 0.0
        %7724 = vmatpush2.msra.mxu0 0.0
        %7725 = vmatprep.subr.mxu0 0.0
        %7726 = vmatpush2.msra.mxu0 0.0
        %7727 = vmatprep.subr.mxu0 0.0
        %7728 = vmatpush2.msra.mxu0 0.0
        %7729 = vmatprep.subr.mxu0 0.0
        %7730 = vmatpush2.msra.mxu0 0.0
        %7731 = vmatprep.subr.mxu0 0.0
        %7732 = vmatpush2.msra.mxu0 0.0
        %7733 = vmatprep.subr.mxu0 0.0
        %7734 = vmatpush2.msra.mxu0 0.0
        %7735 = vmatprep.mubr.f32.mxu0 0.0
        %7736 = vmatmul.mubr.f32.gmra.mxu0 %v7666
        %v7737 = vpop.f32.mrf.mxu0
        %v7738 = vadd.f32 0.0, %v7737
        %v7739 = vpop.f32.mrf.mxu0
        %7740 = vmatprep.mubr.f32.mxu0 0.0
        %7741 = vmatmul.mubr.f32.gmra.mxu0 %v7669
        %v7742 = vpop.f32.mrf.mxu0
        %v7743 = vadd.f32 0.0, %v7742
        %v7744 = vpop.f32.mrf.mxu0
        %7745 = vdwg.mxu0
        %v7746 = vadd.f32 %v6185, %v7738
        %v7747 = vadd.f32 %v6186, %v7743
        %s7748 = scalar_lea.vmem %s13, 3
        %v7749 = vld [vmem:[%s7748] sm:$0x1]
        %v7751 = vlaneseq
        %v7752 = vshrl.u32 %v7751, 7
        %v7753 = vsub.s32 0, %v7752
        %v7754 = vrot.slane %v7749, %v7753
        %v7756 = vadd.f32 %v7746, %v7754
        %v7757 = vadd.f32 %v7747, %v7754
        %v7758 = vld [vmem:[%s14] sm:$0xff]
        %v7759 = vld [vmem:[%s14 + $0x8] sm:$0xff]
        %v7760 = vld [vmem:[%s14 + $0x10] sm:$0xff]
        %v7761 = vld [vmem:[%s14 + $0x18] sm:$0xff]
        %v7762 = vld [vmem:[%s15] sm:$0x1]
        %v7764 = vlaneseq
        %v7765 = vshrl.u32 %v7764, 7
        %v7766 = vsub.s32 0, %v7765
        %v7767 = vrot.slane %v7762, %v7766
        %v7770 = vsel %vm794, %v7756, 0
        %v7773 = vsel %vm794, %v7757, 0
        %7775 = vmatprep.subr.mxu0 0.0
        %7776 = vmatpush1.msra.mxu0 0.0
        %7777 = vmatprep.subr.mxu0 0.0
        %7778 = vmatpush1.msra.mxu0 0.0
        %7779 = vmatprep.subr.mxu0 0.0
        %7780 = vmatpush1.msra.mxu0 0.0
        %7781 = vmatprep.subr.mxu0 0.0
        %7782 = vmatpush1.msra.mxu0 0.0
        %7783 = vmatprep.subr.mxu0 0.0
        %7784 = vmatpush1.msra.mxu0 0.0
        %7785 = vmatprep.subr.mxu0 0.0
        %7786 = vmatpush1.msra.mxu0 0.0
        %7787 = vmatprep.subr.mxu0 0.0
        %7788 = vmatpush1.msra.mxu0 0.0
        %7789 = vmatprep.subr.mxu0 0.0
        %7790 = vmatpush1.msra.mxu0 0.0
        %7791 = vmatprep.subr.mxu0 0.0
        %7792 = vmatpush1.msra.mxu0 0.0
        %7793 = vmatprep.subr.mxu0 0.0
        %7794 = vmatpush1.msra.mxu0 0.0
        %7795 = vmatprep.subr.mxu0 0.0
        %7796 = vmatpush1.msra.mxu0 0.0
        %7797 = vmatprep.subr.mxu0 0.0
        %7798 = vmatpush1.msra.mxu0 0.0
        %7799 = vmatprep.subr.mxu0 0.0
        %7800 = vmatpush1.msra.mxu0 %v7761
        %7801 = vmatprep.subr.mxu0 0.0
        %7802 = vmatpush1.msra.mxu0 %v7760
        %7803 = vmatprep.subr.mxu0 0.0
        %7804 = vmatpush1.msra.mxu0 %v7759
        %7805 = vmatprep.subr.mxu0 0.0
        %7806 = vmatpush1.msra.mxu0 %v7758
        %7807 = vmatprep.subr.mxu0 0.0
        %7808 = vmatpush2.msra.mxu0 0.0
        %7809 = vmatprep.subr.mxu0 0.0
        %7810 = vmatpush2.msra.mxu0 0.0
        %7811 = vmatprep.subr.mxu0 0.0
        %7812 = vmatpush2.msra.mxu0 0.0
        %7813 = vmatprep.subr.mxu0 0.0
        %7814 = vmatpush2.msra.mxu0 0.0
        %7815 = vmatprep.subr.mxu0 0.0
        %7816 = vmatpush2.msra.mxu0 0.0
        %7817 = vmatprep.subr.mxu0 0.0
        %7818 = vmatpush2.msra.mxu0 0.0
        %7819 = vmatprep.subr.mxu0 0.0
        %7820 = vmatpush2.msra.mxu0 0.0
        %7821 = vmatprep.subr.mxu0 0.0
        %7822 = vmatpush2.msra.mxu0 0.0
        %7823 = vmatprep.subr.mxu0 0.0
        %7824 = vmatpush2.msra.mxu0 0.0
        %7825 = vmatprep.subr.mxu0 0.0
        %7826 = vmatpush2.msra.mxu0 0.0
        %7827 = vmatprep.subr.mxu0 0.0
        %7828 = vmatpush2.msra.mxu0 0.0
        %7829 = vmatprep.subr.mxu0 0.0
        %7830 = vmatpush2.msra.mxu0 0.0
        %7831 = vmatprep.subr.mxu0 0.0
        %7832 = vmatpush2.msra.mxu0 0.0
        %7833 = vmatprep.subr.mxu0 0.0
        %7834 = vmatpush2.msra.mxu0 0.0
        %7835 = vmatprep.subr.mxu0 0.0
        %7836 = vmatpush2.msra.mxu0 0.0
        %7837 = vmatprep.subr.mxu0 0.0
        %7838 = vmatpush2.msra.mxu0 0.0
        %7839 = vmatprep.mubr.f32.mxu0 0.0
        %7840 = vmatmul.mubr.f32.gmra.mxu0 %v7770
        %v7841 = vpop.f32.mrf.mxu0
        %v7842 = vadd.f32 %v7767, %v7841
        %v7843 = vpop.f32.mrf.mxu0
        %7844 = vmatprep.mubr.f32.mxu0 0.0
        %7845 = vmatmul.mubr.f32.gmra.mxu0 %v7773
        %v7846 = vpop.f32.mrf.mxu0
        %v7847 = vadd.f32 %v7767, %v7846
        %v7848 = vpop.f32.mrf.mxu0
        %7849 = vdwg.mxu0
        %v7850 = vxor.u32 %v7842, 2147483648
        %v7851 = vxor.u32 %v7847, 2147483648
        %v7852 = vmul.f32 %v7850, 1.442695
        %v7853 = vpow.pop %v7852
        %v7854 = vmul.f32 %v7851, 1.442695
        %v7855 = vpow.pop %v7854
        %v7856 = vadd.f32 %v7853, 1.0
        %v7857 = vadd.f32 %v7855, 1.0
        %v7858 = vrcp.pop %v7856
        %v7859 = vmul.f32 1.0, %v7858
        %v7860 = vrcp.pop %v7857
        %v7861 = vmul.f32 1.0, %v7860
        %v7862 = vmul.f32 %v7842, %v7859
        %v7863 = vmul.f32 %v7847, %v7861
        %v7864 = vld [vmem:[%s16] sm:$0xff]
        %v7865 = vld [vmem:[%s16 + $0x8] sm:$0xff]
        %v7866 = vld [vmem:[%s16 + $0x10] sm:$0xff]
        %v7867 = vld [vmem:[%s16 + $0x18] sm:$0xff]
        %v7868 = vld [vmem:[%s17] sm:$0x1]
        %v7870 = vlaneseq
        %v7871 = vshrl.u32 %v7870, 7
        %v7872 = vsub.s32 0, %v7871
        %v7873 = vrot.slane %v7868, %v7872
        %v7876 = vsel %vm794, %v7862, 0
        %v7879 = vsel %vm794, %v7863, 0
        %7881 = vmatprep.subr.mxu0 0.0
        %7882 = vmatpush1.msra.mxu0 0.0
        %7883 = vmatprep.subr.mxu0 0.0
        %7884 = vmatpush1.msra.mxu0 0.0
        %7885 = vmatprep.subr.mxu0 0.0
        %7886 = vmatpush1.msra.mxu0 0.0
        %7887 = vmatprep.subr.mxu0 0.0
        %7888 = vmatpush1.msra.mxu0 0.0
        %7889 = vmatprep.subr.mxu0 0.0
        %7890 = vmatpush1.msra.mxu0 0.0
        %7891 = vmatprep.subr.mxu0 0.0
        %7892 = vmatpush1.msra.mxu0 0.0
        %7893 = vmatprep.subr.mxu0 0.0
        %7894 = vmatpush1.msra.mxu0 0.0
        %7895 = vmatprep.subr.mxu0 0.0
        %7896 = vmatpush1.msra.mxu0 0.0
        %7897 = vmatprep.subr.mxu0 0.0
        %7898 = vmatpush1.msra.mxu0 0.0
        %7899 = vmatprep.subr.mxu0 0.0
        %7900 = vmatpush1.msra.mxu0 0.0
        %7901 = vmatprep.subr.mxu0 0.0
        %7902 = vmatpush1.msra.mxu0 0.0
        %7903 = vmatprep.subr.mxu0 0.0
        %7904 = vmatpush1.msra.mxu0 0.0
        %7905 = vmatprep.subr.mxu0 0.0
        %7906 = vmatpush1.msra.mxu0 %v7867
        %7907 = vmatprep.subr.mxu0 0.0
        %7908 = vmatpush1.msra.mxu0 %v7866
        %7909 = vmatprep.subr.mxu0 0.0
        %7910 = vmatpush1.msra.mxu0 %v7865
        %7911 = vmatprep.subr.mxu0 0.0
        %7912 = vmatpush1.msra.mxu0 %v7864
        %7913 = vmatprep.subr.mxu0 0.0
        %7914 = vmatpush2.msra.mxu0 0.0
        %7915 = vmatprep.subr.mxu0 0.0
        %7916 = vmatpush2.msra.mxu0 0.0
        %7917 = vmatprep.subr.mxu0 0.0
        %7918 = vmatpush2.msra.mxu0 0.0
        %7919 = vmatprep.subr.mxu0 0.0
        %7920 = vmatpush2.msra.mxu0 0.0
        %7921 = vmatprep.subr.mxu0 0.0
        %7922 = vmatpush2.msra.mxu0 0.0
        %7923 = vmatprep.subr.mxu0 0.0
        %7924 = vmatpush2.msra.mxu0 0.0
        %7925 = vmatprep.subr.mxu0 0.0
        %7926 = vmatpush2.msra.mxu0 0.0
        %7927 = vmatprep.subr.mxu0 0.0
        %7928 = vmatpush2.msra.mxu0 0.0
        %7929 = vmatprep.subr.mxu0 0.0
        %7930 = vmatpush2.msra.mxu0 0.0
        %7931 = vmatprep.subr.mxu0 0.0
        %7932 = vmatpush2.msra.mxu0 0.0
        %7933 = vmatprep.subr.mxu0 0.0
        %7934 = vmatpush2.msra.mxu0 0.0
        %7935 = vmatprep.subr.mxu0 0.0
        %7936 = vmatpush2.msra.mxu0 0.0
        %7937 = vmatprep.subr.mxu0 0.0
        %7938 = vmatpush2.msra.mxu0 0.0
        %7939 = vmatprep.subr.mxu0 0.0
        %7940 = vmatpush2.msra.mxu0 0.0
        %7941 = vmatprep.subr.mxu0 0.0
        %7942 = vmatpush2.msra.mxu0 0.0
        %7943 = vmatprep.subr.mxu0 0.0
        %7944 = vmatpush2.msra.mxu0 0.0
        %7945 = vmatprep.mubr.f32.mxu0 0.0
        %7946 = vmatmul.mubr.f32.gmra.mxu0 %v7876
        %v7947 = vpop.f32.mrf.mxu0
        %v7948 = vadd.f32 %v7873, %v7947
        %v7949 = vpop.f32.mrf.mxu0
        %7950 = vmatprep.mubr.f32.mxu0 0.0
        %7951 = vmatmul.mubr.f32.gmra.mxu0 %v7879
        %v7952 = vpop.f32.mrf.mxu0
        %v7953 = vadd.f32 %v7873, %v7952
        %v7954 = vpop.f32.mrf.mxu0
        %7955 = vdwg.mxu0
        %v7956 = vld [vmem:[%s18] sm:$0xff]
        %v7957 = vld [vmem:[%s18 + $0x8] sm:$0xff]
        %v7958 = vld [vmem:[%s18 + $0x10] sm:$0xff]
        %v7959 = vld [vmem:[%s18 + $0x18] sm:$0xff]
        %v7960 = vld [vmem:[%s19] sm:$0x1]
        %v7962 = vlaneseq
        %v7963 = vshrl.u32 %v7962, 7
        %v7964 = vsub.s32 0, %v7963
        %v7965 = vrot.slane %v7960, %v7964
        %v7968 = vsel %vm794, %v7948, 0
        %v7971 = vsel %vm794, %v7953, 0
        %7973 = vmatprep.subr.mxu0 0.0
        %7974 = vmatpush1.msra.mxu0 0.0
        %7975 = vmatprep.subr.mxu0 0.0
        %7976 = vmatpush1.msra.mxu0 0.0
        %7977 = vmatprep.subr.mxu0 0.0
        %7978 = vmatpush1.msra.mxu0 0.0
        %7979 = vmatprep.subr.mxu0 0.0
        %7980 = vmatpush1.msra.mxu0 0.0
        %7981 = vmatprep.subr.mxu0 0.0
        %7982 = vmatpush1.msra.mxu0 0.0
        %7983 = vmatprep.subr.mxu0 0.0
        %7984 = vmatpush1.msra.mxu0 0.0
        %7985 = vmatprep.subr.mxu0 0.0
        %7986 = vmatpush1.msra.mxu0 0.0
        %7987 = vmatprep.subr.mxu0 0.0
        %7988 = vmatpush1.msra.mxu0 0.0
        %7989 = vmatprep.subr.mxu0 0.0
        %7990 = vmatpush1.msra.mxu0 0.0
        %7991 = vmatprep.subr.mxu0 0.0
        %7992 = vmatpush1.msra.mxu0 0.0
        %7993 = vmatprep.subr.mxu0 0.0
        %7994 = vmatpush1.msra.mxu0 0.0
        %7995 = vmatprep.subr.mxu0 0.0
        %7996 = vmatpush1.msra.mxu0 0.0
        %7997 = vmatprep.subr.mxu0 0.0
        %7998 = vmatpush1.msra.mxu0 %v7959
        %7999 = vmatprep.subr.mxu0 0.0
        %8000 = vmatpush1.msra.mxu0 %v7958
        %8001 = vmatprep.subr.mxu0 0.0
        %8002 = vmatpush1.msra.mxu0 %v7957
        %8003 = vmatprep.subr.mxu0 0.0
        %8004 = vmatpush1.msra.mxu0 %v7956
        %8005 = vmatprep.subr.mxu0 0.0
        %8006 = vmatpush2.msra.mxu0 0.0
        %8007 = vmatprep.subr.mxu0 0.0
        %8008 = vmatpush2.msra.mxu0 0.0
        %8009 = vmatprep.subr.mxu0 0.0
        %8010 = vmatpush2.msra.mxu0 0.0
        %8011 = vmatprep.subr.mxu0 0.0
        %8012 = vmatpush2.msra.mxu0 0.0
        %8013 = vmatprep.subr.mxu0 0.0
        %8014 = vmatpush2.msra.mxu0 0.0
        %8015 = vmatprep.subr.mxu0 0.0
        %8016 = vmatpush2.msra.mxu0 0.0
        %8017 = vmatprep.subr.mxu0 0.0
        %8018 = vmatpush2.msra.mxu0 0.0
        %8019 = vmatprep.subr.mxu0 0.0
        %8020 = vmatpush2.msra.mxu0 0.0
        %8021 = vmatprep.subr.mxu0 0.0
        %8022 = vmatpush2.msra.mxu0 0.0
        %8023 = vmatprep.subr.mxu0 0.0
        %8024 = vmatpush2.msra.mxu0 0.0
        %8025 = vmatprep.subr.mxu0 0.0
        %8026 = vmatpush2.msra.mxu0 0.0
        %8027 = vmatprep.subr.mxu0 0.0
        %8028 = vmatpush2.msra.mxu0 0.0
        %8029 = vmatprep.subr.mxu0 0.0
        %8030 = vmatpush2.msra.mxu0 0.0
        %8031 = vmatprep.subr.mxu0 0.0
        %8032 = vmatpush2.msra.mxu0 0.0
        %8033 = vmatprep.subr.mxu0 0.0
        %8034 = vmatpush2.msra.mxu0 0.0
        %8035 = vmatprep.subr.mxu0 0.0
        %8036 = vmatpush2.msra.mxu0 0.0
        %8037 = vmatprep.mubr.f32.mxu0 0.0
        %8038 = vmatmul.mubr.f32.gmra.mxu0 %v7968
        %v8039 = vpop.f32.mrf.mxu0
        %v8040 = vadd.f32 %v7965, %v8039
        %v8041 = vpop.f32.mrf.mxu0
        %8042 = vmatprep.mubr.f32.mxu0 0.0
        %8043 = vmatmul.mubr.f32.gmra.mxu0 %v7971
        %v8044 = vpop.f32.mrf.mxu0
        %v8045 = vadd.f32 %v7965, %v8044
        %v8046 = vpop.f32.mrf.mxu0
        %8047 = vdwg.mxu0
        %v8048 = vxor.u32 %v8040, 2147483648
        %v8049 = vxor.u32 %v8045, 2147483648
        %v8050 = vmul.f32 %v8048, 1.442695
        %v8051 = vpow.pop %v8050
        %v8052 = vmul.f32 %v8049, 1.442695
        %v8053 = vpow.pop %v8052
        %v8054 = vadd.f32 %v8051, 1.0
        %v8055 = vadd.f32 %v8053, 1.0
        %v8056 = vrcp.pop %v8054
        %v8057 = vmul.f32 1.0, %v8056
        %v8058 = vrcp.pop %v8055
        %v8059 = vmul.f32 1.0, %v8058
        %v8060 = vmul.f32 %v8040, %v8057
        %v8061 = vmul.f32 %v8045, %v8059
        %v8062 = vld [vmem:[%s20] sm:$0xff]
        %v8063 = vld [vmem:[%s20 + $0x8] sm:$0xff]
        %v8064 = vld [vmem:[%s20 + $0x10] sm:$0xff]
        %v8065 = vld [vmem:[%s20 + $0x18] sm:$0xff]
        %v8066 = vld [vmem:[%s21] sm:$0x1]
        %v8068 = vlaneseq
        %v8069 = vshrl.u32 %v8068, 7
        %v8070 = vsub.s32 0, %v8069
        %v8071 = vrot.slane %v8066, %v8070
        %v8074 = vsel %vm794, %v8060, 0
        %v8077 = vsel %vm794, %v8061, 0
        %8079 = vmatprep.subr.mxu0 0.0
        %8080 = vmatpush1.msra.mxu0 0.0
        %8081 = vmatprep.subr.mxu0 0.0
        %8082 = vmatpush1.msra.mxu0 0.0
        %8083 = vmatprep.subr.mxu0 0.0
        %8084 = vmatpush1.msra.mxu0 0.0
        %8085 = vmatprep.subr.mxu0 0.0
        %8086 = vmatpush1.msra.mxu0 0.0
        %8087 = vmatprep.subr.mxu0 0.0
        %8088 = vmatpush1.msra.mxu0 0.0
        %8089 = vmatprep.subr.mxu0 0.0
        %8090 = vmatpush1.msra.mxu0 0.0
        %8091 = vmatprep.subr.mxu0 0.0
        %8092 = vmatpush1.msra.mxu0 0.0
        %8093 = vmatprep.subr.mxu0 0.0
        %8094 = vmatpush1.msra.mxu0 0.0
        %8095 = vmatprep.subr.mxu0 0.0
        %8096 = vmatpush1.msra.mxu0 0.0
        %8097 = vmatprep.subr.mxu0 0.0
        %8098 = vmatpush1.msra.mxu0 0.0
        %8099 = vmatprep.subr.mxu0 0.0
        %8100 = vmatpush1.msra.mxu0 0.0
        %8101 = vmatprep.subr.mxu0 0.0
        %8102 = vmatpush1.msra.mxu0 0.0
        %8103 = vmatprep.subr.mxu0 0.0
        %8104 = vmatpush1.msra.mxu0 %v8065
        %8105 = vmatprep.subr.mxu0 0.0
        %8106 = vmatpush1.msra.mxu0 %v8064
        %8107 = vmatprep.subr.mxu0 0.0
        %8108 = vmatpush1.msra.mxu0 %v8063
        %8109 = vmatprep.subr.mxu0 0.0
        %8110 = vmatpush1.msra.mxu0 %v8062
        %8111 = vmatprep.subr.mxu0 0.0
        %8112 = vmatpush2.msra.mxu0 0.0
        %8113 = vmatprep.subr.mxu0 0.0
        %8114 = vmatpush2.msra.mxu0 0.0
        %8115 = vmatprep.subr.mxu0 0.0
        %8116 = vmatpush2.msra.mxu0 0.0
        %8117 = vmatprep.subr.mxu0 0.0
        %8118 = vmatpush2.msra.mxu0 0.0
        %8119 = vmatprep.subr.mxu0 0.0
        %8120 = vmatpush2.msra.mxu0 0.0
        %8121 = vmatprep.subr.mxu0 0.0
        %8122 = vmatpush2.msra.mxu0 0.0
        %8123 = vmatprep.subr.mxu0 0.0
        %8124 = vmatpush2.msra.mxu0 0.0
        %8125 = vmatprep.subr.mxu0 0.0
        %8126 = vmatpush2.msra.mxu0 0.0
        %8127 = vmatprep.subr.mxu0 0.0
        %8128 = vmatpush2.msra.mxu0 0.0
        %8129 = vmatprep.subr.mxu0 0.0
        %8130 = vmatpush2.msra.mxu0 0.0
        %8131 = vmatprep.subr.mxu0 0.0
        %8132 = vmatpush2.msra.mxu0 0.0
        %8133 = vmatprep.subr.mxu0 0.0
        %8134 = vmatpush2.msra.mxu0 0.0
        %8135 = vmatprep.subr.mxu0 0.0
        %8136 = vmatpush2.msra.mxu0 0.0
        %8137 = vmatprep.subr.mxu0 0.0
        %8138 = vmatpush2.msra.mxu0 0.0
        %8139 = vmatprep.subr.mxu0 0.0
        %8140 = vmatpush2.msra.mxu0 0.0
        %8141 = vmatprep.subr.mxu0 0.0
        %8142 = vmatpush2.msra.mxu0 0.0
        %8143 = vmatprep.mubr.f32.mxu0 0.0
        %8144 = vmatmul.mubr.f32.gmra.mxu0 %v8074
        %v8145 = vpop.f32.mrf.mxu0
        %v8146 = vadd.f32 %v8071, %v8145
        %v8147 = vpop.f32.mrf.mxu0
        %8148 = vmatprep.mubr.f32.mxu0 0.0
        %8149 = vmatmul.mubr.f32.gmra.mxu0 %v8077
        %v8150 = vpop.f32.mrf.mxu0
        %v8151 = vadd.f32 %v8071, %v8150
        %v8152 = vpop.f32.mrf.mxu0
        %8153 = vdwg.mxu0
        %vm8154 = vcmask 171008
        %8155 = vst.msk [vmem:[%s706] sm:$0xff] %vm8154, %v8146
        %8156 = vst.msk [vmem:[%s706 + $0x8] sm:$0xff] %vm8154, %v8151
        %s8157 = sand.u32 %s521, 1
        %s8158 = scalar_lea.sflag [#allocation4], %s8157
        %s8159 = sand.u32 %s521, 1
        %s8160 = smul.addr %s8159, 16
        %s8161 = scalar_lea.vmem [#allocation3], %s8160
        // Predicated region
        $region109: #{tpu_custom_call.1} parent=107 // pred_check
          %p8162 = pneg %p531
        $region110: #{tpu_custom_call.1} parent=107 // pred_check_branch
          %8164 = sbr.rel (%p8162) target = $region112
        $region111: #{tpu_custom_call.1} parent=107 // pred_region
          %s8166 = ssub.s32 256, 256
          %8167 = vsyncadd %s8158, %s8166
          %s8168 = smul.addr %s36, 2
          %s8169 = smul.addr %s8168, 128
          %s8170 = scalar_lea.hbm %s22, %s8169
          %s8171 = sshll.u32 %s8161, 4
          %s8172 = int_to_ptr.vmem [resolvable:$true] %s8171
          %8177 = dma.vmem_to_hbm [thread:$0]  %s8172, 256, %s8170, %s8158, 128, 128, 8
        $region112: #{tpu_custom_call.1} parent=107 // pred_fallthru
          _
      $region108: #{tpu_custom_call.1} parent=5 // pred_fallthru
        _
      %p8178 = scmp.le.s32.totalorder 2, %s31
      // Predicated region
      $region113: #{tpu_custom_call.1} parent=5 // pred_check
        %p8179 = pneg %p8178
      $region114: #{tpu_custom_call.1} parent=5 // pred_check_branch
        %8181 = sbr.rel (%p8179) target = $region116
      $region115: #{tpu_custom_call.1} parent=5 // pred_region
        %s8182 = ssub.s32 %s31, 2
        // Predicated region
        $region117: #{tpu_custom_call.1} parent=115 // pred_check
          %p8183 = pneg %p537
        $region118: #{tpu_custom_call.1} parent=115 // pred_check_branch
          %8185 = sbr.rel (%p8183) target = $region120
        $region119: #{tpu_custom_call.1} parent=115 // pred_region
          %s8186 = sand.u32 %s522, 1
          %s8187 = scalar_lea.sflag [#allocation4], %s8186
          %s8188 = sand.u32 %s522, 1
          %s8189 = smul.addr %s8188, 16
          %s8190 = scalar_lea.vmem [#allocation3], %s8189
          %8191 = dma.done %s8187, 256
        $region120: #{tpu_custom_call.1} parent=115 // pred_fallthru
          _
      $region116: #{tpu_custom_call.1} parent=5 // pred_fallthru
        _
    $region6: #{tpu_custom_call.1} parent=1 // loop_footer
      %s35 = sadd.s32 1, %s31
    $region7: #{tpu_custom_call.1} parent=1 // loop_footer_branch
      %30 = sbr.rel target = $region3
    $region8: #{tpu_custom_call.1} parent=1 // loop_exit
      _
    %8192 = vsyncpa [#allocation4], 1
    %s8193 = scalar_lea.sflag [#allocation4], 1
    %8194 = vsyncpa %s8193, 1

</llo_original>
